<compile_context>
chip_gen: v7x
topology: tpu7x:2x2x1
jax: 0.10.0
libtpu: 0.0.40
codegen_flags: <defaults>
</compile_context>

<pallas_src>
import math
from functools import partial

import jax
import jax.numpy as jnp
from jax import lax
from jax.experimental import pallas as pl
from jax.experimental.pallas import tpu as pltpu

EPS = 1e-5                      # nn.LayerNorm default
NEG_INF = -1e30                 # finite causal-mask bias (no inf arithmetic)
MATMUL_DTYPE = jnp.bfloat16     # MXU operand dtype (f32 accumulation)
ACT_DTYPE = jnp.bfloat16        # inter-kernel activation dtype (halves HBM traffic)

# Per-generation VMEM budget: ~75% of physical VMEM leaves headroom for double
# buffers / compiler scratch (~48 MiB on v7x, ~96 MiB on v5e/v6e).
try:
    _VMEM_LIMIT = int(pltpu.get_tpu_info().vmem_capacity_bytes * 3 // 4)
except Exception:  # pragma: no cover - conservative fallback, safe on all gens
    _VMEM_LIMIT = 48 * 1024 * 1024

# Weights never change across grid steps -> request single buffering.  Flipped
# off at runtime if the installed backend rejects BlockSpec.pipeline_mode.
_WEIGHT_SINGLE_BUFFER = True


# ---------------------------------------------------------------------------
# Small helpers
# ---------------------------------------------------------------------------
def _layernorm(x, w, b):
    mean = jnp.mean(x, axis=-1, keepdims=True)
    var = jnp.mean((x - mean) ** 2, axis=-1, keepdims=True)
    return (x - mean) * lax.rsqrt(var + EPS) * w + b


def _gelu_exact(x):
    # PyTorch nn.GELU default = exact erf formulation.
    return 0.5 * x * (1.0 + lax.erf(x * (1.0 / math.sqrt(2.0))))


def _pick_tile(total, target, align):
    """Largest tile <= target that divides `total`; prefers `align`-multiples
    (align 8 for sublanes, 128/256 for MXU-friendly lane extents)."""
    if total <= target:
        return total
    t = (target // align) * align
    while t >= align:
        if total % t == 0:
            return t
        t -= align
    for t in range(min(target, total), 0, -1):   # any divisor (keeps blocks small)
        if total % t == 0:
            return t
    return total


def _weight_spec(shape):
    """BlockSpec for a weight pinned across the whole grid (constant index map).
    Single-buffered when supported so weight VMEM is not doubled."""
    index_map = lambda *_: (0,) * len(shape)
    if _WEIGHT_SINGLE_BUFFER:
        return pl.BlockSpec(shape, index_map, pipeline_mode=pl.Buffered(1))
    return pl.BlockSpec(shape, index_map)


def _cparams(dimension_semantics):
    return pltpu.CompilerParams(dimension_semantics=dimension_semantics,
                                vmem_limit_bytes=_VMEM_LIMIT)


# ---------------------------------------------------------------------------
# Pallas kernels
# ---------------------------------------------------------------------------
def ln_qkv_kernel(num_head, x_ref, ln_w_ref, ln_b_ref, wqkv_ref, bqkv_ref,
                  q_ref, k_ref, v_ref):
    """LayerNorm + fused QKV projection for one (row-tile, batch) block.
    Emits q/k/v directly in the (H, rows, hd) layout the flash kernel reads."""
    x = x_ref[...].astype(jnp.float32)                     # (TR, D)
    TR, D = x.shape
    H = num_head
    hd = D // H

    h = _layernorm(x, ln_w_ref[...], ln_b_ref[...])
    qkv = jnp.dot(h.astype(MATMUL_DTYPE), wqkv_ref[...],
                  preferred_element_type=jnp.float32) + bqkv_ref[...]  # (TR, 3D)

    # Head split in this MXU-bound kernel (its XLU is otherwise idle): one
    # transpose + leading-dim split, no sub-128 lane slicing.
    t = qkv.T.reshape(3 * H, hd, TR)                       # (3H, hd, TR)
    q_ref[...] = jnp.swapaxes(t[:H], 1, 2).astype(q_ref.dtype)          # (H, TR, hd)
    k_ref[...] = jnp.swapaxes(t[H:2 * H], 1, 2).astype(k_ref.dtype)
    v_ref[...] = jnp.swapaxes(t[2 * H:], 1, 2).astype(v_ref.dtype)


def flash_attn_kernel(scale, tq, tk,
                      q_ref, k_ref, v_ref, o_ref, m_scr, l_scr, acc_scr):
    """Flash-style causal attention: grid = (B, H, q-tiles, k-tiles); only a
    (TQ, TK) logits block is live; running m/l/acc persist in VMEM scratch."""
    qi = pl.program_id(2)
    ki = pl.program_id(3)

    @pl.when(ki == 0)
    def _init():
        m_scr[...] = jnp.full_like(m_scr, NEG_INF)
        l_scr[...] = jnp.zeros_like(l_scr)
        acc_scr[...] = jnp.zeros_like(acc_scr)

    # Skip key tiles entirely in the causal-masked future of this query tile.
    @pl.when(ki * tk <= qi * tq + (tq - 1))
    def _update():
        q = q_ref[...]                                     # (TQ, hd) bf16
        k = k_ref[...]                                     # (TK, hd) bf16
        s = lax.dot_general(q, k, (((1,), (1,)), ((), ())),
                            preferred_element_type=jnp.float32) * scale
        rows = qi * tq + lax.broadcasted_iota(jnp.int32, s.shape, 0)
        cols = ki * tk + lax.broadcasted_iota(jnp.int32, s.shape, 1)
        s = jnp.where(cols <= rows, s, NEG_INF)            # per-tile causal mask

        m_prev = m_scr[...]
        m_new = jnp.maximum(m_prev, jnp.max(s, axis=-1, keepdims=True))
        alpha = jnp.exp(m_prev - m_new)
        p = jnp.exp(s - m_new)
        l_scr[...] = alpha * l_scr[...] + jnp.sum(p, axis=-1, keepdims=True)
        acc_scr[...] = alpha * acc_scr[...] + jnp.dot(
            p.astype(MATMUL_DTYPE), v_ref[...], preferred_element_type=jnp.float32)
        m_scr[...] = m_new
        # attn_dropout: identity (eval mode)

    @pl.when(ki == pl.num_programs(3) - 1)
    def _finalize():
        o_ref[...] = (acc_scr[...] *
                      pl.reciprocal(l_scr[...], approx=True)).astype(o_ref.dtype)


def attn_out_mlp_kernel(x_ref, o_ref, wo_ref, bo_ref, ln2_w_ref, ln2_b_ref,
                        w1_ref, b1_ref, w2_ref, b2_ref, out_ref):
    """Merge heads + output projection + residual, then LN2 + GELU MLP + residual."""
    x = x_ref[...].astype(jnp.float32)                     # (TR, D) residual stream
    TR, D = x.shape
    o = o_ref[...]                                         # (H, TR, hd) bf16

    om = jnp.swapaxes(o, 1, 2).reshape(D, TR).T            # merge heads -> (TR, D)
    attn = jnp.dot(om.astype(MATMUL_DTYPE), wo_ref[...],
                   preferred_element_type=jnp.float32) + bo_ref[...]
    # residual_dropout: identity (eval mode)
    x1 = x + attn

    h2 = _layernorm(x1, ln2_w_ref[...], ln2_b_ref[...])
    m1 = jnp.dot(h2.astype(MATMUL_DTYPE), w1_ref[...],
                 preferred_element_type=jnp.float32) + b1_ref[...]
    m1 = _gelu_exact(m1)
    m2 = jnp.dot(m1.astype(MATMUL_DTYPE), w2_ref[...],
                 preferred_element_type=jnp.float32) + b2_ref[...]
    # fc dropout: identity (eval mode)
    out_ref[...] = (x1 + m2).astype(out_ref.dtype)


def final_ln_kernel(x_ref, w_ref, b_ref, out_ref):
    out_ref[...] = _layernorm(x_ref[...].astype(jnp.float32),
                              w_ref[...], b_ref[...]).astype(out_ref.dtype)


def head_kernel(x_ref, w_ref, out_ref):
    # Pure bf16 matmul with f32 accumulation (LayerNorm already applied).
    out_ref[...] = jnp.dot(x_ref[...], w_ref[...],
                           preferred_element_type=jnp.float32)


# ---------------------------------------------------------------------------
# pallas_call wrappers
# ---------------------------------------------------------------------------
def run_ln_qkv(x, p, num_head):
    B, S, D = x.shape
    H = num_head
    hd = D // H
    TR = _pick_tile(S, 256, 8)
    grid = (B, S // TR)
    weights = (p['ln1_w'], p['ln1_b'], p['wqkv'], p['bqkv'])
    cost = pl.CostEstimate(
        flops=int(6 * B * S * D * D), transcendentals=0,
        bytes_accessed=int(4 * B * S * D * 2 + 3 * D * D * 2))
    out_spec = pl.BlockSpec((None, H, TR, hd), lambda b, r: (b, 0, r, 0))
    return pl.pallas_call(
        partial(ln_qkv_kernel, num_head),
        grid=grid,
        in_specs=[pl.BlockSpec((None, TR, D), lambda b, r: (b, r, 0))]
                 + [_weight_spec(w.shape) for w in weights],
        out_specs=[out_spec] * 3,
        out_shape=[jax.ShapeDtypeStruct((B, H, S, hd), ACT_DTYPE)] * 3,
        compiler_params=_cparams(("parallel", "parallel")),
        cost_estimate=cost,
    )(x, *weights)


def run_flash_attention(q, k, v):
    B, H, S, hd = q.shape
    scale = 1.0 / math.sqrt(hd)
    TQ = _pick_tile(S, 256, 8)                       # multiples of 256 preferred (v6e/v7x MXU)
    TK = _pick_tile(S, 256, 128 if S % 128 == 0 else 8)
    grid = (B, H, S // TQ, S // TK)
    cost = pl.CostEstimate(
        flops=int(4 * B * H * S * S * hd),
        transcendentals=int(B * H * S * S),
        bytes_accessed=int(4 * B * H * S * hd * 2))
    return pl.pallas_call(
        partial(flash_attn_kernel, scale, TQ, TK),
        grid=grid,
        in_specs=[
            pl.BlockSpec((None, None, TQ, hd), lambda b, h, qi, ki: (b, h, qi, 0)),
            pl.BlockSpec((None, None, TK, hd), lambda b, h, qi, ki: (b, h, ki, 0)),
            pl.BlockSpec((None, None, TK, hd), lambda b, h, qi, ki: (b, h, ki, 0)),
        ],
        out_specs=pl.BlockSpec((None, None, TQ, hd), lambda b, h, qi, ki: (b, h, qi, 0)),
        out_shape=jax.ShapeDtypeStruct((B, H, S, hd), ACT_DTYPE),
        scratch_shapes=[pltpu.VMEM((TQ, 1), jnp.float32),
                        pltpu.VMEM((TQ, 1), jnp.float32),
                        pltpu.VMEM((TQ, hd), jnp.float32)],
        compiler_params=_cparams(("parallel", "parallel", "parallel", "arbitrary")),
        cost_estimate=cost,
    )(q, k, v)


def run_attn_out_mlp(x, o, p):
    B, S, D = x.shape
    H = o.shape[1]
    hd = D // H
    TR = _pick_tile(S, 256, 8)
    grid = (B, S // TR)
    weights = (p['wo'], p['bo'], p['ln2_w'], p['ln2_b'],
               p['w1'], p['b1'], p['w2'], p['b2'])
    cost = pl.CostEstimate(
        flops=int(18 * B * S * D * D),
        transcendentals=int(4 * B * S * D),
        bytes_accessed=int(3 * B * S * D * 2 + 9 * D * D * 2))
    return pl.pallas_call(
        attn_out_mlp_kernel,
        grid=grid,
        in_specs=[pl.BlockSpec((None, TR, D), lambda b, r: (b, r, 0)),
                  pl.BlockSpec((None, H, TR, hd), lambda b, r: (b, 0, r, 0))]
                 + [_weight_spec(w.shape) for w in weights],
        out_specs=pl.BlockSpec((None, TR, D), lambda b, r: (b, r, 0)),
        out_shape=jax.ShapeDtypeStruct((B, S, D), ACT_DTYPE),
        compiler_params=_cparams(("parallel", "parallel")),
        cost_estimate=cost,
    )(x, o, *weights)


def run_final_ln(x, w, b):
    B, S, D = x.shape
    M = B * S
    xf = x.reshape(M, D)
    TM = _pick_tile(M, 512, 8)
    return pl.pallas_call(
        final_ln_kernel,
        grid=(M // TM,),
        in_specs=[pl.BlockSpec((TM, D), lambda i: (i, 0)),
                  _weight_spec(w.shape), _weight_spec(b.shape)],
        out_specs=pl.BlockSpec((TM, D), lambda i: (i, 0)),
        out_shape=jax.ShapeDtypeStruct((M, D), ACT_DTYPE),
        compiler_params=_cparams(("parallel",)),
    )(xf, w, b)


def run_head(x2d, w_out):
    M, D = x2d.shape
    V = w_out.shape[1]
    TM = _pick_tile(M, 512, 8)
    TN = _pick_tile(V, 2048, 128)
    # Vocab tiles on the OUTER grid axis: each (D, TN) slice of w_out (the
    # dominant HBM traffic) is fetched exactly once; the much smaller x rows
    # are re-streamed instead.
    grid = (V // TN, M // TM)
    cost = pl.CostEstimate(
        flops=int(2 * M * D * V), transcendentals=0,
        bytes_accessed=int((V // TN) * M * D * 2 + D * V * 2 + M * V * 4))
    return pl.pallas_call(
        head_kernel,
        grid=grid,
        in_specs=[pl.BlockSpec((TM, D), lambda j, i: (i, 0)),
                  pl.BlockSpec((D, TN), lambda j, i: (0, j))],
        out_specs=pl.BlockSpec((TM, TN), lambda j, i: (i, j)),
        out_shape=jax.ShapeDtypeStruct((M, V), jnp.float32),
        compiler_params=_cparams(("parallel", "parallel")),
        cost_estimate=cost,
    )(x2d, w_out)


def gpt_forward(idc, params, cfg):
    """Equivalent of GPT.forward(idc, targets=None) -> logits."""
    B, S = idc.shape
    assert S <= cfg['seq_len'], 'Char sequence length too long'
    # TODO(synk): token-embedding gather kept in plain JAX (no clean dense Pallas
    #             equivalent at this scale); embed_dropout is identity (eval mode).
    tok = jnp.take(params['tok_embed'], idc, axis=0)            # (B, S, D)
    pos = params['pos_embed'][:S, :][None, :, :]                # (1, S, D)
    x = (tok + pos).astype(ACT_DTYPE)                           # bf16 residual stream

    for lp in params['layers']:
        q, k, v = run_ln_qkv(x, lp, cfg['num_head'])
        o = run_flash_attention(q, k, v)
        x = run_attn_out_mlp(x, o, lp)

    xn = run_final_ln(x, params['ln_w'], params['ln_b'])
    logits = run_head(xn, params['w_out'])
    # TODO(synk): cross-entropy loss branch (targets is not None) not implemented.
    return logits.reshape(B, S, cfg['vocab_size'])


# ---------------------------------------------------------------------------
# Parameter init (mirrors GPT._init_weights; W stored (in, out) so y = x @ W + b)
# ---------------------------------------------------------------------------
def init_params(key, cfg):
    D, V, S = cfg['embed_dim'], cfg['vocab_size'], cfg['seq_len']
    std = 0.02

    def normal(k, shape):
        return std * jax.random.normal(k, shape, jnp.float32)

    keys = jax.random.split(key, 2 + cfg['num_layer'])
    params = {
        'tok_embed': normal(keys[0], (V, D)),
        'pos_embed': jnp.zeros((S, D), jnp.float32),
        'ln_w': jnp.ones((1, D), jnp.float32),
        'ln_b': jnp.zeros((1, D), jnp.float32),
        'w_out': normal(keys[1], (D, V)),          # out_fc has no bias
        'layers': [],
    }
    for li in range(cfg['num_layer']):
        lk = jax.random.split(keys[2 + li], 6)
        params['layers'].append({
            'ln1_w': jnp.ones((1, D), jnp.float32),
            'ln1_b': jnp.zeros((1, D), jnp.float32),
            'wq': normal(lk[0], (D, D)), 'bq': jnp.zeros((1, D), jnp.float32),
            'wk': normal(lk[1], (D, D)), 'bk': jnp.zeros((1, D), jnp.float32),
            'wv': normal(lk[2], (D, D)), 'bv': jnp.zeros((1, D), jnp.float32),
            'wo': normal(lk[3], (D, D)), 'bo': jnp.zeros((1, D), jnp.float32),
            'ln2_w': jnp.ones((1, D), jnp.float32),
            'ln2_b': jnp.zeros((1, D), jnp.float32),
            'w1': normal(lk[4], (D, 4 * D)), 'b1': jnp.zeros((1, 4 * D), jnp.float32),
            'w2': normal(lk[5], (4 * D, D)), 'b2': jnp.zeros((1, D), jnp.float32),
        })
    return params


def prepare_kernel_params(p):
    """Kernel-side params: fused QKV weight/bias, matmul weights in bf16,
    biases / LayerNorm params / embeddings in f32."""
    def q(w):
        return w.astype(MATMUL_DTYPE)

    out = {
        'tok_embed': p['tok_embed'],
        'pos_embed': p['pos_embed'],
        'ln_w': p['ln_w'], 'ln_b': p['ln_b'],
        'w_out': q(p['w_out']),
        'layers': [],
    }
    for lp in p['layers']:
        out['layers'].append({
            'ln1_w': lp['ln1_w'], 'ln1_b': lp['ln1_b'],
            'wqkv': q(jnp.concatenate([lp['wq'], lp['wk'], lp['wv']], axis=1)),
            'bqkv': jnp.concatenate([lp['bq'], lp['bk'], lp['bv']], axis=1),
            'wo': q(lp['wo']), 'bo': lp['bo'],
            'ln2_w': lp['ln2_w'], 'ln2_b': lp['ln2_b'],
            'w1': q(lp['w1']), 'b1': lp['b1'],
            'w2': q(lp['w2']), 'b2': lp['b2'],
        })
    return out


def bf16_rounded_params(p):
    """f32 params with matmul weights rounded through bf16 so the pure-JAX
    reference matches the kernel's weight storage."""
    def r(w):
        return w.astype(MATMUL_DTYPE).astype(jnp.float32)

    out = {
        'tok_embed': p['tok_embed'], 'pos_embed': p['pos_embed'],
        'ln_w': p['ln_w'], 'ln_b': p['ln_b'],
        'w_out': r(p['w_out']),
        'layers': [],
    }
    for lp in p['layers']:
        nlp = dict(lp)
        for name in ('wq', 'wk', 'wv', 'wo', 'w1', 'w2'):
            nlp[name] = r(lp[name])
        out['layers'].append(nlp)
    return out


# ---------------------------------------------------------------------------
# Pure-JAX reference (mirrors the PyTorch forward, f32 math)
# ---------------------------------------------------------------------------
def ref_forward(idc, params, cfg):
    B, S = idc.shape
    D, H = cfg['embed_dim'], cfg['num_head']
    hd = D // H
    x = params['tok_embed'][idc] + params['pos_embed'][:S][None]
    mask = jnp.tril(jnp.ones((S, S), bool))
    for p in params['layers']:
        h = _layernorm(x, p['ln1_w'], p['ln1_b'])
        q = (h @ p['wq'] + p['bq']).reshape(B, S, H, hd).transpose(0, 2, 1, 3)
        k = (h @ p['wk'] + p['bk']).reshape(B, S, H, hd).transpose(0, 2, 1, 3)
        v = (h @ p['wv'] + p['bv']).reshape(B, S, H, hd).transpose(0, 2, 1, 3)
        w = jnp.einsum('bhqd,bhkd->bhqk', q, k) / math.sqrt(hd)
        w = jnp.where(mask[None, None], w, -jnp.inf)
        w = jax.nn.softmax(w, axis=-1)
        o = jnp.einsum('bhqk,bhkd->bhqd', w, v).transpose(0, 2, 1, 3).reshape(B, S, D)
        x = x + o @ p['wo'] + p['bo']
        h2 = _layernorm(x, p['ln2_w'], p['ln2_b'])
        x = x + _gelu_exact(h2 @ p['w1'] + p['b1']) @ p['w2'] + p['b2']
    x = _layernorm(x, params['ln_w'], params['ln_b'])
    return x @ params['w_out']


if __name__ == "__main__":
    cfg = dict(vocab_size=64, seq_len=8, embed_dim=32, num_head=4, num_layer=2)
    TOL = 3e-2   # bf16 operands + bf16 activation boundaries + approx reciprocal

    root = jax.random.PRNGKey(0)
    k_params, k_idc = jax.random.split(root)
    params_f32 = init_params(k_params, cfg)
    kparams = prepare_kernel_params(params_f32)       # bf16 matmul weights
    rparams = bf16_rounded_params(params_f32)         # same weights, f32 ref math
    idc = jax.random.randint(k_idc, (2, cfg['seq_len']), 0, cfg['vocab_size'],
                             dtype=jnp.int32)

    expected = jax.block_until_ready(ref_forward(idc, rparams, cfg))

    def _forward():
        fwd = jax.jit(lambda ids, ps: gpt_forward(ids, ps, cfg))
        return jax.block_until_ready(fwd(idc, kparams))

    try:
        logits = _forward()
        ok = bool(jnp.allclose(logits, expected, atol=TOL, rtol=TOL))
    except Exception:
        logits, ok = None, False
    if not ok and _WEIGHT_SINGLE_BUFFER:
        # Defensive fallback: retry with default double-buffered weight specs in
        # case this backend rejects BlockSpec.pipeline_mode / Buffered(1).
        _WEIGHT_SINGLE_BUFFER = False
        logits = _forward()

    assert logits.shape == (2, cfg['seq_len'], cfg['vocab_size'])
    max_err = float(jnp.max(jnp.abs(logits - expected)))
    assert jnp.allclose(logits, expected, atol=TOL, rtol=TOL), max_err
    print("KERNEL_OK")
</pallas_src>

<mosaic_0001>
module attributes {stable_mosaic.version = 11 : i64} {
  func.func @ln_qkv_kernel(%arg0: i32, %arg1: i32, %arg2: memref<1x8x32xbf16, #tpu.memory_space<vmem>>, %arg3: memref<1x32xf32, #tpu.memory_space<vmem>>, %arg4: memref<1x32xf32, #tpu.memory_space<vmem>>, %arg5: memref<32x96xbf16, #tpu.memory_space<vmem>>, %arg6: memref<1x96xf32, #tpu.memory_space<vmem>>, %arg7: memref<1x4x8x8xbf16, #tpu.memory_space<vmem>>, %arg8: memref<1x4x8x8xbf16, #tpu.memory_space<vmem>>, %arg9: memref<1x4x8x8xbf16, #tpu.memory_space<vmem>>) attributes {dimension_semantics = [#tpu.dimension_semantics<parallel>, #tpu.dimension_semantics<parallel>], iteration_bounds = array<i64: 2, 1>, scalar_prefetch = 0 : i64, scratch_operands = 0 : i64, tpu.core_type = #tpu.core_type<tc>, window_params = [{transform_indices = @transform_0, window_bounds = array<i64: 1, 8, 32>}, {pipeline_mode = #tpu.pipeline_mode<synchronous>, transform_indices = @transform_1, window_bounds = array<i64: 1, 32>}, {pipeline_mode = #tpu.pipeline_mode<synchronous>, transform_indices = @transform_2, window_bounds = array<i64: 1, 32>}, {pipeline_mode = #tpu.pipeline_mode<synchronous>, transform_indices = @transform_3, window_bounds = array<i64: 32, 96>}, {pipeline_mode = #tpu.pipeline_mode<synchronous>, transform_indices = @transform_4, window_bounds = array<i64: 1, 96>}, {transform_indices = @transform_5, window_bounds = array<i64: 1, 4, 8, 8>}, {transform_indices = @transform_6, window_bounds = array<i64: 1, 4, 8, 8>}, {transform_indices = @transform_7, window_bounds = array<i64: 1, 4, 8, 8>}]} {
    %c0 = arith.constant 0 : index
    %c0_0 = arith.constant 0 : index
    %c0_1 = arith.constant 0 : index
    %0 = vector.load %arg2[%c0, %c0_0, %c0_1] : memref<1x8x32xbf16, #tpu.memory_space<vmem>>, vector<1x8x32xbf16>
    %1 = vector.shape_cast %0 : vector<1x8x32xbf16> to vector<8x32xbf16>
    %2 = arith.extf %1 : vector<8x32xbf16> to vector<8x32xf32>
    %c0_2 = arith.constant 0 : index
    %c0_3 = arith.constant 0 : index
    %3 = vector.load %arg3[%c0_2, %c0_3] : memref<1x32xf32, #tpu.memory_space<vmem>>, vector<1x32xf32>
    %c0_4 = arith.constant 0 : index
    %c0_5 = arith.constant 0 : index
    %4 = vector.load %arg4[%c0_4, %c0_5] : memref<1x32xf32, #tpu.memory_space<vmem>>, vector<1x32xf32>
    %cst = arith.constant dense<0.000000e+00> : vector<8xf32>
    %5 = vector.multi_reduction <add>, %2, %cst [1] : vector<8x32xf32> to vector<8xf32>
    %6 = vector.shape_cast %5 : vector<8xf32> to vector<8x1xf32>
    %cst_6 = arith.constant 3.200000e+01 : f32
    %7 = vector.broadcast %cst_6 : f32 to vector<8x1xf32>
    %8 = arith.divf %6, %7 : vector<8x1xf32>
    %9 = vector.broadcast %8 : vector<8x1xf32> to vector<8x32xf32>
    %10 = arith.subf %2, %9 : vector<8x32xf32>
    %11 = arith.mulf %10, %10 : vector<8x32xf32>
    %cst_7 = arith.constant dense<0.000000e+00> : vector<8xf32>
    %12 = vector.multi_reduction <add>, %11, %cst_7 [1] : vector<8x32xf32> to vector<8xf32>
    %13 = vector.shape_cast %12 : vector<8xf32> to vector<8x1xf32>
    %cst_8 = arith.constant 3.200000e+01 : f32
    %14 = vector.broadcast %cst_8 : f32 to vector<8x1xf32>
    %15 = arith.divf %13, %14 : vector<8x1xf32>
    %16 = vector.broadcast %8 : vector<8x1xf32> to vector<8x32xf32>
    %17 = arith.subf %2, %16 : vector<8x32xf32>
    %cst_9 = arith.constant 9.99999974E-6 : f32
    %18 = vector.broadcast %cst_9 : f32 to vector<8x1xf32>
    %19 = arith.addf %15, %18 : vector<8x1xf32>
    %20 = math.rsqrt %19 : vector<8x1xf32>
    %21 = vector.broadcast %20 : vector<8x1xf32> to vector<8x32xf32>
    %22 = arith.mulf %17, %21 : vector<8x32xf32>
    %23 = vector.broadcast %3 : vector<1x32xf32> to vector<8x32xf32>
    %24 = arith.mulf %22, %23 : vector<8x32xf32>
    %25 = vector.broadcast %4 : vector<1x32xf32> to vector<8x32xf32>
    %26 = arith.addf %24, %25 : vector<8x32xf32>
    %27 = arith.truncf %26 : vector<8x32xf32> to vector<8x32xbf16>
    %c0_10 = arith.constant 0 : index
    %c0_11 = arith.constant 0 : index
    %28 = vector.load %arg5[%c0_10, %c0_11] : memref<32x96xbf16, #tpu.memory_space<vmem>>, vector<32x96xbf16>
    %cst_12 = arith.constant dense<0.000000e+00> : vector<8x96xf32>
    %29 = tpu.matmul %27, %28, %cst_12 {dimension_numbers = #tpu.dot_dimension_numbers<[1], [0], [0], [1], [0, 0, 1, 1], [], []>} : vector<8x32xbf16>, vector<32x96xbf16>, vector<8x96xf32> -> vector<8x96xf32>
    %c0_13 = arith.constant 0 : index
    %c0_14 = arith.constant 0 : index
    %30 = vector.load %arg6[%c0_13, %c0_14] : memref<1x96xf32, #tpu.memory_space<vmem>>, vector<1x96xf32>
    %31 = vector.broadcast %30 : vector<1x96xf32> to vector<8x96xf32>
    %32 = arith.addf %29, %31 : vector<8x96xf32>
    %33 = tpu.transpose %32, [1, 0] : vector<8x96xf32> -> vector<96x8xf32>
    %34 = vector.shape_cast %33 : vector<96x8xf32> to vector<12x8x8xf32>
    %35 = vector.extract_strided_slice %34 {offsets = [0, 0, 0], sizes = [4, 8, 8], strides = [1, 1, 1]} : vector<12x8x8xf32> to vector<4x8x8xf32>
    %36 = tpu.transpose %35, [0, 2, 1] : vector<4x8x8xf32> -> vector<4x8x8xf32>
    %37 = arith.truncf %36 : vector<4x8x8xf32> to vector<4x8x8xbf16>
    %c0_15 = arith.constant 0 : index
    %c0_16 = arith.constant 0 : index
    %c0_17 = arith.constant 0 : index
    %c0_18 = arith.constant 0 : index
    %38 = vector.load %arg7[%c0_15, %c0_16, %c0_17, %c0_18] : memref<1x4x8x8xbf16, #tpu.memory_space<vmem>>, vector<1x4x8x8xbf16>
    %39 = vector.shape_cast %38 : vector<1x4x8x8xbf16> to vector<4x8x8xbf16>
    %40 = vector.shape_cast %37 : vector<4x8x8xbf16> to vector<1x4x8x8xbf16>
    tpu.vector_store %arg7[%c0_15, %c0_16, %c0_17, %c0_18], %40 {strides = array<i32>} : memref<1x4x8x8xbf16, #tpu.memory_space<vmem>>, vector<1x4x8x8xbf16>,
    %41 = vector.extract_strided_slice %34 {offsets = [4, 0, 0], sizes = [4, 8, 8], strides = [1, 1, 1]} : vector<12x8x8xf32> to vector<4x8x8xf32>
    %42 = tpu.transpose %41, [0, 2, 1] : vector<4x8x8xf32> -> vector<4x8x8xf32>
    %43 = arith.truncf %42 : vector<4x8x8xf32> to vector<4x8x8xbf16>
    %c0_19 = arith.constant 0 : index
    %c0_20 = arith.constant 0 : index
    %c0_21 = arith.constant 0 : index
    %c0_22 = arith.constant 0 : index
    %44 = vector.load %arg8[%c0_19, %c0_20, %c0_21, %c0_22] : memref<1x4x8x8xbf16, #tpu.memory_space<vmem>>, vector<1x4x8x8xbf16>
    %45 = vector.shape_cast %44 : vector<1x4x8x8xbf16> to vector<4x8x8xbf16>
    %46 = vector.shape_cast %43 : vector<4x8x8xbf16> to vector<1x4x8x8xbf16>
    tpu.vector_store %arg8[%c0_19, %c0_20, %c0_21, %c0_22], %46 {strides = array<i32>} : memref<1x4x8x8xbf16, #tpu.memory_space<vmem>>, vector<1x4x8x8xbf16>,
    %47 = vector.extract_strided_slice %34 {offsets = [8, 0, 0], sizes = [4, 8, 8], strides = [1, 1, 1]} : vector<12x8x8xf32> to vector<4x8x8xf32>
    %48 = tpu.transpose %47, [0, 2, 1] : vector<4x8x8xf32> -> vector<4x8x8xf32>
    %49 = arith.truncf %48 : vector<4x8x8xf32> to vector<4x8x8xbf16>
    %c0_23 = arith.constant 0 : index
    %c0_24 = arith.constant 0 : index
    %c0_25 = arith.constant 0 : index
    %c0_26 = arith.constant 0 : index
    %50 = vector.load %arg9[%c0_23, %c0_24, %c0_25, %c0_26] : memref<1x4x8x8xbf16, #tpu.memory_space<vmem>>, vector<1x4x8x8xbf16>
    %51 = vector.shape_cast %50 : vector<1x4x8x8xbf16> to vector<4x8x8xbf16>
    %52 = vector.shape_cast %49 : vector<4x8x8xbf16> to vector<1x4x8x8xbf16>
    tpu.vector_store %arg9[%c0_23, %c0_24, %c0_25, %c0_26], %52 {strides = array<i32>} : memref<1x4x8x8xbf16, #tpu.memory_space<vmem>>, vector<1x4x8x8xbf16>,
    return
  }
  func.func @transform_0(%arg0: i32, %arg1: i32) -> (i32, i32, i32) {
    %c0_i32 = arith.constant 0 : i32
    %c0_i32_0 = arith.constant 0 : i32
    return %arg0, %arg1, %c0_i32 : i32, i32, i32
  }
  func.func @transform_1(%arg0: i32, %arg1: i32) -> (i32, i32) {
    %c0_i32 = arith.constant 0 : i32
    %c0_i32_0 = arith.constant 0 : i32
    %c0_i32_1 = arith.constant 0 : i32
    return %c0_i32, %c0_i32_0 : i32, i32
  }
  func.func @transform_2(%arg0: i32, %arg1: i32) -> (i32, i32) {
    %c0_i32 = arith.constant 0 : i32
    %c0_i32_0 = arith.constant 0 : i32
    %c0_i32_1 = arith.constant 0 : i32
    return %c0_i32, %c0_i32_0 : i32, i32
  }
  func.func @transform_3(%arg0: i32, %arg1: i32) -> (i32, i32) {
    %c0_i32 = arith.constant 0 : i32
    %c0_i32_0 = arith.constant 0 : i32
    %c0_i32_1 = arith.constant 0 : i32
    return %c0_i32, %c0_i32_0 : i32, i32
  }
  func.func @transform_4(%arg0: i32, %arg1: i32) -> (i32, i32) {
    %c0_i32 = arith.constant 0 : i32
    %c0_i32_0 = arith.constant 0 : i32
    %c0_i32_1 = arith.constant 0 : i32
    return %c0_i32, %c0_i32_0 : i32, i32
  }
  func.func @transform_5(%arg0: i32, %arg1: i32) -> (i32, i32, i32, i32) {
    %c0_i32 = arith.constant 0 : i32
    %c0_i32_0 = arith.constant 0 : i32
    %c0_i32_1 = arith.constant 0 : i32
    return %arg0, %c0_i32, %arg1, %c0_i32_0 : i32, i32, i32, i32
  }
  func.func @transform_6(%arg0: i32, %arg1: i32) -> (i32, i32, i32, i32) {
    %c0_i32 = arith.constant 0 : i32
    %c0_i32_0 = arith.constant 0 : i32
    %c0_i32_1 = arith.constant 0 : i32
    return %arg0, %c0_i32, %arg1, %c0_i32_0 : i32, i32, i32, i32
  }
  func.func @transform_7(%arg0: i32, %arg1: i32) -> (i32, i32, i32, i32) {
    %c0_i32 = arith.constant 0 : i32
    %c0_i32_0 = arith.constant 0 : i32
    %c0_i32_1 = arith.constant 0 : i32
    return %arg0, %c0_i32, %arg1, %c0_i32_0 : i32, i32, i32, i32
  }
}

module attributes {stable_mosaic.version = 11 : i64} {
  func.func @flash_attn_kernel(%arg0: i32, %arg1: i32, %arg2: i32, %arg3: i32, %arg4: memref<1x1x8x8xbf16, #tpu.memory_space<vmem>>, %arg5: memref<1x1x8x8xbf16, #tpu.memory_space<vmem>>, %arg6: memref<1x1x8x8xbf16, #tpu.memory_space<vmem>>, %arg7: memref<1x1x8x8xbf16, #tpu.memory_space<vmem>>, %arg8: memref<8x1xf32, #tpu.memory_space<vmem>>, %arg9: memref<8x1xf32, #tpu.memory_space<vmem>>, %arg10: memref<8x8xf32, #tpu.memory_space<vmem>>) attributes {dimension_semantics = [#tpu.dimension_semantics<parallel>, #tpu.dimension_semantics<parallel>, #tpu.dimension_semantics<parallel>, #tpu.dimension_semantics<arbitrary>], iteration_bounds = array<i64: 2, 4, 1, 1>, scalar_prefetch = 0 : i64, scratch_operands = 3 : i64, tpu.core_type = #tpu.core_type<tc>, window_params = [{transform_indices = @transform_0, window_bounds = array<i64: 1, 1, 8, 8>}, {transform_indices = @transform_1, window_bounds = array<i64: 1, 1, 8, 8>}, {transform_indices = @transform_2, window_bounds = array<i64: 1, 1, 8, 8>}, {transform_indices = @transform_3, window_bounds = array<i64: 1, 1, 8, 8>}]} {
    %c0_i32 = arith.constant 0 : i32
    %0 = arith.cmpi eq, %arg3, %c0_i32 : i32
    %1 = arith.extui %0 : i1 to i32
    %c0_i32_0 = arith.constant 0 : i32
    %2 = arith.cmpi ne, %1, %c0_i32_0 : i32
    scf.if %2 {
      %cst = arith.constant -1.000000e+30 : f32
      %12 = vector.broadcast %cst : f32 to vector<8x1xf32>
      %c0 = arith.constant 0 : index
      %c0_5 = arith.constant 0 : index
      %13 = vector.load %arg8[%c0, %c0_5] : memref<8x1xf32, #tpu.memory_space<vmem>>, vector<8x1xf32>
      tpu.vector_store %arg8[%c0, %c0_5], %12 {strides = array<i32>} : memref<8x1xf32, #tpu.memory_space<vmem>>, vector<8x1xf32>,
      %cst_6 = arith.constant 0.000000e+00 : f32
      %14 = vector.broadcast %cst_6 : f32 to vector<8x1xf32>
      %c0_7 = arith.constant 0 : index
      %c0_8 = arith.constant 0 : index
      %15 = vector.load %arg9[%c0_7, %c0_8] : memref<8x1xf32, #tpu.memory_space<vmem>>, vector<8x1xf32>
      tpu.vector_store %arg9[%c0_7, %c0_8], %14 {strides = array<i32>} : memref<8x1xf32, #tpu.memory_space<vmem>>, vector<8x1xf32>,
      %cst_9 = arith.constant 0.000000e+00 : f32
      %16 = vector.broadcast %cst_9 : f32 to vector<8x8xf32>
      %c0_10 = arith.constant 0 : index
      %c0_11 = arith.constant 0 : index
      %17 = vector.load %arg10[%c0_10, %c0_11] : memref<8x8xf32, #tpu.memory_space<vmem>>, vector<8x8xf32>
      tpu.vector_store %arg10[%c0_10, %c0_11], %16 {strides = array<i32>} : memref<8x8xf32, #tpu.memory_space<vmem>>, vector<8x8xf32>,
    } else {
    }
    %c8_i32 = arith.constant 8 : i32
    %3 = arith.muli %arg3, %c8_i32 : i32
    %c8_i32_1 = arith.constant 8 : i32
    %4 = arith.muli %arg2, %c8_i32_1 : i32
    %c7_i32 = arith.constant 7 : i32
    %5 = arith.addi %4, %c7_i32 : i32
    %6 = arith.cmpi sle, %3, %5 : i32
    %7 = arith.extui %6 : i1 to i32
    %c0_i32_2 = arith.constant 0 : i32
    %8 = arith.cmpi ne, %7, %c0_i32_2 : i32
    scf.if %8 {
      %c0 = arith.constant 0 : index
      %c0_5 = arith.constant 0 : index
      %c0_6 = arith.constant 0 : index
      %c0_7 = arith.constant 0 : index
      %12 = vector.load %arg4[%c0, %c0_5, %c0_6, %c0_7] : memref<1x1x8x8xbf16, #tpu.memory_space<vmem>>, vector<1x1x8x8xbf16>
      %13 = vector.shape_cast %12 : vector<1x1x8x8xbf16> to vector<8x8xbf16>
      %c0_8 = arith.constant 0 : index
      %c0_9 = arith.constant 0 : index
      %c0_10 = arith.constant 0 : index
      %c0_11 = arith.constant 0 : index
      %14 = vector.load %arg5[%c0_8, %c0_9, %c0_10, %c0_11] : memref<1x1x8x8xbf16, #tpu.memory_space<vmem>>, vector<1x1x8x8xbf16>
      %15 = vector.shape_cast %14 : vector<1x1x8x8xbf16> to vector<8x8xbf16>
      %cst = arith.constant dense<0.000000e+00> : vector<8x8xf32>
      %16 = tpu.matmul %13, %15, %cst {dimension_numbers = #tpu.dot_dimension_numbers<[1], [1], [0], [0], [0, 0, 1, 0], [], []>} : vector<8x8xbf16>, vector<8x8xbf16>, vector<8x8xf32> -> vector<8x8xf32>
      %cst_12 = arith.constant 0.353553385 : f32
      %17 = vector.broadcast %cst_12 : f32 to vector<8x8xf32>
      %18 = arith.mulf %16, %17 : vector<8x8xf32>
      %c8_i32_13 = arith.constant 8 : i32
      %19 = arith.muli %arg2, %c8_i32_13 : i32
      %20 = tpu.iota {dimensions = array<i32: 0>} : vector<8x8xi32>
      %21 = vector.broadcast %19 : i32 to vector<8x8xi32>
      %22 = arith.addi %21, %20 : vector<8x8xi32>
      %c8_i32_14 = arith.constant 8 : i32
      %23 = arith.muli %arg3, %c8_i32_14 : i32
      %24 = tpu.iota {dimensions = array<i32: 1>} : vector<8x8xi32>
      %25 = vector.broadcast %23 : i32 to vector<8x8xi32>
      %26 = arith.addi %25, %24 : vector<8x8xi32>
      %27 = arith.cmpi sle, %26, %22 : vector<8x8xi32>
      %cst_15 = arith.constant -1.000000e+30 : f32
      %28 = vector.broadcast %cst_15 : f32 to vector<8x8xf32>
      %29 = arith.select %27, %18, %28 : vector<8x8xi1>, vector<8x8xf32>
      %c0_16 = arith.constant 0 : index
      %c0_17 = arith.constant 0 : index
      %30 = vector.load %arg8[%c0_16, %c0_17] : memref<8x1xf32, #tpu.memory_space<vmem>>, vector<8x1xf32>
      %cst_18 = arith.constant dense<0xFF800000> : vector<8xf32>
      %31 = vector.multi_reduction <maximumf>, %29, %cst_18 [1] : vector<8x8xf32> to vector<8xf32>
      %32 = vector.shape_cast %31 : vector<8xf32> to vector<8x1xf32>
      %33 = arith.maximumf %30, %32 : vector<8x1xf32>
      %34 = arith.subf %30, %33 : vector<8x1xf32>
      %35 = math.exp %34 : vector<8x1xf32>
      %36 = vector.broadcast %33 : vector<8x1xf32> to vector<8x8xf32>
      %37 = arith.subf %29, %36 : vector<8x8xf32>
      %38 = math.exp %37 : vector<8x8xf32>
      %c0_19 = arith.constant 0 : index
      %c0_20 = arith.constant 0 : index
      %39 = vector.load %arg9[%c0_19, %c0_20] : memref<8x1xf32, #tpu.memory_space<vmem>>, vector<8x1xf32>
      %40 = arith.mulf %35, %39 : vector<8x1xf32>
      %cst_21 = arith.constant dense<0.000000e+00> : vector<8xf32>
      %41 = vector.multi_reduction <add>, %38, %cst_21 [1] : vector<8x8xf32> to vector<8xf32>
      %42 = vector.shape_cast %41 : vector<8xf32> to vector<8x1xf32>
      %43 = arith.addf %40, %42 : vector<8x1xf32>
      %c0_22 = arith.constant 0 : index
      %c0_23 = arith.constant 0 : index
      %44 = vector.load %arg9[%c0_22, %c0_23] : memref<8x1xf32, #tpu.memory_space<vmem>>, vector<8x1xf32>
      tpu.vector_store %arg9[%c0_22, %c0_23], %43 {strides = array<i32>} : memref<8x1xf32, #tpu.memory_space<vmem>>, vector<8x1xf32>,
      %c0_24 = arith.constant 0 : index
      %c0_25 = arith.constant 0 : index
      %45 = vector.load %arg10[%c0_24, %c0_25] : memref<8x8xf32, #tpu.memory_space<vmem>>, vector<8x8xf32>
      %46 = vector.broadcast %35 : vector<8x1xf32> to vector<8x8xf32>
      %47 = arith.mulf %46, %45 : vector<8x8xf32>
      %48 = arith.truncf %38 : vector<8x8xf32> to vector<8x8xbf16>
      %c0_26 = arith.constant 0 : index
      %c0_27 = arith.constant 0 : index
      %c0_28 = arith.constant 0 : index
      %c0_29 = arith.constant 0 : index
      %49 = vector.load %arg6[%c0_26, %c0_27, %c0_28, %c0_29] : memref<1x1x8x8xbf16, #tpu.memory_space<vmem>>, vector<1x1x8x8xbf16>
      %50 = vector.shape_cast %49 : vector<1x1x8x8xbf16> to vector<8x8xbf16>
      %cst_30 = arith.constant dense<0.000000e+00> : vector<8x8xf32>
      %51 = tpu.matmul %48, %50, %cst_30 {dimension_numbers = #tpu.dot_dimension_numbers<[1], [0], [0], [1], [0, 0, 1, 1], [], []>} : vector<8x8xbf16>, vector<8x8xbf16>, vector<8x8xf32> -> vector<8x8xf32>
      %52 = arith.addf %47, %51 : vector<8x8xf32>
      %c0_31 = arith.constant 0 : index
      %c0_32 = arith.constant 0 : index
      %53 = vector.load %arg10[%c0_31, %c0_32] : memref<8x8xf32, #tpu.memory_space<vmem>>, vector<8x8xf32>
      tpu.vector_store %arg10[%c0_31, %c0_32], %52 {strides = array<i32>} : memref<8x8xf32, #tpu.memory_space<vmem>>, vector<8x8xf32>,
      %c0_33 = arith.constant 0 : index
      %c0_34 = arith.constant 0 : index
      %54 = vector.load %arg8[%c0_33, %c0_34] : memref<8x1xf32, #tpu.memory_space<vmem>>, vector<8x1xf32>
      tpu.vector_store %arg8[%c0_33, %c0_34], %33 {strides = array<i32>} : memref<8x1xf32, #tpu.memory_space<vmem>>, vector<8x1xf32>,
    } else {
    }
    %c0_i32_3 = arith.constant 0 : i32
    %9 = arith.cmpi eq, %arg3, %c0_i32_3 : i32
    %10 = arith.extui %9 : i1 to i32
    %c0_i32_4 = arith.constant 0 : i32
    %11 = arith.cmpi ne, %10, %c0_i32_4 : i32
    scf.if %11 {
      %c0 = arith.constant 0 : index
      %c0_5 = arith.constant 0 : index
      %12 = vector.load %arg10[%c0, %c0_5] : memref<8x8xf32, #tpu.memory_space<vmem>>, vector<8x8xf32>
      %c0_6 = arith.constant 0 : index
      %c0_7 = arith.constant 0 : index
      %13 = vector.load %arg9[%c0_6, %c0_7] : memref<8x1xf32, #tpu.memory_space<vmem>>, vector<8x1xf32>
      %14 = tpu.reciprocal %13 {approx = true} : vector<8x1xf32> -> vector<8x1xf32>
      %15 = vector.broadcast %14 : vector<8x1xf32> to vector<8x8xf32>
      %16 = arith.mulf %12, %15 : vector<8x8xf32>
      %17 = arith.truncf %16 : vector<8x8xf32> to vector<8x8xbf16>
      %c0_8 = arith.constant 0 : index
      %c0_9 = arith.constant 0 : index
      %c0_10 = arith.constant 0 : index
      %c0_11 = arith.constant 0 : index
      %18 = vector.load %arg7[%c0_8, %c0_9, %c0_10, %c0_11] : memref<1x1x8x8xbf16, #tpu.memory_space<vmem>>, vector<1x1x8x8xbf16>
      %19 = vector.shape_cast %18 : vector<1x1x8x8xbf16> to vector<8x8xbf16>
      %20 = vector.shape_cast %17 : vector<8x8xbf16> to vector<1x1x8x8xbf16>
      tpu.vector_store %arg7[%c0_8, %c0_9, %c0_10, %c0_11], %20 {strides = array<i32>} : memref<1x1x8x8xbf16, #tpu.memory_space<vmem>>, vector<1x1x8x8xbf16>,
    } else {
    }
    return
  }
  func.func @transform_0(%arg0: i32, %arg1: i32, %arg2: i32, %arg3: i32) -> (i32, i32, i32, i32) {
    %c0_i32 = arith.constant 0 : i32
    %c0_i32_0 = arith.constant 0 : i32
    return %arg0, %arg1, %arg2, %c0_i32 : i32, i32, i32, i32
  }
  func.func @transform_1(%arg0: i32, %arg1: i32, %arg2: i32, %arg3: i32) -> (i32, i32, i32, i32) {
    %c0_i32 = arith.constant 0 : i32
    %c0_i32_0 = arith.constant 0 : i32
    return %arg0, %arg1, %arg3, %c0_i32 : i32, i32, i32, i32
  }
  func.func @transform_2(%arg0: i32, %arg1: i32, %arg2: i32, %arg3: i32) -> (i32, i32, i32, i32) {
    %c0_i32 = arith.constant 0 : i32
    %c0_i32_0 = arith.constant 0 : i32
    return %arg0, %arg1, %arg3, %c0_i32 : i32, i32, i32, i32
  }
  func.func @transform_3(%arg0: i32, %arg1: i32, %arg2: i32, %arg3: i32) -> (i32, i32, i32, i32) {
    %c0_i32 = arith.constant 0 : i32
    %c0_i32_0 = arith.constant 0 : i32
    return %arg0, %arg1, %arg2, %c0_i32 : i32, i32, i32, i32
  }
}

module attributes {stable_mosaic.version = 11 : i64} {
  func.func @attn_out_mlp_kernel(%arg0: i32, %arg1: i32, %arg2: memref<1x8x32xbf16, #tpu.memory_space<vmem>>, %arg3: memref<1x4x8x8xbf16, #tpu.memory_space<vmem>>, %arg4: memref<32x32xbf16, #tpu.memory_space<vmem>>, %arg5: memref<1x32xf32, #tpu.memory_space<vmem>>, %arg6: memref<1x32xf32, #tpu.memory_space<vmem>>, %arg7: memref<1x32xf32, #tpu.memory_space<vmem>>, %arg8: memref<32x128xbf16, #tpu.memory_space<vmem>>, %arg9: memref<1x128xf32, #tpu.memory_space<vmem>>, %arg10: memref<128x32xbf16, #tpu.memory_space<vmem>>, %arg11: memref<1x32xf32, #tpu.memory_space<vmem>>, %arg12: memref<1x8x32xbf16, #tpu.memory_space<vmem>>) attributes {dimension_semantics = [#tpu.dimension_semantics<parallel>, #tpu.dimension_semantics<parallel>], iteration_bounds = array<i64: 2, 1>, scalar_prefetch = 0 : i64, scratch_operands = 0 : i64, tpu.core_type = #tpu.core_type<tc>, window_params = [{transform_indices = @transform_0, window_bounds = array<i64: 1, 8, 32>}, {transform_indices = @transform_1, window_bounds = array<i64: 1, 4, 8, 8>}, {pipeline_mode = #tpu.pipeline_mode<synchronous>, transform_indices = @transform_2, window_bounds = array<i64: 32, 32>}, {pipeline_mode = #tpu.pipeline_mode<synchronous>, transform_indices = @transform_3, window_bounds = array<i64: 1, 32>}, {pipeline_mode = #tpu.pipeline_mode<synchronous>, transform_indices = @transform_4, window_bounds = array<i64: 1, 32>}, {pipeline_mode = #tpu.pipeline_mode<synchronous>, transform_indices = @transform_5, window_bounds = array<i64: 1, 32>}, {pipeline_mode = #tpu.pipeline_mode<synchronous>, transform_indices = @transform_6, window_bounds = array<i64: 32, 128>}, {pipeline_mode = #tpu.pipeline_mode<synchronous>, transform_indices = @transform_7, window_bounds = array<i64: 1, 128>}, {pipeline_mode = #tpu.pipeline_mode<synchronous>, transform_indices = @transform_8, window_bounds = array<i64: 128, 32>}, {pipeline_mode = #tpu.pipeline_mode<synchronous>, transform_indices = @transform_9, window_bounds = array<i64: 1, 32>}, {transform_indices = @transform_10, window_bounds = array<i64: 1, 8, 32>}]} {
    %c0 = arith.constant 0 : index
    %c0_0 = arith.constant 0 : index
    %c0_1 = arith.constant 0 : index
    %0 = vector.load %arg2[%c0, %c0_0, %c0_1] : memref<1x8x32xbf16, #tpu.memory_space<vmem>>, vector<1x8x32xbf16>
    %1 = vector.shape_cast %0 : vector<1x8x32xbf16> to vector<8x32xbf16>
    %2 = arith.extf %1 : vector<8x32xbf16> to vector<8x32xf32>
    %c0_2 = arith.constant 0 : index
    %c0_3 = arith.constant 0 : index
    %c0_4 = arith.constant 0 : index
    %c0_5 = arith.constant 0 : index
    %3 = vector.load %arg3[%c0_2, %c0_3, %c0_4, %c0_5] : memref<1x4x8x8xbf16, #tpu.memory_space<vmem>>, vector<1x4x8x8xbf16>
    %4 = vector.shape_cast %3 : vector<1x4x8x8xbf16> to vector<4x8x8xbf16>
    %5 = tpu.transpose %4, [0, 2, 1] : vector<4x8x8xbf16> -> vector<4x8x8xbf16>
    %6 = vector.shape_cast %5 : vector<4x8x8xbf16> to vector<32x8xbf16>
    %7 = tpu.transpose %6, [1, 0] : vector<32x8xbf16> -> vector<8x32xbf16>
    %c0_6 = arith.constant 0 : index
    %c0_7 = arith.constant 0 : index
    %8 = vector.load %arg4[%c0_6, %c0_7] : memref<32x32xbf16, #tpu.memory_space<vmem>>, vector<32x32xbf16>
    %cst = arith.constant dense<0.000000e+00> : vector<8x32xf32>
    %9 = tpu.matmul %7, %8, %cst {dimension_numbers = #tpu.dot_dimension_numbers<[1], [0], [0], [1], [0, 0, 1, 1], [], []>} : vector<8x32xbf16>, vector<32x32xbf16>, vector<8x32xf32> -> vector<8x32xf32>
    %c0_8 = arith.constant 0 : index
    %c0_9 = arith.constant 0 : index
    %10 = vector.load %arg5[%c0_8, %c0_9] : memref<1x32xf32, #tpu.memory_space<vmem>>, vector<1x32xf32>
    %11 = vector.broadcast %10 : vector<1x32xf32> to vector<8x32xf32>
    %12 = arith.addf %9, %11 : vector<8x32xf32>
    %13 = arith.addf %2, %12 : vector<8x32xf32>
    %c0_10 = arith.constant 0 : index
    %c0_11 = arith.constant 0 : index
    %14 = vector.load %arg6[%c0_10, %c0_11] : memref<1x32xf32, #tpu.memory_space<vmem>>, vector<1x32xf32>
    %c0_12 = arith.constant 0 : index
    %c0_13 = arith.constant 0 : index
    %15 = vector.load %arg7[%c0_12, %c0_13] : memref<1x32xf32, #tpu.memory_space<vmem>>, vector<1x32xf32>
    %cst_14 = arith.constant dense<0.000000e+00> : vector<8xf32>
    %16 = vector.multi_reduction <add>, %13, %cst_14 [1] : vector<8x32xf32> to vector<8xf32>
    %17 = vector.shape_cast %16 : vector<8xf32> to vector<8x1xf32>
    %cst_15 = arith.constant 3.200000e+01 : f32
    %18 = vector.broadcast %cst_15 : f32 to vector<8x1xf32>
    %19 = arith.divf %17, %18 : vector<8x1xf32>
    %20 = vector.broadcast %19 : vector<8x1xf32> to vector<8x32xf32>
    %21 = arith.subf %13, %20 : vector<8x32xf32>
    %22 = arith.mulf %21, %21 : vector<8x32xf32>
    %cst_16 = arith.constant dense<0.000000e+00> : vector<8xf32>
    %23 = vector.multi_reduction <add>, %22, %cst_16 [1] : vector<8x32xf32> to vector<8xf32>
    %24 = vector.shape_cast %23 : vector<8xf32> to vector<8x1xf32>
    %cst_17 = arith.constant 3.200000e+01 : f32
    %25 = vector.broadcast %cst_17 : f32 to vector<8x1xf32>
    %26 = arith.divf %24, %25 : vector<8x1xf32>
    %27 = vector.broadcast %19 : vector<8x1xf32> to vector<8x32xf32>
    %28 = arith.subf %13, %27 : vector<8x32xf32>
    %cst_18 = arith.constant 9.99999974E-6 : f32
    %29 = vector.broadcast %cst_18 : f32 to vector<8x1xf32>
    %30 = arith.addf %26, %29 : vector<8x1xf32>
    %31 = math.rsqrt %30 : vector<8x1xf32>
    %32 = vector.broadcast %31 : vector<8x1xf32> to vector<8x32xf32>
    %33 = arith.mulf %28, %32 : vector<8x32xf32>
    %34 = vector.broadcast %14 : vector<1x32xf32> to vector<8x32xf32>
    %35 = arith.mulf %33, %34 : vector<8x32xf32>
    %36 = vector.broadcast %15 : vector<1x32xf32> to vector<8x32xf32>
    %37 = arith.addf %35, %36 : vector<8x32xf32>
    %38 = arith.truncf %37 : vector<8x32xf32> to vector<8x32xbf16>
    %c0_19 = arith.constant 0 : index
    %c0_20 = arith.constant 0 : index
    %39 = vector.load %arg8[%c0_19, %c0_20] : memref<32x128xbf16, #tpu.memory_space<vmem>>, vector<32x128xbf16>
    %cst_21 = arith.constant dense<0.000000e+00> : vector<8x128xf32>
    %40 = tpu.matmul %38, %39, %cst_21 {dimension_numbers = #tpu.dot_dimension_numbers<[1], [0], [0], [1], [0, 0, 1, 1], [], []>} : vector<8x32xbf16>, vector<32x128xbf16>, vector<8x128xf32> -> vector<8x128xf32>
    %c0_22 = arith.constant 0 : index
    %c0_23 = arith.constant 0 : index
    %41 = vector.load %arg9[%c0_22, %c0_23] : memref<1x128xf32, #tpu.memory_space<vmem>>, vector<1x128xf32>
    %42 = vector.broadcast %41 : vector<1x128xf32> to vector<8x128xf32>
    %43 = arith.addf %40, %42 : vector<8x128xf32>
    %cst_24 = arith.constant 5.000000e-01 : f32
    %44 = vector.broadcast %cst_24 : f32 to vector<8x128xf32>
    %45 = arith.mulf %44, %43 : vector<8x128xf32>
    %cst_25 = arith.constant 0.707106769 : f32
    %46 = vector.broadcast %cst_25 : f32 to vector<8x128xf32>
    %47 = arith.mulf %43, %46 : vector<8x128xf32>
    %48 = math.erf %47 : vector<8x128xf32>
    %cst_26 = arith.constant 1.000000e+00 : f32
    %49 = vector.broadcast %cst_26 : f32 to vector<8x128xf32>
    %50 = arith.addf %49, %48 : vector<8x128xf32>
    %51 = arith.mulf %45, %50 : vector<8x128xf32>
    %52 = arith.truncf %51 : vector<8x128xf32> to vector<8x128xbf16>
    %c0_27 = arith.constant 0 : index
    %c0_28 = arith.constant 0 : index
    %53 = vector.load %arg10[%c0_27, %c0_28] : memref<128x32xbf16, #tpu.memory_space<vmem>>, vector<128x32xbf16>
    %cst_29 = arith.constant dense<0.000000e+00> : vector<8x32xf32>
    %54 = tpu.matmul %52, %53, %cst_29 {dimension_numbers = #tpu.dot_dimension_numbers<[1], [0], [0], [1], [0, 0, 1, 1], [], []>} : vector<8x128xbf16>, vector<128x32xbf16>, vector<8x32xf32> -> vector<8x32xf32>
    %c0_30 = arith.constant 0 : index
    %c0_31 = arith.constant 0 : index
    %55 = vector.load %arg11[%c0_30, %c0_31] : memref<1x32xf32, #tpu.memory_space<vmem>>, vector<1x32xf32>
    %56 = vector.broadcast %55 : vector<1x32xf32> to vector<8x32xf32>
    %57 = arith.addf %54, %56 : vector<8x32xf32>
    %58 = arith.addf %13, %57 : vector<8x32xf32>
    %59 = arith.truncf %58 : vector<8x32xf32> to vector<8x32xbf16>
    %c0_32 = arith.constant 0 : index
    %c0_33 = arith.constant 0 : index
    %c0_34 = arith.constant 0 : index
    %60 = vector.load %arg12[%c0_32, %c0_33, %c0_34] : memref<1x8x32xbf16, #tpu.memory_space<vmem>>, vector<1x8x32xbf16>
    %61 = vector.shape_cast %60 : vector<1x8x32xbf16> to vector<8x32xbf16>
    %62 = vector.shape_cast %59 : vector<8x32xbf16> to vector<1x8x32xbf16>
    tpu.vector_store %arg12[%c0_32, %c0_33, %c0_34], %62 {strides = array<i32>} : memref<1x8x32xbf16, #tpu.memory_space<vmem>>, vector<1x8x32xbf16>,
    return
  }
  func.func @transform_0(%arg0: i32, %arg1: i32) -> (i32, i32, i32) {
    %c0_i32 = arith.constant 0 : i32
    %c0_i32_0 = arith.constant 0 : i32
    return %arg0, %arg1, %c0_i32 : i32, i32, i32
  }
  func.func @transform_1(%arg0: i32, %arg1: i32) -> (i32, i32, i32, i32) {
    %c0_i32 = arith.constant 0 : i32
    %c0_i32_0 = arith.constant 0 : i32
    %c0_i32_1 = arith.constant 0 : i32
    return %arg0, %c0_i32, %arg1, %c0_i32_0 : i32, i32, i32, i32
  }
  func.func @transform_2(%arg0: i32, %arg1: i32) -> (i32, i32) {
    %c0_i32 = arith.constant 0 : i32
    %c0_i32_0 = arith.constant 0 : i32
    %c0_i32_1 = arith.constant 0 : i32
    return %c0_i32, %c0_i32_0 : i32, i32
  }
  func.func @transform_3(%arg0: i32, %arg1: i32) -> (i32, i32) {
    %c0_i32 = arith.constant 0 : i32
    %c0_i32_0 = arith.constant 0 : i32
    %c0_i32_1 = arith.constant 0 : i32
    return %c0_i32, %c0_i32_0 : i32, i32
  }
  func.func @transform_4(%arg0: i32, %arg1: i32) -> (i32, i32) {
    %c0_i32 = arith.constant 0 : i32
    %c0_i32_0 = arith.constant 0 : i32
    %c0_i32_1 = arith.constant 0 : i32
    return %c0_i32, %c0_i32_0 : i32, i32
  }
  func.func @transform_5(%arg0: i32, %arg1: i32) -> (i32, i32) {
    %c0_i32 = arith.constant 0 : i32
    %c0_i32_0 = arith.constant 0 : i32
    %c0_i32_1 = arith.constant 0 : i32
    return %c0_i32, %c0_i32_0 : i32, i32
  }
  func.func @transform_6(%arg0: i32, %arg1: i32) -> (i32, i32) {
    %c0_i32 = arith.constant 0 : i32
    %c0_i32_0 = arith.constant 0 : i32
    %c0_i32_1 = arith.constant 0 : i32
    return %c0_i32, %c0_i32_0 : i32, i32
  }
  func.func @transform_7(%arg0: i32, %arg1: i32) -> (i32, i32) {
    %c0_i32 = arith.constant 0 : i32
    %c0_i32_0 = arith.constant 0 : i32
    %c0_i32_1 = arith.constant 0 : i32
    return %c0_i32, %c0_i32_0 : i32, i32
  }
  func.func @transform_8(%arg0: i32, %arg1: i32) -> (i32, i32) {
    %c0_i32 = arith.constant 0 : i32
    %c0_i32_0 = arith.constant 0 : i32
    %c0_i32_1 = arith.constant 0 : i32
    return %c0_i32, %c0_i32_0 : i32, i32
  }
  func.func @transform_9(%arg0: i32, %arg1: i32) -> (i32, i32) {
    %c0_i32 = arith.constant 0 : i32
    %c0_i32_0 = arith.constant 0 : i32
    %c0_i32_1 = arith.constant 0 : i32
    return %c0_i32, %c0_i32_0 : i32, i32
  }
  func.func @transform_10(%arg0: i32, %arg1: i32) -> (i32, i32, i32) {
    %c0_i32 = arith.constant 0 : i32
    %c0_i32_0 = arith.constant 0 : i32
    return %arg0, %arg1, %c0_i32 : i32, i32, i32
  }
}

module attributes {stable_mosaic.version = 11 : i64} {
  func.func @final_ln_kernel(%arg0: i32, %arg1: memref<16x32xbf16, #tpu.memory_space<vmem>>, %arg2: memref<1x32xf32, #tpu.memory_space<vmem>>, %arg3: memref<1x32xf32, #tpu.memory_space<vmem>>, %arg4: memref<16x32xbf16, #tpu.memory_space<vmem>>) attributes {dimension_semantics = [#tpu.dimension_semantics<parallel>], iteration_bounds = array<i64: 1>, scalar_prefetch = 0 : i64, scratch_operands = 0 : i64, tpu.core_type = #tpu.core_type<tc>, window_params = [{transform_indices = @transform_0, window_bounds = array<i64: 16, 32>}, {pipeline_mode = #tpu.pipeline_mode<synchronous>, transform_indices = @transform_1, window_bounds = array<i64: 1, 32>}, {pipeline_mode = #tpu.pipeline_mode<synchronous>, transform_indices = @transform_2, window_bounds = array<i64: 1, 32>}, {transform_indices = @transform_3, window_bounds = array<i64: 16, 32>}]} {
    %c0 = arith.constant 0 : index
    %c0_0 = arith.constant 0 : index
    %0 = vector.load %arg1[%c0, %c0_0] : memref<16x32xbf16, #tpu.memory_space<vmem>>, vector<16x32xbf16>
    %1 = arith.extf %0 : vector<16x32xbf16> to vector<16x32xf32>
    %c0_1 = arith.constant 0 : index
    %c0_2 = arith.constant 0 : index
    %2 = vector.load %arg2[%c0_1, %c0_2] : memref<1x32xf32, #tpu.memory_space<vmem>>, vector<1x32xf32>
    %c0_3 = arith.constant 0 : index
    %c0_4 = arith.constant 0 : index
    %3 = vector.load %arg3[%c0_3, %c0_4] : memref<1x32xf32, #tpu.memory_space<vmem>>, vector<1x32xf32>
    %cst = arith.constant dense<0.000000e+00> : vector<16xf32>
    %4 = vector.multi_reduction <add>, %1, %cst [1] : vector<16x32xf32> to vector<16xf32>
    %5 = vector.shape_cast %4 : vector<16xf32> to vector<16x1xf32>
    %cst_5 = arith.constant 3.200000e+01 : f32
    %6 = vector.broadcast %cst_5 : f32 to vector<16x1xf32>
    %7 = arith.divf %5, %6 : vector<16x1xf32>
    %8 = vector.broadcast %7 : vector<16x1xf32> to vector<16x32xf32>
    %9 = arith.subf %1, %8 : vector<16x32xf32>
    %10 = arith.mulf %9, %9 : vector<16x32xf32>
    %cst_6 = arith.constant dense<0.000000e+00> : vector<16xf32>
    %11 = vector.multi_reduction <add>, %10, %cst_6 [1] : vector<16x32xf32> to vector<16xf32>
    %12 = vector.shape_cast %11 : vector<16xf32> to vector<16x1xf32>
    %cst_7 = arith.constant 3.200000e+01 : f32
    %13 = vector.broadcast %cst_7 : f32 to vector<16x1xf32>
    %14 = arith.divf %12, %13 : vector<16x1xf32>
    %15 = vector.broadcast %7 : vector<16x1xf32> to vector<16x32xf32>
    %16 = arith.subf %1, %15 : vector<16x32xf32>
    %cst_8 = arith.constant 9.99999974E-6 : f32
    %17 = vector.broadcast %cst_8 : f32 to vector<16x1xf32>
    %18 = arith.addf %14, %17 : vector<16x1xf32>
    %19 = math.rsqrt %18 : vector<16x1xf32>
    %20 = vector.broadcast %19 : vector<16x1xf32> to vector<16x32xf32>
    %21 = arith.mulf %16, %20 : vector<16x32xf32>
    %22 = vector.broadcast %2 : vector<1x32xf32> to vector<16x32xf32>
    %23 = arith.mulf %21, %22 : vector<16x32xf32>
    %24 = vector.broadcast %3 : vector<1x32xf32> to vector<16x32xf32>
    %25 = arith.addf %23, %24 : vector<16x32xf32>
    %26 = arith.truncf %25 : vector<16x32xf32> to vector<16x32xbf16>
    %c0_9 = arith.constant 0 : index
    %c0_10 = arith.constant 0 : index
    %27 = vector.load %arg4[%c0_9, %c0_10] : memref<16x32xbf16, #tpu.memory_space<vmem>>, vector<16x32xbf16>
    tpu.vector_store %arg4[%c0_9, %c0_10], %26 {strides = array<i32>} : memref<16x32xbf16, #tpu.memory_space<vmem>>, vector<16x32xbf16>,
    return
  }
  func.func @transform_0(%arg0: i32) -> (i32, i32) {
    %c0_i32 = arith.constant 0 : i32
    %c0_i32_0 = arith.constant 0 : i32
    return %arg0, %c0_i32 : i32, i32
  }
  func.func @transform_1(%arg0: i32) -> (i32, i32) {
    %c0_i32 = arith.constant 0 : i32
    %c0_i32_0 = arith.constant 0 : i32
    %c0_i32_1 = arith.constant 0 : i32
    return %c0_i32, %c0_i32_0 : i32, i32
  }
  func.func @transform_2(%arg0: i32) -> (i32, i32) {
    %c0_i32 = arith.constant 0 : i32
    %c0_i32_0 = arith.constant 0 : i32
    %c0_i32_1 = arith.constant 0 : i32
    return %c0_i32, %c0_i32_0 : i32, i32
  }
  func.func @transform_3(%arg0: i32) -> (i32, i32) {
    %c0_i32 = arith.constant 0 : i32
    %c0_i32_0 = arith.constant 0 : i32
    return %arg0, %c0_i32 : i32, i32
  }
}

module attributes {stable_mosaic.version = 11 : i64} {
  func.func @head_kernel(%arg0: i32, %arg1: i32, %arg2: memref<16x32xbf16, #tpu.memory_space<vmem>>, %arg3: memref<32x64xbf16, #tpu.memory_space<vmem>>, %arg4: memref<16x64xf32, #tpu.memory_space<vmem>>) attributes {dimension_semantics = [#tpu.dimension_semantics<parallel>, #tpu.dimension_semantics<parallel>], iteration_bounds = array<i64: 1, 1>, scalar_prefetch = 0 : i64, scratch_operands = 0 : i64, tpu.core_type = #tpu.core_type<tc>, window_params = [{transform_indices = @transform_0, window_bounds = array<i64: 16, 32>}, {transform_indices = @transform_1, window_bounds = array<i64: 32, 64>}, {transform_indices = @transform_2, window_bounds = array<i64: 16, 64>}]} {
    %c0 = arith.constant 0 : index
    %c0_0 = arith.constant 0 : index
    %0 = vector.load %arg2[%c0, %c0_0] : memref<16x32xbf16, #tpu.memory_space<vmem>>, vector<16x32xbf16>
    %c0_1 = arith.constant 0 : index
    %c0_2 = arith.constant 0 : index
    %1 = vector.load %arg3[%c0_1, %c0_2] : memref<32x64xbf16, #tpu.memory_space<vmem>>, vector<32x64xbf16>
    %cst = arith.constant dense<0.000000e+00> : vector<16x64xf32>
    %2 = tpu.matmul %0, %1, %cst {dimension_numbers = #tpu.dot_dimension_numbers<[1], [0], [0], [1], [0, 0, 1, 1], [], []>} : vector<16x32xbf16>, vector<32x64xbf16>, vector<16x64xf32> -> vector<16x64xf32>
    %c0_3 = arith.constant 0 : index
    %c0_4 = arith.constant 0 : index
    %3 = vector.load %arg4[%c0_3, %c0_4] : memref<16x64xf32, #tpu.memory_space<vmem>>, vector<16x64xf32>
    tpu.vector_store %arg4[%c0_3, %c0_4], %2 {strides = array<i32>} : memref<16x64xf32, #tpu.memory_space<vmem>>, vector<16x64xf32>,
    return
  }
  func.func @transform_0(%arg0: i32, %arg1: i32) -> (i32, i32) {
    %c0_i32 = arith.constant 0 : i32
    %c0_i32_0 = arith.constant 0 : i32
    return %arg1, %c0_i32 : i32, i32
  }
  func.func @transform_1(%arg0: i32, %arg1: i32) -> (i32, i32) {
    %c0_i32 = arith.constant 0 : i32
    %c0_i32_0 = arith.constant 0 : i32
    return %c0_i32, %arg0 : i32, i32
  }
  func.func @transform_2(%arg0: i32, %arg1: i32) -> (i32, i32) {
    %c0_i32 = arith.constant 0 : i32
    return %arg1, %arg0 : i32, i32
  }
}

module attributes {stable_mosaic.version = 11 : i64} {
  func.func @ln_qkv_kernel(%arg0: i32, %arg1: i32, %arg2: memref<1x8x32xbf16, #tpu.memory_space<vmem>>, %arg3: memref<1x32xf32, #tpu.memory_space<vmem>>, %arg4: memref<1x32xf32, #tpu.memory_space<vmem>>, %arg5: memref<32x96xbf16, #tpu.memory_space<vmem>>, %arg6: memref<1x96xf32, #tpu.memory_space<vmem>>, %arg7: memref<1x4x8x8xbf16, #tpu.memory_space<vmem>>, %arg8: memref<1x4x8x8xbf16, #tpu.memory_space<vmem>>, %arg9: memref<1x4x8x8xbf16, #tpu.memory_space<vmem>>) attributes {dimension_semantics = [#tpu.dimension_semantics<parallel>, #tpu.dimension_semantics<parallel>], iteration_bounds = array<i64: 2, 1>, scalar_prefetch = 0 : i64, scratch_operands = 0 : i64, tpu.core_type = #tpu.core_type<tc>, window_params = [{transform_indices = @transform_0, window_bounds = array<i64: 1, 8, 32>}, {pipeline_mode = #tpu.pipeline_mode<synchronous>, transform_indices = @transform_1, window_bounds = array<i64: 1, 32>}, {pipeline_mode = #tpu.pipeline_mode<synchronous>, transform_indices = @transform_2, window_bounds = array<i64: 1, 32>}, {pipeline_mode = #tpu.pipeline_mode<synchronous>, transform_indices = @transform_3, window_bounds = array<i64: 32, 96>}, {pipeline_mode = #tpu.pipeline_mode<synchronous>, transform_indices = @transform_4, window_bounds = array<i64: 1, 96>}, {transform_indices = @transform_5, window_bounds = array<i64: 1, 4, 8, 8>}, {transform_indices = @transform_6, window_bounds = array<i64: 1, 4, 8, 8>}, {transform_indices = @transform_7, window_bounds = array<i64: 1, 4, 8, 8>}]} {
    %c0 = arith.constant 0 : index
    %c0_0 = arith.constant 0 : index
    %c0_1 = arith.constant 0 : index
    %0 = vector.load %arg2[%c0, %c0_0, %c0_1] : memref<1x8x32xbf16, #tpu.memory_space<vmem>>, vector<1x8x32xbf16>
    %1 = vector.shape_cast %0 : vector<1x8x32xbf16> to vector<8x32xbf16>
    %2 = arith.extf %1 : vector<8x32xbf16> to vector<8x32xf32>
    %c0_2 = arith.constant 0 : index
    %c0_3 = arith.constant 0 : index
    %3 = vector.load %arg3[%c0_2, %c0_3] : memref<1x32xf32, #tpu.memory_space<vmem>>, vector<1x32xf32>
    %c0_4 = arith.constant 0 : index
    %c0_5 = arith.constant 0 : index
    %4 = vector.load %arg4[%c0_4, %c0_5] : memref<1x32xf32, #tpu.memory_space<vmem>>, vector<1x32xf32>
    %cst = arith.constant dense<0.000000e+00> : vector<8xf32>
    %5 = vector.multi_reduction <add>, %2, %cst [1] : vector<8x32xf32> to vector<8xf32>
    %6 = vector.shape_cast %5 : vector<8xf32> to vector<8x1xf32>
    %cst_6 = arith.constant 3.200000e+01 : f32
    %7 = vector.broadcast %cst_6 : f32 to vector<8x1xf32>
    %8 = arith.divf %6, %7 : vector<8x1xf32>
    %9 = vector.broadcast %8 : vector<8x1xf32> to vector<8x32xf32>
    %10 = arith.subf %2, %9 : vector<8x32xf32>
    %11 = arith.mulf %10, %10 : vector<8x32xf32>
    %cst_7 = arith.constant dense<0.000000e+00> : vector<8xf32>
    %12 = vector.multi_reduction <add>, %11, %cst_7 [1] : vector<8x32xf32> to vector<8xf32>
    %13 = vector.shape_cast %12 : vector<8xf32> to vector<8x1xf32>
    %cst_8 = arith.constant 3.200000e+01 : f32
    %14 = vector.broadcast %cst_8 : f32 to vector<8x1xf32>
    %15 = arith.divf %13, %14 : vector<8x1xf32>
    %16 = vector.broadcast %8 : vector<8x1xf32> to vector<8x32xf32>
    %17 = arith.subf %2, %16 : vector<8x32xf32>
    %cst_9 = arith.constant 9.99999974E-6 : f32
    %18 = vector.broadcast %cst_9 : f32 to vector<8x1xf32>
    %19 = arith.addf %15, %18 : vector<8x1xf32>
    %20 = math.rsqrt %19 : vector<8x1xf32>
    %21 = vector.broadcast %20 : vector<8x1xf32> to vector<8x32xf32>
    %22 = arith.mulf %17, %21 : vector<8x32xf32>
    %23 = vector.broadcast %3 : vector<1x32xf32> to vector<8x32xf32>
    %24 = arith.mulf %22, %23 : vector<8x32xf32>
    %25 = vector.broadcast %4 : vector<1x32xf32> to vector<8x32xf32>
    %26 = arith.addf %24, %25 : vector<8x32xf32>
    %27 = arith.truncf %26 : vector<8x32xf32> to vector<8x32xbf16>
    %c0_10 = arith.constant 0 : index
    %c0_11 = arith.constant 0 : index
    %28 = vector.load %arg5[%c0_10, %c0_11] : memref<32x96xbf16, #tpu.memory_space<vmem>>, vector<32x96xbf16>
    %cst_12 = arith.constant dense<0.000000e+00> : vector<8x96xf32>
    %29 = tpu.matmul %27, %28, %cst_12 {dimension_numbers = #tpu.dot_dimension_numbers<[1], [0], [0], [1], [0, 0, 1, 1], [], []>} : vector<8x32xbf16>, vector<32x96xbf16>, vector<8x96xf32> -> vector<8x96xf32>
    %c0_13 = arith.constant 0 : index
    %c0_14 = arith.constant 0 : index
    %30 = vector.load %arg6[%c0_13, %c0_14] : memref<1x96xf32, #tpu.memory_space<vmem>>, vector<1x96xf32>
    %31 = vector.broadcast %30 : vector<1x96xf32> to vector<8x96xf32>
    %32 = arith.addf %29, %31 : vector<8x96xf32>
    %33 = tpu.transpose %32, [1, 0] : vector<8x96xf32> -> vector<96x8xf32>
    %34 = vector.shape_cast %33 : vector<96x8xf32> to vector<12x8x8xf32>
    %35 = vector.extract_strided_slice %34 {offsets = [0, 0, 0], sizes = [4, 8, 8], strides = [1, 1, 1]} : vector<12x8x8xf32> to vector<4x8x8xf32>
    %36 = tpu.transpose %35, [0, 2, 1] : vector<4x8x8xf32> -> vector<4x8x8xf32>
    %37 = arith.truncf %36 : vector<4x8x8xf32> to vector<4x8x8xbf16>
    %c0_15 = arith.constant 0 : index
    %c0_16 = arith.constant 0 : index
    %c0_17 = arith.constant 0 : index
    %c0_18 = arith.constant 0 : index
    %38 = vector.load %arg7[%c0_15, %c0_16, %c0_17, %c0_18] : memref<1x4x8x8xbf16, #tpu.memory_space<vmem>>, vector<1x4x8x8xbf16>
    %39 = vector.shape_cast %38 : vector<1x4x8x8xbf16> to vector<4x8x8xbf16>
    %40 = vector.shape_cast %37 : vector<4x8x8xbf16> to vector<1x4x8x8xbf16>
    tpu.vector_store %arg7[%c0_15, %c0_16, %c0_17, %c0_18], %40 {strides = array<i32>} : memref<1x4x8x8xbf16, #tpu.memory_space<vmem>>, vector<1x4x8x8xbf16>,
    %41 = vector.extract_strided_slice %34 {offsets = [4, 0, 0], sizes = [4, 8, 8], strides = [1, 1, 1]} : vector<12x8x8xf32> to vector<4x8x8xf32>
    %42 = tpu.transpose %41, [0, 2, 1] : vector<4x8x8xf32> -> vector<4x8x8xf32>
    %43 = arith.truncf %42 : vector<4x8x8xf32> to vector<4x8x8xbf16>
    %c0_19 = arith.constant 0 : index
    %c0_20 = arith.constant 0 : index
    %c0_21 = arith.constant 0 : index
    %c0_22 = arith.constant 0 : index
    %44 = vector.load %arg8[%c0_19, %c0_20, %c0_21, %c0_22] : memref<1x4x8x8xbf16, #tpu.memory_space<vmem>>, vector<1x4x8x8xbf16>
    %45 = vector.shape_cast %44 : vector<1x4x8x8xbf16> to vector<4x8x8xbf16>
    %46 = vector.shape_cast %43 : vector<4x8x8xbf16> to vector<1x4x8x8xbf16>
    tpu.vector_store %arg8[%c0_19, %c0_20, %c0_21, %c0_22], %46 {strides = array<i32>} : memref<1x4x8x8xbf16, #tpu.memory_space<vmem>>, vector<1x4x8x8xbf16>,
    %47 = vector.extract_strided_slice %34 {offsets = [8, 0, 0], sizes = [4, 8, 8], strides = [1, 1, 1]} : vector<12x8x8xf32> to vector<4x8x8xf32>
    %48 = tpu.transpose %47, [0, 2, 1] : vector<4x8x8xf32> -> vector<4x8x8xf32>
    %49 = arith.truncf %48 : vector<4x8x8xf32> to vector<4x8x8xbf16>
    %c0_23 = arith.constant 0 : index
    %c0_24 = arith.constant 0 : index
    %c0_25 = arith.constant 0 : index
    %c0_26 = arith.constant 0 : index
    %50 = vector.load %arg9[%c0_23, %c0_24, %c0_25, %c0_26] : memref<1x4x8x8xbf16, #tpu.memory_space<vmem>>, vector<1x4x8x8xbf16>
    %51 = vector.shape_cast %50 : vector<1x4x8x8xbf16> to vector<4x8x8xbf16>
    %52 = vector.shape_cast %49 : vector<4x8x8xbf16> to vector<1x4x8x8xbf16>
    tpu.vector_store %arg9[%c0_23, %c0_24, %c0_25, %c0_26], %52 {strides = array<i32>} : memref<1x4x8x8xbf16, #tpu.memory_space<vmem>>, vector<1x4x8x8xbf16>,
    return
  }
  func.func @transform_0(%arg0: i32, %arg1: i32) -> (i32, i32, i32) {
    %c0_i32 = arith.constant 0 : i32
    %c0_i32_0 = arith.constant 0 : i32
    return %arg0, %arg1, %c0_i32 : i32, i32, i32
  }
  func.func @transform_1(%arg0: i32, %arg1: i32) -> (i32, i32) {
    %c0_i32 = arith.constant 0 : i32
    %c0_i32_0 = arith.constant 0 : i32
    %c0_i32_1 = arith.constant 0 : i32
    return %c0_i32, %c0_i32_0 : i32, i32
  }
  func.func @transform_2(%arg0: i32, %arg1: i32) -> (i32, i32) {
    %c0_i32 = arith.constant 0 : i32
    %c0_i32_0 = arith.constant 0 : i32
    %c0_i32_1 = arith.constant 0 : i32
    return %c0_i32, %c0_i32_0 : i32, i32
  }
  func.func @transform_3(%arg0: i32, %arg1: i32) -> (i32, i32) {
    %c0_i32 = arith.constant 0 : i32
    %c0_i32_0 = arith.constant 0 : i32
    %c0_i32_1 = arith.constant 0 : i32
    return %c0_i32, %c0_i32_0 : i32, i32
  }
  func.func @transform_4(%arg0: i32, %arg1: i32) -> (i32, i32) {
    %c0_i32 = arith.constant 0 : i32
    %c0_i32_0 = arith.constant 0 : i32
    %c0_i32_1 = arith.constant 0 : i32
    return %c0_i32, %c0_i32_0 : i32, i32
  }
  func.func @transform_5(%arg0: i32, %arg1: i32) -> (i32, i32, i32, i32) {
    %c0_i32 = arith.constant 0 : i32
    %c0_i32_0 = arith.constant 0 : i32
    %c0_i32_1 = arith.constant 0 : i32
    return %arg0, %c0_i32, %arg1, %c0_i32_0 : i32, i32, i32, i32
  }
  func.func @transform_6(%arg0: i32, %arg1: i32) -> (i32, i32, i32, i32) {
    %c0_i32 = arith.constant 0 : i32
    %c0_i32_0 = arith.constant 0 : i32
    %c0_i32_1 = arith.constant 0 : i32
    return %arg0, %c0_i32, %arg1, %c0_i32_0 : i32, i32, i32, i32
  }
  func.func @transform_7(%arg0: i32, %arg1: i32) -> (i32, i32, i32, i32) {
    %c0_i32 = arith.constant 0 : i32
    %c0_i32_0 = arith.constant 0 : i32
    %c0_i32_1 = arith.constant 0 : i32
    return %arg0, %c0_i32, %arg1, %c0_i32_0 : i32, i32, i32, i32
  }
}

module attributes {stable_mosaic.version = 11 : i64} {
  func.func @attn_out_mlp_kernel(%arg0: i32, %arg1: i32, %arg2: memref<1x8x32xbf16, #tpu.memory_space<vmem>>, %arg3: memref<1x4x8x8xbf16, #tpu.memory_space<vmem>>, %arg4: memref<32x32xbf16, #tpu.memory_space<vmem>>, %arg5: memref<1x32xf32, #tpu.memory_space<vmem>>, %arg6: memref<1x32xf32, #tpu.memory_space<vmem>>, %arg7: memref<1x32xf32, #tpu.memory_space<vmem>>, %arg8: memref<32x128xbf16, #tpu.memory_space<vmem>>, %arg9: memref<1x128xf32, #tpu.memory_space<vmem>>, %arg10: memref<128x32xbf16, #tpu.memory_space<vmem>>, %arg11: memref<1x32xf32, #tpu.memory_space<vmem>>, %arg12: memref<1x8x32xbf16, #tpu.memory_space<vmem>>) attributes {dimension_semantics = [#tpu.dimension_semantics<parallel>, #tpu.dimension_semantics<parallel>], iteration_bounds = array<i64: 2, 1>, scalar_prefetch = 0 : i64, scratch_operands = 0 : i64, tpu.core_type = #tpu.core_type<tc>, window_params = [{transform_indices = @transform_0, window_bounds = array<i64: 1, 8, 32>}, {transform_indices = @transform_1, window_bounds = array<i64: 1, 4, 8, 8>}, {pipeline_mode = #tpu.pipeline_mode<synchronous>, transform_indices = @transform_2, window_bounds = array<i64: 32, 32>}, {pipeline_mode = #tpu.pipeline_mode<synchronous>, transform_indices = @transform_3, window_bounds = array<i64: 1, 32>}, {pipeline_mode = #tpu.pipeline_mode<synchronous>, transform_indices = @transform_4, window_bounds = array<i64: 1, 32>}, {pipeline_mode = #tpu.pipeline_mode<synchronous>, transform_indices = @transform_5, window_bounds = array<i64: 1, 32>}, {pipeline_mode = #tpu.pipeline_mode<synchronous>, transform_indices = @transform_6, window_bounds = array<i64: 32, 128>}, {pipeline_mode = #tpu.pipeline_mode<synchronous>, transform_indices = @transform_7, window_bounds = array<i64: 1, 128>}, {pipeline_mode = #tpu.pipeline_mode<synchronous>, transform_indices = @transform_8, window_bounds = array<i64: 128, 32>}, {pipeline_mode = #tpu.pipeline_mode<synchronous>, transform_indices = @transform_9, window_bounds = array<i64: 1, 32>}, {transform_indices = @transform_10, window_bounds = array<i64: 1, 8, 32>}]} {
    %c0 = arith.constant 0 : index
    %c0_0 = arith.constant 0 : index
    %c0_1 = arith.constant 0 : index
    %0 = vector.load %arg2[%c0, %c0_0, %c0_1] : memref<1x8x32xbf16, #tpu.memory_space<vmem>>, vector<1x8x32xbf16>
    %1 = vector.shape_cast %0 : vector<1x8x32xbf16> to vector<8x32xbf16>
    %2 = arith.extf %1 : vector<8x32xbf16> to vector<8x32xf32>
    %c0_2 = arith.constant 0 : index
    %c0_3 = arith.constant 0 : index
    %c0_4 = arith.constant 0 : index
    %c0_5 = arith.constant 0 : index
    %3 = vector.load %arg3[%c0_2, %c0_3, %c0_4, %c0_5] : memref<1x4x8x8xbf16, #tpu.memory_space<vmem>>, vector<1x4x8x8xbf16>
    %4 = vector.shape_cast %3 : vector<1x4x8x8xbf16> to vector<4x8x8xbf16>
    %5 = tpu.transpose %4, [0, 2, 1] : vector<4x8x8xbf16> -> vector<4x8x8xbf16>
    %6 = vector.shape_cast %5 : vector<4x8x8xbf16> to vector<32x8xbf16>
    %7 = tpu.transpose %6, [1, 0] : vector<32x8xbf16> -> vector<8x32xbf16>
    %c0_6 = arith.constant 0 : index
    %c0_7 = arith.constant 0 : index
    %8 = vector.load %arg4[%c0_6, %c0_7] : memref<32x32xbf16, #tpu.memory_space<vmem>>, vector<32x32xbf16>
    %cst = arith.constant dense<0.000000e+00> : vector<8x32xf32>
    %9 = tpu.matmul %7, %8, %cst {dimension_numbers = #tpu.dot_dimension_numbers<[1], [0], [0], [1], [0, 0, 1, 1], [], []>} : vector<8x32xbf16>, vector<32x32xbf16>, vector<8x32xf32> -> vector<8x32xf32>
    %c0_8 = arith.constant 0 : index
    %c0_9 = arith.constant 0 : index
    %10 = vector.load %arg5[%c0_8, %c0_9] : memref<1x32xf32, #tpu.memory_space<vmem>>, vector<1x32xf32>
    %11 = vector.broadcast %10 : vector<1x32xf32> to vector<8x32xf32>
    %12 = arith.addf %9, %11 : vector<8x32xf32>
    %13 = arith.addf %2, %12 : vector<8x32xf32>
    %c0_10 = arith.constant 0 : index
    %c0_11 = arith.constant 0 : index
    %14 = vector.load %arg6[%c0_10, %c0_11] : memref<1x32xf32, #tpu.memory_space<vmem>>, vector<1x32xf32>
    %c0_12 = arith.constant 0 : index
    %c0_13 = arith.constant 0 : index
    %15 = vector.load %arg7[%c0_12, %c0_13] : memref<1x32xf32, #tpu.memory_space<vmem>>, vector<1x32xf32>
    %cst_14 = arith.constant dense<0.000000e+00> : vector<8xf32>
    %16 = vector.multi_reduction <add>, %13, %cst_14 [1] : vector<8x32xf32> to vector<8xf32>
    %17 = vector.shape_cast %16 : vector<8xf32> to vector<8x1xf32>
    %cst_15 = arith.constant 3.200000e+01 : f32
    %18 = vector.broadcast %cst_15 : f32 to vector<8x1xf32>
    %19 = arith.divf %17, %18 : vector<8x1xf32>
    %20 = vector.broadcast %19 : vector<8x1xf32> to vector<8x32xf32>
    %21 = arith.subf %13, %20 : vector<8x32xf32>
    %22 = arith.mulf %21, %21 : vector<8x32xf32>
    %cst_16 = arith.constant dense<0.000000e+00> : vector<8xf32>
    %23 = vector.multi_reduction <add>, %22, %cst_16 [1] : vector<8x32xf32> to vector<8xf32>
    %24 = vector.shape_cast %23 : vector<8xf32> to vector<8x1xf32>
    %cst_17 = arith.constant 3.200000e+01 : f32
    %25 = vector.broadcast %cst_17 : f32 to vector<8x1xf32>
    %26 = arith.divf %24, %25 : vector<8x1xf32>
    %27 = vector.broadcast %19 : vector<8x1xf32> to vector<8x32xf32>
    %28 = arith.subf %13, %27 : vector<8x32xf32>
    %cst_18 = arith.constant 9.99999974E-6 : f32
    %29 = vector.broadcast %cst_18 : f32 to vector<8x1xf32>
    %30 = arith.addf %26, %29 : vector<8x1xf32>
    %31 = math.rsqrt %30 : vector<8x1xf32>
    %32 = vector.broadcast %31 : vector<8x1xf32> to vector<8x32xf32>
    %33 = arith.mulf %28, %32 : vector<8x32xf32>
    %34 = vector.broadcast %14 : vector<1x32xf32> to vector<8x32xf32>
    %35 = arith.mulf %33, %34 : vector<8x32xf32>
    %36 = vector.broadcast %15 : vector<1x32xf32> to vector<8x32xf32>
    %37 = arith.addf %35, %36 : vector<8x32xf32>
    %38 = arith.truncf %37 : vector<8x32xf32> to vector<8x32xbf16>
    %c0_19 = arith.constant 0 : index
    %c0_20 = arith.constant 0 : index
    %39 = vector.load %arg8[%c0_19, %c0_20] : memref<32x128xbf16, #tpu.memory_space<vmem>>, vector<32x128xbf16>
    %cst_21 = arith.constant dense<0.000000e+00> : vector<8x128xf32>
    %40 = tpu.matmul %38, %39, %cst_21 {dimension_numbers = #tpu.dot_dimension_numbers<[1], [0], [0], [1], [0, 0, 1, 1], [], []>} : vector<8x32xbf16>, vector<32x128xbf16>, vector<8x128xf32> -> vector<8x128xf32>
    %c0_22 = arith.constant 0 : index
    %c0_23 = arith.constant 0 : index
    %41 = vector.load %arg9[%c0_22, %c0_23] : memref<1x128xf32, #tpu.memory_space<vmem>>, vector<1x128xf32>
    %42 = vector.broadcast %41 : vector<1x128xf32> to vector<8x128xf32>
    %43 = arith.addf %40, %42 : vector<8x128xf32>
    %cst_24 = arith.constant 5.000000e-01 : f32
    %44 = vector.broadcast %cst_24 : f32 to vector<8x128xf32>
    %45 = arith.mulf %44, %43 : vector<8x128xf32>
    %cst_25 = arith.constant 0.707106769 : f32
    %46 = vector.broadcast %cst_25 : f32 to vector<8x128xf32>
    %47 = arith.mulf %43, %46 : vector<8x128xf32>
    %48 = math.erf %47 : vector<8x128xf32>
    %cst_26 = arith.constant 1.000000e+00 : f32
    %49 = vector.broadcast %cst_26 : f32 to vector<8x128xf32>
    %50 = arith.addf %49, %48 : vector<8x128xf32>
    %51 = arith.mulf %45, %50 : vector<8x128xf32>
    %52 = arith.truncf %51 : vector<8x128xf32> to vector<8x128xbf16>
    %c0_27 = arith.constant 0 : index
    %c0_28 = arith.constant 0 : index
    %53 = vector.load %arg10[%c0_27, %c0_28] : memref<128x32xbf16, #tpu.memory_space<vmem>>, vector<128x32xbf16>
    %cst_29 = arith.constant dense<0.000000e+00> : vector<8x32xf32>
    %54 = tpu.matmul %52, %53, %cst_29 {dimension_numbers = #tpu.dot_dimension_numbers<[1], [0], [0], [1], [0, 0, 1, 1], [], []>} : vector<8x128xbf16>, vector<128x32xbf16>, vector<8x32xf32> -> vector<8x32xf32>
    %c0_30 = arith.constant 0 : index
    %c0_31 = arith.constant 0 : index
    %55 = vector.load %arg11[%c0_30, %c0_31] : memref<1x32xf32, #tpu.memory_space<vmem>>, vector<1x32xf32>
    %56 = vector.broadcast %55 : vector<1x32xf32> to vector<8x32xf32>
    %57 = arith.addf %54, %56 : vector<8x32xf32>
    %58 = arith.addf %13, %57 : vector<8x32xf32>
    %59 = arith.truncf %58 : vector<8x32xf32> to vector<8x32xbf16>
    %c0_32 = arith.constant 0 : index
    %c0_33 = arith.constant 0 : index
    %c0_34 = arith.constant 0 : index
    %60 = vector.load %arg12[%c0_32, %c0_33, %c0_34] : memref<1x8x32xbf16, #tpu.memory_space<vmem>>, vector<1x8x32xbf16>
    %61 = vector.shape_cast %60 : vector<1x8x32xbf16> to vector<8x32xbf16>
    %62 = vector.shape_cast %59 : vector<8x32xbf16> to vector<1x8x32xbf16>
    tpu.vector_store %arg12[%c0_32, %c0_33, %c0_34], %62 {strides = array<i32>} : memref<1x8x32xbf16, #tpu.memory_space<vmem>>, vector<1x8x32xbf16>,
    return
  }
  func.func @transform_0(%arg0: i32, %arg1: i32) -> (i32, i32, i32) {
    %c0_i32 = arith.constant 0 : i32
    %c0_i32_0 = arith.constant 0 : i32
    return %arg0, %arg1, %c0_i32 : i32, i32, i32
  }
  func.func @transform_1(%arg0: i32, %arg1: i32) -> (i32, i32, i32, i32) {
    %c0_i32 = arith.constant 0 : i32
    %c0_i32_0 = arith.constant 0 : i32
    %c0_i32_1 = arith.constant 0 : i32
    return %arg0, %c0_i32, %arg1, %c0_i32_0 : i32, i32, i32, i32
  }
  func.func @transform_2(%arg0: i32, %arg1: i32) -> (i32, i32) {
    %c0_i32 = arith.constant 0 : i32
    %c0_i32_0 = arith.constant 0 : i32
    %c0_i32_1 = arith.constant 0 : i32
    return %c0_i32, %c0_i32_0 : i32, i32
  }
  func.func @transform_3(%arg0: i32, %arg1: i32) -> (i32, i32) {
    %c0_i32 = arith.constant 0 : i32
    %c0_i32_0 = arith.constant 0 : i32
    %c0_i32_1 = arith.constant 0 : i32
    return %c0_i32, %c0_i32_0 : i32, i32
  }
  func.func @transform_4(%arg0: i32, %arg1: i32) -> (i32, i32) {
    %c0_i32 = arith.constant 0 : i32
    %c0_i32_0 = arith.constant 0 : i32
    %c0_i32_1 = arith.constant 0 : i32
    return %c0_i32, %c0_i32_0 : i32, i32
  }
  func.func @transform_5(%arg0: i32, %arg1: i32) -> (i32, i32) {
    %c0_i32 = arith.constant 0 : i32
    %c0_i32_0 = arith.constant 0 : i32
    %c0_i32_1 = arith.constant 0 : i32
    return %c0_i32, %c0_i32_0 : i32, i32
  }
  func.func @transform_6(%arg0: i32, %arg1: i32) -> (i32, i32) {
    %c0_i32 = arith.constant 0 : i32
    %c0_i32_0 = arith.constant 0 : i32
    %c0_i32_1 = arith.constant 0 : i32
    return %c0_i32, %c0_i32_0 : i32, i32
  }
  func.func @transform_7(%arg0: i32, %arg1: i32) -> (i32, i32) {
    %c0_i32 = arith.constant 0 : i32
    %c0_i32_0 = arith.constant 0 : i32
    %c0_i32_1 = arith.constant 0 : i32
    return %c0_i32, %c0_i32_0 : i32, i32
  }
  func.func @transform_8(%arg0: i32, %arg1: i32) -> (i32, i32) {
    %c0_i32 = arith.constant 0 : i32
    %c0_i32_0 = arith.constant 0 : i32
    %c0_i32_1 = arith.constant 0 : i32
    return %c0_i32, %c0_i32_0 : i32, i32
  }
  func.func @transform_9(%arg0: i32, %arg1: i32) -> (i32, i32) {
    %c0_i32 = arith.constant 0 : i32
    %c0_i32_0 = arith.constant 0 : i32
    %c0_i32_1 = arith.constant 0 : i32
    return %c0_i32, %c0_i32_0 : i32, i32
  }
  func.func @transform_10(%arg0: i32, %arg1: i32) -> (i32, i32, i32) {
    %c0_i32 = arith.constant 0 : i32
    %c0_i32_0 = arith.constant 0 : i32
    return %arg0, %arg1, %c0_i32 : i32, i32, i32
  }
}

module attributes {stable_mosaic.version = 11 : i64} {
  func.func @flash_attn_kernel(%arg0: i32, %arg1: i32, %arg2: i32, %arg3: i32, %arg4: memref<1x1x8x8xbf16, #tpu.memory_space<vmem>>, %arg5: memref<1x1x8x8xbf16, #tpu.memory_space<vmem>>, %arg6: memref<1x1x8x8xbf16, #tpu.memory_space<vmem>>, %arg7: memref<1x1x8x8xbf16, #tpu.memory_space<vmem>>, %arg8: memref<8x1xf32, #tpu.memory_space<vmem>>, %arg9: memref<8x1xf32, #tpu.memory_space<vmem>>, %arg10: memref<8x8xf32, #tpu.memory_space<vmem>>) attributes {dimension_semantics = [#tpu.dimension_semantics<parallel>, #tpu.dimension_semantics<parallel>, #tpu.dimension_semantics<parallel>, #tpu.dimension_semantics<arbitrary>], iteration_bounds = array<i64: 2, 4, 1, 1>, scalar_prefetch = 0 : i64, scratch_operands = 3 : i64, tpu.core_type = #tpu.core_type<tc>, window_params = [{transform_indices = @transform_0, window_bounds = array<i64: 1, 1, 8, 8>}, {transform_indices = @transform_1, window_bounds = array<i64: 1, 1, 8, 8>}, {transform_indices = @transform_2, window_bounds = array<i64: 1, 1, 8, 8>}, {transform_indices = @transform_3, window_bounds = array<i64: 1, 1, 8, 8>}]} {
    %c0_i32 = arith.constant 0 : i32
    %0 = arith.cmpi eq, %arg3, %c0_i32 : i32
    %1 = arith.extui %0 : i1 to i32
    %c0_i32_0 = arith.constant 0 : i32
    %2 = arith.cmpi ne, %1, %c0_i32_0 : i32
    scf.if %2 {
      %cst = arith.constant -1.000000e+30 : f32
      %12 = vector.broadcast %cst : f32 to vector<8x1xf32>
      %c0 = arith.constant 0 : index
      %c0_5 = arith.constant 0 : index
      %13 = vector.load %arg8[%c0, %c0_5] : memref<8x1xf32, #tpu.memory_space<vmem>>, vector<8x1xf32>
      tpu.vector_store %arg8[%c0, %c0_5], %12 {strides = array<i32>} : memref<8x1xf32, #tpu.memory_space<vmem>>, vector<8x1xf32>,
      %cst_6 = arith.constant 0.000000e+00 : f32
      %14 = vector.broadcast %cst_6 : f32 to vector<8x1xf32>
      %c0_7 = arith.constant 0 : index
      %c0_8 = arith.constant 0 : index
      %15 = vector.load %arg9[%c0_7, %c0_8] : memref<8x1xf32, #tpu.memory_space<vmem>>, vector<8x1xf32>
      tpu.vector_store %arg9[%c0_7, %c0_8], %14 {strides = array<i32>} : memref<8x1xf32, #tpu.memory_space<vmem>>, vector<8x1xf32>,
      %cst_9 = arith.constant 0.000000e+00 : f32
      %16 = vector.broadcast %cst_9 : f32 to vector<8x8xf32>
      %c0_10 = arith.constant 0 : index
      %c0_11 = arith.constant 0 : index
      %17 = vector.load %arg10[%c0_10, %c0_11] : memref<8x8xf32, #tpu.memory_space<vmem>>, vector<8x8xf32>
      tpu.vector_store %arg10[%c0_10, %c0_11], %16 {strides = array<i32>} : memref<8x8xf32, #tpu.memory_space<vmem>>, vector<8x8xf32>,
    } else {
    }
    %c8_i32 = arith.constant 8 : i32
    %3 = arith.muli %arg3, %c8_i32 : i32
    %c8_i32_1 = arith.constant 8 : i32
    %4 = arith.muli %arg2, %c8_i32_1 : i32
    %c7_i32 = arith.constant 7 : i32
    %5 = arith.addi %4, %c7_i32 : i32
    %6 = arith.cmpi sle, %3, %5 : i32
    %7 = arith.extui %6 : i1 to i32
    %c0_i32_2 = arith.constant 0 : i32
    %8 = arith.cmpi ne, %7, %c0_i32_2 : i32
    scf.if %8 {
      %c0 = arith.constant 0 : index
      %c0_5 = arith.constant 0 : index
      %c0_6 = arith.constant 0 : index
      %c0_7 = arith.constant 0 : index
      %12 = vector.load %arg4[%c0, %c0_5, %c0_6, %c0_7] : memref<1x1x8x8xbf16, #tpu.memory_space<vmem>>, vector<1x1x8x8xbf16>
      %13 = vector.shape_cast %12 : vector<1x1x8x8xbf16> to vector<8x8xbf16>
      %c0_8 = arith.constant 0 : index
      %c0_9 = arith.constant 0 : index
      %c0_10 = arith.constant 0 : index
      %c0_11 = arith.constant 0 : index
      %14 = vector.load %arg5[%c0_8, %c0_9, %c0_10, %c0_11] : memref<1x1x8x8xbf16, #tpu.memory_space<vmem>>, vector<1x1x8x8xbf16>
      %15 = vector.shape_cast %14 : vector<1x1x8x8xbf16> to vector<8x8xbf16>
      %cst = arith.constant dense<0.000000e+00> : vector<8x8xf32>
      %16 = tpu.matmul %13, %15, %cst {dimension_numbers = #tpu.dot_dimension_numbers<[1], [1], [0], [0], [0, 0, 1, 0], [], []>} : vector<8x8xbf16>, vector<8x8xbf16>, vector<8x8xf32> -> vector<8x8xf32>
      %cst_12 = arith.constant 0.353553385 : f32
      %17 = vector.broadcast %cst_12 : f32 to vector<8x8xf32>
      %18 = arith.mulf %16, %17 : vector<8x8xf32>
      %c8_i32_13 = arith.constant 8 : i32
      %19 = arith.muli %arg2, %c8_i32_13 : i32
      %20 = tpu.iota {dimensions = array<i32: 0>} : vector<8x8xi32>
      %21 = vector.broadcast %19 : i32 to vector<8x8xi32>
      %22 = arith.addi %21, %20 : vector<8x8xi32>
      %c8_i32_14 = arith.constant 8 : i32
      %23 = arith.muli %arg3, %c8_i32_14 : i32
      %24 = tpu.iota {dimensions = array<i32: 1>} : vector<8x8xi32>
      %25 = vector.broadcast %23 : i32 to vector<8x8xi32>
      %26 = arith.addi %25, %24 : vector<8x8xi32>
      %27 = arith.cmpi sle, %26, %22 : vector<8x8xi32>
      %cst_15 = arith.constant -1.000000e+30 : f32
      %28 = vector.broadcast %cst_15 : f32 to vector<8x8xf32>
      %29 = arith.select %27, %18, %28 : vector<8x8xi1>, vector<8x8xf32>
      %c0_16 = arith.constant 0 : index
      %c0_17 = arith.constant 0 : index
      %30 = vector.load %arg8[%c0_16, %c0_17] : memref<8x1xf32, #tpu.memory_space<vmem>>, vector<8x1xf32>
      %cst_18 = arith.constant dense<0xFF800000> : vector<8xf32>
      %31 = vector.multi_reduction <maximumf>, %29, %cst_18 [1] : vector<8x8xf32> to vector<8xf32>
      %32 = vector.shape_cast %31 : vector<8xf32> to vector<8x1xf32>
      %33 = arith.maximumf %30, %32 : vector<8x1xf32>
      %34 = arith.subf %30, %33 : vector<8x1xf32>
      %35 = math.exp %34 : vector<8x1xf32>
      %36 = vector.broadcast %33 : vector<8x1xf32> to vector<8x8xf32>
      %37 = arith.subf %29, %36 : vector<8x8xf32>
      %38 = math.exp %37 : vector<8x8xf32>
      %c0_19 = arith.constant 0 : index
      %c0_20 = arith.constant 0 : index
      %39 = vector.load %arg9[%c0_19, %c0_20] : memref<8x1xf32, #tpu.memory_space<vmem>>, vector<8x1xf32>
      %40 = arith.mulf %35, %39 : vector<8x1xf32>
      %cst_21 = arith.constant dense<0.000000e+00> : vector<8xf32>
      %41 = vector.multi_reduction <add>, %38, %cst_21 [1] : vector<8x8xf32> to vector<8xf32>
      %42 = vector.shape_cast %41 : vector<8xf32> to vector<8x1xf32>
      %43 = arith.addf %40, %42 : vector<8x1xf32>
      %c0_22 = arith.constant 0 : index
      %c0_23 = arith.constant 0 : index
      %44 = vector.load %arg9[%c0_22, %c0_23] : memref<8x1xf32, #tpu.memory_space<vmem>>, vector<8x1xf32>
      tpu.vector_store %arg9[%c0_22, %c0_23], %43 {strides = array<i32>} : memref<8x1xf32, #tpu.memory_space<vmem>>, vector<8x1xf32>,
      %c0_24 = arith.constant 0 : index
      %c0_25 = arith.constant 0 : index
      %45 = vector.load %arg10[%c0_24, %c0_25] : memref<8x8xf32, #tpu.memory_space<vmem>>, vector<8x8xf32>
      %46 = vector.broadcast %35 : vector<8x1xf32> to vector<8x8xf32>
      %47 = arith.mulf %46, %45 : vector<8x8xf32>
      %48 = arith.truncf %38 : vector<8x8xf32> to vector<8x8xbf16>
      %c0_26 = arith.constant 0 : index
      %c0_27 = arith.constant 0 : index
      %c0_28 = arith.constant 0 : index
      %c0_29 = arith.constant 0 : index
      %49 = vector.load %arg6[%c0_26, %c0_27, %c0_28, %c0_29] : memref<1x1x8x8xbf16, #tpu.memory_space<vmem>>, vector<1x1x8x8xbf16>
      %50 = vector.shape_cast %49 : vector<1x1x8x8xbf16> to vector<8x8xbf16>
      %cst_30 = arith.constant dense<0.000000e+00> : vector<8x8xf32>
      %51 = tpu.matmul %48, %50, %cst_30 {dimension_numbers = #tpu.dot_dimension_numbers<[1], [0], [0], [1], [0, 0, 1, 1], [], []>} : vector<8x8xbf16>, vector<8x8xbf16>, vector<8x8xf32> -> vector<8x8xf32>
      %52 = arith.addf %47, %51 : vector<8x8xf32>
      %c0_31 = arith.constant 0 : index
      %c0_32 = arith.constant 0 : index
      %53 = vector.load %arg10[%c0_31, %c0_32] : memref<8x8xf32, #tpu.memory_space<vmem>>, vector<8x8xf32>
      tpu.vector_store %arg10[%c0_31, %c0_32], %52 {strides = array<i32>} : memref<8x8xf32, #tpu.memory_space<vmem>>, vector<8x8xf32>,
      %c0_33 = arith.constant 0 : index
      %c0_34 = arith.constant 0 : index
      %54 = vector.load %arg8[%c0_33, %c0_34] : memref<8x1xf32, #tpu.memory_space<vmem>>, vector<8x1xf32>
      tpu.vector_store %arg8[%c0_33, %c0_34], %33 {strides = array<i32>} : memref<8x1xf32, #tpu.memory_space<vmem>>, vector<8x1xf32>,
    } else {
    }
    %c0_i32_3 = arith.constant 0 : i32
    %9 = arith.cmpi eq, %arg3, %c0_i32_3 : i32
    %10 = arith.extui %9 : i1 to i32
    %c0_i32_4 = arith.constant 0 : i32
    %11 = arith.cmpi ne, %10, %c0_i32_4 : i32
    scf.if %11 {
      %c0 = arith.constant 0 : index
      %c0_5 = arith.constant 0 : index
      %12 = vector.load %arg10[%c0, %c0_5] : memref<8x8xf32, #tpu.memory_space<vmem>>, vector<8x8xf32>
      %c0_6 = arith.constant 0 : index
      %c0_7 = arith.constant 0 : index
      %13 = vector.load %arg9[%c0_6, %c0_7] : memref<8x1xf32, #tpu.memory_space<vmem>>, vector<8x1xf32>
      %14 = tpu.reciprocal %13 {approx = true} : vector<8x1xf32> -> vector<8x1xf32>
      %15 = vector.broadcast %14 : vector<8x1xf32> to vector<8x8xf32>
      %16 = arith.mulf %12, %15 : vector<8x8xf32>
      %17 = arith.truncf %16 : vector<8x8xf32> to vector<8x8xbf16>
      %c0_8 = arith.constant 0 : index
      %c0_9 = arith.constant 0 : index
      %c0_10 = arith.constant 0 : index
      %c0_11 = arith.constant 0 : index
      %18 = vector.load %arg7[%c0_8, %c0_9, %c0_10, %c0_11] : memref<1x1x8x8xbf16, #tpu.memory_space<vmem>>, vector<1x1x8x8xbf16>
      %19 = vector.shape_cast %18 : vector<1x1x8x8xbf16> to vector<8x8xbf16>
      %20 = vector.shape_cast %17 : vector<8x8xbf16> to vector<1x1x8x8xbf16>
      tpu.vector_store %arg7[%c0_8, %c0_9, %c0_10, %c0_11], %20 {strides = array<i32>} : memref<1x1x8x8xbf16, #tpu.memory_space<vmem>>, vector<1x1x8x8xbf16>,
    } else {
    }
    return
  }
  func.func @transform_0(%arg0: i32, %arg1: i32, %arg2: i32, %arg3: i32) -> (i32, i32, i32, i32) {
    %c0_i32 = arith.constant 0 : i32
    %c0_i32_0 = arith.constant 0 : i32
    return %arg0, %arg1, %arg2, %c0_i32 : i32, i32, i32, i32
  }
  func.func @transform_1(%arg0: i32, %arg1: i32, %arg2: i32, %arg3: i32) -> (i32, i32, i32, i32) {
    %c0_i32 = arith.constant 0 : i32
    %c0_i32_0 = arith.constant 0 : i32
    return %arg0, %arg1, %arg3, %c0_i32 : i32, i32, i32, i32
  }
  func.func @transform_2(%arg0: i32, %arg1: i32, %arg2: i32, %arg3: i32) -> (i32, i32, i32, i32) {
    %c0_i32 = arith.constant 0 : i32
    %c0_i32_0 = arith.constant 0 : i32
    return %arg0, %arg1, %arg3, %c0_i32 : i32, i32, i32, i32
  }
  func.func @transform_3(%arg0: i32, %arg1: i32, %arg2: i32, %arg3: i32) -> (i32, i32, i32, i32) {
    %c0_i32 = arith.constant 0 : i32
    %c0_i32_0 = arith.constant 0 : i32
    return %arg0, %arg1, %arg2, %c0_i32 : i32, i32, i32, i32
  }
}

module attributes {stable_mosaic.version = 11 : i64} {
  func.func @final_ln_kernel(%arg0: i32, %arg1: memref<16x32xbf16, #tpu.memory_space<vmem>>, %arg2: memref<1x32xf32, #tpu.memory_space<vmem>>, %arg3: memref<1x32xf32, #tpu.memory_space<vmem>>, %arg4: memref<16x32xbf16, #tpu.memory_space<vmem>>) attributes {dimension_semantics = [#tpu.dimension_semantics<parallel>], iteration_bounds = array<i64: 1>, scalar_prefetch = 0 : i64, scratch_operands = 0 : i64, tpu.core_type = #tpu.core_type<tc>, window_params = [{transform_indices = @transform_0, window_bounds = array<i64: 16, 32>}, {pipeline_mode = #tpu.pipeline_mode<synchronous>, transform_indices = @transform_1, window_bounds = array<i64: 1, 32>}, {pipeline_mode = #tpu.pipeline_mode<synchronous>, transform_indices = @transform_2, window_bounds = array<i64: 1, 32>}, {transform_indices = @transform_3, window_bounds = array<i64: 16, 32>}]} {
    %c0 = arith.constant 0 : index
    %c0_0 = arith.constant 0 : index
    %0 = vector.load %arg1[%c0, %c0_0] : memref<16x32xbf16, #tpu.memory_space<vmem>>, vector<16x32xbf16>
    %1 = arith.extf %0 : vector<16x32xbf16> to vector<16x32xf32>
    %c0_1 = arith.constant 0 : index
    %c0_2 = arith.constant 0 : index
    %2 = vector.load %arg2[%c0_1, %c0_2] : memref<1x32xf32, #tpu.memory_space<vmem>>, vector<1x32xf32>
    %c0_3 = arith.constant 0 : index
    %c0_4 = arith.constant 0 : index
    %3 = vector.load %arg3[%c0_3, %c0_4] : memref<1x32xf32, #tpu.memory_space<vmem>>, vector<1x32xf32>
    %cst = arith.constant dense<0.000000e+00> : vector<16xf32>
    %4 = vector.multi_reduction <add>, %1, %cst [1] : vector<16x32xf32> to vector<16xf32>
    %5 = vector.shape_cast %4 : vector<16xf32> to vector<16x1xf32>
    %cst_5 = arith.constant 3.200000e+01 : f32
    %6 = vector.broadcast %cst_5 : f32 to vector<16x1xf32>
    %7 = arith.divf %5, %6 : vector<16x1xf32>
    %8 = vector.broadcast %7 : vector<16x1xf32> to vector<16x32xf32>
    %9 = arith.subf %1, %8 : vector<16x32xf32>
    %10 = arith.mulf %9, %9 : vector<16x32xf32>
    %cst_6 = arith.constant dense<0.000000e+00> : vector<16xf32>
    %11 = vector.multi_reduction <add>, %10, %cst_6 [1] : vector<16x32xf32> to vector<16xf32>
    %12 = vector.shape_cast %11 : vector<16xf32> to vector<16x1xf32>
    %cst_7 = arith.constant 3.200000e+01 : f32
    %13 = vector.broadcast %cst_7 : f32 to vector<16x1xf32>
    %14 = arith.divf %12, %13 : vector<16x1xf32>
    %15 = vector.broadcast %7 : vector<16x1xf32> to vector<16x32xf32>
    %16 = arith.subf %1, %15 : vector<16x32xf32>
    %cst_8 = arith.constant 9.99999974E-6 : f32
    %17 = vector.broadcast %cst_8 : f32 to vector<16x1xf32>
    %18 = arith.addf %14, %17 : vector<16x1xf32>
    %19 = math.rsqrt %18 : vector<16x1xf32>
    %20 = vector.broadcast %19 : vector<16x1xf32> to vector<16x32xf32>
    %21 = arith.mulf %16, %20 : vector<16x32xf32>
    %22 = vector.broadcast %2 : vector<1x32xf32> to vector<16x32xf32>
    %23 = arith.mulf %21, %22 : vector<16x32xf32>
    %24 = vector.broadcast %3 : vector<1x32xf32> to vector<16x32xf32>
    %25 = arith.addf %23, %24 : vector<16x32xf32>
    %26 = arith.truncf %25 : vector<16x32xf32> to vector<16x32xbf16>
    %c0_9 = arith.constant 0 : index
    %c0_10 = arith.constant 0 : index
    %27 = vector.load %arg4[%c0_9, %c0_10] : memref<16x32xbf16, #tpu.memory_space<vmem>>, vector<16x32xbf16>
    tpu.vector_store %arg4[%c0_9, %c0_10], %26 {strides = array<i32>} : memref<16x32xbf16, #tpu.memory_space<vmem>>, vector<16x32xbf16>,
    return
  }
  func.func @transform_0(%arg0: i32) -> (i32, i32) {
    %c0_i32 = arith.constant 0 : i32
    %c0_i32_0 = arith.constant 0 : i32
    return %arg0, %c0_i32 : i32, i32
  }
  func.func @transform_1(%arg0: i32) -> (i32, i32) {
    %c0_i32 = arith.constant 0 : i32
    %c0_i32_0 = arith.constant 0 : i32
    %c0_i32_1 = arith.constant 0 : i32
    return %c0_i32, %c0_i32_0 : i32, i32
  }
  func.func @transform_2(%arg0: i32) -> (i32, i32) {
    %c0_i32 = arith.constant 0 : i32
    %c0_i32_0 = arith.constant 0 : i32
    %c0_i32_1 = arith.constant 0 : i32
    return %c0_i32, %c0_i32_0 : i32, i32
  }
  func.func @transform_3(%arg0: i32) -> (i32, i32) {
    %c0_i32 = arith.constant 0 : i32
    %c0_i32_0 = arith.constant 0 : i32
    return %arg0, %c0_i32 : i32, i32
  }
}

module attributes {stable_mosaic.version = 11 : i64} {
  func.func @head_kernel(%arg0: i32, %arg1: i32, %arg2: memref<16x32xbf16, #tpu.memory_space<vmem>>, %arg3: memref<32x64xbf16, #tpu.memory_space<vmem>>, %arg4: memref<16x64xf32, #tpu.memory_space<vmem>>) attributes {dimension_semantics = [#tpu.dimension_semantics<parallel>, #tpu.dimension_semantics<parallel>], iteration_bounds = array<i64: 1, 1>, scalar_prefetch = 0 : i64, scratch_operands = 0 : i64, tpu.core_type = #tpu.core_type<tc>, window_params = [{transform_indices = @transform_0, window_bounds = array<i64: 16, 32>}, {transform_indices = @transform_1, window_bounds = array<i64: 32, 64>}, {transform_indices = @transform_2, window_bounds = array<i64: 16, 64>}]} {
    %c0 = arith.constant 0 : index
    %c0_0 = arith.constant 0 : index
    %0 = vector.load %arg2[%c0, %c0_0] : memref<16x32xbf16, #tpu.memory_space<vmem>>, vector<16x32xbf16>
    %c0_1 = arith.constant 0 : index
    %c0_2 = arith.constant 0 : index
    %1 = vector.load %arg3[%c0_1, %c0_2] : memref<32x64xbf16, #tpu.memory_space<vmem>>, vector<32x64xbf16>
    %cst = arith.constant dense<0.000000e+00> : vector<16x64xf32>
    %2 = tpu.matmul %0, %1, %cst {dimension_numbers = #tpu.dot_dimension_numbers<[1], [0], [0], [1], [0, 0, 1, 1], [], []>} : vector<16x32xbf16>, vector<32x64xbf16>, vector<16x64xf32> -> vector<16x64xf32>
    %c0_3 = arith.constant 0 : index
    %c0_4 = arith.constant 0 : index
    %3 = vector.load %arg4[%c0_3, %c0_4] : memref<16x64xf32, #tpu.memory_space<vmem>>, vector<16x64xf32>
    tpu.vector_store %arg4[%c0_3, %c0_4], %2 {strides = array<i32>} : memref<16x64xf32, #tpu.memory_space<vmem>>, vector<16x64xf32>,
    return
  }
  func.func @transform_0(%arg0: i32, %arg1: i32) -> (i32, i32) {
    %c0_i32 = arith.constant 0 : i32
    %c0_i32_0 = arith.constant 0 : i32
    return %arg1, %c0_i32 : i32, i32
  }
  func.func @transform_1(%arg0: i32, %arg1: i32) -> (i32, i32) {
    %c0_i32 = arith.constant 0 : i32
    %c0_i32_0 = arith.constant 0 : i32
    return %c0_i32, %arg0 : i32, i32
  }
  func.func @transform_2(%arg0: i32, %arg1: i32) -> (i32, i32) {
    %c0_i32 = arith.constant 0 : i32
    return %arg1, %arg0 : i32, i32
  }
}

</mosaic_0001>

<llo_original>
// kernel: _lambda_.14
$region0: #{_lambda_.14}
  #allocation0 [shape = 'u32[]', space=smem, size = 0x4, offset = 0x4, fixed_abs, tag = 'smem constant byte address 0x4 - core index']
  #allocation1 [shape = 'u32[144,128]{1,0:T(1,128)}', space=vmem, size = 0x12000, scoped, tag = 'internal scratch']
  %s0 = inlined_call_operand.vmem [shape: bf16[16,32], index: 0, kind: input, shape index: {}]
  %s1 = inlined_call_operand.vmem [shape: f32[1,32], index: 1, kind: input, shape index: {}]
  %s2 = inlined_call_operand.vmem [shape: f32[1,32], index: 2, kind: input, shape index: {}]
  %s3 = inlined_call_operand.vmem [shape: bf16[16,32], index: 3, kind: output, shape index: {}]
  %s4 = sld [smem:[#allocation0]]
  $region22: #{_lambda_.14} parent=0
    _
  %s6 = ssub.s32 1, %s4
  %s7 = scalar_select 0, %s6, %s4
  // Predicated region
  $region2: #{_lambda_.14} parent=0 // pred_check
    _
  $region3: #{_lambda_.14} parent=0 // pred_check_branch
    %9 = sbr.rel (0) target = $region5
  $region4: #{_lambda_.14} parent=0 // pred_region
    _
  $region5: #{_lambda_.14} parent=0 // pred_fallthru
    _
  // Predicated region
  $region6: #{_lambda_.14} parent=0 // pred_check
    _
  $region7: #{_lambda_.14} parent=0 // pred_check_branch
    %11 = sbr.rel (0) target = $region9
  $region8: #{_lambda_.14} parent=0 // pred_region
    _
  $region9: #{_lambda_.14} parent=0 // pred_fallthru
    _
  // Predicated region
  $region10: #{_lambda_.14} parent=0 // pred_check
    _
  $region11: #{_lambda_.14} parent=0 // pred_check_branch
    %13 = sbr.rel (0) target = $region13
  $region12: #{_lambda_.14} parent=0 // pred_region
    _
  $region13: #{_lambda_.14} parent=0 // pred_fallthru
    _
  %v14 = vld [vmem:[%s0] sm:$0xf]
  %v15 = vld [vmem:[%s0 + $0x4] sm:$0xf]
  %v16 = vunpack.c.l.bf16 %v14
  %v17 = vunpack.c.l.bf16 %v15
  %v18 = vld [vmem:[%s1] sm:$0x1]
  %v19 = vld [vmem:[%s2] sm:$0x1]
  %vm20 = vcmask 261120
  %v21 = vsel %vm20, %v16, 0.0
  %22 = vadd.xlane.f32.xlu0 %v21
  %v23 = vpop.xlane.xlu0 %22
  %v24 = vsel %vm20, %v17, 0.0
  %25 = vadd.xlane.f32.xlu0 %v24
  %v26 = vpop.xlane.xlu0 %25
  %v27 = vrcp.pop 32.0
  %v28 = vmul.f32 %v23, %v27
  %v29 = vmul.f32 %v26, %v27
  %v30 = vsub.f32 %v16, %v28
  %v31 = vsub.f32 %v17, %v29
  %v32 = vmul.f32 %v30, %v30
  %v33 = vmul.f32 %v31, %v31
  %v34 = vsel %vm20, %v32, 0.0
  %35 = vadd.xlane.f32.xlu0 %v34
  %v36 = vpop.xlane.xlu0 %35
  %v37 = vsel %vm20, %v33, 0.0
  %38 = vadd.xlane.f32.xlu0 %v37
  %v39 = vpop.xlane.xlu0 %38
  %v40 = vmul.f32 %v36, %v27
  %v41 = vmul.f32 %v39, %v27
  %v42 = vadd.f32 %v40, 1e-05
  %v43 = vadd.f32 %v41, 1e-05
  %v44 = vrsqrt.pop %v42
  %v45 = vrsqrt.pop %v43
  %v46 = vmul.f32 %v30, %v44
  %v47 = vmul.f32 %v31, %v45
  %v49 = vlaneseq
  %v50 = vshrl.u32 %v49, 7
  %v51 = vsub.s32 0, %v50
  %v52 = vrot.slane %v18, %v51
  %v54 = vmul.f32 %v46, %v52
  %v55 = vmul.f32 %v47, %v52
  %v57 = vlaneseq
  %v58 = vshrl.u32 %v57, 7
  %v59 = vsub.s32 0, %v58
  %v60 = vrot.slane %v19, %v59
  %v62 = vadd.f32 %v54, %v60
  %v63 = vadd.f32 %v55, %v60
  %v64 = vpack.c.bf16 %v63, %v62
  %v66 = vunpack.c.l.b16 %v64
  %v67 = vunpack.c.h.b16 %v64
  %v68 = vpack.c.b16 %v66, %v66
  %v69 = vpack.c.b16 %v67, %v67
  %vm72 = vcmask 257024
  %73 = vst.msk [vmem:[%s3] sm:$0xf] %vm72, %v68
  %74 = vst.msk [vmem:[%s3 + $0x4] sm:$0xf] %vm72, %v69
  // Predicated region
  $region14: #{_lambda_.14} parent=0 // pred_check
    _
  $region15: #{_lambda_.14} parent=0 // pred_check_branch
    %76 = sbr.rel (0) target = $region17
  $region16: #{_lambda_.14} parent=0 // pred_region
    _
  $region17: #{_lambda_.14} parent=0 // pred_fallthru
    _
  // Predicated region
  $region18: #{_lambda_.14} parent=0 // pred_check
    _
  $region19: #{_lambda_.14} parent=0 // pred_check_branch
    %78 = sbr.rel (0) target = $region21
  $region20: #{_lambda_.14} parent=0 // pred_region
    _
  $region21: #{_lambda_.14} parent=0 // pred_fallthru
    _

// kernel: _lambda_.9
$region0: #{_lambda_.9}
  #allocation0 [shape = 'u32[]', space=smem, size = 0x4, offset = 0x4, fixed_abs, tag = 'smem constant byte address 0x4 - core index']
  #allocation1 [shape = 'u32[144,128]{1,0:T(1,128)}', space=vmem, size = 0x12000, scoped, tag = 'internal scratch']
  #allocation2 [shape = 'f32[8,1]{1,0:T(8,128)}', space=vmem, size = 0x1000, scoped, tag = 'scratch operand']
  #allocation3 [shape = 'f32[8,1]{1,0:T(8,128)}', space=vmem, size = 0x1000, scoped, tag = 'scratch operand']
  #allocation4 [shape = 'f32[8,8]{1,0:T(8,128)}', space=vmem, size = 0x1000, scoped, tag = 'scratch operand']
  %s0 = inlined_call_operand.vmem [shape: bf16[2,4,8,8], index: 0, kind: input, shape index: {}]
  %s1 = inlined_call_operand.vmem [shape: bf16[2,4,8,8], index: 1, kind: input, shape index: {}]
  %s2 = inlined_call_operand.vmem [shape: bf16[2,4,8,8], index: 2, kind: input, shape index: {}]
  %s3 = inlined_call_operand.vmem [shape: bf16[2,4,8,8], index: 3, kind: output, shape index: {}]
  %s4 = sld [smem:[#allocation0]]
  $region57: #{_lambda_.9} parent=0
    _
  %s6 = ssub.s32 1, %s4
  %s7 = scalar_select 0, %s6, %s4
  loop: start=0, step=1, limit=10
  $region2: #{_lambda_.9} parent=0 // loop_pre_header
    _
  $region3: #{_lambda_.9} parent=0 // loop_header
    %s9 = sphi 0, %s13
    %p10 = scmp.ge.s32.totalorder %s9, 10
    %s16 = sphi 0, %s42
    %s17 = sphi 0, %s38
    %s18 = sphi 0, %s34
    %s19 = sphi 0, %s30
    %s20 = sphi 0, %s16
    %s21 = sphi 0, %s17
    %s22 = sphi 0, %s18
    %s23 = sphi 0, %s19
    %s24 = sphi 0, %s20
    %s25 = sphi 0, %s21
    %s26 = sphi 0, %s22
    %s27 = sphi 0, %s23
    %s49 = sphi 0, %s51
    %s52 = sphi 0, %s49
    %s53 = sphi 0, %s52
    %s69 = sphi 0, %s53
    %s79 = sphi 0, %s81
    %s82 = sphi 0, %s79
    %s83 = sphi 0, %s82
    %s99 = sphi 0, %s83
    %s109 = sphi 0, %s111
    %s112 = sphi 0, %s109
    %s113 = sphi 0, %s112
    %s129 = sphi 0, %s113
    %s139 = sphi 0, %s141
    %s142 = sphi 0, %s139
    %s143 = sphi 0, %s142
    %s159 = sphi 0, %s143
  $region4: #{_lambda_.9} parent=0 // loop_header_branch
    %12 = sbr.rel (%p10) target = $region8
  $region5: #{_lambda_.9} parent=0 // loop_body
    %s14 = ssub.s32 %s9, 1
    %s15 = ssub.s32 %s9, 2
    %s28 = sadd.s32 1, %s19
    %p29 = scmp.ge.s32.totalorder %s28, 1
    %s30 = scalar_select %p29, 0, %s28
    %s31 = sadd.s32 1, %s18
    %s32 = scalar_select %p29, %s31, %s18
    %p33 = scmp.ge.s32.totalorder %s32, 1
    %s34 = scalar_select %p33, 0, %s32
    %s35 = sadd.s32 1, %s17
    %s36 = scalar_select %p33, %s35, %s17
    %p37 = scmp.ge.s32.totalorder %s36, 4
    %s38 = scalar_select %p37, 0, %s36
    %s39 = sadd.s32 1, %s16
    %s40 = scalar_select %p37, %s39, %s16
    %p41 = scmp.ge.s32.totalorder %s40, 2
    %s42 = scalar_select %p41, 0, %s40
    %s43 = ssub.s32 %s16, %s42
    %s44 = ssub.s32 %s17, %s38
    %s45 = sor.u32 %s43, %s44
    %s46 = ssub.s32 %s18, %s34
    %s47 = sor.u32 %s45, %s46
    %p48 = scmp.eq.s32.totalorder %s47, 0
    %s50 = sadd.s32 %s49, 1
    %s51 = scalar_select %p48, %s49, %s50
    %p54 = pneg %p48
    %p55 = scmp.eq.s32.totalorder %s9, 7
    %p56 = por %p54, %p55
    %p57 = scmp.ne.s32.totalorder %s49, %s52
    %p58 = scmp.eq.s32.totalorder %s9, 0
    %p59 = por %p57, %p58
    %p60 = scmp.ne.s32.totalorder %s49, %s52
    %p61 = scmp.eq.s32.totalorder %s14, 7
    %p62 = por %p60, %p61
    %p63 = scmp.ne.s32.totalorder %s52, %s53
    %p64 = scmp.eq.s32.totalorder %s14, 0
    %p65 = por %p63, %p64
    %p66 = scmp.ne.s32.totalorder %s52, %s53
    %p67 = scmp.eq.s32.totalorder %s15, 7
    %p68 = por %p66, %p67
    %p70 = scmp.ne.s32.totalorder %s53, %s69
    %p71 = scmp.eq.s32.totalorder %s15, 0
    %p72 = por %p70, %p71
    %s73 = ssub.s32 %s16, %s42
    %s74 = ssub.s32 %s17, %s38
    %s75 = sor.u32 %s73, %s74
    %s76 = ssub.s32 %s19, %s30
    %s77 = sor.u32 %s75, %s76
    %p78 = scmp.eq.s32.totalorder %s77, 0
    %s80 = sadd.s32 %s79, 1
    %s81 = scalar_select %p78, %s79, %s80
    %p84 = pneg %p78
    %p85 = scmp.eq.s32.totalorder %s9, 7
    %p86 = por %p84, %p85
    %p87 = scmp.ne.s32.totalorder %s79, %s82
    %p88 = scmp.eq.s32.totalorder %s9, 0
    %p89 = por %p87, %p88
    %p90 = scmp.ne.s32.totalorder %s79, %s82
    %p91 = scmp.eq.s32.totalorder %s14, 7
    %p92 = por %p90, %p91
    %p93 = scmp.ne.s32.totalorder %s82, %s83
    %p94 = scmp.eq.s32.totalorder %s14, 0
    %p95 = por %p93, %p94
    %p96 = scmp.ne.s32.totalorder %s82, %s83
    %p97 = scmp.eq.s32.totalorder %s15, 7
    %p98 = por %p96, %p97
    %p100 = scmp.ne.s32.totalorder %s83, %s99
    %p101 = scmp.eq.s32.totalorder %s15, 0
    %p102 = por %p100, %p101
    %s103 = ssub.s32 %s16, %s42
    %s104 = ssub.s32 %s17, %s38
    %s105 = sor.u32 %s103, %s104
    %s106 = ssub.s32 %s19, %s30
    %s107 = sor.u32 %s105, %s106
    %p108 = scmp.eq.s32.totalorder %s107, 0
    %s110 = sadd.s32 %s109, 1
    %s111 = scalar_select %p108, %s109, %s110
    %p114 = pneg %p108
    %p115 = scmp.eq.s32.totalorder %s9, 7
    %p116 = por %p114, %p115
    %p117 = scmp.ne.s32.totalorder %s109, %s112
    %p118 = scmp.eq.s32.totalorder %s9, 0
    %p119 = por %p117, %p118
    %p120 = scmp.ne.s32.totalorder %s109, %s112
    %p121 = scmp.eq.s32.totalorder %s14, 7
    %p122 = por %p120, %p121
    %p123 = scmp.ne.s32.totalorder %s112, %s113
    %p124 = scmp.eq.s32.totalorder %s14, 0
    %p125 = por %p123, %p124
    %p126 = scmp.ne.s32.totalorder %s112, %s113
    %p127 = scmp.eq.s32.totalorder %s15, 7
    %p128 = por %p126, %p127
    %p130 = scmp.ne.s32.totalorder %s113, %s129
    %p131 = scmp.eq.s32.totalorder %s15, 0
    %p132 = por %p130, %p131
    %s133 = ssub.s32 %s16, %s42
    %s134 = ssub.s32 %s17, %s38
    %s135 = sor.u32 %s133, %s134
    %s136 = ssub.s32 %s18, %s34
    %s137 = sor.u32 %s135, %s136
    %p138 = scmp.eq.s32.totalorder %s137, 0
    %s140 = sadd.s32 %s139, 1
    %s141 = scalar_select %p138, %s139, %s140
    %p144 = pneg %p138
    %p145 = scmp.eq.s32.totalorder %s9, 7
    %p146 = por %p144, %p145
    %p147 = scmp.ne.s32.totalorder %s139, %s142
    %p148 = scmp.eq.s32.totalorder %s9, 0
    %p149 = por %p147, %p148
    %p150 = scmp.ne.s32.totalorder %s139, %s142
    %p151 = scmp.eq.s32.totalorder %s14, 7
    %p152 = por %p150, %p151
    %p153 = scmp.ne.s32.totalorder %s142, %s143
    %p154 = scmp.eq.s32.totalorder %s14, 0
    %p155 = por %p153, %p154
    %p156 = scmp.ne.s32.totalorder %s142, %s143
    %p157 = scmp.eq.s32.totalorder %s15, 7
    %p158 = por %p156, %p157
    %p160 = scmp.ne.s32.totalorder %s143, %s159
    %p161 = scmp.eq.s32.totalorder %s15, 0
    %p162 = por %p160, %p161
    %p163 = scmp.le.s32.totalorder 1, %s9
    %p164 = scmp.lt.s32.totalorder %s9, 9
    %p165 = pnand %p163, %p164
    %p166 = pneg %p165
    // Predicated region
    $region9: #{_lambda_.9} parent=5 // pred_check
      _
    $region10: #{_lambda_.9} parent=5 // pred_check_branch
      %168 = sbr.rel (%p165) target = $region12
    $region11: #{_lambda_.9} parent=5 // pred_region
      %s169 = ssub.s32 %s9, 1
    $region12: #{_lambda_.9} parent=5 // pred_fallthru
      _
    %p170 = scmp.lt.s32.totalorder %s9, 8
    // Predicated region
    $region13: #{_lambda_.9} parent=5 // pred_check
      %p171 = pneg %p170
    $region14: #{_lambda_.9} parent=5 // pred_check_branch
      %173 = sbr.rel (%p171) target = $region16
    $region15: #{_lambda_.9} parent=5 // pred_region
      // Predicated region
      $region17: #{_lambda_.9} parent=15 // pred_check
        %p174 = pneg %p59
      $region18: #{_lambda_.9} parent=15 // pred_check_branch
        %176 = sbr.rel (%p174) target = $region20
      $region19: #{_lambda_.9} parent=15 // pred_region
        %p177 = scmp.lt.s32.totalorder %s16, 1
        %s178 = scalar_select %p177, %s16, 1
        %p179 = scmp.lt.s32.totalorder %s17, 3
        %s180 = scalar_select %p179, %s17, 3
        %p181 = scmp.lt.s32.totalorder %s18, 0
        %s182 = scalar_select %p181, %s18, 0
        %s183 = sadd.s32 %s182, %s180
        %s184 = smul.addr %s178, 4
        %s185 = sadd.s32 %s183, %s184
        %s186 = smul.addr %s185, 4
        %s187 = scalar_lea.vmem %s0, %s186
      $region20: #{_lambda_.9} parent=15 // pred_fallthru
        _
      // Predicated region
      $region21: #{_lambda_.9} parent=15 // pred_check
        %p188 = pneg %p89
      $region22: #{_lambda_.9} parent=15 // pred_check_branch
        %190 = sbr.rel (%p188) target = $region24
      $region23: #{_lambda_.9} parent=15 // pred_region
        %p191 = scmp.lt.s32.totalorder %s16, 1
        %s192 = scalar_select %p191, %s16, 1
        %p193 = scmp.lt.s32.totalorder %s17, 3
        %s194 = scalar_select %p193, %s17, 3
        %p195 = scmp.lt.s32.totalorder %s19, 0
        %s196 = scalar_select %p195, %s19, 0
        %s197 = sadd.s32 %s196, %s194
        %s198 = smul.addr %s192, 4
        %s199 = sadd.s32 %s197, %s198
        %s200 = smul.addr %s199, 4
        %s201 = scalar_lea.vmem %s1, %s200
      $region24: #{_lambda_.9} parent=15 // pred_fallthru
        _
      // Predicated region
      $region25: #{_lambda_.9} parent=15 // pred_check
        %p202 = pneg %p119
      $region26: #{_lambda_.9} parent=15 // pred_check_branch
        %204 = sbr.rel (%p202) target = $region28
      $region27: #{_lambda_.9} parent=15 // pred_region
        %p205 = scmp.lt.s32.totalorder %s16, 1
        %s206 = scalar_select %p205, %s16, 1
        %p207 = scmp.lt.s32.totalorder %s17, 3
        %s208 = scalar_select %p207, %s17, 3
        %p209 = scmp.lt.s32.totalorder %s19, 0
        %s210 = scalar_select %p209, %s19, 0
        %s211 = sadd.s32 %s210, %s208
        %s212 = smul.addr %s206, 4
        %s213 = sadd.s32 %s211, %s212
        %s214 = smul.addr %s213, 4
        %s215 = scalar_lea.vmem %s2, %s214
      $region28: #{_lambda_.9} parent=15 // pred_fallthru
        _
    $region16: #{_lambda_.9} parent=5 // pred_fallthru
      _
    %p216 = scmp.le.s32.totalorder 1, %s9
    %p217 = scmp.lt.s32.totalorder %s9, 9
    %p218 = pnand %p216, %p217
    %p219 = pneg %p218
    // Predicated region
    $region29: #{_lambda_.9} parent=5 // pred_check
      _
    $region30: #{_lambda_.9} parent=5 // pred_check_branch
      %221 = sbr.rel (%p218) target = $region32
    $region31: #{_lambda_.9} parent=5 // pred_region
      %s222 = ssub.s32 %s9, 1
      %p223 = scmp.lt.s32.totalorder %s20, 1
      %s224 = scalar_select %p223, %s20, 1
      %p225 = scmp.lt.s32.totalorder %s21, 3
      %s226 = scalar_select %p225, %s21, 3
      %p227 = scmp.lt.s32.totalorder %s22, 0
      %s228 = scalar_select %p227, %s22, 0
      %s229 = sadd.s32 %s228, %s226
      %s230 = smul.addr %s224, 4
      %s231 = sadd.s32 %s229, %s230
      %s232 = smul.addr %s231, 4
      %s233 = scalar_lea.vmem %s0, %s232
      %p234 = pneg %p65
      %p235 = pneg %p62
      %p236 = scmp.lt.s32.totalorder %s20, 1
      %s237 = scalar_select %p236, %s20, 1
      %p238 = scmp.lt.s32.totalorder %s21, 3
      %s239 = scalar_select %p238, %s21, 3
      %p240 = scmp.lt.s32.totalorder %s23, 0
      %s241 = scalar_select %p240, %s23, 0
      %s242 = sadd.s32 %s241, %s239
      %s243 = smul.addr %s237, 4
      %s244 = sadd.s32 %s242, %s243
      %s245 = smul.addr %s244, 4
      %s246 = scalar_lea.vmem %s1, %s245
      %p247 = pneg %p95
      %p248 = pneg %p92
      %p249 = scmp.lt.s32.totalorder %s20, 1
      %s250 = scalar_select %p249, %s20, 1
      %p251 = scmp.lt.s32.totalorder %s21, 3
      %s252 = scalar_select %p251, %s21, 3
      %p253 = scmp.lt.s32.totalorder %s23, 0
      %s254 = scalar_select %p253, %s23, 0
      %s255 = sadd.s32 %s254, %s252
      %s256 = smul.addr %s250, 4
      %s257 = sadd.s32 %s255, %s256
      %s258 = smul.addr %s257, 4
      %s259 = scalar_lea.vmem %s2, %s258
      %p260 = pneg %p125
      %p261 = pneg %p122
      %p262 = pneg %p155
      %p263 = pneg %p152
      %p264 = scmp.lt.s32.totalorder %s20, 1
      %s265 = scalar_select %p264, %s20, 1
      %p266 = scmp.lt.s32.totalorder %s21, 3
      %s267 = scalar_select %p266, %s21, 3
      %p268 = scmp.lt.s32.totalorder %s22, 0
      %s269 = scalar_select %p268, %s22, 0
      %s270 = sadd.s32 %s269, %s267
      %s271 = smul.addr %s265, 4
      %s272 = sadd.s32 %s270, %s271
      %s273 = smul.addr %s272, 4
      %s274 = scalar_lea.vmem %s3, %s273
      %p275 = scmp.lt.s32.totalorder %s20, 1
      %s276 = scalar_select %p275, %s20, 1
      %p277 = scmp.lt.s32.totalorder %s21, 3
      %s278 = scalar_select %p277, %s21, 3
      %p279 = scmp.lt.s32.totalorder %s22, 0
      %s280 = scalar_select %p279, %s22, 0
      %s281 = sadd.s32 %s280, %s278
      %s282 = smul.addr %s276, 4
      %s283 = sadd.s32 %s281, %s282
      %s284 = smul.addr %s283, 4
      %s285 = scalar_lea.vmem %s0, %s284
      %p286 = scmp.lt.s32.totalorder %s20, 1
      %s287 = scalar_select %p286, %s20, 1
      %p288 = scmp.lt.s32.totalorder %s21, 3
      %s289 = scalar_select %p288, %s21, 3
      %p290 = scmp.lt.s32.totalorder %s23, 0
      %s291 = scalar_select %p290, %s23, 0
      %s292 = sadd.s32 %s291, %s289
      %s293 = smul.addr %s287, 4
      %s294 = sadd.s32 %s292, %s293
      %s295 = smul.addr %s294, 4
      %s296 = scalar_lea.vmem %s1, %s295
      %p297 = scmp.lt.s32.totalorder %s20, 1
      %s298 = scalar_select %p297, %s20, 1
      %p299 = scmp.lt.s32.totalorder %s21, 3
      %s300 = scalar_select %p299, %s21, 3
      %p301 = scmp.lt.s32.totalorder %s23, 0
      %s302 = scalar_select %p301, %s23, 0
      %s303 = sadd.s32 %s302, %s300
      %s304 = smul.addr %s298, 4
      %s305 = sadd.s32 %s303, %s304
      %s306 = smul.addr %s305, 4
      %s307 = scalar_lea.vmem %s2, %s306
      %p308 = scmp.lt.s32.totalorder %s20, 1
      %s309 = scalar_select %p308, %s20, 1
      %p310 = scmp.lt.s32.totalorder %s21, 3
      %s311 = scalar_select %p310, %s21, 3
      %p312 = scmp.lt.s32.totalorder %s22, 0
      %s313 = scalar_select %p312, %s22, 0
      %s314 = sadd.s32 %s313, %s311
      %s315 = smul.addr %s309, 4
      %s316 = sadd.s32 %s314, %s315
      %s317 = smul.addr %s316, 4
      %s318 = scalar_lea.vmem %s3, %s317
      %p320 = scmp.eq.s32.totalorder %s23, 0
      // Predicated region
      $region33: #{_lambda_.9} parent=31 // pred_check
        %p321 = pneg %p320
      $region34: #{_lambda_.9} parent=31 // pred_check_branch
        %323 = sbr.rel (%p321) target = $region36
      $region35: #{_lambda_.9} parent=31 // pred_region
        %vm324 = vcmask 7168
        %325 = vst.msk [vmem:[#allocation2] sm:$0xff] %vm324, -1e+30
        %326 = vst.msk [vmem:[#allocation3] sm:$0xff] %vm324, 0.0
        %vm327 = vcmask 64512
        %328 = vst.msk [vmem:[#allocation4] sm:$0xff] %vm327, 0.0
      $region36: #{_lambda_.9} parent=31 // pred_fallthru
        _
      %s329 = smul.u32 %s23, 8
      %s330 = smul.u32 %s22, 8
      %s331 = sadd.s32 %s330, 7
      %p332 = scmp.le.s32.totalorder %s329, %s331
      // Predicated region
      $region37: #{_lambda_.9} parent=31 // pred_check
        %p333 = pneg %p332
      $region38: #{_lambda_.9} parent=31 // pred_check_branch
        %335 = sbr.rel (%p333) target = $region40
      $region39: #{_lambda_.9} parent=31 // pred_region
        %v336 = vld [vmem:[%s285] sm:$0xf]
        %v337 = vld [vmem:[%s296] sm:$0xf]
        %vm338 = vcmask 64512
        %v340 = vsel %vm338, %v336, 0
        %v343 = vsel %vm338, %v337, 0
        %345 = vmatprep.subr.bf16.mxu0 0
        %346 = vmatpush1.bf16.xpose.msra.mxu0 %v343
        %347 = vmatprep.subr.bf16.mxu0 0
        %348 = vmatpush1.bf16.xpose.msra.mxu0 0
        %349 = vmatprep.subr.bf16.mxu0 0
        %350 = vmatpush1.bf16.xpose.msra.mxu0 0
        %351 = vmatprep.subr.bf16.mxu0 0
        %352 = vmatpush1.bf16.xpose.msra.mxu0 0
        %353 = vmatprep.subr.bf16.mxu0 0
        %354 = vmatpush1.bf16.xpose.msra.mxu0 0
        %355 = vmatprep.subr.bf16.mxu0 0
        %356 = vmatpush1.bf16.xpose.msra.mxu0 0
        %357 = vmatprep.subr.bf16.mxu0 0
        %358 = vmatpush1.bf16.xpose.msra.mxu0 0
        %359 = vmatprep.subr.bf16.mxu0 0
        %360 = vmatpush1.bf16.xpose.msra.mxu0 0
        %361 = vmatprep.subr.bf16.mxu0 0
        %362 = vmatpush1.bf16.xpose.msra.mxu0 0
        %363 = vmatprep.subr.bf16.mxu0 0
        %364 = vmatpush1.bf16.xpose.msra.mxu0 0
        %365 = vmatprep.subr.bf16.mxu0 0
        %366 = vmatpush1.bf16.xpose.msra.mxu0 0
        %367 = vmatprep.subr.bf16.mxu0 0
        %368 = vmatpush1.bf16.xpose.msra.mxu0 0
        %369 = vmatprep.subr.bf16.mxu0 0
        %370 = vmatpush1.bf16.xpose.msra.mxu0 0
        %371 = vmatprep.subr.bf16.mxu0 0
        %372 = vmatpush1.bf16.xpose.msra.mxu0 0
        %373 = vmatprep.subr.bf16.mxu0 0
        %374 = vmatpush1.bf16.xpose.msra.mxu0 0
        %375 = vmatprep.subr.bf16.mxu0 0
        %376 = vmatpush1.bf16.xpose.msra.mxu0 0
        %377 = vmatprep.mubr.bf16.mxu0 0
        %378 = vmatmul.mubr.bf16.gmra.mrb[0].mxu0 %v340
        %v379 = vpop.f32.mrb[0].mxu0
        %v380 = vadd.f32 0.0, %v379
        %v381 = vpop.f32.mrb[0].mxu0
        %v382 = vpop.f32.mrb[0].mxu0
        %v383 = vpop.f32.mrb[0].mxu0
        %384 = vdwg.mxu0
        %v385 = vmul.f32 %v380, 0.35355338
        %v386 = vlaneseq
        %v387 = vshrl.u32 %v386, 7
        %v388 = vstv %s330
        %v389 = vadd.s32 %v388, %v387
        %v390 = vlaneseq
        %v391 = vand.u32 %v390, 127
        %v392 = vstv %s329
        %v393 = vadd.s32 %v392, %v391
        %vm394 = vcmp.le.s32.totalorder %v393, %v389
        %v395 = vsel %vm394, %v385, -1e+30
        %v396 = vld [vmem:[#allocation2] sm:$0xff]
        %v397 = vsel %vm338, %v395, -inf
        %398 = vmax.xlane.f32.xlu0 %v397
        %v399 = vpop.xlane.xlu0 %398
        %v400 = vmax.f32 %v396, %v399
        %v401 = vsub.f32 %v396, %v400
        %v402 = vmul.f32 %v401, 1.442695
        %v403 = vpow.pop %v402
        %405 = vset.pattern.permute.xlu0 0
        %406 = vperm.xlu0 %405, %v400
        %v407 = vpop.permute.xlu0 %406
        %v409 = vsub.f32 %v395, %v407
        %v410 = vmul.f32 %v409, 1.442695
        %v411 = vpow.pop %v410
        %v412 = vld [vmem:[#allocation3] sm:$0xff]
        %v413 = vmul.f32 %v403, %v412
        %v414 = vsel %vm338, %v411, 0.0
        %415 = vadd.xlane.f32.xlu0 %v414
        %v416 = vpop.xlane.xlu0 %415
        %v417 = vadd.f32 %v413, %v416
        %vm418 = vcmask 7168
        %419 = vst.msk [vmem:[#allocation3] sm:$0xff] %vm418, %v417
        %v420 = vld [vmem:[#allocation4] sm:$0xff]
        %422 = vset.pattern.permute.xlu0 0
        %423 = vperm.xlu0 %422, %v403
        %v424 = vpop.permute.xlu0 %423
        %v426 = vmul.f32 %v424, %v420
        %v427 = vpack.c.bf16 %v411, %v411
        %v428 = vld [vmem:[%s307] sm:$0xf]
        %v430 = vsel %vm338, %v427, 0
        %vm432 = vcmask 1043456
        %v434 = vsel %vm432, %v428, 0
        %436 = vmatprep.subr.bf16.mxu0 0
        %437 = vmatpush1.bf16.msra.mxu0 %v434
        %438 = vmatprep.subr.bf16.mxu0 0
        %439 = vmatpush1.bf16.msra.mxu0 0
        %440 = vmatprep.subr.bf16.mxu0 0
        %441 = vmatpush1.bf16.msra.mxu0 0
        %442 = vmatprep.subr.bf16.mxu0 0
        %443 = vmatpush1.bf16.msra.mxu0 0
        %444 = vmatprep.subr.bf16.mxu0 0
        %445 = vmatpush1.bf16.msra.mxu0 0
        %446 = vmatprep.subr.bf16.mxu0 0
        %447 = vmatpush1.bf16.msra.mxu0 0
        %448 = vmatprep.subr.bf16.mxu0 0
        %449 = vmatpush1.bf16.msra.mxu0 0
        %450 = vmatprep.subr.bf16.mxu0 0
        %451 = vmatpush1.bf16.msra.mxu0 0
        %452 = vmatprep.subr.bf16.mxu0 0
        %453 = vmatpush1.bf16.msra.mxu0 0
        %454 = vmatprep.subr.bf16.mxu0 0
        %455 = vmatpush1.bf16.msra.mxu0 0
        %456 = vmatprep.subr.bf16.mxu0 0
        %457 = vmatpush1.bf16.msra.mxu0 0
        %458 = vmatprep.subr.bf16.mxu0 0
        %459 = vmatpush1.bf16.msra.mxu0 0
        %460 = vmatprep.subr.bf16.mxu0 0
        %461 = vmatpush1.bf16.msra.mxu0 0
        %462 = vmatprep.subr.bf16.mxu0 0
        %463 = vmatpush1.bf16.msra.mxu0 0
        %464 = vmatprep.subr.bf16.mxu0 0
        %465 = vmatpush1.bf16.msra.mxu0 0
        %466 = vmatprep.subr.bf16.mxu0 0
        %467 = vmatpush1.bf16.msra.mxu0 0
        %468 = vmatprep.mubr.bf16.mxu0 0
        %469 = vmatmul.mubr.bf16.gmra.mrb[0].mxu0 %v430
        %v470 = vpop.f32.mrb[0].mxu0
        %v471 = vadd.f32 0.0, %v470
        %v472 = vpop.f32.mrb[0].mxu0
        %v473 = vpop.f32.mrb[0].mxu0
        %v474 = vpop.f32.mrb[0].mxu0
        %475 = vdwg.mxu0
        %v476 = vadd.f32 %v426, %v471
        %477 = vst.msk [vmem:[#allocation4] sm:$0xff] %vm338, %v476
        %478 = vst.msk [vmem:[#allocation2] sm:$0xff] %vm418, %v400
      $region40: #{_lambda_.9} parent=31 // pred_fallthru
        _
      // Predicated region
      $region41: #{_lambda_.9} parent=31 // pred_check
        %p479 = pneg %p320
      $region42: #{_lambda_.9} parent=31 // pred_check_branch
        %481 = sbr.rel (%p479) target = $region44
      $region43: #{_lambda_.9} parent=31 // pred_region
        %v482 = vld [vmem:[#allocation4] sm:$0xff]
        %v483 = vld [vmem:[#allocation3] sm:$0xff]
        %v484 = vrcp.pop %v483
        %486 = vset.pattern.permute.xlu0 0
        %487 = vperm.xlu0 %486, %v484
        %v488 = vpop.permute.xlu0 %487
        %v490 = vmul.f32 %v482, %v488
        %v491 = vpack.c.bf16 %v490, %v490
        %vm492 = vcmask 60416
        %493 = vst.msk [vmem:[%s318] sm:$0xf] %vm492, %v491
      $region44: #{_lambda_.9} parent=31 // pred_fallthru
        _
      %p494 = scmp.lt.s32.totalorder %s20, 1
      %s495 = scalar_select %p494, %s20, 1
      %p496 = scmp.lt.s32.totalorder %s21, 3
      %s497 = scalar_select %p496, %s21, 3
      %p498 = scmp.lt.s32.totalorder %s22, 0
      %s499 = scalar_select %p498, %s22, 0
      %s500 = sadd.s32 %s499, %s497
      %s501 = smul.addr %s495, 4
      %s502 = sadd.s32 %s500, %s501
      %s503 = smul.addr %s502, 4
      %s504 = scalar_lea.vmem %s3, %s503
      // Predicated region
      $region45: #{_lambda_.9} parent=31 // pred_check
        %p505 = pneg %p152
      $region46: #{_lambda_.9} parent=31 // pred_check_branch
        %507 = sbr.rel (%p505) target = $region48
      $region47: #{_lambda_.9} parent=31 // pred_region
        _
      $region48: #{_lambda_.9} parent=31 // pred_fallthru
        _
    $region32: #{_lambda_.9} parent=5 // pred_fallthru
      _
    %p508 = scmp.le.s32.totalorder 2, %s9
    // Predicated region
    $region49: #{_lambda_.9} parent=5 // pred_check
      %p509 = pneg %p508
    $region50: #{_lambda_.9} parent=5 // pred_check_branch
      %511 = sbr.rel (%p509) target = $region52
    $region51: #{_lambda_.9} parent=5 // pred_region
      %s512 = ssub.s32 %s9, 2
      // Predicated region
      $region53: #{_lambda_.9} parent=51 // pred_check
        %p513 = pneg %p158
      $region54: #{_lambda_.9} parent=51 // pred_check_branch
        %515 = sbr.rel (%p513) target = $region56
      $region55: #{_lambda_.9} parent=51 // pred_region
        %p516 = scmp.lt.s32.totalorder %s24, 1
        %s517 = scalar_select %p516, %s24, 1
        %p518 = scmp.lt.s32.totalorder %s25, 3
        %s519 = scalar_select %p518, %s25, 3
        %p520 = scmp.lt.s32.totalorder %s26, 0
        %s521 = scalar_select %p520, %s26, 0
        %s522 = sadd.s32 %s521, %s519
        %s523 = smul.addr %s517, 4
        %s524 = sadd.s32 %s522, %s523
        %s525 = smul.addr %s524, 4
        %s526 = scalar_lea.vmem %s3, %s525
      $region56: #{_lambda_.9} parent=51 // pred_fallthru
        _
    $region52: #{_lambda_.9} parent=5 // pred_fallthru
      _
  $region6: #{_lambda_.9} parent=0 // loop_footer
    %s13 = sadd.s32 1, %s9
  $region7: #{_lambda_.9} parent=0 // loop_footer_branch
    %8 = sbr.rel target = $region3
  $region8: #{_lambda_.9} parent=0 // loop_exit
    _

// kernel: _lambda_.8
$region0: #{_lambda_.8}
  #allocation0 [shape = 'u32[]', space=smem, size = 0x4, offset = 0x4, fixed_abs, tag = 'smem constant byte address 0x4 - core index']
  #allocation1 [shape = 'u32[144,128]{1,0:T(1,128)}', space=vmem, size = 0x12000, scoped, tag = 'internal scratch']
  %s0 = inlined_call_operand.vmem [shape: bf16[2,8,32], index: 0, kind: input, shape index: {}]
  %s1 = inlined_call_operand.vmem [shape: f32[1,32], index: 1, kind: input, shape index: {}]
  %s2 = inlined_call_operand.vmem [shape: f32[1,32], index: 2, kind: input, shape index: {}]
  %s3 = inlined_call_operand.vmem [shape: bf16[32,96], index: 3, kind: input, shape index: {}]
  %s4 = inlined_call_operand.vmem [shape: f32[1,96], index: 4, kind: input, shape index: {}]
  %s5 = inlined_call_operand.vmem [shape: bf16[2,4,8,8], index: 5, kind: output, shape index: {0}]
  %s6 = inlined_call_operand.vmem [shape: bf16[2,4,8,8], index: 6, kind: output, shape index: {1}]
  %s7 = inlined_call_operand.vmem [shape: bf16[2,4,8,8], index: 7, kind: output, shape index: {2}]
  %8 = xla_tuple %s5, %s6, %s7
  %s9 = sld [smem:[#allocation0]]
  $region69: #{_lambda_.8} parent=0
    _
  %s11 = ssub.s32 1, %s9
  %s12 = scalar_select 0, %s11, %s9
  loop: start=0, step=1, limit=4
  $region2: #{_lambda_.8} parent=0 // loop_pre_header
    _
  $region3: #{_lambda_.8} parent=0 // loop_header
    %s14 = sphi 0, %s18
    %p15 = scmp.ge.s32.totalorder %s14, 4
    %s21 = sphi 0, %s33
    %s22 = sphi 0, %s29
    %s23 = sphi 0, %s21
    %s24 = sphi 0, %s22
    %s25 = sphi 0, %s23
    %s26 = sphi 0, %s24
    %s38 = sphi 0, %s40
    %s41 = sphi 0, %s38
    %s42 = sphi 0, %s41
    %s58 = sphi 0, %s42
    %s62 = sphi 0, %s62
    %s64 = sphi 0, %s62
    %s65 = sphi 0, %s64
    %s79 = sphi 0, %s65
    %s83 = sphi 0, %s83
    %s85 = sphi 0, %s83
    %s86 = sphi 0, %s85
    %s100 = sphi 0, %s86
    %s104 = sphi 0, %s104
    %s106 = sphi 0, %s104
    %s107 = sphi 0, %s106
    %s121 = sphi 0, %s107
    %s125 = sphi 0, %s125
    %s127 = sphi 0, %s125
    %s128 = sphi 0, %s127
    %s142 = sphi 0, %s128
    %s150 = sphi 0, %s152
    %s153 = sphi 0, %s150
    %s154 = sphi 0, %s153
    %s170 = sphi 0, %s154
    %s178 = sphi 0, %s180
    %s181 = sphi 0, %s178
    %s182 = sphi 0, %s181
    %s198 = sphi 0, %s182
    %s206 = sphi 0, %s208
    %s209 = sphi 0, %s206
    %s210 = sphi 0, %s209
    %s226 = sphi 0, %s210
  $region4: #{_lambda_.8} parent=0 // loop_header_branch
    %17 = sbr.rel (%p15) target = $region8
  $region5: #{_lambda_.8} parent=0 // loop_body
    %s19 = ssub.s32 %s14, 1
    %s20 = ssub.s32 %s14, 2
    %s27 = sadd.s32 1, %s22
    %p28 = scmp.ge.s32.totalorder %s27, 1
    %s29 = scalar_select %p28, 0, %s27
    %s30 = sadd.s32 1, %s21
    %s31 = scalar_select %p28, %s30, %s21
    %p32 = scmp.ge.s32.totalorder %s31, 2
    %s33 = scalar_select %p32, 0, %s31
    %s34 = ssub.s32 %s21, %s33
    %s35 = ssub.s32 %s22, %s29
    %s36 = sor.u32 %s34, %s35
    %p37 = scmp.eq.s32.totalorder %s36, 0
    %s39 = sadd.s32 %s38, 1
    %s40 = scalar_select %p37, %s38, %s39
    %p43 = pneg %p37
    %p44 = scmp.eq.s32.totalorder %s14, 1
    %p45 = por %p43, %p44
    %p46 = scmp.ne.s32.totalorder %s38, %s41
    %p47 = scmp.eq.s32.totalorder %s14, 0
    %p48 = por %p46, %p47
    %p49 = scmp.ne.s32.totalorder %s38, %s41
    %p50 = scmp.eq.s32.totalorder %s19, 1
    %p51 = por %p49, %p50
    %p52 = scmp.ne.s32.totalorder %s41, %s42
    %p53 = scmp.eq.s32.totalorder %s19, 0
    %p54 = por %p52, %p53
    %p55 = scmp.ne.s32.totalorder %s41, %s42
    %p56 = scmp.eq.s32.totalorder %s20, 1
    %p57 = por %p55, %p56
    %p59 = scmp.ne.s32.totalorder %s42, %s58
    %p60 = scmp.eq.s32.totalorder %s20, 0
    %p61 = por %p59, %p60
    %s63 = sadd.s32 %s62, 1
    %p66 = scmp.eq.s32.totalorder %s14, 1
    %p67 = scmp.ne.s32.totalorder %s62, %s64
    %p68 = scmp.eq.s32.totalorder %s14, 0
    %p69 = por %p67, %p68
    %p70 = scmp.ne.s32.totalorder %s62, %s64
    %p71 = scmp.eq.s32.totalorder %s19, 1
    %p72 = por %p70, %p71
    %p73 = scmp.ne.s32.totalorder %s64, %s65
    %p74 = scmp.eq.s32.totalorder %s19, 0
    %p75 = por %p73, %p74
    %p76 = scmp.ne.s32.totalorder %s64, %s65
    %p77 = scmp.eq.s32.totalorder %s20, 1
    %p78 = por %p76, %p77
    %p80 = scmp.ne.s32.totalorder %s65, %s79
    %p81 = scmp.eq.s32.totalorder %s20, 0
    %p82 = por %p80, %p81
    %s84 = sadd.s32 %s83, 1
    %p87 = scmp.eq.s32.totalorder %s14, 1
    %p88 = scmp.ne.s32.totalorder %s83, %s85
    %p89 = scmp.eq.s32.totalorder %s14, 0
    %p90 = por %p88, %p89
    %p91 = scmp.ne.s32.totalorder %s83, %s85
    %p92 = scmp.eq.s32.totalorder %s19, 1
    %p93 = por %p91, %p92
    %p94 = scmp.ne.s32.totalorder %s85, %s86
    %p95 = scmp.eq.s32.totalorder %s19, 0
    %p96 = por %p94, %p95
    %p97 = scmp.ne.s32.totalorder %s85, %s86
    %p98 = scmp.eq.s32.totalorder %s20, 1
    %p99 = por %p97, %p98
    %p101 = scmp.ne.s32.totalorder %s86, %s100
    %p102 = scmp.eq.s32.totalorder %s20, 0
    %p103 = por %p101, %p102
    %s105 = sadd.s32 %s104, 1
    %p108 = scmp.eq.s32.totalorder %s14, 1
    %p109 = scmp.ne.s32.totalorder %s104, %s106
    %p110 = scmp.eq.s32.totalorder %s14, 0
    %p111 = por %p109, %p110
    %p112 = scmp.ne.s32.totalorder %s104, %s106
    %p113 = scmp.eq.s32.totalorder %s19, 1
    %p114 = por %p112, %p113
    %p115 = scmp.ne.s32.totalorder %s106, %s107
    %p116 = scmp.eq.s32.totalorder %s19, 0
    %p117 = por %p115, %p116
    %p118 = scmp.ne.s32.totalorder %s106, %s107
    %p119 = scmp.eq.s32.totalorder %s20, 1
    %p120 = por %p118, %p119
    %p122 = scmp.ne.s32.totalorder %s107, %s121
    %p123 = scmp.eq.s32.totalorder %s20, 0
    %p124 = por %p122, %p123
    %s126 = sadd.s32 %s125, 1
    %p129 = scmp.eq.s32.totalorder %s14, 1
    %p130 = scmp.ne.s32.totalorder %s125, %s127
    %p131 = scmp.eq.s32.totalorder %s14, 0
    %p132 = por %p130, %p131
    %p133 = scmp.ne.s32.totalorder %s125, %s127
    %p134 = scmp.eq.s32.totalorder %s19, 1
    %p135 = por %p133, %p134
    %p136 = scmp.ne.s32.totalorder %s127, %s128
    %p137 = scmp.eq.s32.totalorder %s19, 0
    %p138 = por %p136, %p137
    %p139 = scmp.ne.s32.totalorder %s127, %s128
    %p140 = scmp.eq.s32.totalorder %s20, 1
    %p141 = por %p139, %p140
    %p143 = scmp.ne.s32.totalorder %s128, %s142
    %p144 = scmp.eq.s32.totalorder %s20, 0
    %p145 = por %p143, %p144
    %s146 = ssub.s32 %s21, %s33
    %s147 = ssub.s32 %s22, %s29
    %s148 = sor.u32 %s146, %s147
    %p149 = scmp.eq.s32.totalorder %s148, 0
    %s151 = sadd.s32 %s150, 1
    %s152 = scalar_select %p149, %s150, %s151
    %p155 = pneg %p149
    %p156 = scmp.eq.s32.totalorder %s14, 1
    %p157 = por %p155, %p156
    %p158 = scmp.ne.s32.totalorder %s150, %s153
    %p159 = scmp.eq.s32.totalorder %s14, 0
    %p160 = por %p158, %p159
    %p161 = scmp.ne.s32.totalorder %s150, %s153
    %p162 = scmp.eq.s32.totalorder %s19, 1
    %p163 = por %p161, %p162
    %p164 = scmp.ne.s32.totalorder %s153, %s154
    %p165 = scmp.eq.s32.totalorder %s19, 0
    %p166 = por %p164, %p165
    %p167 = scmp.ne.s32.totalorder %s153, %s154
    %p168 = scmp.eq.s32.totalorder %s20, 1
    %p169 = por %p167, %p168
    %p171 = scmp.ne.s32.totalorder %s154, %s170
    %p172 = scmp.eq.s32.totalorder %s20, 0
    %p173 = por %p171, %p172
    %s174 = ssub.s32 %s21, %s33
    %s175 = ssub.s32 %s22, %s29
    %s176 = sor.u32 %s174, %s175
    %p177 = scmp.eq.s32.totalorder %s176, 0
    %s179 = sadd.s32 %s178, 1
    %s180 = scalar_select %p177, %s178, %s179
    %p183 = pneg %p177
    %p184 = scmp.eq.s32.totalorder %s14, 1
    %p185 = por %p183, %p184
    %p186 = scmp.ne.s32.totalorder %s178, %s181
    %p187 = scmp.eq.s32.totalorder %s14, 0
    %p188 = por %p186, %p187
    %p189 = scmp.ne.s32.totalorder %s178, %s181
    %p190 = scmp.eq.s32.totalorder %s19, 1
    %p191 = por %p189, %p190
    %p192 = scmp.ne.s32.totalorder %s181, %s182
    %p193 = scmp.eq.s32.totalorder %s19, 0
    %p194 = por %p192, %p193
    %p195 = scmp.ne.s32.totalorder %s181, %s182
    %p196 = scmp.eq.s32.totalorder %s20, 1
    %p197 = por %p195, %p196
    %p199 = scmp.ne.s32.totalorder %s182, %s198
    %p200 = scmp.eq.s32.totalorder %s20, 0
    %p201 = por %p199, %p200
    %s202 = ssub.s32 %s21, %s33
    %s203 = ssub.s32 %s22, %s29
    %s204 = sor.u32 %s202, %s203
    %p205 = scmp.eq.s32.totalorder %s204, 0
    %s207 = sadd.s32 %s206, 1
    %s208 = scalar_select %p205, %s206, %s207
    %p211 = pneg %p205
    %p212 = scmp.eq.s32.totalorder %s14, 1
    %p213 = por %p211, %p212
    %p214 = scmp.ne.s32.totalorder %s206, %s209
    %p215 = scmp.eq.s32.totalorder %s14, 0
    %p216 = por %p214, %p215
    %p217 = scmp.ne.s32.totalorder %s206, %s209
    %p218 = scmp.eq.s32.totalorder %s19, 1
    %p219 = por %p217, %p218
    %p220 = scmp.ne.s32.totalorder %s209, %s210
    %p221 = scmp.eq.s32.totalorder %s19, 0
    %p222 = por %p220, %p221
    %p223 = scmp.ne.s32.totalorder %s209, %s210
    %p224 = scmp.eq.s32.totalorder %s20, 1
    %p225 = por %p223, %p224
    %p227 = scmp.ne.s32.totalorder %s210, %s226
    %p228 = scmp.eq.s32.totalorder %s20, 0
    %p229 = por %p227, %p228
    %p230 = scmp.le.s32.totalorder 1, %s14
    %p231 = scmp.lt.s32.totalorder %s14, 3
    %p232 = pnand %p230, %p231
    %p233 = pneg %p232
    // Predicated region
    $region9: #{_lambda_.8} parent=5 // pred_check
      _
    $region10: #{_lambda_.8} parent=5 // pred_check_branch
      %235 = sbr.rel (%p232) target = $region12
    $region11: #{_lambda_.8} parent=5 // pred_region
      %s236 = ssub.s32 %s14, 1
      // Predicated region
      $region13: #{_lambda_.8} parent=11 // pred_check
        %p237 = pneg %p75
      $region14: #{_lambda_.8} parent=11 // pred_check_branch
        %239 = sbr.rel (%p237) target = $region16
      $region15: #{_lambda_.8} parent=11 // pred_region
        _
      $region16: #{_lambda_.8} parent=11 // pred_fallthru
        _
      // Predicated region
      $region17: #{_lambda_.8} parent=11 // pred_check
        %p240 = pneg %p96
      $region18: #{_lambda_.8} parent=11 // pred_check_branch
        %242 = sbr.rel (%p240) target = $region20
      $region19: #{_lambda_.8} parent=11 // pred_region
        _
      $region20: #{_lambda_.8} parent=11 // pred_fallthru
        _
      // Predicated region
      $region21: #{_lambda_.8} parent=11 // pred_check
        %p243 = pneg %p117
      $region22: #{_lambda_.8} parent=11 // pred_check_branch
        %245 = sbr.rel (%p243) target = $region24
      $region23: #{_lambda_.8} parent=11 // pred_region
        _
      $region24: #{_lambda_.8} parent=11 // pred_fallthru
        _
      // Predicated region
      $region25: #{_lambda_.8} parent=11 // pred_check
        %p246 = pneg %p138
      $region26: #{_lambda_.8} parent=11 // pred_check_branch
        %248 = sbr.rel (%p246) target = $region28
      $region27: #{_lambda_.8} parent=11 // pred_region
        _
      $region28: #{_lambda_.8} parent=11 // pred_fallthru
        _
    $region12: #{_lambda_.8} parent=5 // pred_fallthru
      _
    %p249 = scmp.lt.s32.totalorder %s14, 2
    // Predicated region
    $region29: #{_lambda_.8} parent=5 // pred_check
      %p250 = pneg %p249
    $region30: #{_lambda_.8} parent=5 // pred_check_branch
      %252 = sbr.rel (%p250) target = $region32
    $region31: #{_lambda_.8} parent=5 // pred_region
      // Predicated region
      $region33: #{_lambda_.8} parent=31 // pred_check
        %p253 = pneg %p48
      $region34: #{_lambda_.8} parent=31 // pred_check_branch
        %255 = sbr.rel (%p253) target = $region36
      $region35: #{_lambda_.8} parent=31 // pred_region
        %p256 = scmp.lt.s32.totalorder %s21, 1
        %s257 = scalar_select %p256, %s21, 1
        %p258 = scmp.lt.s32.totalorder %s22, 0
        %s259 = scalar_select %p258, %s22, 0
        %s260 = sadd.s32 %s259, %s257
        %s261 = smul.addr %s260, 4
        %s262 = scalar_lea.vmem %s0, %s261
      $region36: #{_lambda_.8} parent=31 // pred_fallthru
        _
    $region32: #{_lambda_.8} parent=5 // pred_fallthru
      _
    %p263 = scmp.le.s32.totalorder 1, %s14
    %p264 = scmp.lt.s32.totalorder %s14, 3
    %p265 = pnand %p263, %p264
    %p266 = pneg %p265
    // Predicated region
    $region37: #{_lambda_.8} parent=5 // pred_check
      _
    $region38: #{_lambda_.8} parent=5 // pred_check_branch
      %268 = sbr.rel (%p265) target = $region40
    $region39: #{_lambda_.8} parent=5 // pred_region
      %s269 = ssub.s32 %s14, 1
      %p270 = scmp.lt.s32.totalorder %s23, 1
      %s271 = scalar_select %p270, %s23, 1
      %p272 = scmp.lt.s32.totalorder %s24, 0
      %s273 = scalar_select %p272, %s24, 0
      %s274 = sadd.s32 %s273, %s271
      %s275 = smul.addr %s274, 4
      %s276 = scalar_lea.vmem %s0, %s275
      %p277 = pneg %p54
      %p278 = pneg %p51
      %p279 = pneg %p75
      %p280 = pneg %p72
      %p281 = pneg %p96
      %p282 = pneg %p93
      %p283 = pneg %p117
      %p284 = pneg %p114
      %p285 = pneg %p138
      %p286 = pneg %p135
      %p287 = pneg %p166
      %p288 = pneg %p163
      %p289 = scmp.lt.s32.totalorder %s23, 1
      %s290 = scalar_select %p289, %s23, 1
      %p291 = scmp.lt.s32.totalorder %s24, 0
      %s292 = scalar_select %p291, %s24, 0
      %s293 = smul.addr %s290, 4
      %s294 = sadd.s32 %s292, %s293
      %s295 = smul.addr %s294, 4
      %s296 = scalar_lea.vmem %s5, %s295
      %p297 = pneg %p194
      %p298 = pneg %p191
      %p299 = scmp.lt.s32.totalorder %s23, 1
      %s300 = scalar_select %p299, %s23, 1
      %p301 = scmp.lt.s32.totalorder %s24, 0
      %s302 = scalar_select %p301, %s24, 0
      %s303 = smul.addr %s300, 4
      %s304 = sadd.s32 %s302, %s303
      %s305 = smul.addr %s304, 4
      %s306 = scalar_lea.vmem %s6, %s305
      %p307 = pneg %p222
      %p308 = pneg %p219
      %p309 = scmp.lt.s32.totalorder %s23, 1
      %s310 = scalar_select %p309, %s23, 1
      %p311 = scmp.lt.s32.totalorder %s24, 0
      %s312 = scalar_select %p311, %s24, 0
      %s313 = smul.addr %s310, 4
      %s314 = sadd.s32 %s312, %s313
      %s315 = smul.addr %s314, 4
      %s316 = scalar_lea.vmem %s7, %s315
      %p317 = scmp.lt.s32.totalorder %s23, 1
      %s318 = scalar_select %p317, %s23, 1
      %p319 = scmp.lt.s32.totalorder %s24, 0
      %s320 = scalar_select %p319, %s24, 0
      %s321 = sadd.s32 %s320, %s318
      %s322 = smul.addr %s321, 4
      %s323 = scalar_lea.vmem %s0, %s322
      %p324 = scmp.lt.s32.totalorder %s23, 1
      %s325 = scalar_select %p324, %s23, 1
      %p326 = scmp.lt.s32.totalorder %s24, 0
      %s327 = scalar_select %p326, %s24, 0
      %s328 = smul.addr %s325, 4
      %s329 = sadd.s32 %s327, %s328
      %s330 = smul.addr %s329, 4
      %s331 = scalar_lea.vmem %s5, %s330
      %p332 = scmp.lt.s32.totalorder %s23, 1
      %s333 = scalar_select %p332, %s23, 1
      %p334 = scmp.lt.s32.totalorder %s24, 0
      %s335 = scalar_select %p334, %s24, 0
      %s336 = smul.addr %s333, 4
      %s337 = sadd.s32 %s335, %s336
      %s338 = smul.addr %s337, 4
      %s339 = scalar_lea.vmem %s6, %s338
      %p340 = scmp.lt.s32.totalorder %s23, 1
      %s341 = scalar_select %p340, %s23, 1
      %p342 = scmp.lt.s32.totalorder %s24, 0
      %s343 = scalar_select %p342, %s24, 0
      %s344 = smul.addr %s341, 4
      %s345 = sadd.s32 %s343, %s344
      %s346 = smul.addr %s345, 4
      %s347 = scalar_lea.vmem %s7, %s346
      %v349 = vld [vmem:[%s323] sm:$0xf]
      %v350 = vunpack.c.l.bf16 %v349
      %v351 = vld [vmem:[%s1] sm:$0x1]
      %v352 = vld [vmem:[%s2] sm:$0x1]
      %vm353 = vcmask 261120
      %v354 = vsel %vm353, %v350, 0.0
      %355 = vadd.xlane.f32.xlu0 %v354
      %v356 = vpop.xlane.xlu0 %355
      %v357 = vrcp.pop 32.0
      %v358 = vmul.f32 %v356, %v357
      %v359 = vsub.f32 %v350, %v358
      %v360 = vmul.f32 %v359, %v359
      %v361 = vsel %vm353, %v360, 0.0
      %362 = vadd.xlane.f32.xlu0 %v361
      %v363 = vpop.xlane.xlu0 %362
      %v364 = vmul.f32 %v363, %v357
      %v365 = vadd.f32 %v364, 1e-05
      %v366 = vrsqrt.pop %v365
      %v367 = vmul.f32 %v359, %v366
      %v369 = vlaneseq
      %v370 = vshrl.u32 %v369, 7
      %v371 = vsub.s32 0, %v370
      %v372 = vrot.slane %v351, %v371
      %v374 = vmul.f32 %v367, %v372
      %v376 = vlaneseq
      %v377 = vshrl.u32 %v376, 7
      %v378 = vsub.s32 0, %v377
      %v379 = vrot.slane %v352, %v378
      %v381 = vadd.f32 %v374, %v379
      %v382 = vpack.c.bf16 %v381, %v381
      %v383 = vld [vmem:[%s3] sm:$0xf]
      %v384 = vld [vmem:[%s3 + $0x4] sm:$0xf]
      %v385 = vld [vmem:[%s3 + $0x8] sm:$0xf]
      %v386 = vld [vmem:[%s3 + $0xc] sm:$0xf]
      %v387 = vld [vmem:[%s4] sm:$0x1]
      %v389 = vlaneseq
      %v390 = vshrl.u32 %v389, 7
      %v391 = vsub.s32 0, %v390
      %v392 = vrot.slane %v387, %v391
      %v398 = vunpack.c.l.b16 %v383
      %v399 = vunpack.c.l.b16 %v384
      %v400 = vunpack.c.l.b16 %v385
      %v401 = vunpack.c.l.b16 %v386
      %v402 = vpack.c.b16 %v399, %v398
      %v403 = vpack.c.b16 %v401, %v400
      %v407 = vsel %vm353, %v382, 0
      %409 = vmatprep.subr.bf16.mxu0 0
      %410 = vmatpush1.bf16.msra.mxu0 %v402
      %411 = vmatprep.subr.bf16.mxu0 0
      %412 = vmatpush1.bf16.msra.mxu0 %v403
      %413 = vmatprep.subr.bf16.mxu0 0
      %414 = vmatpush1.bf16.msra.mxu0 0
      %415 = vmatprep.subr.bf16.mxu0 0
      %416 = vmatpush1.bf16.msra.mxu0 0
      %417 = vmatprep.subr.bf16.mxu0 0
      %418 = vmatpush1.bf16.msra.mxu0 0
      %419 = vmatprep.subr.bf16.mxu0 0
      %420 = vmatpush1.bf16.msra.mxu0 0
      %421 = vmatprep.subr.bf16.mxu0 0
      %422 = vmatpush1.bf16.msra.mxu0 0
      %423 = vmatprep.subr.bf16.mxu0 0
      %424 = vmatpush1.bf16.msra.mxu0 0
      %425 = vmatprep.subr.bf16.mxu0 0
      %426 = vmatpush1.bf16.msra.mxu0 0
      %427 = vmatprep.subr.bf16.mxu0 0
      %428 = vmatpush1.bf16.msra.mxu0 0
      %429 = vmatprep.subr.bf16.mxu0 0
      %430 = vmatpush1.bf16.msra.mxu0 0
      %431 = vmatprep.subr.bf16.mxu0 0
      %432 = vmatpush1.bf16.msra.mxu0 0
      %433 = vmatprep.subr.bf16.mxu0 0
      %434 = vmatpush1.bf16.msra.mxu0 0
      %435 = vmatprep.subr.bf16.mxu0 0
      %436 = vmatpush1.bf16.msra.mxu0 0
      %437 = vmatprep.subr.bf16.mxu0 0
      %438 = vmatpush1.bf16.msra.mxu0 0
      %439 = vmatprep.subr.bf16.mxu0 0
      %440 = vmatpush1.bf16.msra.mxu0 0
      %441 = vmatprep.mubr.bf16.mxu0 0
      %442 = vmatmul.mubr.bf16.gmra.mrb[0].mxu0 %v407
      %v443 = vpop.f32.mrb[0].mxu0
      %v444 = vadd.f32 %v392, %v443
      %v445 = vpop.f32.mrb[0].mxu0
      %v446 = vpop.f32.mrb[0].mxu0
      %v447 = vpop.f32.mrb[0].mxu0
      %448 = vdwg.mxu0
      %449 = vxpose.xlu0.b32.start [1/16] %v444, 128
      %450 = vxpose.xlu0.b32.cont [2/16] 0.0, 128
      %451 = vxpose.xlu0.b32.cont [3/16] 0.0, 128
      %452 = vxpose.xlu0.b32.cont [4/16] 0.0, 128
      %453 = vxpose.xlu0.b32.cont [5/16] 0.0, 128
      %454 = vxpose.xlu0.b32.cont [6/16] 0.0, 128
      %455 = vxpose.xlu0.b32.cont [7/16] 0.0, 128
      %456 = vxpose.xlu0.b32.cont [8/16] 0.0, 128
      %457 = vxpose.xlu0.b32.cont [9/16] 0.0, 128
      %458 = vxpose.xlu0.b32.cont [10/16] 0.0, 128
      %459 = vxpose.xlu0.b32.cont [11/16] 0.0, 128
      %460 = vxpose.xlu0.b32.cont [12/16] 0.0, 128
      %461 = vxpose.xlu0.b32.cont [13/16] 0.0, 128
      %462 = vxpose.xlu0.b32.cont [14/16] 0.0, 128
      %463 = vxpose.xlu0.b32.cont [15/16] 0.0, 128
      %464 = vxpose.xlu0.b32.end [16/16] 0.0, 128
      %v465 = vpop.trf.xlu0
      %v466 = vpop.trf.xlu0
      %v467 = vpop.trf.xlu0
      %v468 = vpop.trf.xlu0
      %v469 = vpop.trf.xlu0
      %v470 = vpop.trf.xlu0
      %v471 = vpop.trf.xlu0
      %v472 = vpop.trf.xlu0
      %v473 = vpop.trf.xlu0
      %v474 = vpop.trf.xlu0
      %v475 = vpop.trf.xlu0
      %v476 = vpop.trf.xlu0
      %v477 = vpop.trf.xlu0
      %v478 = vpop.trf.xlu0
      %v479 = vpop.trf.xlu0
      %v480 = vpop.trf.xlu0
      %481 = vxpose.xlu0.b32.start [1/16] %v465, 128
      %482 = vxpose.xlu0.b32.cont [2/16] 0.0, 128
      %483 = vxpose.xlu0.b32.cont [3/16] 0.0, 128
      %484 = vxpose.xlu0.b32.cont [4/16] 0.0, 128
      %485 = vxpose.xlu0.b32.cont [5/16] 0.0, 128
      %486 = vxpose.xlu0.b32.cont [6/16] 0.0, 128
      %487 = vxpose.xlu0.b32.cont [7/16] 0.0, 128
      %488 = vxpose.xlu0.b32.cont [8/16] 0.0, 128
      %489 = vxpose.xlu0.b32.cont [9/16] 0.0, 128
      %490 = vxpose.xlu0.b32.cont [10/16] 0.0, 128
      %491 = vxpose.xlu0.b32.cont [11/16] 0.0, 128
      %492 = vxpose.xlu0.b32.cont [12/16] 0.0, 128
      %493 = vxpose.xlu0.b32.cont [13/16] 0.0, 128
      %494 = vxpose.xlu0.b32.cont [14/16] 0.0, 128
      %495 = vxpose.xlu0.b32.cont [15/16] 0.0, 128
      %496 = vxpose.xlu0.b32.end [16/16] 0.0, 128
      %v497 = vpop.trf.xlu0
      %v498 = vpop.trf.xlu0
      %v499 = vpop.trf.xlu0
      %v500 = vpop.trf.xlu0
      %v501 = vpop.trf.xlu0
      %v502 = vpop.trf.xlu0
      %v503 = vpop.trf.xlu0
      %v504 = vpop.trf.xlu0
      %v505 = vpop.trf.xlu0
      %v506 = vpop.trf.xlu0
      %v507 = vpop.trf.xlu0
      %v508 = vpop.trf.xlu0
      %v509 = vpop.trf.xlu0
      %v510 = vpop.trf.xlu0
      %v511 = vpop.trf.xlu0
      %v512 = vpop.trf.xlu0
      %513 = vxpose.xlu0.b32.start [1/16] %v466, 128
      %514 = vxpose.xlu0.b32.cont [2/16] 0.0, 128
      %515 = vxpose.xlu0.b32.cont [3/16] 0.0, 128
      %516 = vxpose.xlu0.b32.cont [4/16] 0.0, 128
      %517 = vxpose.xlu0.b32.cont [5/16] 0.0, 128
      %518 = vxpose.xlu0.b32.cont [6/16] 0.0, 128
      %519 = vxpose.xlu0.b32.cont [7/16] 0.0, 128
      %520 = vxpose.xlu0.b32.cont [8/16] 0.0, 128
      %521 = vxpose.xlu0.b32.cont [9/16] 0.0, 128
      %522 = vxpose.xlu0.b32.cont [10/16] 0.0, 128
      %523 = vxpose.xlu0.b32.cont [11/16] 0.0, 128
      %524 = vxpose.xlu0.b32.cont [12/16] 0.0, 128
      %525 = vxpose.xlu0.b32.cont [13/16] 0.0, 128
      %526 = vxpose.xlu0.b32.cont [14/16] 0.0, 128
      %527 = vxpose.xlu0.b32.cont [15/16] 0.0, 128
      %528 = vxpose.xlu0.b32.end [16/16] 0.0, 128
      %v529 = vpop.trf.xlu0
      %v530 = vpop.trf.xlu0
      %v531 = vpop.trf.xlu0
      %v532 = vpop.trf.xlu0
      %v533 = vpop.trf.xlu0
      %v534 = vpop.trf.xlu0
      %v535 = vpop.trf.xlu0
      %v536 = vpop.trf.xlu0
      %v537 = vpop.trf.xlu0
      %v538 = vpop.trf.xlu0
      %v539 = vpop.trf.xlu0
      %v540 = vpop.trf.xlu0
      %v541 = vpop.trf.xlu0
      %v542 = vpop.trf.xlu0
      %v543 = vpop.trf.xlu0
      %v544 = vpop.trf.xlu0
      %545 = vxpose.xlu0.b32.start [1/16] %v467, 128
      %546 = vxpose.xlu0.b32.cont [2/16] 0.0, 128
      %547 = vxpose.xlu0.b32.cont [3/16] 0.0, 128
      %548 = vxpose.xlu0.b32.cont [4/16] 0.0, 128
      %549 = vxpose.xlu0.b32.cont [5/16] 0.0, 128
      %550 = vxpose.xlu0.b32.cont [6/16] 0.0, 128
      %551 = vxpose.xlu0.b32.cont [7/16] 0.0, 128
      %552 = vxpose.xlu0.b32.cont [8/16] 0.0, 128
      %553 = vxpose.xlu0.b32.cont [9/16] 0.0, 128
      %554 = vxpose.xlu0.b32.cont [10/16] 0.0, 128
      %555 = vxpose.xlu0.b32.cont [11/16] 0.0, 128
      %556 = vxpose.xlu0.b32.cont [12/16] 0.0, 128
      %557 = vxpose.xlu0.b32.cont [13/16] 0.0, 128
      %558 = vxpose.xlu0.b32.cont [14/16] 0.0, 128
      %559 = vxpose.xlu0.b32.cont [15/16] 0.0, 128
      %560 = vxpose.xlu0.b32.end [16/16] 0.0, 128
      %v561 = vpop.trf.xlu0
      %v562 = vpop.trf.xlu0
      %v563 = vpop.trf.xlu0
      %v564 = vpop.trf.xlu0
      %v565 = vpop.trf.xlu0
      %v566 = vpop.trf.xlu0
      %v567 = vpop.trf.xlu0
      %v568 = vpop.trf.xlu0
      %v569 = vpop.trf.xlu0
      %v570 = vpop.trf.xlu0
      %v571 = vpop.trf.xlu0
      %v572 = vpop.trf.xlu0
      %v573 = vpop.trf.xlu0
      %v574 = vpop.trf.xlu0
      %v575 = vpop.trf.xlu0
      %v576 = vpop.trf.xlu0
      %577 = vxpose.xlu0.b32.start [1/16] %v468, 128
      %578 = vxpose.xlu0.b32.cont [2/16] 0.0, 128
      %579 = vxpose.xlu0.b32.cont [3/16] 0.0, 128
      %580 = vxpose.xlu0.b32.cont [4/16] 0.0, 128
      %581 = vxpose.xlu0.b32.cont [5/16] 0.0, 128
      %582 = vxpose.xlu0.b32.cont [6/16] 0.0, 128
      %583 = vxpose.xlu0.b32.cont [7/16] 0.0, 128
      %584 = vxpose.xlu0.b32.cont [8/16] 0.0, 128
      %585 = vxpose.xlu0.b32.cont [9/16] 0.0, 128
      %586 = vxpose.xlu0.b32.cont [10/16] 0.0, 128
      %587 = vxpose.xlu0.b32.cont [11/16] 0.0, 128
      %588 = vxpose.xlu0.b32.cont [12/16] 0.0, 128
      %589 = vxpose.xlu0.b32.cont [13/16] 0.0, 128
      %590 = vxpose.xlu0.b32.cont [14/16] 0.0, 128
      %591 = vxpose.xlu0.b32.cont [15/16] 0.0, 128
      %592 = vxpose.xlu0.b32.end [16/16] 0.0, 128
      %v593 = vpop.trf.xlu0
      %v594 = vpop.trf.xlu0
      %v595 = vpop.trf.xlu0
      %v596 = vpop.trf.xlu0
      %v597 = vpop.trf.xlu0
      %v598 = vpop.trf.xlu0
      %v599 = vpop.trf.xlu0
      %v600 = vpop.trf.xlu0
      %v601 = vpop.trf.xlu0
      %v602 = vpop.trf.xlu0
      %v603 = vpop.trf.xlu0
      %v604 = vpop.trf.xlu0
      %v605 = vpop.trf.xlu0
      %v606 = vpop.trf.xlu0
      %v607 = vpop.trf.xlu0
      %v608 = vpop.trf.xlu0
      %v609 = vpack.c.bf16 %v497, %v497
      %v610 = vpack.c.bf16 %v529, %v529
      %v611 = vpack.c.bf16 %v561, %v561
      %v612 = vpack.c.bf16 %v593, %v593
      %vm613 = vcmask 60416
      %614 = vst.msk [vmem:[%s331] sm:$0xf] %vm613, %v609
      %615 = vst.msk [vmem:[%s331 + $0x4] sm:$0xf] %vm613, %v610
      %616 = vst.msk [vmem:[%s331 + $0x8] sm:$0xf] %vm613, %v611
      %617 = vst.msk [vmem:[%s331 + $0xc] sm:$0xf] %vm613, %v612
      %618 = vxpose.xlu0.b32.start [1/16] %v469, 128
      %619 = vxpose.xlu0.b32.cont [2/16] 0.0, 128
      %620 = vxpose.xlu0.b32.cont [3/16] 0.0, 128
      %621 = vxpose.xlu0.b32.cont [4/16] 0.0, 128
      %622 = vxpose.xlu0.b32.cont [5/16] 0.0, 128
      %623 = vxpose.xlu0.b32.cont [6/16] 0.0, 128
      %624 = vxpose.xlu0.b32.cont [7/16] 0.0, 128
      %625 = vxpose.xlu0.b32.cont [8/16] 0.0, 128
      %626 = vxpose.xlu0.b32.cont [9/16] 0.0, 128
      %627 = vxpose.xlu0.b32.cont [10/16] 0.0, 128
      %628 = vxpose.xlu0.b32.cont [11/16] 0.0, 128
      %629 = vxpose.xlu0.b32.cont [12/16] 0.0, 128
      %630 = vxpose.xlu0.b32.cont [13/16] 0.0, 128
      %631 = vxpose.xlu0.b32.cont [14/16] 0.0, 128
      %632 = vxpose.xlu0.b32.cont [15/16] 0.0, 128
      %633 = vxpose.xlu0.b32.end [16/16] 0.0, 128
      %v634 = vpop.trf.xlu0
      %v635 = vpop.trf.xlu0
      %v636 = vpop.trf.xlu0
      %v637 = vpop.trf.xlu0
      %v638 = vpop.trf.xlu0
      %v639 = vpop.trf.xlu0
      %v640 = vpop.trf.xlu0
      %v641 = vpop.trf.xlu0
      %v642 = vpop.trf.xlu0
      %v643 = vpop.trf.xlu0
      %v644 = vpop.trf.xlu0
      %v645 = vpop.trf.xlu0
      %v646 = vpop.trf.xlu0
      %v647 = vpop.trf.xlu0
      %v648 = vpop.trf.xlu0
      %v649 = vpop.trf.xlu0
      %650 = vxpose.xlu0.b32.start [1/16] %v470, 128
      %651 = vxpose.xlu0.b32.cont [2/16] 0.0, 128
      %652 = vxpose.xlu0.b32.cont [3/16] 0.0, 128
      %653 = vxpose.xlu0.b32.cont [4/16] 0.0, 128
      %654 = vxpose.xlu0.b32.cont [5/16] 0.0, 128
      %655 = vxpose.xlu0.b32.cont [6/16] 0.0, 128
      %656 = vxpose.xlu0.b32.cont [7/16] 0.0, 128
      %657 = vxpose.xlu0.b32.cont [8/16] 0.0, 128
      %658 = vxpose.xlu0.b32.cont [9/16] 0.0, 128
      %659 = vxpose.xlu0.b32.cont [10/16] 0.0, 128
      %660 = vxpose.xlu0.b32.cont [11/16] 0.0, 128
      %661 = vxpose.xlu0.b32.cont [12/16] 0.0, 128
      %662 = vxpose.xlu0.b32.cont [13/16] 0.0, 128
      %663 = vxpose.xlu0.b32.cont [14/16] 0.0, 128
      %664 = vxpose.xlu0.b32.cont [15/16] 0.0, 128
      %665 = vxpose.xlu0.b32.end [16/16] 0.0, 128
      %v666 = vpop.trf.xlu0
      %v667 = vpop.trf.xlu0
      %v668 = vpop.trf.xlu0
      %v669 = vpop.trf.xlu0
      %v670 = vpop.trf.xlu0
      %v671 = vpop.trf.xlu0
      %v672 = vpop.trf.xlu0
      %v673 = vpop.trf.xlu0
      %v674 = vpop.trf.xlu0
      %v675 = vpop.trf.xlu0
      %v676 = vpop.trf.xlu0
      %v677 = vpop.trf.xlu0
      %v678 = vpop.trf.xlu0
      %v679 = vpop.trf.xlu0
      %v680 = vpop.trf.xlu0
      %v681 = vpop.trf.xlu0
      %682 = vxpose.xlu0.b32.start [1/16] %v471, 128
      %683 = vxpose.xlu0.b32.cont [2/16] 0.0, 128
      %684 = vxpose.xlu0.b32.cont [3/16] 0.0, 128
      %685 = vxpose.xlu0.b32.cont [4/16] 0.0, 128
      %686 = vxpose.xlu0.b32.cont [5/16] 0.0, 128
      %687 = vxpose.xlu0.b32.cont [6/16] 0.0, 128
      %688 = vxpose.xlu0.b32.cont [7/16] 0.0, 128
      %689 = vxpose.xlu0.b32.cont [8/16] 0.0, 128
      %690 = vxpose.xlu0.b32.cont [9/16] 0.0, 128
      %691 = vxpose.xlu0.b32.cont [10/16] 0.0, 128
      %692 = vxpose.xlu0.b32.cont [11/16] 0.0, 128
      %693 = vxpose.xlu0.b32.cont [12/16] 0.0, 128
      %694 = vxpose.xlu0.b32.cont [13/16] 0.0, 128
      %695 = vxpose.xlu0.b32.cont [14/16] 0.0, 128
      %696 = vxpose.xlu0.b32.cont [15/16] 0.0, 128
      %697 = vxpose.xlu0.b32.end [16/16] 0.0, 128
      %v698 = vpop.trf.xlu0
      %v699 = vpop.trf.xlu0
      %v700 = vpop.trf.xlu0
      %v701 = vpop.trf.xlu0
      %v702 = vpop.trf.xlu0
      %v703 = vpop.trf.xlu0
      %v704 = vpop.trf.xlu0
      %v705 = vpop.trf.xlu0
      %v706 = vpop.trf.xlu0
      %v707 = vpop.trf.xlu0
      %v708 = vpop.trf.xlu0
      %v709 = vpop.trf.xlu0
      %v710 = vpop.trf.xlu0
      %v711 = vpop.trf.xlu0
      %v712 = vpop.trf.xlu0
      %v713 = vpop.trf.xlu0
      %714 = vxpose.xlu0.b32.start [1/16] %v472, 128
      %715 = vxpose.xlu0.b32.cont [2/16] 0.0, 128
      %716 = vxpose.xlu0.b32.cont [3/16] 0.0, 128
      %717 = vxpose.xlu0.b32.cont [4/16] 0.0, 128
      %718 = vxpose.xlu0.b32.cont [5/16] 0.0, 128
      %719 = vxpose.xlu0.b32.cont [6/16] 0.0, 128
      %720 = vxpose.xlu0.b32.cont [7/16] 0.0, 128
      %721 = vxpose.xlu0.b32.cont [8/16] 0.0, 128
      %722 = vxpose.xlu0.b32.cont [9/16] 0.0, 128
      %723 = vxpose.xlu0.b32.cont [10/16] 0.0, 128
      %724 = vxpose.xlu0.b32.cont [11/16] 0.0, 128
      %725 = vxpose.xlu0.b32.cont [12/16] 0.0, 128
      %726 = vxpose.xlu0.b32.cont [13/16] 0.0, 128
      %727 = vxpose.xlu0.b32.cont [14/16] 0.0, 128
      %728 = vxpose.xlu0.b32.cont [15/16] 0.0, 128
      %729 = vxpose.xlu0.b32.end [16/16] 0.0, 128
      %v730 = vpop.trf.xlu0
      %v731 = vpop.trf.xlu0
      %v732 = vpop.trf.xlu0
      %v733 = vpop.trf.xlu0
      %v734 = vpop.trf.xlu0
      %v735 = vpop.trf.xlu0
      %v736 = vpop.trf.xlu0
      %v737 = vpop.trf.xlu0
      %v738 = vpop.trf.xlu0
      %v739 = vpop.trf.xlu0
      %v740 = vpop.trf.xlu0
      %v741 = vpop.trf.xlu0
      %v742 = vpop.trf.xlu0
      %v743 = vpop.trf.xlu0
      %v744 = vpop.trf.xlu0
      %v745 = vpop.trf.xlu0
      %v746 = vpack.c.bf16 %v634, %v634
      %v747 = vpack.c.bf16 %v666, %v666
      %v748 = vpack.c.bf16 %v698, %v698
      %v749 = vpack.c.bf16 %v730, %v730
      %750 = vst.msk [vmem:[%s339] sm:$0xf] %vm613, %v746
      %751 = vst.msk [vmem:[%s339 + $0x4] sm:$0xf] %vm613, %v747
      %752 = vst.msk [vmem:[%s339 + $0x8] sm:$0xf] %vm613, %v748
      %753 = vst.msk [vmem:[%s339 + $0xc] sm:$0xf] %vm613, %v749
      %754 = vxpose.xlu0.b32.start [1/16] %v473, 128
      %755 = vxpose.xlu0.b32.cont [2/16] 0.0, 128
      %756 = vxpose.xlu0.b32.cont [3/16] 0.0, 128
      %757 = vxpose.xlu0.b32.cont [4/16] 0.0, 128
      %758 = vxpose.xlu0.b32.cont [5/16] 0.0, 128
      %759 = vxpose.xlu0.b32.cont [6/16] 0.0, 128
      %760 = vxpose.xlu0.b32.cont [7/16] 0.0, 128
      %761 = vxpose.xlu0.b32.cont [8/16] 0.0, 128
      %762 = vxpose.xlu0.b32.cont [9/16] 0.0, 128
      %763 = vxpose.xlu0.b32.cont [10/16] 0.0, 128
      %764 = vxpose.xlu0.b32.cont [11/16] 0.0, 128
      %765 = vxpose.xlu0.b32.cont [12/16] 0.0, 128
      %766 = vxpose.xlu0.b32.cont [13/16] 0.0, 128
      %767 = vxpose.xlu0.b32.cont [14/16] 0.0, 128
      %768 = vxpose.xlu0.b32.cont [15/16] 0.0, 128
      %769 = vxpose.xlu0.b32.end [16/16] 0.0, 128
      %v770 = vpop.trf.xlu0
      %v771 = vpop.trf.xlu0
      %v772 = vpop.trf.xlu0
      %v773 = vpop.trf.xlu0
      %v774 = vpop.trf.xlu0
      %v775 = vpop.trf.xlu0
      %v776 = vpop.trf.xlu0
      %v777 = vpop.trf.xlu0
      %v778 = vpop.trf.xlu0
      %v779 = vpop.trf.xlu0
      %v780 = vpop.trf.xlu0
      %v781 = vpop.trf.xlu0
      %v782 = vpop.trf.xlu0
      %v783 = vpop.trf.xlu0
      %v784 = vpop.trf.xlu0
      %v785 = vpop.trf.xlu0
      %786 = vxpose.xlu0.b32.start [1/16] %v474, 128
      %787 = vxpose.xlu0.b32.cont [2/16] 0.0, 128
      %788 = vxpose.xlu0.b32.cont [3/16] 0.0, 128
      %789 = vxpose.xlu0.b32.cont [4/16] 0.0, 128
      %790 = vxpose.xlu0.b32.cont [5/16] 0.0, 128
      %791 = vxpose.xlu0.b32.cont [6/16] 0.0, 128
      %792 = vxpose.xlu0.b32.cont [7/16] 0.0, 128
      %793 = vxpose.xlu0.b32.cont [8/16] 0.0, 128
      %794 = vxpose.xlu0.b32.cont [9/16] 0.0, 128
      %795 = vxpose.xlu0.b32.cont [10/16] 0.0, 128
      %796 = vxpose.xlu0.b32.cont [11/16] 0.0, 128
      %797 = vxpose.xlu0.b32.cont [12/16] 0.0, 128
      %798 = vxpose.xlu0.b32.cont [13/16] 0.0, 128
      %799 = vxpose.xlu0.b32.cont [14/16] 0.0, 128
      %800 = vxpose.xlu0.b32.cont [15/16] 0.0, 128
      %801 = vxpose.xlu0.b32.end [16/16] 0.0, 128
      %v802 = vpop.trf.xlu0
      %v803 = vpop.trf.xlu0
      %v804 = vpop.trf.xlu0
      %v805 = vpop.trf.xlu0
      %v806 = vpop.trf.xlu0
      %v807 = vpop.trf.xlu0
      %v808 = vpop.trf.xlu0
      %v809 = vpop.trf.xlu0
      %v810 = vpop.trf.xlu0
      %v811 = vpop.trf.xlu0
      %v812 = vpop.trf.xlu0
      %v813 = vpop.trf.xlu0
      %v814 = vpop.trf.xlu0
      %v815 = vpop.trf.xlu0
      %v816 = vpop.trf.xlu0
      %v817 = vpop.trf.xlu0
      %818 = vxpose.xlu0.b32.start [1/16] %v475, 128
      %819 = vxpose.xlu0.b32.cont [2/16] 0.0, 128
      %820 = vxpose.xlu0.b32.cont [3/16] 0.0, 128
      %821 = vxpose.xlu0.b32.cont [4/16] 0.0, 128
      %822 = vxpose.xlu0.b32.cont [5/16] 0.0, 128
      %823 = vxpose.xlu0.b32.cont [6/16] 0.0, 128
      %824 = vxpose.xlu0.b32.cont [7/16] 0.0, 128
      %825 = vxpose.xlu0.b32.cont [8/16] 0.0, 128
      %826 = vxpose.xlu0.b32.cont [9/16] 0.0, 128
      %827 = vxpose.xlu0.b32.cont [10/16] 0.0, 128
      %828 = vxpose.xlu0.b32.cont [11/16] 0.0, 128
      %829 = vxpose.xlu0.b32.cont [12/16] 0.0, 128
      %830 = vxpose.xlu0.b32.cont [13/16] 0.0, 128
      %831 = vxpose.xlu0.b32.cont [14/16] 0.0, 128
      %832 = vxpose.xlu0.b32.cont [15/16] 0.0, 128
      %833 = vxpose.xlu0.b32.end [16/16] 0.0, 128
      %v834 = vpop.trf.xlu0
      %v835 = vpop.trf.xlu0
      %v836 = vpop.trf.xlu0
      %v837 = vpop.trf.xlu0
      %v838 = vpop.trf.xlu0
      %v839 = vpop.trf.xlu0
      %v840 = vpop.trf.xlu0
      %v841 = vpop.trf.xlu0
      %v842 = vpop.trf.xlu0
      %v843 = vpop.trf.xlu0
      %v844 = vpop.trf.xlu0
      %v845 = vpop.trf.xlu0
      %v846 = vpop.trf.xlu0
      %v847 = vpop.trf.xlu0
      %v848 = vpop.trf.xlu0
      %v849 = vpop.trf.xlu0
      %850 = vxpose.xlu0.b32.start [1/16] %v476, 128
      %851 = vxpose.xlu0.b32.cont [2/16] 0.0, 128
      %852 = vxpose.xlu0.b32.cont [3/16] 0.0, 128
      %853 = vxpose.xlu0.b32.cont [4/16] 0.0, 128
      %854 = vxpose.xlu0.b32.cont [5/16] 0.0, 128
      %855 = vxpose.xlu0.b32.cont [6/16] 0.0, 128
      %856 = vxpose.xlu0.b32.cont [7/16] 0.0, 128
      %857 = vxpose.xlu0.b32.cont [8/16] 0.0, 128
      %858 = vxpose.xlu0.b32.cont [9/16] 0.0, 128
      %859 = vxpose.xlu0.b32.cont [10/16] 0.0, 128
      %860 = vxpose.xlu0.b32.cont [11/16] 0.0, 128
      %861 = vxpose.xlu0.b32.cont [12/16] 0.0, 128
      %862 = vxpose.xlu0.b32.cont [13/16] 0.0, 128
      %863 = vxpose.xlu0.b32.cont [14/16] 0.0, 128
      %864 = vxpose.xlu0.b32.cont [15/16] 0.0, 128
      %865 = vxpose.xlu0.b32.end [16/16] 0.0, 128
      %v866 = vpop.trf.xlu0
      %v867 = vpop.trf.xlu0
      %v868 = vpop.trf.xlu0
      %v869 = vpop.trf.xlu0
      %v870 = vpop.trf.xlu0
      %v871 = vpop.trf.xlu0
      %v872 = vpop.trf.xlu0
      %v873 = vpop.trf.xlu0
      %v874 = vpop.trf.xlu0
      %v875 = vpop.trf.xlu0
      %v876 = vpop.trf.xlu0
      %v877 = vpop.trf.xlu0
      %v878 = vpop.trf.xlu0
      %v879 = vpop.trf.xlu0
      %v880 = vpop.trf.xlu0
      %v881 = vpop.trf.xlu0
      %v882 = vpack.c.bf16 %v770, %v770
      %v883 = vpack.c.bf16 %v802, %v802
      %v884 = vpack.c.bf16 %v834, %v834
      %v885 = vpack.c.bf16 %v866, %v866
      %886 = vst.msk [vmem:[%s347] sm:$0xf] %vm613, %v882
      %887 = vst.msk [vmem:[%s347 + $0x4] sm:$0xf] %vm613, %v883
      %888 = vst.msk [vmem:[%s347 + $0x8] sm:$0xf] %vm613, %v884
      %889 = vst.msk [vmem:[%s347 + $0xc] sm:$0xf] %vm613, %v885
      %p890 = scmp.lt.s32.totalorder %s23, 1
      %s891 = scalar_select %p890, %s23, 1
      %p892 = scmp.lt.s32.totalorder %s24, 0
      %s893 = scalar_select %p892, %s24, 0
      %s894 = smul.addr %s891, 4
      %s895 = sadd.s32 %s893, %s894
      %s896 = smul.addr %s895, 4
      %s897 = scalar_lea.vmem %s5, %s896
      %p898 = scmp.lt.s32.totalorder %s23, 1
      %s899 = scalar_select %p898, %s23, 1
      %p900 = scmp.lt.s32.totalorder %s24, 0
      %s901 = scalar_select %p900, %s24, 0
      %s902 = smul.addr %s899, 4
      %s903 = sadd.s32 %s901, %s902
      %s904 = smul.addr %s903, 4
      %s905 = scalar_lea.vmem %s6, %s904
      %p906 = scmp.lt.s32.totalorder %s23, 1
      %s907 = scalar_select %p906, %s23, 1
      %p908 = scmp.lt.s32.totalorder %s24, 0
      %s909 = scalar_select %p908, %s24, 0
      %s910 = smul.addr %s907, 4
      %s911 = sadd.s32 %s909, %s910
      %s912 = smul.addr %s911, 4
      %s913 = scalar_lea.vmem %s7, %s912
      // Predicated region
      $region41: #{_lambda_.8} parent=39 // pred_check
        %p914 = pneg %p163
      $region42: #{_lambda_.8} parent=39 // pred_check_branch
        %916 = sbr.rel (%p914) target = $region44
      $region43: #{_lambda_.8} parent=39 // pred_region
        _
      $region44: #{_lambda_.8} parent=39 // pred_fallthru
        _
      // Predicated region
      $region45: #{_lambda_.8} parent=39 // pred_check
        %p917 = pneg %p191
      $region46: #{_lambda_.8} parent=39 // pred_check_branch
        %919 = sbr.rel (%p917) target = $region48
      $region47: #{_lambda_.8} parent=39 // pred_region
        _
      $region48: #{_lambda_.8} parent=39 // pred_fallthru
        _
      // Predicated region
      $region49: #{_lambda_.8} parent=39 // pred_check
        %p920 = pneg %p219
      $region50: #{_lambda_.8} parent=39 // pred_check_branch
        %922 = sbr.rel (%p920) target = $region52
      $region51: #{_lambda_.8} parent=39 // pred_region
        _
      $region52: #{_lambda_.8} parent=39 // pred_fallthru
        _
    $region40: #{_lambda_.8} parent=5 // pred_fallthru
      _
    %p923 = scmp.le.s32.totalorder 2, %s14
    // Predicated region
    $region53: #{_lambda_.8} parent=5 // pred_check
      %p924 = pneg %p923
    $region54: #{_lambda_.8} parent=5 // pred_check_branch
      %926 = sbr.rel (%p924) target = $region56
    $region55: #{_lambda_.8} parent=5 // pred_region
      %s927 = ssub.s32 %s14, 2
      // Predicated region
      $region57: #{_lambda_.8} parent=55 // pred_check
        %p928 = pneg %p169
      $region58: #{_lambda_.8} parent=55 // pred_check_branch
        %930 = sbr.rel (%p928) target = $region60
      $region59: #{_lambda_.8} parent=55 // pred_region
        %p931 = scmp.lt.s32.totalorder %s25, 1
        %s932 = scalar_select %p931, %s25, 1
        %p933 = scmp.lt.s32.totalorder %s26, 0
        %s934 = scalar_select %p933, %s26, 0
        %s935 = smul.addr %s932, 4
        %s936 = sadd.s32 %s934, %s935
        %s937 = smul.addr %s936, 4
        %s938 = scalar_lea.vmem %s5, %s937
      $region60: #{_lambda_.8} parent=55 // pred_fallthru
        _
      // Predicated region
      $region61: #{_lambda_.8} parent=55 // pred_check
        %p939 = pneg %p197
      $region62: #{_lambda_.8} parent=55 // pred_check_branch
        %941 = sbr.rel (%p939) target = $region64
      $region63: #{_lambda_.8} parent=55 // pred_region
        %p942 = scmp.lt.s32.totalorder %s25, 1
        %s943 = scalar_select %p942, %s25, 1
        %p944 = scmp.lt.s32.totalorder %s26, 0
        %s945 = scalar_select %p944, %s26, 0
        %s946 = smul.addr %s943, 4
        %s947 = sadd.s32 %s945, %s946
        %s948 = smul.addr %s947, 4
        %s949 = scalar_lea.vmem %s6, %s948
      $region64: #{_lambda_.8} parent=55 // pred_fallthru
        _
      // Predicated region
      $region65: #{_lambda_.8} parent=55 // pred_check
        %p950 = pneg %p225
      $region66: #{_lambda_.8} parent=55 // pred_check_branch
        %952 = sbr.rel (%p950) target = $region68
      $region67: #{_lambda_.8} parent=55 // pred_region
        %p953 = scmp.lt.s32.totalorder %s25, 1
        %s954 = scalar_select %p953, %s25, 1
        %p955 = scmp.lt.s32.totalorder %s26, 0
        %s956 = scalar_select %p955, %s26, 0
        %s957 = smul.addr %s954, 4
        %s958 = sadd.s32 %s956, %s957
        %s959 = smul.addr %s958, 4
        %s960 = scalar_lea.vmem %s7, %s959
      $region68: #{_lambda_.8} parent=55 // pred_fallthru
        _
    $region56: #{_lambda_.8} parent=5 // pred_fallthru
      _
  $region6: #{_lambda_.8} parent=0 // loop_footer
    %s18 = sadd.s32 1, %s14
  $region7: #{_lambda_.8} parent=0 // loop_footer_branch
    %13 = sbr.rel target = $region3
  $region8: #{_lambda_.8} parent=0 // loop_exit
    _

// kernel: _lambda_.10
$region0: #{_lambda_.10}
  #allocation0 [shape = 'u32[]', space=smem, size = 0x4, offset = 0x4, fixed_abs, tag = 'smem constant byte address 0x4 - core index']
  #allocation1 [shape = 'u32[144,128]{1,0:T(1,128)}', space=vmem, size = 0x12000, scoped, tag = 'internal scratch']
  %s0 = inlined_call_operand.vmem [shape: bf16[2,8,32], index: 0, kind: input, shape index: {}]
  %s1 = inlined_call_operand.vmem [shape: bf16[2,4,8,8], index: 1, kind: input, shape index: {}]
  %s2 = inlined_call_operand.vmem [shape: bf16[32,32], index: 2, kind: input, shape index: {}]
  %s3 = inlined_call_operand.vmem [shape: f32[1,32], index: 3, kind: input, shape index: {}]
  %s4 = inlined_call_operand.vmem [shape: f32[1,32], index: 4, kind: input, shape index: {}]
  %s5 = inlined_call_operand.vmem [shape: f32[1,32], index: 5, kind: input, shape index: {}]
  %s6 = inlined_call_operand.vmem [shape: bf16[32,128], index: 6, kind: input, shape index: {}]
  %s7 = inlined_call_operand.vmem [shape: f32[1,128], index: 7, kind: input, shape index: {}]
  %s8 = inlined_call_operand.vmem [shape: bf16[128,32], index: 8, kind: input, shape index: {}]
  %s9 = inlined_call_operand.vmem [shape: f32[1,32], index: 9, kind: input, shape index: {}]
  %s10 = inlined_call_operand.vmem [shape: bf16[2,8,32], index: 10, kind: output, shape index: {}]
  %s11 = sld [smem:[#allocation0]]
  $region73: #{_lambda_.10} parent=0
    _
  %s13 = ssub.s32 1, %s11
  %s14 = scalar_select 0, %s13, %s11
  loop: start=0, step=1, limit=4
  $region2: #{_lambda_.10} parent=0 // loop_pre_header
    _
  $region3: #{_lambda_.10} parent=0 // loop_header
    %s16 = sphi 0, %s20
    %p17 = scmp.ge.s32.totalorder %s16, 4
    %s23 = sphi 0, %s35
    %s24 = sphi 0, %s31
    %s25 = sphi 0, %s23
    %s26 = sphi 0, %s24
    %s27 = sphi 0, %s25
    %s28 = sphi 0, %s26
    %s40 = sphi 0, %s42
    %s43 = sphi 0, %s40
    %s44 = sphi 0, %s43
    %s60 = sphi 0, %s44
    %s68 = sphi 0, %s70
    %s71 = sphi 0, %s68
    %s72 = sphi 0, %s71
    %s88 = sphi 0, %s72
    %s92 = sphi 0, %s92
    %s94 = sphi 0, %s92
    %s95 = sphi 0, %s94
    %s109 = sphi 0, %s95
    %s113 = sphi 0, %s113
    %s115 = sphi 0, %s113
    %s116 = sphi 0, %s115
    %s130 = sphi 0, %s116
    %s134 = sphi 0, %s134
    %s136 = sphi 0, %s134
    %s137 = sphi 0, %s136
    %s151 = sphi 0, %s137
    %s155 = sphi 0, %s155
    %s157 = sphi 0, %s155
    %s158 = sphi 0, %s157
    %s172 = sphi 0, %s158
    %s176 = sphi 0, %s176
    %s178 = sphi 0, %s176
    %s179 = sphi 0, %s178
    %s193 = sphi 0, %s179
    %s197 = sphi 0, %s197
    %s199 = sphi 0, %s197
    %s200 = sphi 0, %s199
    %s214 = sphi 0, %s200
    %s218 = sphi 0, %s218
    %s220 = sphi 0, %s218
    %s221 = sphi 0, %s220
    %s235 = sphi 0, %s221
    %s239 = sphi 0, %s239
    %s241 = sphi 0, %s239
    %s242 = sphi 0, %s241
    %s256 = sphi 0, %s242
    %s264 = sphi 0, %s266
    %s267 = sphi 0, %s264
    %s268 = sphi 0, %s267
    %s284 = sphi 0, %s268
  $region4: #{_lambda_.10} parent=0 // loop_header_branch
    %19 = sbr.rel (%p17) target = $region8
  $region5: #{_lambda_.10} parent=0 // loop_body
    %s21 = ssub.s32 %s16, 1
    %s22 = ssub.s32 %s16, 2
    %s29 = sadd.s32 1, %s24
    %p30 = scmp.ge.s32.totalorder %s29, 1
    %s31 = scalar_select %p30, 0, %s29
    %s32 = sadd.s32 1, %s23
    %s33 = scalar_select %p30, %s32, %s23
    %p34 = scmp.ge.s32.totalorder %s33, 2
    %s35 = scalar_select %p34, 0, %s33
    %s36 = ssub.s32 %s23, %s35
    %s37 = ssub.s32 %s24, %s31
    %s38 = sor.u32 %s36, %s37
    %p39 = scmp.eq.s32.totalorder %s38, 0
    %s41 = sadd.s32 %s40, 1
    %s42 = scalar_select %p39, %s40, %s41
    %p45 = pneg %p39
    %p46 = scmp.eq.s32.totalorder %s16, 1
    %p47 = por %p45, %p46
    %p48 = scmp.ne.s32.totalorder %s40, %s43
    %p49 = scmp.eq.s32.totalorder %s16, 0
    %p50 = por %p48, %p49
    %p51 = scmp.ne.s32.totalorder %s40, %s43
    %p52 = scmp.eq.s32.totalorder %s21, 1
    %p53 = por %p51, %p52
    %p54 = scmp.ne.s32.totalorder %s43, %s44
    %p55 = scmp.eq.s32.totalorder %s21, 0
    %p56 = por %p54, %p55
    %p57 = scmp.ne.s32.totalorder %s43, %s44
    %p58 = scmp.eq.s32.totalorder %s22, 1
    %p59 = por %p57, %p58
    %p61 = scmp.ne.s32.totalorder %s44, %s60
    %p62 = scmp.eq.s32.totalorder %s22, 0
    %p63 = por %p61, %p62
    %s64 = ssub.s32 %s23, %s35
    %s65 = ssub.s32 %s24, %s31
    %s66 = sor.u32 %s64, %s65
    %p67 = scmp.eq.s32.totalorder %s66, 0
    %s69 = sadd.s32 %s68, 1
    %s70 = scalar_select %p67, %s68, %s69
    %p73 = pneg %p67
    %p74 = scmp.eq.s32.totalorder %s16, 1
    %p75 = por %p73, %p74
    %p76 = scmp.ne.s32.totalorder %s68, %s71
    %p77 = scmp.eq.s32.totalorder %s16, 0
    %p78 = por %p76, %p77
    %p79 = scmp.ne.s32.totalorder %s68, %s71
    %p80 = scmp.eq.s32.totalorder %s21, 1
    %p81 = por %p79, %p80
    %p82 = scmp.ne.s32.totalorder %s71, %s72
    %p83 = scmp.eq.s32.totalorder %s21, 0
    %p84 = por %p82, %p83
    %p85 = scmp.ne.s32.totalorder %s71, %s72
    %p86 = scmp.eq.s32.totalorder %s22, 1
    %p87 = por %p85, %p86
    %p89 = scmp.ne.s32.totalorder %s72, %s88
    %p90 = scmp.eq.s32.totalorder %s22, 0
    %p91 = por %p89, %p90
    %s93 = sadd.s32 %s92, 1
    %p96 = scmp.eq.s32.totalorder %s16, 1
    %p97 = scmp.ne.s32.totalorder %s92, %s94
    %p98 = scmp.eq.s32.totalorder %s16, 0
    %p99 = por %p97, %p98
    %p100 = scmp.ne.s32.totalorder %s92, %s94
    %p101 = scmp.eq.s32.totalorder %s21, 1
    %p102 = por %p100, %p101
    %p103 = scmp.ne.s32.totalorder %s94, %s95
    %p104 = scmp.eq.s32.totalorder %s21, 0
    %p105 = por %p103, %p104
    %p106 = scmp.ne.s32.totalorder %s94, %s95
    %p107 = scmp.eq.s32.totalorder %s22, 1
    %p108 = por %p106, %p107
    %p110 = scmp.ne.s32.totalorder %s95, %s109
    %p111 = scmp.eq.s32.totalorder %s22, 0
    %p112 = por %p110, %p111
    %s114 = sadd.s32 %s113, 1
    %p117 = scmp.eq.s32.totalorder %s16, 1
    %p118 = scmp.ne.s32.totalorder %s113, %s115
    %p119 = scmp.eq.s32.totalorder %s16, 0
    %p120 = por %p118, %p119
    %p121 = scmp.ne.s32.totalorder %s113, %s115
    %p122 = scmp.eq.s32.totalorder %s21, 1
    %p123 = por %p121, %p122
    %p124 = scmp.ne.s32.totalorder %s115, %s116
    %p125 = scmp.eq.s32.totalorder %s21, 0
    %p126 = por %p124, %p125
    %p127 = scmp.ne.s32.totalorder %s115, %s116
    %p128 = scmp.eq.s32.totalorder %s22, 1
    %p129 = por %p127, %p128
    %p131 = scmp.ne.s32.totalorder %s116, %s130
    %p132 = scmp.eq.s32.totalorder %s22, 0
    %p133 = por %p131, %p132
    %s135 = sadd.s32 %s134, 1
    %p138 = scmp.eq.s32.totalorder %s16, 1
    %p139 = scmp.ne.s32.totalorder %s134, %s136
    %p140 = scmp.eq.s32.totalorder %s16, 0
    %p141 = por %p139, %p140
    %p142 = scmp.ne.s32.totalorder %s134, %s136
    %p143 = scmp.eq.s32.totalorder %s21, 1
    %p144 = por %p142, %p143
    %p145 = scmp.ne.s32.totalorder %s136, %s137
    %p146 = scmp.eq.s32.totalorder %s21, 0
    %p147 = por %p145, %p146
    %p148 = scmp.ne.s32.totalorder %s136, %s137
    %p149 = scmp.eq.s32.totalorder %s22, 1
    %p150 = por %p148, %p149
    %p152 = scmp.ne.s32.totalorder %s137, %s151
    %p153 = scmp.eq.s32.totalorder %s22, 0
    %p154 = por %p152, %p153
    %s156 = sadd.s32 %s155, 1
    %p159 = scmp.eq.s32.totalorder %s16, 1
    %p160 = scmp.ne.s32.totalorder %s155, %s157
    %p161 = scmp.eq.s32.totalorder %s16, 0
    %p162 = por %p160, %p161
    %p163 = scmp.ne.s32.totalorder %s155, %s157
    %p164 = scmp.eq.s32.totalorder %s21, 1
    %p165 = por %p163, %p164
    %p166 = scmp.ne.s32.totalorder %s157, %s158
    %p167 = scmp.eq.s32.totalorder %s21, 0
    %p168 = por %p166, %p167
    %p169 = scmp.ne.s32.totalorder %s157, %s158
    %p170 = scmp.eq.s32.totalorder %s22, 1
    %p171 = por %p169, %p170
    %p173 = scmp.ne.s32.totalorder %s158, %s172
    %p174 = scmp.eq.s32.totalorder %s22, 0
    %p175 = por %p173, %p174
    %s177 = sadd.s32 %s176, 1
    %p180 = scmp.eq.s32.totalorder %s16, 1
    %p181 = scmp.ne.s32.totalorder %s176, %s178
    %p182 = scmp.eq.s32.totalorder %s16, 0
    %p183 = por %p181, %p182
    %p184 = scmp.ne.s32.totalorder %s176, %s178
    %p185 = scmp.eq.s32.totalorder %s21, 1
    %p186 = por %p184, %p185
    %p187 = scmp.ne.s32.totalorder %s178, %s179
    %p188 = scmp.eq.s32.totalorder %s21, 0
    %p189 = por %p187, %p188
    %p190 = scmp.ne.s32.totalorder %s178, %s179
    %p191 = scmp.eq.s32.totalorder %s22, 1
    %p192 = por %p190, %p191
    %p194 = scmp.ne.s32.totalorder %s179, %s193
    %p195 = scmp.eq.s32.totalorder %s22, 0
    %p196 = por %p194, %p195
    %s198 = sadd.s32 %s197, 1
    %p201 = scmp.eq.s32.totalorder %s16, 1
    %p202 = scmp.ne.s32.totalorder %s197, %s199
    %p203 = scmp.eq.s32.totalorder %s16, 0
    %p204 = por %p202, %p203
    %p205 = scmp.ne.s32.totalorder %s197, %s199
    %p206 = scmp.eq.s32.totalorder %s21, 1
    %p207 = por %p205, %p206
    %p208 = scmp.ne.s32.totalorder %s199, %s200
    %p209 = scmp.eq.s32.totalorder %s21, 0
    %p210 = por %p208, %p209
    %p211 = scmp.ne.s32.totalorder %s199, %s200
    %p212 = scmp.eq.s32.totalorder %s22, 1
    %p213 = por %p211, %p212
    %p215 = scmp.ne.s32.totalorder %s200, %s214
    %p216 = scmp.eq.s32.totalorder %s22, 0
    %p217 = por %p215, %p216
    %s219 = sadd.s32 %s218, 1
    %p222 = scmp.eq.s32.totalorder %s16, 1
    %p223 = scmp.ne.s32.totalorder %s218, %s220
    %p224 = scmp.eq.s32.totalorder %s16, 0
    %p225 = por %p223, %p224
    %p226 = scmp.ne.s32.totalorder %s218, %s220
    %p227 = scmp.eq.s32.totalorder %s21, 1
    %p228 = por %p226, %p227
    %p229 = scmp.ne.s32.totalorder %s220, %s221
    %p230 = scmp.eq.s32.totalorder %s21, 0
    %p231 = por %p229, %p230
    %p232 = scmp.ne.s32.totalorder %s220, %s221
    %p233 = scmp.eq.s32.totalorder %s22, 1
    %p234 = por %p232, %p233
    %p236 = scmp.ne.s32.totalorder %s221, %s235
    %p237 = scmp.eq.s32.totalorder %s22, 0
    %p238 = por %p236, %p237
    %s240 = sadd.s32 %s239, 1
    %p243 = scmp.eq.s32.totalorder %s16, 1
    %p244 = scmp.ne.s32.totalorder %s239, %s241
    %p245 = scmp.eq.s32.totalorder %s16, 0
    %p246 = por %p244, %p245
    %p247 = scmp.ne.s32.totalorder %s239, %s241
    %p248 = scmp.eq.s32.totalorder %s21, 1
    %p249 = por %p247, %p248
    %p250 = scmp.ne.s32.totalorder %s241, %s242
    %p251 = scmp.eq.s32.totalorder %s21, 0
    %p252 = por %p250, %p251
    %p253 = scmp.ne.s32.totalorder %s241, %s242
    %p254 = scmp.eq.s32.totalorder %s22, 1
    %p255 = por %p253, %p254
    %p257 = scmp.ne.s32.totalorder %s242, %s256
    %p258 = scmp.eq.s32.totalorder %s22, 0
    %p259 = por %p257, %p258
    %s260 = ssub.s32 %s23, %s35
    %s261 = ssub.s32 %s24, %s31
    %s262 = sor.u32 %s260, %s261
    %p263 = scmp.eq.s32.totalorder %s262, 0
    %s265 = sadd.s32 %s264, 1
    %s266 = scalar_select %p263, %s264, %s265
    %p269 = pneg %p263
    %p270 = scmp.eq.s32.totalorder %s16, 1
    %p271 = por %p269, %p270
    %p272 = scmp.ne.s32.totalorder %s264, %s267
    %p273 = scmp.eq.s32.totalorder %s16, 0
    %p274 = por %p272, %p273
    %p275 = scmp.ne.s32.totalorder %s264, %s267
    %p276 = scmp.eq.s32.totalorder %s21, 1
    %p277 = por %p275, %p276
    %p278 = scmp.ne.s32.totalorder %s267, %s268
    %p279 = scmp.eq.s32.totalorder %s21, 0
    %p280 = por %p278, %p279
    %p281 = scmp.ne.s32.totalorder %s267, %s268
    %p282 = scmp.eq.s32.totalorder %s22, 1
    %p283 = por %p281, %p282
    %p285 = scmp.ne.s32.totalorder %s268, %s284
    %p286 = scmp.eq.s32.totalorder %s22, 0
    %p287 = por %p285, %p286
    %p288 = scmp.le.s32.totalorder 1, %s16
    %p289 = scmp.lt.s32.totalorder %s16, 3
    %p290 = pnand %p288, %p289
    %p291 = pneg %p290
    // Predicated region
    $region9: #{_lambda_.10} parent=5 // pred_check
      _
    $region10: #{_lambda_.10} parent=5 // pred_check_branch
      %293 = sbr.rel (%p290) target = $region12
    $region11: #{_lambda_.10} parent=5 // pred_region
      %s294 = ssub.s32 %s16, 1
      // Predicated region
      $region13: #{_lambda_.10} parent=11 // pred_check
        %p295 = pneg %p105
      $region14: #{_lambda_.10} parent=11 // pred_check_branch
        %297 = sbr.rel (%p295) target = $region16
      $region15: #{_lambda_.10} parent=11 // pred_region
        _
      $region16: #{_lambda_.10} parent=11 // pred_fallthru
        _
      // Predicated region
      $region17: #{_lambda_.10} parent=11 // pred_check
        %p298 = pneg %p126
      $region18: #{_lambda_.10} parent=11 // pred_check_branch
        %300 = sbr.rel (%p298) target = $region20
      $region19: #{_lambda_.10} parent=11 // pred_region
        _
      $region20: #{_lambda_.10} parent=11 // pred_fallthru
        _
      // Predicated region
      $region21: #{_lambda_.10} parent=11 // pred_check
        %p301 = pneg %p147
      $region22: #{_lambda_.10} parent=11 // pred_check_branch
        %303 = sbr.rel (%p301) target = $region24
      $region23: #{_lambda_.10} parent=11 // pred_region
        _
      $region24: #{_lambda_.10} parent=11 // pred_fallthru
        _
      // Predicated region
      $region25: #{_lambda_.10} parent=11 // pred_check
        %p304 = pneg %p168
      $region26: #{_lambda_.10} parent=11 // pred_check_branch
        %306 = sbr.rel (%p304) target = $region28
      $region27: #{_lambda_.10} parent=11 // pred_region
        _
      $region28: #{_lambda_.10} parent=11 // pred_fallthru
        _
      // Predicated region
      $region29: #{_lambda_.10} parent=11 // pred_check
        %p307 = pneg %p189
      $region30: #{_lambda_.10} parent=11 // pred_check_branch
        %309 = sbr.rel (%p307) target = $region32
      $region31: #{_lambda_.10} parent=11 // pred_region
        _
      $region32: #{_lambda_.10} parent=11 // pred_fallthru
        _
      // Predicated region
      $region33: #{_lambda_.10} parent=11 // pred_check
        %p310 = pneg %p210
      $region34: #{_lambda_.10} parent=11 // pred_check_branch
        %312 = sbr.rel (%p310) target = $region36
      $region35: #{_lambda_.10} parent=11 // pred_region
        _
      $region36: #{_lambda_.10} parent=11 // pred_fallthru
        _
      // Predicated region
      $region37: #{_lambda_.10} parent=11 // pred_check
        %p313 = pneg %p231
      $region38: #{_lambda_.10} parent=11 // pred_check_branch
        %315 = sbr.rel (%p313) target = $region40
      $region39: #{_lambda_.10} parent=11 // pred_region
        _
      $region40: #{_lambda_.10} parent=11 // pred_fallthru
        _
      // Predicated region
      $region41: #{_lambda_.10} parent=11 // pred_check
        %p316 = pneg %p252
      $region42: #{_lambda_.10} parent=11 // pred_check_branch
        %318 = sbr.rel (%p316) target = $region44
      $region43: #{_lambda_.10} parent=11 // pred_region
        _
      $region44: #{_lambda_.10} parent=11 // pred_fallthru
        _
    $region12: #{_lambda_.10} parent=5 // pred_fallthru
      _
    %p319 = scmp.lt.s32.totalorder %s16, 2
    // Predicated region
    $region45: #{_lambda_.10} parent=5 // pred_check
      %p320 = pneg %p319
    $region46: #{_lambda_.10} parent=5 // pred_check_branch
      %322 = sbr.rel (%p320) target = $region48
    $region47: #{_lambda_.10} parent=5 // pred_region
      // Predicated region
      $region49: #{_lambda_.10} parent=47 // pred_check
        %p323 = pneg %p50
      $region50: #{_lambda_.10} parent=47 // pred_check_branch
        %325 = sbr.rel (%p323) target = $region52
      $region51: #{_lambda_.10} parent=47 // pred_region
        %p326 = scmp.lt.s32.totalorder %s23, 1
        %s327 = scalar_select %p326, %s23, 1
        %p328 = scmp.lt.s32.totalorder %s24, 0
        %s329 = scalar_select %p328, %s24, 0
        %s330 = sadd.s32 %s329, %s327
        %s331 = smul.addr %s330, 4
        %s332 = scalar_lea.vmem %s0, %s331
      $region52: #{_lambda_.10} parent=47 // pred_fallthru
        _
      // Predicated region
      $region53: #{_lambda_.10} parent=47 // pred_check
        %p333 = pneg %p78
      $region54: #{_lambda_.10} parent=47 // pred_check_branch
        %335 = sbr.rel (%p333) target = $region56
      $region55: #{_lambda_.10} parent=47 // pred_region
        %p336 = scmp.lt.s32.totalorder %s23, 1
        %s337 = scalar_select %p336, %s23, 1
        %p338 = scmp.lt.s32.totalorder %s24, 0
        %s339 = scalar_select %p338, %s24, 0
        %s340 = smul.addr %s337, 4
        %s341 = sadd.s32 %s339, %s340
        %s342 = smul.addr %s341, 4
        %s343 = scalar_lea.vmem %s1, %s342
      $region56: #{_lambda_.10} parent=47 // pred_fallthru
        _
    $region48: #{_lambda_.10} parent=5 // pred_fallthru
      _
    %p344 = scmp.le.s32.totalorder 1, %s16
    %p345 = scmp.lt.s32.totalorder %s16, 3
    %p346 = pnand %p344, %p345
    %p347 = pneg %p346
    // Predicated region
    $region57: #{_lambda_.10} parent=5 // pred_check
      _
    $region58: #{_lambda_.10} parent=5 // pred_check_branch
      %349 = sbr.rel (%p346) target = $region60
    $region59: #{_lambda_.10} parent=5 // pred_region
      %s350 = ssub.s32 %s16, 1
      %p351 = scmp.lt.s32.totalorder %s25, 1
      %s352 = scalar_select %p351, %s25, 1
      %p353 = scmp.lt.s32.totalorder %s26, 0
      %s354 = scalar_select %p353, %s26, 0
      %s355 = sadd.s32 %s354, %s352
      %s356 = smul.addr %s355, 4
      %s357 = scalar_lea.vmem %s0, %s356
      %p358 = pneg %p56
      %p359 = pneg %p53
      %p360 = scmp.lt.s32.totalorder %s25, 1
      %s361 = scalar_select %p360, %s25, 1
      %p362 = scmp.lt.s32.totalorder %s26, 0
      %s363 = scalar_select %p362, %s26, 0
      %s364 = smul.addr %s361, 4
      %s365 = sadd.s32 %s363, %s364
      %s366 = smul.addr %s365, 4
      %s367 = scalar_lea.vmem %s1, %s366
      %p368 = pneg %p84
      %p369 = pneg %p81
      %p370 = pneg %p105
      %p371 = pneg %p102
      %p372 = pneg %p126
      %p373 = pneg %p123
      %p374 = pneg %p147
      %p375 = pneg %p144
      %p376 = pneg %p168
      %p377 = pneg %p165
      %p378 = pneg %p189
      %p379 = pneg %p186
      %p380 = pneg %p210
      %p381 = pneg %p207
      %p382 = pneg %p231
      %p383 = pneg %p228
      %p384 = pneg %p252
      %p385 = pneg %p249
      %p386 = pneg %p280
      %p387 = pneg %p277
      %p388 = scmp.lt.s32.totalorder %s25, 1
      %s389 = scalar_select %p388, %s25, 1
      %p390 = scmp.lt.s32.totalorder %s26, 0
      %s391 = scalar_select %p390, %s26, 0
      %s392 = sadd.s32 %s391, %s389
      %s393 = smul.addr %s392, 4
      %s394 = scalar_lea.vmem %s10, %s393
      %p395 = scmp.lt.s32.totalorder %s25, 1
      %s396 = scalar_select %p395, %s25, 1
      %p397 = scmp.lt.s32.totalorder %s26, 0
      %s398 = scalar_select %p397, %s26, 0
      %s399 = sadd.s32 %s398, %s396
      %s400 = smul.addr %s399, 4
      %s401 = scalar_lea.vmem %s0, %s400
      %p402 = scmp.lt.s32.totalorder %s25, 1
      %s403 = scalar_select %p402, %s25, 1
      %p404 = scmp.lt.s32.totalorder %s26, 0
      %s405 = scalar_select %p404, %s26, 0
      %s406 = smul.addr %s403, 4
      %s407 = sadd.s32 %s405, %s406
      %s408 = smul.addr %s407, 4
      %s409 = scalar_lea.vmem %s1, %s408
      %p410 = scmp.lt.s32.totalorder %s25, 1
      %s411 = scalar_select %p410, %s25, 1
      %p412 = scmp.lt.s32.totalorder %s26, 0
      %s413 = scalar_select %p412, %s26, 0
      %s414 = sadd.s32 %s413, %s411
      %s415 = smul.addr %s414, 4
      %s416 = scalar_lea.vmem %s10, %s415
      %v418 = vld [vmem:[%s401] sm:$0xf]
      %v419 = vunpack.c.l.bf16 %v418
      %v420 = vld [vmem:[%s409] sm:$0xf]
      %v421 = vld [vmem:[%s409 + $0x4] sm:$0xf]
      %v422 = vld [vmem:[%s409 + $0x8] sm:$0xf]
      %v423 = vld [vmem:[%s409 + $0xc] sm:$0xf]
      %424 = vxpose.xlu0.c.b16.start [1/8] %v420, 128
      %425 = vxpose.xlu0.c.b16.cont [2/8] 0, 128
      %426 = vxpose.xlu0.c.b16.cont [3/8] 0, 128
      %427 = vxpose.xlu0.c.b16.cont [4/8] 0, 128
      %428 = vxpose.xlu0.c.b16.cont [5/8] 0, 128
      %429 = vxpose.xlu0.c.b16.cont [6/8] 0, 128
      %430 = vxpose.xlu0.c.b16.cont [7/8] 0, 128
      %431 = vxpose.xlu0.c.b16.end [8/8] 0, 128
      %v432 = vpop.trf.xlu0
      %v433 = vpop.trf.xlu0
      %v434 = vpop.trf.xlu0
      %v435 = vpop.trf.xlu0
      %v436 = vpop.trf.xlu0
      %v437 = vpop.trf.xlu0
      %v438 = vpop.trf.xlu0
      %v439 = vpop.trf.xlu0
      %440 = vxpose.xlu0.c.b16.start [1/8] %v421, 128
      %441 = vxpose.xlu0.c.b16.cont [2/8] 0, 128
      %442 = vxpose.xlu0.c.b16.cont [3/8] 0, 128
      %443 = vxpose.xlu0.c.b16.cont [4/8] 0, 128
      %444 = vxpose.xlu0.c.b16.cont [5/8] 0, 128
      %445 = vxpose.xlu0.c.b16.cont [6/8] 0, 128
      %446 = vxpose.xlu0.c.b16.cont [7/8] 0, 128
      %447 = vxpose.xlu0.c.b16.end [8/8] 0, 128
      %v448 = vpop.trf.xlu0
      %v449 = vpop.trf.xlu0
      %v450 = vpop.trf.xlu0
      %v451 = vpop.trf.xlu0
      %v452 = vpop.trf.xlu0
      %v453 = vpop.trf.xlu0
      %v454 = vpop.trf.xlu0
      %v455 = vpop.trf.xlu0
      %456 = vxpose.xlu0.c.b16.start [1/8] %v422, 128
      %457 = vxpose.xlu0.c.b16.cont [2/8] 0, 128
      %458 = vxpose.xlu0.c.b16.cont [3/8] 0, 128
      %459 = vxpose.xlu0.c.b16.cont [4/8] 0, 128
      %460 = vxpose.xlu0.c.b16.cont [5/8] 0, 128
      %461 = vxpose.xlu0.c.b16.cont [6/8] 0, 128
      %462 = vxpose.xlu0.c.b16.cont [7/8] 0, 128
      %463 = vxpose.xlu0.c.b16.end [8/8] 0, 128
      %v464 = vpop.trf.xlu0
      %v465 = vpop.trf.xlu0
      %v466 = vpop.trf.xlu0
      %v467 = vpop.trf.xlu0
      %v468 = vpop.trf.xlu0
      %v469 = vpop.trf.xlu0
      %v470 = vpop.trf.xlu0
      %v471 = vpop.trf.xlu0
      %472 = vxpose.xlu0.c.b16.start [1/8] %v423, 128
      %473 = vxpose.xlu0.c.b16.cont [2/8] 0, 128
      %474 = vxpose.xlu0.c.b16.cont [3/8] 0, 128
      %475 = vxpose.xlu0.c.b16.cont [4/8] 0, 128
      %476 = vxpose.xlu0.c.b16.cont [5/8] 0, 128
      %477 = vxpose.xlu0.c.b16.cont [6/8] 0, 128
      %478 = vxpose.xlu0.c.b16.cont [7/8] 0, 128
      %479 = vxpose.xlu0.c.b16.end [8/8] 0, 128
      %v480 = vpop.trf.xlu0
      %v481 = vpop.trf.xlu0
      %v482 = vpop.trf.xlu0
      %v483 = vpop.trf.xlu0
      %v484 = vpop.trf.xlu0
      %v485 = vpop.trf.xlu0
      %v486 = vpop.trf.xlu0
      %v487 = vpop.trf.xlu0
      %v492 = vunpack.c.l.b16 %v432
      %v493 = vunpack.c.l.b16 %v448
      %v494 = vunpack.c.l.b16 %v464
      %v495 = vunpack.c.l.b16 %v480
      %v496 = vpack.c.b16 %v493, %v492
      %v497 = vpack.c.b16 %v495, %v494
      %500 = vxpose.xlu0.c.b16.start [1/8] %v496, 128
      %501 = vxpose.xlu0.c.b16.cont [2/8] %v497, 128
      %502 = vxpose.xlu0.c.b16.cont [3/8] 0, 128
      %503 = vxpose.xlu0.c.b16.cont [4/8] 0, 128
      %504 = vxpose.xlu0.c.b16.cont [5/8] 0, 128
      %505 = vxpose.xlu0.c.b16.cont [6/8] 0, 128
      %506 = vxpose.xlu0.c.b16.cont [7/8] 0, 128
      %507 = vxpose.xlu0.c.b16.end [8/8] 0, 128
      %v508 = vpop.trf.xlu0
      %v509 = vpop.trf.xlu0
      %v510 = vpop.trf.xlu0
      %v511 = vpop.trf.xlu0
      %v512 = vpop.trf.xlu0
      %v513 = vpop.trf.xlu0
      %v514 = vpop.trf.xlu0
      %v515 = vpop.trf.xlu0
      %v516 = vld [vmem:[%s2] sm:$0xf]
      %v517 = vld [vmem:[%s2 + $0x4] sm:$0xf]
      %v518 = vld [vmem:[%s2 + $0x8] sm:$0xf]
      %v519 = vld [vmem:[%s2 + $0xc] sm:$0xf]
      %v520 = vld [vmem:[%s3] sm:$0x1]
      %v522 = vlaneseq
      %v523 = vshrl.u32 %v522, 7
      %v524 = vsub.s32 0, %v523
      %v525 = vrot.slane %v520, %v524
      %v531 = vunpack.c.l.b16 %v516
      %v532 = vunpack.c.l.b16 %v517
      %v533 = vunpack.c.l.b16 %v518
      %v534 = vunpack.c.l.b16 %v519
      %v535 = vpack.c.b16 %v532, %v531
      %v536 = vpack.c.b16 %v534, %v533
      %vm539 = vcmask 261120
      %v541 = vsel %vm539, %v508, 0
      %543 = vmatprep.subr.bf16.mxu0 0
      %544 = vmatpush1.bf16.msra.mxu0 %v535
      %545 = vmatprep.subr.bf16.mxu0 0
      %546 = vmatpush1.bf16.msra.mxu0 %v536
      %547 = vmatprep.subr.bf16.mxu0 0
      %548 = vmatpush1.bf16.msra.mxu0 0
      %549 = vmatprep.subr.bf16.mxu0 0
      %550 = vmatpush1.bf16.msra.mxu0 0
      %551 = vmatprep.subr.bf16.mxu0 0
      %552 = vmatpush1.bf16.msra.mxu0 0
      %553 = vmatprep.subr.bf16.mxu0 0
      %554 = vmatpush1.bf16.msra.mxu0 0
      %555 = vmatprep.subr.bf16.mxu0 0
      %556 = vmatpush1.bf16.msra.mxu0 0
      %557 = vmatprep.subr.bf16.mxu0 0
      %558 = vmatpush1.bf16.msra.mxu0 0
      %559 = vmatprep.subr.bf16.mxu0 0
      %560 = vmatpush1.bf16.msra.mxu0 0
      %561 = vmatprep.subr.bf16.mxu0 0
      %562 = vmatpush1.bf16.msra.mxu0 0
      %563 = vmatprep.subr.bf16.mxu0 0
      %564 = vmatpush1.bf16.msra.mxu0 0
      %565 = vmatprep.subr.bf16.mxu0 0
      %566 = vmatpush1.bf16.msra.mxu0 0
      %567 = vmatprep.subr.bf16.mxu0 0
      %568 = vmatpush1.bf16.msra.mxu0 0
      %569 = vmatprep.subr.bf16.mxu0 0
      %570 = vmatpush1.bf16.msra.mxu0 0
      %571 = vmatprep.subr.bf16.mxu0 0
      %572 = vmatpush1.bf16.msra.mxu0 0
      %573 = vmatprep.subr.bf16.mxu0 0
      %574 = vmatpush1.bf16.msra.mxu0 0
      %575 = vmatprep.mubr.bf16.mxu0 0
      %576 = vmatmul.mubr.bf16.gmra.mrb[0].mxu0 %v541
      %v577 = vpop.f32.mrb[0].mxu0
      %v578 = vadd.f32 %v525, %v577
      %v579 = vpop.f32.mrb[0].mxu0
      %v580 = vpop.f32.mrb[0].mxu0
      %v581 = vpop.f32.mrb[0].mxu0
      %582 = vdwg.mxu0
      %v583 = vadd.f32 %v419, %v578
      %v584 = vld [vmem:[%s4] sm:$0x1]
      %v585 = vld [vmem:[%s5] sm:$0x1]
      %v586 = vsel %vm539, %v583, 0.0
      %587 = vadd.xlane.f32.xlu0 %v586
      %v588 = vpop.xlane.xlu0 %587
      %v589 = vrcp.pop 32.0
      %v590 = vmul.f32 %v588, %v589
      %v591 = vsub.f32 %v583, %v590
      %v592 = vmul.f32 %v591, %v591
      %v593 = vsel %vm539, %v592, 0.0
      %594 = vadd.xlane.f32.xlu0 %v593
      %v595 = vpop.xlane.xlu0 %594
      %v596 = vmul.f32 %v595, %v589
      %v597 = vadd.f32 %v596, 1e-05
      %v598 = vrsqrt.pop %v597
      %v599 = vmul.f32 %v591, %v598
      %v601 = vlaneseq
      %v602 = vshrl.u32 %v601, 7
      %v603 = vsub.s32 0, %v602
      %v604 = vrot.slane %v584, %v603
      %v606 = vmul.f32 %v599, %v604
      %v608 = vlaneseq
      %v609 = vshrl.u32 %v608, 7
      %v610 = vsub.s32 0, %v609
      %v611 = vrot.slane %v585, %v610
      %v613 = vadd.f32 %v606, %v611
      %v614 = vpack.c.bf16 %v613, %v613
      %v615 = vld [vmem:[%s6] sm:$0xf]
      %v616 = vld [vmem:[%s6 + $0x4] sm:$0xf]
      %v617 = vld [vmem:[%s6 + $0x8] sm:$0xf]
      %v618 = vld [vmem:[%s6 + $0xc] sm:$0xf]
      %v619 = vld [vmem:[%s7] sm:$0x1]
      %v621 = vlaneseq
      %v622 = vshrl.u32 %v621, 7
      %v623 = vsub.s32 0, %v622
      %v624 = vrot.slane %v619, %v623
      %v630 = vunpack.c.l.b16 %v615
      %v631 = vunpack.c.l.b16 %v616
      %v632 = vunpack.c.l.b16 %v617
      %v633 = vunpack.c.l.b16 %v618
      %v634 = vpack.c.b16 %v631, %v630
      %v635 = vpack.c.b16 %v633, %v632
      %v639 = vsel %vm539, %v614, 0
      %641 = vmatprep.subr.bf16.mxu0 0
      %642 = vmatpush1.bf16.msra.mxu0 %v634
      %643 = vmatprep.subr.bf16.mxu0 0
      %644 = vmatpush1.bf16.msra.mxu0 %v635
      %645 = vmatprep.subr.bf16.mxu0 0
      %646 = vmatpush1.bf16.msra.mxu0 0
      %647 = vmatprep.subr.bf16.mxu0 0
      %648 = vmatpush1.bf16.msra.mxu0 0
      %649 = vmatprep.subr.bf16.mxu0 0
      %650 = vmatpush1.bf16.msra.mxu0 0
      %651 = vmatprep.subr.bf16.mxu0 0
      %652 = vmatpush1.bf16.msra.mxu0 0
      %653 = vmatprep.subr.bf16.mxu0 0
      %654 = vmatpush1.bf16.msra.mxu0 0
      %655 = vmatprep.subr.bf16.mxu0 0
      %656 = vmatpush1.bf16.msra.mxu0 0
      %657 = vmatprep.subr.bf16.mxu0 0
      %658 = vmatpush1.bf16.msra.mxu0 0
      %659 = vmatprep.subr.bf16.mxu0 0
      %660 = vmatpush1.bf16.msra.mxu0 0
      %661 = vmatprep.subr.bf16.mxu0 0
      %662 = vmatpush1.bf16.msra.mxu0 0
      %663 = vmatprep.subr.bf16.mxu0 0
      %664 = vmatpush1.bf16.msra.mxu0 0
      %665 = vmatprep.subr.bf16.mxu0 0
      %666 = vmatpush1.bf16.msra.mxu0 0
      %667 = vmatprep.subr.bf16.mxu0 0
      %668 = vmatpush1.bf16.msra.mxu0 0
      %669 = vmatprep.subr.bf16.mxu0 0
      %670 = vmatpush1.bf16.msra.mxu0 0
      %671 = vmatprep.subr.bf16.mxu0 0
      %672 = vmatpush1.bf16.msra.mxu0 0
      %673 = vmatprep.mubr.bf16.mxu0 0
      %674 = vmatmul.mubr.bf16.gmra.mrb[0].mxu0 %v639
      %v675 = vpop.f32.mrb[0].mxu0
      %v676 = vadd.f32 %v624, %v675
      %v677 = vpop.f32.mrb[0].mxu0
      %v678 = vpop.f32.mrb[0].mxu0
      %v679 = vpop.f32.mrb[0].mxu0
      %680 = vdwg.mxu0
      %v681 = vmul.f32 %v676, 0.5
      %v682 = vmul.f32 %v676, 0.70710677
      %v683 = verf.f32.pop %v682
      %v684 = vadd.f32 %v683, 1.0
      %v685 = vmul.f32 %v681, %v684
      %v686 = vpack.c.bf16 %v685, %v685
      %v687 = vld [vmem:[%s8] sm:$0xf]
      %v688 = vld [vmem:[%s8 + $0x4] sm:$0xf]
      %v689 = vld [vmem:[%s8 + $0x8] sm:$0xf]
      %v690 = vld [vmem:[%s8 + $0xc] sm:$0xf]
      %v691 = vld [vmem:[%s8 + $0x10] sm:$0xf]
      %v692 = vld [vmem:[%s8 + $0x14] sm:$0xf]
      %v693 = vld [vmem:[%s8 + $0x18] sm:$0xf]
      %v694 = vld [vmem:[%s8 + $0x1c] sm:$0xf]
      %v695 = vld [vmem:[%s8 + $0x20] sm:$0xf]
      %v696 = vld [vmem:[%s8 + $0x24] sm:$0xf]
      %v697 = vld [vmem:[%s8 + $0x28] sm:$0xf]
      %v698 = vld [vmem:[%s8 + $0x2c] sm:$0xf]
      %v699 = vld [vmem:[%s8 + $0x30] sm:$0xf]
      %v700 = vld [vmem:[%s8 + $0x34] sm:$0xf]
      %v701 = vld [vmem:[%s8 + $0x38] sm:$0xf]
      %v702 = vld [vmem:[%s8 + $0x3c] sm:$0xf]
      %v703 = vld [vmem:[%s9] sm:$0x1]
      %v705 = vlaneseq
      %v706 = vshrl.u32 %v705, 7
      %v707 = vsub.s32 0, %v706
      %v708 = vrot.slane %v703, %v707
      %v726 = vunpack.c.l.b16 %v687
      %v727 = vunpack.c.l.b16 %v688
      %v728 = vunpack.c.l.b16 %v689
      %v729 = vunpack.c.l.b16 %v690
      %v730 = vunpack.c.l.b16 %v691
      %v731 = vunpack.c.l.b16 %v692
      %v732 = vunpack.c.l.b16 %v693
      %v733 = vunpack.c.l.b16 %v694
      %v734 = vunpack.c.l.b16 %v695
      %v735 = vunpack.c.l.b16 %v696
      %v736 = vunpack.c.l.b16 %v697
      %v737 = vunpack.c.l.b16 %v698
      %v738 = vunpack.c.l.b16 %v699
      %v739 = vunpack.c.l.b16 %v700
      %v740 = vunpack.c.l.b16 %v701
      %v741 = vunpack.c.l.b16 %v702
      %v742 = vpack.c.b16 %v727, %v726
      %v743 = vpack.c.b16 %v729, %v728
      %v744 = vpack.c.b16 %v731, %v730
      %v745 = vpack.c.b16 %v733, %v732
      %v746 = vpack.c.b16 %v735, %v734
      %v747 = vpack.c.b16 %v737, %v736
      %v748 = vpack.c.b16 %v739, %v738
      %v749 = vpack.c.b16 %v741, %v740
      %758 = vmatprep.subr.bf16.mxu0 0
      %759 = vmatpush1.bf16.msra.mxu0 %v742
      %760 = vmatprep.subr.bf16.mxu0 0
      %761 = vmatpush1.bf16.msra.mxu0 %v743
      %762 = vmatprep.subr.bf16.mxu0 0
      %763 = vmatpush1.bf16.msra.mxu0 %v744
      %764 = vmatprep.subr.bf16.mxu0 0
      %765 = vmatpush1.bf16.msra.mxu0 %v745
      %766 = vmatprep.subr.bf16.mxu0 0
      %767 = vmatpush1.bf16.msra.mxu0 %v746
      %768 = vmatprep.subr.bf16.mxu0 0
      %769 = vmatpush1.bf16.msra.mxu0 %v747
      %770 = vmatprep.subr.bf16.mxu0 0
      %771 = vmatpush1.bf16.msra.mxu0 %v748
      %772 = vmatprep.subr.bf16.mxu0 0
      %773 = vmatpush1.bf16.msra.mxu0 %v749
      %774 = vmatprep.subr.bf16.mxu0 0
      %775 = vmatpush1.bf16.msra.mxu0 0
      %776 = vmatprep.subr.bf16.mxu0 0
      %777 = vmatpush1.bf16.msra.mxu0 0
      %778 = vmatprep.subr.bf16.mxu0 0
      %779 = vmatpush1.bf16.msra.mxu0 0
      %780 = vmatprep.subr.bf16.mxu0 0
      %781 = vmatpush1.bf16.msra.mxu0 0
      %782 = vmatprep.subr.bf16.mxu0 0
      %783 = vmatpush1.bf16.msra.mxu0 0
      %784 = vmatprep.subr.bf16.mxu0 0
      %785 = vmatpush1.bf16.msra.mxu0 0
      %786 = vmatprep.subr.bf16.mxu0 0
      %787 = vmatpush1.bf16.msra.mxu0 0
      %788 = vmatprep.subr.bf16.mxu0 0
      %789 = vmatpush1.bf16.msra.mxu0 0
      %790 = vmatprep.mubr.bf16.mxu0 0
      %791 = vmatmul.mubr.bf16.gmra.mrb[0].mxu0 %v686
      %v792 = vpop.f32.mrb[0].mxu0
      %v793 = vadd.f32 %v708, %v792
      %v794 = vpop.f32.mrb[0].mxu0
      %v795 = vpop.f32.mrb[0].mxu0
      %v796 = vpop.f32.mrb[0].mxu0
      %797 = vdwg.mxu0
      %v798 = vadd.f32 %v583, %v793
      %v799 = vpack.c.bf16 %v798, %v798
      %vm800 = vcmask 257024
      %801 = vst.msk [vmem:[%s416] sm:$0xf] %vm800, %v799
      %p802 = scmp.lt.s32.totalorder %s25, 1
      %s803 = scalar_select %p802, %s25, 1
      %p804 = scmp.lt.s32.totalorder %s26, 0
      %s805 = scalar_select %p804, %s26, 0
      %s806 = sadd.s32 %s805, %s803
      %s807 = smul.addr %s806, 4
      %s808 = scalar_lea.vmem %s10, %s807
      // Predicated region
      $region61: #{_lambda_.10} parent=59 // pred_check
        %p809 = pneg %p277
      $region62: #{_lambda_.10} parent=59 // pred_check_branch
        %811 = sbr.rel (%p809) target = $region64
      $region63: #{_lambda_.10} parent=59 // pred_region
        _
      $region64: #{_lambda_.10} parent=59 // pred_fallthru
        _
    $region60: #{_lambda_.10} parent=5 // pred_fallthru
      _
    %p812 = scmp.le.s32.totalorder 2, %s16
    // Predicated region
    $region65: #{_lambda_.10} parent=5 // pred_check
      %p813 = pneg %p812
    $region66: #{_lambda_.10} parent=5 // pred_check_branch
      %815 = sbr.rel (%p813) target = $region68
    $region67: #{_lambda_.10} parent=5 // pred_region
      %s816 = ssub.s32 %s16, 2
      // Predicated region
      $region69: #{_lambda_.10} parent=67 // pred_check
        %p817 = pneg %p283
      $region70: #{_lambda_.10} parent=67 // pred_check_branch
        %819 = sbr.rel (%p817) target = $region72
      $region71: #{_lambda_.10} parent=67 // pred_region
        %p820 = scmp.lt.s32.totalorder %s27, 1
        %s821 = scalar_select %p820, %s27, 1
        %p822 = scmp.lt.s32.totalorder %s28, 0
        %s823 = scalar_select %p822, %s28, 0
        %s824 = sadd.s32 %s823, %s821
        %s825 = smul.addr %s824, 4
        %s826 = scalar_lea.vmem %s10, %s825
      $region72: #{_lambda_.10} parent=67 // pred_fallthru
        _
    $region68: #{_lambda_.10} parent=5 // pred_fallthru
      _
  $region6: #{_lambda_.10} parent=0 // loop_footer
    %s20 = sadd.s32 1, %s16
  $region7: #{_lambda_.10} parent=0 // loop_footer_branch
    %15 = sbr.rel target = $region3
  $region8: #{_lambda_.10} parent=0 // loop_exit
    _

// kernel: _lambda_.15
$region0: #{_lambda_.15}
  #allocation0 [shape = 'u32[]', space=smem, size = 0x4, offset = 0x4, fixed_abs, tag = 'smem constant byte address 0x4 - core index']
  #allocation1 [shape = 'u32[144,128]{1,0:T(1,128)}', space=vmem, size = 0x12000, scoped, tag = 'internal scratch']
  %s0 = inlined_call_operand.vmem [shape: bf16[16,32], index: 0, kind: input, shape index: {}]
  %s1 = inlined_call_operand.vmem [shape: bf16[32,64], index: 1, kind: input, shape index: {}]
  %s2 = inlined_call_operand.hbm [shape: f32[16,64], index: 2, kind: output, shape index: {}]
  %s3 = sld [smem:[#allocation0]]
  $region18: #{_lambda_.15} parent=0
    _
  %s5 = ssub.s32 1, %s3
  %s6 = scalar_select 0, %s5, %s3
  $region1: #{_lambda_.15} parent=0
    #allocation2 [shape = 'u8[8192]{0}', space=vmem, size = 0x2000, scoped, tag = 'output window, operand 0, single buffered']
    #allocation3 [shape = 's32[1]{0}', space=sflag, size = 0x4, scoped, tag = 'scoped memory for _lambda_.15']
    %7 = vsyncpa [#allocation3], 0
    // Predicated region
    $region2: #{_lambda_.15} parent=1 // pred_check
      _
    $region3: #{_lambda_.15} parent=1 // pred_check_branch
      %9 = sbr.rel (0) target = $region5
    $region4: #{_lambda_.15} parent=1 // pred_region
      _
    $region5: #{_lambda_.15} parent=1 // pred_fallthru
      _
    // Predicated region
    $region6: #{_lambda_.15} parent=1 // pred_check
      _
    $region7: #{_lambda_.15} parent=1 // pred_check_branch
      %11 = sbr.rel (0) target = $region9
    $region8: #{_lambda_.15} parent=1 // pred_region
      _
    $region9: #{_lambda_.15} parent=1 // pred_fallthru
      _
    %v13 = vld [vmem:[%s0] sm:$0xf]
    %v14 = vld [vmem:[%s0 + $0x4] sm:$0xf]
    %v15 = vld [vmem:[%s1] sm:$0xf]
    %v16 = vld [vmem:[%s1 + $0x4] sm:$0xf]
    %v17 = vld [vmem:[%s1 + $0x8] sm:$0xf]
    %v18 = vld [vmem:[%s1 + $0xc] sm:$0xf]
    %v21 = vunpack.c.l.b16 %v13
    %v22 = vunpack.c.l.b16 %v14
    %v23 = vpack.c.b16 %v22, %v21
    %v28 = vunpack.c.l.b16 %v15
    %v29 = vunpack.c.l.b16 %v16
    %v30 = vunpack.c.l.b16 %v17
    %v31 = vunpack.c.l.b16 %v18
    %v32 = vpack.c.b16 %v29, %v28
    %v33 = vpack.c.b16 %v31, %v30
    %vm36 = vcmask 261120
    %v38 = vsel %vm36, %v23, 0
    %40 = vmatprep.subr.bf16.mxu0 0
    %41 = vmatpush1.bf16.msra.mxu0 %v32
    %42 = vmatprep.subr.bf16.mxu0 0
    %43 = vmatpush1.bf16.msra.mxu0 %v33
    %44 = vmatprep.subr.bf16.mxu0 0
    %45 = vmatpush1.bf16.msra.mxu0 0
    %46 = vmatprep.subr.bf16.mxu0 0
    %47 = vmatpush1.bf16.msra.mxu0 0
    %48 = vmatprep.subr.bf16.mxu0 0
    %49 = vmatpush1.bf16.msra.mxu0 0
    %50 = vmatprep.subr.bf16.mxu0 0
    %51 = vmatpush1.bf16.msra.mxu0 0
    %52 = vmatprep.subr.bf16.mxu0 0
    %53 = vmatpush1.bf16.msra.mxu0 0
    %54 = vmatprep.subr.bf16.mxu0 0
    %55 = vmatpush1.bf16.msra.mxu0 0
    %56 = vmatprep.subr.bf16.mxu0 0
    %57 = vmatpush1.bf16.msra.mxu0 0
    %58 = vmatprep.subr.bf16.mxu0 0
    %59 = vmatpush1.bf16.msra.mxu0 0
    %60 = vmatprep.subr.bf16.mxu0 0
    %61 = vmatpush1.bf16.msra.mxu0 0
    %62 = vmatprep.subr.bf16.mxu0 0
    %63 = vmatpush1.bf16.msra.mxu0 0
    %64 = vmatprep.subr.bf16.mxu0 0
    %65 = vmatpush1.bf16.msra.mxu0 0
    %66 = vmatprep.subr.bf16.mxu0 0
    %67 = vmatpush1.bf16.msra.mxu0 0
    %68 = vmatprep.subr.bf16.mxu0 0
    %69 = vmatpush1.bf16.msra.mxu0 0
    %70 = vmatprep.subr.bf16.mxu0 0
    %71 = vmatpush1.bf16.msra.mxu0 0
    %72 = vmatprep.mubr.bf16.mxu0 0
    %73 = vmatmul.mubr.bf16.gmra.mrb[0].mxu0 %v38
    %v74 = vpop.f32.mrb[0].mxu0
    %v75 = vadd.f32 0.0, %v74
    %v76 = vpop.f32.mrb[0].mxu0
    %v77 = vpop.f32.mrb[0].mxu0
    %v78 = vadd.f32 0.0, %v77
    %v79 = vpop.f32.mrb[0].mxu0
    %80 = vdwg.mxu0
    %vm81 = vcmask 523264
    %82 = vst.msk [vmem:[#allocation2] sm:$0xff] %vm81, %v75
    %83 = vst.msk [vmem:[#allocation2 + $0x8] sm:$0xff] %vm81, %v78
    // Predicated region
    $region10: #{_lambda_.15} parent=1 // pred_check
      _
    $region11: #{_lambda_.15} parent=1 // pred_check_branch
      %85 = sbr.rel (0) target = $region13
    $region12: #{_lambda_.15} parent=1 // pred_region
      %s87 = ssub.s32 256, 256
      %88 = vsyncadd [#allocation3], %s87
      %s89 = sshll.u32 [#allocation2], 4
      %s90 = int_to_ptr.vmem [resolvable:$true] %s89
      %95 = dma.vmem_to_hbm [thread:$0]  %s90, 256, %s2, [#allocation3], 128, 128, 8
    $region13: #{_lambda_.15} parent=1 // pred_fallthru
      _
    // Predicated region
    $region14: #{_lambda_.15} parent=1 // pred_check
      _
    $region15: #{_lambda_.15} parent=1 // pred_check_branch
      %97 = sbr.rel (0) target = $region17
    $region16: #{_lambda_.15} parent=1 // pred_region
      %98 = dma.done [#allocation3], 256
    $region17: #{_lambda_.15} parent=1 // pred_fallthru
      _
    %99 = vsyncpa [#allocation3], 1

// kernel: _lambda_.14
$region0: #{_lambda_.14}
  #allocation0 [shape = 'u32[]', space=smem, size = 0x4, offset = 0x4, fixed_abs, tag = 'smem constant byte address 0x4 - core index']
  #allocation1 [shape = 'u32[144,128]{1,0:T(1,128)}', space=vmem, size = 0x12000, scoped, tag = 'internal scratch']
  %s0 = inlined_call_operand.vmem [shape: bf16[16,32], index: 0, kind: input, shape index: {}]
  %s1 = inlined_call_operand.vmem [shape: f32[1,32], index: 1, kind: input, shape index: {}]
  %s2 = inlined_call_operand.vmem [shape: f32[1,32], index: 2, kind: input, shape index: {}]
  %s3 = inlined_call_operand.vmem [shape: bf16[16,32], index: 3, kind: output, shape index: {}]
  %s4 = sld [smem:[#allocation0]]
  $region22: #{_lambda_.14} parent=0
    _
  %s6 = ssub.s32 1, %s4
  %s7 = scalar_select 0, %s6, %s4
  // Predicated region
  $region2: #{_lambda_.14} parent=0 // pred_check
    _
  $region3: #{_lambda_.14} parent=0 // pred_check_branch
    %9 = sbr.rel (0) target = $region5
  $region4: #{_lambda_.14} parent=0 // pred_region
    _
  $region5: #{_lambda_.14} parent=0 // pred_fallthru
    _
  // Predicated region
  $region6: #{_lambda_.14} parent=0 // pred_check
    _
  $region7: #{_lambda_.14} parent=0 // pred_check_branch
    %11 = sbr.rel (0) target = $region9
  $region8: #{_lambda_.14} parent=0 // pred_region
    _
  $region9: #{_lambda_.14} parent=0 // pred_fallthru
    _
  // Predicated region
  $region10: #{_lambda_.14} parent=0 // pred_check
    _
  $region11: #{_lambda_.14} parent=0 // pred_check_branch
    %13 = sbr.rel (0) target = $region13
  $region12: #{_lambda_.14} parent=0 // pred_region
    _
  $region13: #{_lambda_.14} parent=0 // pred_fallthru
    _
  %v14 = vld [vmem:[%s0] sm:$0xf]
  %v15 = vld [vmem:[%s0 + $0x4] sm:$0xf]
  %v16 = vunpack.c.l.bf16 %v14
  %v17 = vunpack.c.l.bf16 %v15
  %v18 = vld [vmem:[%s1] sm:$0x1]
  %v19 = vld [vmem:[%s2] sm:$0x1]
  %vm20 = vcmask 261120
  %v21 = vsel %vm20, %v16, 0.0
  %22 = vadd.xlane.f32.xlu0 %v21
  %v23 = vpop.xlane.xlu0 %22
  %v24 = vsel %vm20, %v17, 0.0
  %25 = vadd.xlane.f32.xlu0 %v24
  %v26 = vpop.xlane.xlu0 %25
  %v27 = vrcp.pop 32.0
  %v28 = vmul.f32 %v23, %v27
  %v29 = vmul.f32 %v26, %v27
  %v30 = vsub.f32 %v16, %v28
  %v31 = vsub.f32 %v17, %v29
  %v32 = vmul.f32 %v30, %v30
  %v33 = vmul.f32 %v31, %v31
  %v34 = vsel %vm20, %v32, 0.0
  %35 = vadd.xlane.f32.xlu0 %v34
  %v36 = vpop.xlane.xlu0 %35
  %v37 = vsel %vm20, %v33, 0.0
  %38 = vadd.xlane.f32.xlu0 %v37
  %v39 = vpop.xlane.xlu0 %38
  %v40 = vmul.f32 %v36, %v27
  %v41 = vmul.f32 %v39, %v27
  %v42 = vadd.f32 %v40, 1e-05
  %v43 = vadd.f32 %v41, 1e-05
  %v44 = vrsqrt.pop %v42
  %v45 = vrsqrt.pop %v43
  %v46 = vmul.f32 %v30, %v44
  %v47 = vmul.f32 %v31, %v45
  %v49 = vlaneseq
  %v50 = vshrl.u32 %v49, 7
  %v51 = vsub.s32 0, %v50
  %v52 = vrot.slane %v18, %v51
  %v54 = vmul.f32 %v46, %v52
  %v55 = vmul.f32 %v47, %v52
  %v57 = vlaneseq
  %v58 = vshrl.u32 %v57, 7
  %v59 = vsub.s32 0, %v58
  %v60 = vrot.slane %v19, %v59
  %v62 = vadd.f32 %v54, %v60
  %v63 = vadd.f32 %v55, %v60
  %v64 = vpack.c.bf16 %v63, %v62
  %v66 = vunpack.c.l.b16 %v64
  %v67 = vunpack.c.h.b16 %v64
  %v68 = vpack.c.b16 %v66, %v66
  %v69 = vpack.c.b16 %v67, %v67
  %vm72 = vcmask 257024
  %73 = vst.msk [vmem:[%s3] sm:$0xf] %vm72, %v68
  %74 = vst.msk [vmem:[%s3 + $0x4] sm:$0xf] %vm72, %v69
  // Predicated region
  $region14: #{_lambda_.14} parent=0 // pred_check
    _
  $region15: #{_lambda_.14} parent=0 // pred_check_branch
    %76 = sbr.rel (0) target = $region17
  $region16: #{_lambda_.14} parent=0 // pred_region
    _
  $region17: #{_lambda_.14} parent=0 // pred_fallthru
    _
  // Predicated region
  $region18: #{_lambda_.14} parent=0 // pred_check
    _
  $region19: #{_lambda_.14} parent=0 // pred_check_branch
    %78 = sbr.rel (0) target = $region21
  $region20: #{_lambda_.14} parent=0 // pred_region
    _
  $region21: #{_lambda_.14} parent=0 // pred_fallthru
    _

// kernel: _lambda_.8
$region0: #{_lambda_.8}
  #allocation0 [shape = 'u32[]', space=smem, size = 0x4, offset = 0x4, fixed_abs, tag = 'smem constant byte address 0x4 - core index']
  #allocation1 [shape = 'u32[144,128]{1,0:T(1,128)}', space=vmem, size = 0x12000, scoped, tag = 'internal scratch']
  %s0 = inlined_call_operand.vmem [shape: bf16[2,8,32], index: 0, kind: input, shape index: {}]
  %s1 = inlined_call_operand.vmem [shape: f32[1,32], index: 1, kind: input, shape index: {}]
  %s2 = inlined_call_operand.vmem [shape: f32[1,32], index: 2, kind: input, shape index: {}]
  %s3 = inlined_call_operand.vmem [shape: bf16[32,96], index: 3, kind: input, shape index: {}]
  %s4 = inlined_call_operand.vmem [shape: f32[1,96], index: 4, kind: input, shape index: {}]
  %s5 = inlined_call_operand.vmem [shape: bf16[2,4,8,8], index: 5, kind: output, shape index: {0}]
  %s6 = inlined_call_operand.vmem [shape: bf16[2,4,8,8], index: 6, kind: output, shape index: {1}]
  %s7 = inlined_call_operand.vmem [shape: bf16[2,4,8,8], index: 7, kind: output, shape index: {2}]
  %8 = xla_tuple %s5, %s6, %s7
  %s9 = sld [smem:[#allocation0]]
  $region69: #{_lambda_.8} parent=0
    _
  %s11 = ssub.s32 1, %s9
  %s12 = scalar_select 0, %s11, %s9
  loop: start=0, step=1, limit=4
  $region2: #{_lambda_.8} parent=0 // loop_pre_header
    _
  $region3: #{_lambda_.8} parent=0 // loop_header
    %s14 = sphi 0, %s18
    %p15 = scmp.ge.s32.totalorder %s14, 4
    %s21 = sphi 0, %s33
    %s22 = sphi 0, %s29
    %s23 = sphi 0, %s21
    %s24 = sphi 0, %s22
    %s25 = sphi 0, %s23
    %s26 = sphi 0, %s24
    %s38 = sphi 0, %s40
    %s41 = sphi 0, %s38
    %s42 = sphi 0, %s41
    %s58 = sphi 0, %s42
    %s62 = sphi 0, %s62
    %s64 = sphi 0, %s62
    %s65 = sphi 0, %s64
    %s79 = sphi 0, %s65
    %s83 = sphi 0, %s83
    %s85 = sphi 0, %s83
    %s86 = sphi 0, %s85
    %s100 = sphi 0, %s86
    %s104 = sphi 0, %s104
    %s106 = sphi 0, %s104
    %s107 = sphi 0, %s106
    %s121 = sphi 0, %s107
    %s125 = sphi 0, %s125
    %s127 = sphi 0, %s125
    %s128 = sphi 0, %s127
    %s142 = sphi 0, %s128
    %s150 = sphi 0, %s152
    %s153 = sphi 0, %s150
    %s154 = sphi 0, %s153
    %s170 = sphi 0, %s154
    %s178 = sphi 0, %s180
    %s181 = sphi 0, %s178
    %s182 = sphi 0, %s181
    %s198 = sphi 0, %s182
    %s206 = sphi 0, %s208
    %s209 = sphi 0, %s206
    %s210 = sphi 0, %s209
    %s226 = sphi 0, %s210
  $region4: #{_lambda_.8} parent=0 // loop_header_branch
    %17 = sbr.rel (%p15) target = $region8
  $region5: #{_lambda_.8} parent=0 // loop_body
    %s19 = ssub.s32 %s14, 1
    %s20 = ssub.s32 %s14, 2
    %s27 = sadd.s32 1, %s22
    %p28 = scmp.ge.s32.totalorder %s27, 1
    %s29 = scalar_select %p28, 0, %s27
    %s30 = sadd.s32 1, %s21
    %s31 = scalar_select %p28, %s30, %s21
    %p32 = scmp.ge.s32.totalorder %s31, 2
    %s33 = scalar_select %p32, 0, %s31
    %s34 = ssub.s32 %s21, %s33
    %s35 = ssub.s32 %s22, %s29
    %s36 = sor.u32 %s34, %s35
    %p37 = scmp.eq.s32.totalorder %s36, 0
    %s39 = sadd.s32 %s38, 1
    %s40 = scalar_select %p37, %s38, %s39
    %p43 = pneg %p37
    %p44 = scmp.eq.s32.totalorder %s14, 1
    %p45 = por %p43, %p44
    %p46 = scmp.ne.s32.totalorder %s38, %s41
    %p47 = scmp.eq.s32.totalorder %s14, 0
    %p48 = por %p46, %p47
    %p49 = scmp.ne.s32.totalorder %s38, %s41
    %p50 = scmp.eq.s32.totalorder %s19, 1
    %p51 = por %p49, %p50
    %p52 = scmp.ne.s32.totalorder %s41, %s42
    %p53 = scmp.eq.s32.totalorder %s19, 0
    %p54 = por %p52, %p53
    %p55 = scmp.ne.s32.totalorder %s41, %s42
    %p56 = scmp.eq.s32.totalorder %s20, 1
    %p57 = por %p55, %p56
    %p59 = scmp.ne.s32.totalorder %s42, %s58
    %p60 = scmp.eq.s32.totalorder %s20, 0
    %p61 = por %p59, %p60
    %s63 = sadd.s32 %s62, 1
    %p66 = scmp.eq.s32.totalorder %s14, 1
    %p67 = scmp.ne.s32.totalorder %s62, %s64
    %p68 = scmp.eq.s32.totalorder %s14, 0
    %p69 = por %p67, %p68
    %p70 = scmp.ne.s32.totalorder %s62, %s64
    %p71 = scmp.eq.s32.totalorder %s19, 1
    %p72 = por %p70, %p71
    %p73 = scmp.ne.s32.totalorder %s64, %s65
    %p74 = scmp.eq.s32.totalorder %s19, 0
    %p75 = por %p73, %p74
    %p76 = scmp.ne.s32.totalorder %s64, %s65
    %p77 = scmp.eq.s32.totalorder %s20, 1
    %p78 = por %p76, %p77
    %p80 = scmp.ne.s32.totalorder %s65, %s79
    %p81 = scmp.eq.s32.totalorder %s20, 0
    %p82 = por %p80, %p81
    %s84 = sadd.s32 %s83, 1
    %p87 = scmp.eq.s32.totalorder %s14, 1
    %p88 = scmp.ne.s32.totalorder %s83, %s85
    %p89 = scmp.eq.s32.totalorder %s14, 0
    %p90 = por %p88, %p89
    %p91 = scmp.ne.s32.totalorder %s83, %s85
    %p92 = scmp.eq.s32.totalorder %s19, 1
    %p93 = por %p91, %p92
    %p94 = scmp.ne.s32.totalorder %s85, %s86
    %p95 = scmp.eq.s32.totalorder %s19, 0
    %p96 = por %p94, %p95
    %p97 = scmp.ne.s32.totalorder %s85, %s86
    %p98 = scmp.eq.s32.totalorder %s20, 1
    %p99 = por %p97, %p98
    %p101 = scmp.ne.s32.totalorder %s86, %s100
    %p102 = scmp.eq.s32.totalorder %s20, 0
    %p103 = por %p101, %p102
    %s105 = sadd.s32 %s104, 1
    %p108 = scmp.eq.s32.totalorder %s14, 1
    %p109 = scmp.ne.s32.totalorder %s104, %s106
    %p110 = scmp.eq.s32.totalorder %s14, 0
    %p111 = por %p109, %p110
    %p112 = scmp.ne.s32.totalorder %s104, %s106
    %p113 = scmp.eq.s32.totalorder %s19, 1
    %p114 = por %p112, %p113
    %p115 = scmp.ne.s32.totalorder %s106, %s107
    %p116 = scmp.eq.s32.totalorder %s19, 0
    %p117 = por %p115, %p116
    %p118 = scmp.ne.s32.totalorder %s106, %s107
    %p119 = scmp.eq.s32.totalorder %s20, 1
    %p120 = por %p118, %p119
    %p122 = scmp.ne.s32.totalorder %s107, %s121
    %p123 = scmp.eq.s32.totalorder %s20, 0
    %p124 = por %p122, %p123
    %s126 = sadd.s32 %s125, 1
    %p129 = scmp.eq.s32.totalorder %s14, 1
    %p130 = scmp.ne.s32.totalorder %s125, %s127
    %p131 = scmp.eq.s32.totalorder %s14, 0
    %p132 = por %p130, %p131
    %p133 = scmp.ne.s32.totalorder %s125, %s127
    %p134 = scmp.eq.s32.totalorder %s19, 1
    %p135 = por %p133, %p134
    %p136 = scmp.ne.s32.totalorder %s127, %s128
    %p137 = scmp.eq.s32.totalorder %s19, 0
    %p138 = por %p136, %p137
    %p139 = scmp.ne.s32.totalorder %s127, %s128
    %p140 = scmp.eq.s32.totalorder %s20, 1
    %p141 = por %p139, %p140
    %p143 = scmp.ne.s32.totalorder %s128, %s142
    %p144 = scmp.eq.s32.totalorder %s20, 0
    %p145 = por %p143, %p144
    %s146 = ssub.s32 %s21, %s33
    %s147 = ssub.s32 %s22, %s29
    %s148 = sor.u32 %s146, %s147
    %p149 = scmp.eq.s32.totalorder %s148, 0
    %s151 = sadd.s32 %s150, 1
    %s152 = scalar_select %p149, %s150, %s151
    %p155 = pneg %p149
    %p156 = scmp.eq.s32.totalorder %s14, 1
    %p157 = por %p155, %p156
    %p158 = scmp.ne.s32.totalorder %s150, %s153
    %p159 = scmp.eq.s32.totalorder %s14, 0
    %p160 = por %p158, %p159
    %p161 = scmp.ne.s32.totalorder %s150, %s153
    %p162 = scmp.eq.s32.totalorder %s19, 1
    %p163 = por %p161, %p162
    %p164 = scmp.ne.s32.totalorder %s153, %s154
    %p165 = scmp.eq.s32.totalorder %s19, 0
    %p166 = por %p164, %p165
    %p167 = scmp.ne.s32.totalorder %s153, %s154
    %p168 = scmp.eq.s32.totalorder %s20, 1
    %p169 = por %p167, %p168
    %p171 = scmp.ne.s32.totalorder %s154, %s170
    %p172 = scmp.eq.s32.totalorder %s20, 0
    %p173 = por %p171, %p172
    %s174 = ssub.s32 %s21, %s33
    %s175 = ssub.s32 %s22, %s29
    %s176 = sor.u32 %s174, %s175
    %p177 = scmp.eq.s32.totalorder %s176, 0
    %s179 = sadd.s32 %s178, 1
    %s180 = scalar_select %p177, %s178, %s179
    %p183 = pneg %p177
    %p184 = scmp.eq.s32.totalorder %s14, 1
    %p185 = por %p183, %p184
    %p186 = scmp.ne.s32.totalorder %s178, %s181
    %p187 = scmp.eq.s32.totalorder %s14, 0
    %p188 = por %p186, %p187
    %p189 = scmp.ne.s32.totalorder %s178, %s181
    %p190 = scmp.eq.s32.totalorder %s19, 1
    %p191 = por %p189, %p190
    %p192 = scmp.ne.s32.totalorder %s181, %s182
    %p193 = scmp.eq.s32.totalorder %s19, 0
    %p194 = por %p192, %p193
    %p195 = scmp.ne.s32.totalorder %s181, %s182
    %p196 = scmp.eq.s32.totalorder %s20, 1
    %p197 = por %p195, %p196
    %p199 = scmp.ne.s32.totalorder %s182, %s198
    %p200 = scmp.eq.s32.totalorder %s20, 0
    %p201 = por %p199, %p200
    %s202 = ssub.s32 %s21, %s33
    %s203 = ssub.s32 %s22, %s29
    %s204 = sor.u32 %s202, %s203
    %p205 = scmp.eq.s32.totalorder %s204, 0
    %s207 = sadd.s32 %s206, 1
    %s208 = scalar_select %p205, %s206, %s207
    %p211 = pneg %p205
    %p212 = scmp.eq.s32.totalorder %s14, 1
    %p213 = por %p211, %p212
    %p214 = scmp.ne.s32.totalorder %s206, %s209
    %p215 = scmp.eq.s32.totalorder %s14, 0
    %p216 = por %p214, %p215
    %p217 = scmp.ne.s32.totalorder %s206, %s209
    %p218 = scmp.eq.s32.totalorder %s19, 1
    %p219 = por %p217, %p218
    %p220 = scmp.ne.s32.totalorder %s209, %s210
    %p221 = scmp.eq.s32.totalorder %s19, 0
    %p222 = por %p220, %p221
    %p223 = scmp.ne.s32.totalorder %s209, %s210
    %p224 = scmp.eq.s32.totalorder %s20, 1
    %p225 = por %p223, %p224
    %p227 = scmp.ne.s32.totalorder %s210, %s226
    %p228 = scmp.eq.s32.totalorder %s20, 0
    %p229 = por %p227, %p228
    %p230 = scmp.le.s32.totalorder 1, %s14
    %p231 = scmp.lt.s32.totalorder %s14, 3
    %p232 = pnand %p230, %p231
    %p233 = pneg %p232
    // Predicated region
    $region9: #{_lambda_.8} parent=5 // pred_check
      _
    $region10: #{_lambda_.8} parent=5 // pred_check_branch
      %235 = sbr.rel (%p232) target = $region12
    $region11: #{_lambda_.8} parent=5 // pred_region
      %s236 = ssub.s32 %s14, 1
      // Predicated region
      $region13: #{_lambda_.8} parent=11 // pred_check
        %p237 = pneg %p75
      $region14: #{_lambda_.8} parent=11 // pred_check_branch
        %239 = sbr.rel (%p237) target = $region16
      $region15: #{_lambda_.8} parent=11 // pred_region
        _
      $region16: #{_lambda_.8} parent=11 // pred_fallthru
        _
      // Predicated region
      $region17: #{_lambda_.8} parent=11 // pred_check
        %p240 = pneg %p96
      $region18: #{_lambda_.8} parent=11 // pred_check_branch
        %242 = sbr.rel (%p240) target = $region20
      $region19: #{_lambda_.8} parent=11 // pred_region
        _
      $region20: #{_lambda_.8} parent=11 // pred_fallthru
        _
      // Predicated region
      $region21: #{_lambda_.8} parent=11 // pred_check
        %p243 = pneg %p117
      $region22: #{_lambda_.8} parent=11 // pred_check_branch
        %245 = sbr.rel (%p243) target = $region24
      $region23: #{_lambda_.8} parent=11 // pred_region
        _
      $region24: #{_lambda_.8} parent=11 // pred_fallthru
        _
      // Predicated region
      $region25: #{_lambda_.8} parent=11 // pred_check
        %p246 = pneg %p138
      $region26: #{_lambda_.8} parent=11 // pred_check_branch
        %248 = sbr.rel (%p246) target = $region28
      $region27: #{_lambda_.8} parent=11 // pred_region
        _
      $region28: #{_lambda_.8} parent=11 // pred_fallthru
        _
    $region12: #{_lambda_.8} parent=5 // pred_fallthru
      _
    %p249 = scmp.lt.s32.totalorder %s14, 2
    // Predicated region
    $region29: #{_lambda_.8} parent=5 // pred_check
      %p250 = pneg %p249
    $region30: #{_lambda_.8} parent=5 // pred_check_branch
      %252 = sbr.rel (%p250) target = $region32
    $region31: #{_lambda_.8} parent=5 // pred_region
      // Predicated region
      $region33: #{_lambda_.8} parent=31 // pred_check
        %p253 = pneg %p48
      $region34: #{_lambda_.8} parent=31 // pred_check_branch
        %255 = sbr.rel (%p253) target = $region36
      $region35: #{_lambda_.8} parent=31 // pred_region
        %p256 = scmp.lt.s32.totalorder %s21, 1
        %s257 = scalar_select %p256, %s21, 1
        %p258 = scmp.lt.s32.totalorder %s22, 0
        %s259 = scalar_select %p258, %s22, 0
        %s260 = sadd.s32 %s259, %s257
        %s261 = smul.addr %s260, 4
        %s262 = scalar_lea.vmem %s0, %s261
      $region36: #{_lambda_.8} parent=31 // pred_fallthru
        _
    $region32: #{_lambda_.8} parent=5 // pred_fallthru
      _
    %p263 = scmp.le.s32.totalorder 1, %s14
    %p264 = scmp.lt.s32.totalorder %s14, 3
    %p265 = pnand %p263, %p264
    %p266 = pneg %p265
    // Predicated region
    $region37: #{_lambda_.8} parent=5 // pred_check
      _
    $region38: #{_lambda_.8} parent=5 // pred_check_branch
      %268 = sbr.rel (%p265) target = $region40
    $region39: #{_lambda_.8} parent=5 // pred_region
      %s269 = ssub.s32 %s14, 1
      %p270 = scmp.lt.s32.totalorder %s23, 1
      %s271 = scalar_select %p270, %s23, 1
      %p272 = scmp.lt.s32.totalorder %s24, 0
      %s273 = scalar_select %p272, %s24, 0
      %s274 = sadd.s32 %s273, %s271
      %s275 = smul.addr %s274, 4
      %s276 = scalar_lea.vmem %s0, %s275
      %p277 = pneg %p54
      %p278 = pneg %p51
      %p279 = pneg %p75
      %p280 = pneg %p72
      %p281 = pneg %p96
      %p282 = pneg %p93
      %p283 = pneg %p117
      %p284 = pneg %p114
      %p285 = pneg %p138
      %p286 = pneg %p135
      %p287 = pneg %p166
      %p288 = pneg %p163
      %p289 = scmp.lt.s32.totalorder %s23, 1
      %s290 = scalar_select %p289, %s23, 1
      %p291 = scmp.lt.s32.totalorder %s24, 0
      %s292 = scalar_select %p291, %s24, 0
      %s293 = smul.addr %s290, 4
      %s294 = sadd.s32 %s292, %s293
      %s295 = smul.addr %s294, 4
      %s296 = scalar_lea.vmem %s5, %s295
      %p297 = pneg %p194
      %p298 = pneg %p191
      %p299 = scmp.lt.s32.totalorder %s23, 1
      %s300 = scalar_select %p299, %s23, 1
      %p301 = scmp.lt.s32.totalorder %s24, 0
      %s302 = scalar_select %p301, %s24, 0
      %s303 = smul.addr %s300, 4
      %s304 = sadd.s32 %s302, %s303
      %s305 = smul.addr %s304, 4
      %s306 = scalar_lea.vmem %s6, %s305
      %p307 = pneg %p222
      %p308 = pneg %p219
      %p309 = scmp.lt.s32.totalorder %s23, 1
      %s310 = scalar_select %p309, %s23, 1
      %p311 = scmp.lt.s32.totalorder %s24, 0
      %s312 = scalar_select %p311, %s24, 0
      %s313 = smul.addr %s310, 4
      %s314 = sadd.s32 %s312, %s313
      %s315 = smul.addr %s314, 4
      %s316 = scalar_lea.vmem %s7, %s315
      %p317 = scmp.lt.s32.totalorder %s23, 1
      %s318 = scalar_select %p317, %s23, 1
      %p319 = scmp.lt.s32.totalorder %s24, 0
      %s320 = scalar_select %p319, %s24, 0
      %s321 = sadd.s32 %s320, %s318
      %s322 = smul.addr %s321, 4
      %s323 = scalar_lea.vmem %s0, %s322
      %p324 = scmp.lt.s32.totalorder %s23, 1
      %s325 = scalar_select %p324, %s23, 1
      %p326 = scmp.lt.s32.totalorder %s24, 0
      %s327 = scalar_select %p326, %s24, 0
      %s328 = smul.addr %s325, 4
      %s329 = sadd.s32 %s327, %s328
      %s330 = smul.addr %s329, 4
      %s331 = scalar_lea.vmem %s5, %s330
      %p332 = scmp.lt.s32.totalorder %s23, 1
      %s333 = scalar_select %p332, %s23, 1
      %p334 = scmp.lt.s32.totalorder %s24, 0
      %s335 = scalar_select %p334, %s24, 0
      %s336 = smul.addr %s333, 4
      %s337 = sadd.s32 %s335, %s336
      %s338 = smul.addr %s337, 4
      %s339 = scalar_lea.vmem %s6, %s338
      %p340 = scmp.lt.s32.totalorder %s23, 1
      %s341 = scalar_select %p340, %s23, 1
      %p342 = scmp.lt.s32.totalorder %s24, 0
      %s343 = scalar_select %p342, %s24, 0
      %s344 = smul.addr %s341, 4
      %s345 = sadd.s32 %s343, %s344
      %s346 = smul.addr %s345, 4
      %s347 = scalar_lea.vmem %s7, %s346
      %v349 = vld [vmem:[%s323] sm:$0xf]
      %v350 = vunpack.c.l.bf16 %v349
      %v351 = vld [vmem:[%s1] sm:$0x1]
      %v352 = vld [vmem:[%s2] sm:$0x1]
      %vm353 = vcmask 261120
      %v354 = vsel %vm353, %v350, 0.0
      %355 = vadd.xlane.f32.xlu0 %v354
      %v356 = vpop.xlane.xlu0 %355
      %v357 = vrcp.pop 32.0
      %v358 = vmul.f32 %v356, %v357
      %v359 = vsub.f32 %v350, %v358
      %v360 = vmul.f32 %v359, %v359
      %v361 = vsel %vm353, %v360, 0.0
      %362 = vadd.xlane.f32.xlu0 %v361
      %v363 = vpop.xlane.xlu0 %362
      %v364 = vmul.f32 %v363, %v357
      %v365 = vadd.f32 %v364, 1e-05
      %v366 = vrsqrt.pop %v365
      %v367 = vmul.f32 %v359, %v366
      %v369 = vlaneseq
      %v370 = vshrl.u32 %v369, 7
      %v371 = vsub.s32 0, %v370
      %v372 = vrot.slane %v351, %v371
      %v374 = vmul.f32 %v367, %v372
      %v376 = vlaneseq
      %v377 = vshrl.u32 %v376, 7
      %v378 = vsub.s32 0, %v377
      %v379 = vrot.slane %v352, %v378
      %v381 = vadd.f32 %v374, %v379
      %v382 = vpack.c.bf16 %v381, %v381
      %v383 = vld [vmem:[%s3] sm:$0xf]
      %v384 = vld [vmem:[%s3 + $0x4] sm:$0xf]
      %v385 = vld [vmem:[%s3 + $0x8] sm:$0xf]
      %v386 = vld [vmem:[%s3 + $0xc] sm:$0xf]
      %v387 = vld [vmem:[%s4] sm:$0x1]
      %v389 = vlaneseq
      %v390 = vshrl.u32 %v389, 7
      %v391 = vsub.s32 0, %v390
      %v392 = vrot.slane %v387, %v391
      %v398 = vunpack.c.l.b16 %v383
      %v399 = vunpack.c.l.b16 %v384
      %v400 = vunpack.c.l.b16 %v385
      %v401 = vunpack.c.l.b16 %v386
      %v402 = vpack.c.b16 %v399, %v398
      %v403 = vpack.c.b16 %v401, %v400
      %v407 = vsel %vm353, %v382, 0
      %409 = vmatprep.subr.bf16.mxu0 0
      %410 = vmatpush1.bf16.msra.mxu0 %v402
      %411 = vmatprep.subr.bf16.mxu0 0
      %412 = vmatpush1.bf16.msra.mxu0 %v403
      %413 = vmatprep.subr.bf16.mxu0 0
      %414 = vmatpush1.bf16.msra.mxu0 0
      %415 = vmatprep.subr.bf16.mxu0 0
      %416 = vmatpush1.bf16.msra.mxu0 0
      %417 = vmatprep.subr.bf16.mxu0 0
      %418 = vmatpush1.bf16.msra.mxu0 0
      %419 = vmatprep.subr.bf16.mxu0 0
      %420 = vmatpush1.bf16.msra.mxu0 0
      %421 = vmatprep.subr.bf16.mxu0 0
      %422 = vmatpush1.bf16.msra.mxu0 0
      %423 = vmatprep.subr.bf16.mxu0 0
      %424 = vmatpush1.bf16.msra.mxu0 0
      %425 = vmatprep.subr.bf16.mxu0 0
      %426 = vmatpush1.bf16.msra.mxu0 0
      %427 = vmatprep.subr.bf16.mxu0 0
      %428 = vmatpush1.bf16.msra.mxu0 0
      %429 = vmatprep.subr.bf16.mxu0 0
      %430 = vmatpush1.bf16.msra.mxu0 0
      %431 = vmatprep.subr.bf16.mxu0 0
      %432 = vmatpush1.bf16.msra.mxu0 0
      %433 = vmatprep.subr.bf16.mxu0 0
      %434 = vmatpush1.bf16.msra.mxu0 0
      %435 = vmatprep.subr.bf16.mxu0 0
      %436 = vmatpush1.bf16.msra.mxu0 0
      %437 = vmatprep.subr.bf16.mxu0 0
      %438 = vmatpush1.bf16.msra.mxu0 0
      %439 = vmatprep.subr.bf16.mxu0 0
      %440 = vmatpush1.bf16.msra.mxu0 0
      %441 = vmatprep.mubr.bf16.mxu0 0
      %442 = vmatmul.mubr.bf16.gmra.mrb[0].mxu0 %v407
      %v443 = vpop.f32.mrb[0].mxu0
      %v444 = vadd.f32 %v392, %v443
      %v445 = vpop.f32.mrb[0].mxu0
      %v446 = vpop.f32.mrb[0].mxu0
      %v447 = vpop.f32.mrb[0].mxu0
      %448 = vdwg.mxu0
      %449 = vxpose.xlu0.b32.start [1/16] %v444, 128
      %450 = vxpose.xlu0.b32.cont [2/16] 0.0, 128
      %451 = vxpose.xlu0.b32.cont [3/16] 0.0, 128
      %452 = vxpose.xlu0.b32.cont [4/16] 0.0, 128
      %453 = vxpose.xlu0.b32.cont [5/16] 0.0, 128
      %454 = vxpose.xlu0.b32.cont [6/16] 0.0, 128
      %455 = vxpose.xlu0.b32.cont [7/16] 0.0, 128
      %456 = vxpose.xlu0.b32.cont [8/16] 0.0, 128
      %457 = vxpose.xlu0.b32.cont [9/16] 0.0, 128
      %458 = vxpose.xlu0.b32.cont [10/16] 0.0, 128
      %459 = vxpose.xlu0.b32.cont [11/16] 0.0, 128
      %460 = vxpose.xlu0.b32.cont [12/16] 0.0, 128
      %461 = vxpose.xlu0.b32.cont [13/16] 0.0, 128
      %462 = vxpose.xlu0.b32.cont [14/16] 0.0, 128
      %463 = vxpose.xlu0.b32.cont [15/16] 0.0, 128
      %464 = vxpose.xlu0.b32.end [16/16] 0.0, 128
      %v465 = vpop.trf.xlu0
      %v466 = vpop.trf.xlu0
      %v467 = vpop.trf.xlu0
      %v468 = vpop.trf.xlu0
      %v469 = vpop.trf.xlu0
      %v470 = vpop.trf.xlu0
      %v471 = vpop.trf.xlu0
      %v472 = vpop.trf.xlu0
      %v473 = vpop.trf.xlu0
      %v474 = vpop.trf.xlu0
      %v475 = vpop.trf.xlu0
      %v476 = vpop.trf.xlu0
      %v477 = vpop.trf.xlu0
      %v478 = vpop.trf.xlu0
      %v479 = vpop.trf.xlu0
      %v480 = vpop.trf.xlu0
      %481 = vxpose.xlu0.b32.start [1/16] %v465, 128
      %482 = vxpose.xlu0.b32.cont [2/16] 0.0, 128
      %483 = vxpose.xlu0.b32.cont [3/16] 0.0, 128
      %484 = vxpose.xlu0.b32.cont [4/16] 0.0, 128
      %485 = vxpose.xlu0.b32.cont [5/16] 0.0, 128
      %486 = vxpose.xlu0.b32.cont [6/16] 0.0, 128
      %487 = vxpose.xlu0.b32.cont [7/16] 0.0, 128
      %488 = vxpose.xlu0.b32.cont [8/16] 0.0, 128
      %489 = vxpose.xlu0.b32.cont [9/16] 0.0, 128
      %490 = vxpose.xlu0.b32.cont [10/16] 0.0, 128
      %491 = vxpose.xlu0.b32.cont [11/16] 0.0, 128
      %492 = vxpose.xlu0.b32.cont [12/16] 0.0, 128
      %493 = vxpose.xlu0.b32.cont [13/16] 0.0, 128
      %494 = vxpose.xlu0.b32.cont [14/16] 0.0, 128
      %495 = vxpose.xlu0.b32.cont [15/16] 0.0, 128
      %496 = vxpose.xlu0.b32.end [16/16] 0.0, 128
      %v497 = vpop.trf.xlu0
      %v498 = vpop.trf.xlu0
      %v499 = vpop.trf.xlu0
      %v500 = vpop.trf.xlu0
      %v501 = vpop.trf.xlu0
      %v502 = vpop.trf.xlu0
      %v503 = vpop.trf.xlu0
      %v504 = vpop.trf.xlu0
      %v505 = vpop.trf.xlu0
      %v506 = vpop.trf.xlu0
      %v507 = vpop.trf.xlu0
      %v508 = vpop.trf.xlu0
      %v509 = vpop.trf.xlu0
      %v510 = vpop.trf.xlu0
      %v511 = vpop.trf.xlu0
      %v512 = vpop.trf.xlu0
      %513 = vxpose.xlu0.b32.start [1/16] %v466, 128
      %514 = vxpose.xlu0.b32.cont [2/16] 0.0, 128
      %515 = vxpose.xlu0.b32.cont [3/16] 0.0, 128
      %516 = vxpose.xlu0.b32.cont [4/16] 0.0, 128
      %517 = vxpose.xlu0.b32.cont [5/16] 0.0, 128
      %518 = vxpose.xlu0.b32.cont [6/16] 0.0, 128
      %519 = vxpose.xlu0.b32.cont [7/16] 0.0, 128
      %520 = vxpose.xlu0.b32.cont [8/16] 0.0, 128
      %521 = vxpose.xlu0.b32.cont [9/16] 0.0, 128
      %522 = vxpose.xlu0.b32.cont [10/16] 0.0, 128
      %523 = vxpose.xlu0.b32.cont [11/16] 0.0, 128
      %524 = vxpose.xlu0.b32.cont [12/16] 0.0, 128
      %525 = vxpose.xlu0.b32.cont [13/16] 0.0, 128
      %526 = vxpose.xlu0.b32.cont [14/16] 0.0, 128
      %527 = vxpose.xlu0.b32.cont [15/16] 0.0, 128
      %528 = vxpose.xlu0.b32.end [16/16] 0.0, 128
      %v529 = vpop.trf.xlu0
      %v530 = vpop.trf.xlu0
      %v531 = vpop.trf.xlu0
      %v532 = vpop.trf.xlu0
      %v533 = vpop.trf.xlu0
      %v534 = vpop.trf.xlu0
      %v535 = vpop.trf.xlu0
      %v536 = vpop.trf.xlu0
      %v537 = vpop.trf.xlu0
      %v538 = vpop.trf.xlu0
      %v539 = vpop.trf.xlu0
      %v540 = vpop.trf.xlu0
      %v541 = vpop.trf.xlu0
      %v542 = vpop.trf.xlu0
      %v543 = vpop.trf.xlu0
      %v544 = vpop.trf.xlu0
      %545 = vxpose.xlu0.b32.start [1/16] %v467, 128
      %546 = vxpose.xlu0.b32.cont [2/16] 0.0, 128
      %547 = vxpose.xlu0.b32.cont [3/16] 0.0, 128
      %548 = vxpose.xlu0.b32.cont [4/16] 0.0, 128
      %549 = vxpose.xlu0.b32.cont [5/16] 0.0, 128
      %550 = vxpose.xlu0.b32.cont [6/16] 0.0, 128
      %551 = vxpose.xlu0.b32.cont [7/16] 0.0, 128
      %552 = vxpose.xlu0.b32.cont [8/16] 0.0, 128
      %553 = vxpose.xlu0.b32.cont [9/16] 0.0, 128
      %554 = vxpose.xlu0.b32.cont [10/16] 0.0, 128
      %555 = vxpose.xlu0.b32.cont [11/16] 0.0, 128
      %556 = vxpose.xlu0.b32.cont [12/16] 0.0, 128
      %557 = vxpose.xlu0.b32.cont [13/16] 0.0, 128
      %558 = vxpose.xlu0.b32.cont [14/16] 0.0, 128
      %559 = vxpose.xlu0.b32.cont [15/16] 0.0, 128
      %560 = vxpose.xlu0.b32.end [16/16] 0.0, 128
      %v561 = vpop.trf.xlu0
      %v562 = vpop.trf.xlu0
      %v563 = vpop.trf.xlu0
      %v564 = vpop.trf.xlu0
      %v565 = vpop.trf.xlu0
      %v566 = vpop.trf.xlu0
      %v567 = vpop.trf.xlu0
      %v568 = vpop.trf.xlu0
      %v569 = vpop.trf.xlu0
      %v570 = vpop.trf.xlu0
      %v571 = vpop.trf.xlu0
      %v572 = vpop.trf.xlu0
      %v573 = vpop.trf.xlu0
      %v574 = vpop.trf.xlu0
      %v575 = vpop.trf.xlu0
      %v576 = vpop.trf.xlu0
      %577 = vxpose.xlu0.b32.start [1/16] %v468, 128
      %578 = vxpose.xlu0.b32.cont [2/16] 0.0, 128
      %579 = vxpose.xlu0.b32.cont [3/16] 0.0, 128
      %580 = vxpose.xlu0.b32.cont [4/16] 0.0, 128
      %581 = vxpose.xlu0.b32.cont [5/16] 0.0, 128
      %582 = vxpose.xlu0.b32.cont [6/16] 0.0, 128
      %583 = vxpose.xlu0.b32.cont [7/16] 0.0, 128
      %584 = vxpose.xlu0.b32.cont [8/16] 0.0, 128
      %585 = vxpose.xlu0.b32.cont [9/16] 0.0, 128
      %586 = vxpose.xlu0.b32.cont [10/16] 0.0, 128
      %587 = vxpose.xlu0.b32.cont [11/16] 0.0, 128
      %588 = vxpose.xlu0.b32.cont [12/16] 0.0, 128
      %589 = vxpose.xlu0.b32.cont [13/16] 0.0, 128
      %590 = vxpose.xlu0.b32.cont [14/16] 0.0, 128
      %591 = vxpose.xlu0.b32.cont [15/16] 0.0, 128
      %592 = vxpose.xlu0.b32.end [16/16] 0.0, 128
      %v593 = vpop.trf.xlu0
      %v594 = vpop.trf.xlu0
      %v595 = vpop.trf.xlu0
      %v596 = vpop.trf.xlu0
      %v597 = vpop.trf.xlu0
      %v598 = vpop.trf.xlu0
      %v599 = vpop.trf.xlu0
      %v600 = vpop.trf.xlu0
      %v601 = vpop.trf.xlu0
      %v602 = vpop.trf.xlu0
      %v603 = vpop.trf.xlu0
      %v604 = vpop.trf.xlu0
      %v605 = vpop.trf.xlu0
      %v606 = vpop.trf.xlu0
      %v607 = vpop.trf.xlu0
      %v608 = vpop.trf.xlu0
      %v609 = vpack.c.bf16 %v497, %v497
      %v610 = vpack.c.bf16 %v529, %v529
      %v611 = vpack.c.bf16 %v561, %v561
      %v612 = vpack.c.bf16 %v593, %v593
      %vm613 = vcmask 60416
      %614 = vst.msk [vmem:[%s331] sm:$0xf] %vm613, %v609
      %615 = vst.msk [vmem:[%s331 + $0x4] sm:$0xf] %vm613, %v610
      %616 = vst.msk [vmem:[%s331 + $0x8] sm:$0xf] %vm613, %v611
      %617 = vst.msk [vmem:[%s331 + $0xc] sm:$0xf] %vm613, %v612
      %618 = vxpose.xlu0.b32.start [1/16] %v469, 128
      %619 = vxpose.xlu0.b32.cont [2/16] 0.0, 128
      %620 = vxpose.xlu0.b32.cont [3/16] 0.0, 128
      %621 = vxpose.xlu0.b32.cont [4/16] 0.0, 128
      %622 = vxpose.xlu0.b32.cont [5/16] 0.0, 128
      %623 = vxpose.xlu0.b32.cont [6/16] 0.0, 128
      %624 = vxpose.xlu0.b32.cont [7/16] 0.0, 128
      %625 = vxpose.xlu0.b32.cont [8/16] 0.0, 128
      %626 = vxpose.xlu0.b32.cont [9/16] 0.0, 128
      %627 = vxpose.xlu0.b32.cont [10/16] 0.0, 128
      %628 = vxpose.xlu0.b32.cont [11/16] 0.0, 128
      %629 = vxpose.xlu0.b32.cont [12/16] 0.0, 128
      %630 = vxpose.xlu0.b32.cont [13/16] 0.0, 128
      %631 = vxpose.xlu0.b32.cont [14/16] 0.0, 128
      %632 = vxpose.xlu0.b32.cont [15/16] 0.0, 128
      %633 = vxpose.xlu0.b32.end [16/16] 0.0, 128
      %v634 = vpop.trf.xlu0
      %v635 = vpop.trf.xlu0
      %v636 = vpop.trf.xlu0
      %v637 = vpop.trf.xlu0
      %v638 = vpop.trf.xlu0
      %v639 = vpop.trf.xlu0
      %v640 = vpop.trf.xlu0
      %v641 = vpop.trf.xlu0
      %v642 = vpop.trf.xlu0
      %v643 = vpop.trf.xlu0
      %v644 = vpop.trf.xlu0
      %v645 = vpop.trf.xlu0
      %v646 = vpop.trf.xlu0
      %v647 = vpop.trf.xlu0
      %v648 = vpop.trf.xlu0
      %v649 = vpop.trf.xlu0
      %650 = vxpose.xlu0.b32.start [1/16] %v470, 128
      %651 = vxpose.xlu0.b32.cont [2/16] 0.0, 128
      %652 = vxpose.xlu0.b32.cont [3/16] 0.0, 128
      %653 = vxpose.xlu0.b32.cont [4/16] 0.0, 128
      %654 = vxpose.xlu0.b32.cont [5/16] 0.0, 128
      %655 = vxpose.xlu0.b32.cont [6/16] 0.0, 128
      %656 = vxpose.xlu0.b32.cont [7/16] 0.0, 128
      %657 = vxpose.xlu0.b32.cont [8/16] 0.0, 128
      %658 = vxpose.xlu0.b32.cont [9/16] 0.0, 128
      %659 = vxpose.xlu0.b32.cont [10/16] 0.0, 128
      %660 = vxpose.xlu0.b32.cont [11/16] 0.0, 128
      %661 = vxpose.xlu0.b32.cont [12/16] 0.0, 128
      %662 = vxpose.xlu0.b32.cont [13/16] 0.0, 128
      %663 = vxpose.xlu0.b32.cont [14/16] 0.0, 128
      %664 = vxpose.xlu0.b32.cont [15/16] 0.0, 128
      %665 = vxpose.xlu0.b32.end [16/16] 0.0, 128
      %v666 = vpop.trf.xlu0
      %v667 = vpop.trf.xlu0
      %v668 = vpop.trf.xlu0
      %v669 = vpop.trf.xlu0
      %v670 = vpop.trf.xlu0
      %v671 = vpop.trf.xlu0
      %v672 = vpop.trf.xlu0
      %v673 = vpop.trf.xlu0
      %v674 = vpop.trf.xlu0
      %v675 = vpop.trf.xlu0
      %v676 = vpop.trf.xlu0
      %v677 = vpop.trf.xlu0
      %v678 = vpop.trf.xlu0
      %v679 = vpop.trf.xlu0
      %v680 = vpop.trf.xlu0
      %v681 = vpop.trf.xlu0
      %682 = vxpose.xlu0.b32.start [1/16] %v471, 128
      %683 = vxpose.xlu0.b32.cont [2/16] 0.0, 128
      %684 = vxpose.xlu0.b32.cont [3/16] 0.0, 128
      %685 = vxpose.xlu0.b32.cont [4/16] 0.0, 128
      %686 = vxpose.xlu0.b32.cont [5/16] 0.0, 128
      %687 = vxpose.xlu0.b32.cont [6/16] 0.0, 128
      %688 = vxpose.xlu0.b32.cont [7/16] 0.0, 128
      %689 = vxpose.xlu0.b32.cont [8/16] 0.0, 128
      %690 = vxpose.xlu0.b32.cont [9/16] 0.0, 128
      %691 = vxpose.xlu0.b32.cont [10/16] 0.0, 128
      %692 = vxpose.xlu0.b32.cont [11/16] 0.0, 128
      %693 = vxpose.xlu0.b32.cont [12/16] 0.0, 128
      %694 = vxpose.xlu0.b32.cont [13/16] 0.0, 128
      %695 = vxpose.xlu0.b32.cont [14/16] 0.0, 128
      %696 = vxpose.xlu0.b32.cont [15/16] 0.0, 128
      %697 = vxpose.xlu0.b32.end [16/16] 0.0, 128
      %v698 = vpop.trf.xlu0
      %v699 = vpop.trf.xlu0
      %v700 = vpop.trf.xlu0
      %v701 = vpop.trf.xlu0
      %v702 = vpop.trf.xlu0
      %v703 = vpop.trf.xlu0
      %v704 = vpop.trf.xlu0
      %v705 = vpop.trf.xlu0
      %v706 = vpop.trf.xlu0
      %v707 = vpop.trf.xlu0
      %v708 = vpop.trf.xlu0
      %v709 = vpop.trf.xlu0
      %v710 = vpop.trf.xlu0
      %v711 = vpop.trf.xlu0
      %v712 = vpop.trf.xlu0
      %v713 = vpop.trf.xlu0
      %714 = vxpose.xlu0.b32.start [1/16] %v472, 128
      %715 = vxpose.xlu0.b32.cont [2/16] 0.0, 128
      %716 = vxpose.xlu0.b32.cont [3/16] 0.0, 128
      %717 = vxpose.xlu0.b32.cont [4/16] 0.0, 128
      %718 = vxpose.xlu0.b32.cont [5/16] 0.0, 128
      %719 = vxpose.xlu0.b32.cont [6/16] 0.0, 128
      %720 = vxpose.xlu0.b32.cont [7/16] 0.0, 128
      %721 = vxpose.xlu0.b32.cont [8/16] 0.0, 128
      %722 = vxpose.xlu0.b32.cont [9/16] 0.0, 128
      %723 = vxpose.xlu0.b32.cont [10/16] 0.0, 128
      %724 = vxpose.xlu0.b32.cont [11/16] 0.0, 128
      %725 = vxpose.xlu0.b32.cont [12/16] 0.0, 128
      %726 = vxpose.xlu0.b32.cont [13/16] 0.0, 128
      %727 = vxpose.xlu0.b32.cont [14/16] 0.0, 128
      %728 = vxpose.xlu0.b32.cont [15/16] 0.0, 128
      %729 = vxpose.xlu0.b32.end [16/16] 0.0, 128
      %v730 = vpop.trf.xlu0
      %v731 = vpop.trf.xlu0
      %v732 = vpop.trf.xlu0
      %v733 = vpop.trf.xlu0
      %v734 = vpop.trf.xlu0
      %v735 = vpop.trf.xlu0
      %v736 = vpop.trf.xlu0
      %v737 = vpop.trf.xlu0
      %v738 = vpop.trf.xlu0
      %v739 = vpop.trf.xlu0
      %v740 = vpop.trf.xlu0
      %v741 = vpop.trf.xlu0
      %v742 = vpop.trf.xlu0
      %v743 = vpop.trf.xlu0
      %v744 = vpop.trf.xlu0
      %v745 = vpop.trf.xlu0
      %v746 = vpack.c.bf16 %v634, %v634
      %v747 = vpack.c.bf16 %v666, %v666
      %v748 = vpack.c.bf16 %v698, %v698
      %v749 = vpack.c.bf16 %v730, %v730
      %750 = vst.msk [vmem:[%s339] sm:$0xf] %vm613, %v746
      %751 = vst.msk [vmem:[%s339 + $0x4] sm:$0xf] %vm613, %v747
      %752 = vst.msk [vmem:[%s339 + $0x8] sm:$0xf] %vm613, %v748
      %753 = vst.msk [vmem:[%s339 + $0xc] sm:$0xf] %vm613, %v749
      %754 = vxpose.xlu0.b32.start [1/16] %v473, 128
      %755 = vxpose.xlu0.b32.cont [2/16] 0.0, 128
      %756 = vxpose.xlu0.b32.cont [3/16] 0.0, 128
      %757 = vxpose.xlu0.b32.cont [4/16] 0.0, 128
      %758 = vxpose.xlu0.b32.cont [5/16] 0.0, 128
      %759 = vxpose.xlu0.b32.cont [6/16] 0.0, 128
      %760 = vxpose.xlu0.b32.cont [7/16] 0.0, 128
      %761 = vxpose.xlu0.b32.cont [8/16] 0.0, 128
      %762 = vxpose.xlu0.b32.cont [9/16] 0.0, 128
      %763 = vxpose.xlu0.b32.cont [10/16] 0.0, 128
      %764 = vxpose.xlu0.b32.cont [11/16] 0.0, 128
      %765 = vxpose.xlu0.b32.cont [12/16] 0.0, 128
      %766 = vxpose.xlu0.b32.cont [13/16] 0.0, 128
      %767 = vxpose.xlu0.b32.cont [14/16] 0.0, 128
      %768 = vxpose.xlu0.b32.cont [15/16] 0.0, 128
      %769 = vxpose.xlu0.b32.end [16/16] 0.0, 128
      %v770 = vpop.trf.xlu0
      %v771 = vpop.trf.xlu0
      %v772 = vpop.trf.xlu0
      %v773 = vpop.trf.xlu0
      %v774 = vpop.trf.xlu0
      %v775 = vpop.trf.xlu0
      %v776 = vpop.trf.xlu0
      %v777 = vpop.trf.xlu0
      %v778 = vpop.trf.xlu0
      %v779 = vpop.trf.xlu0
      %v780 = vpop.trf.xlu0
      %v781 = vpop.trf.xlu0
      %v782 = vpop.trf.xlu0
      %v783 = vpop.trf.xlu0
      %v784 = vpop.trf.xlu0
      %v785 = vpop.trf.xlu0
      %786 = vxpose.xlu0.b32.start [1/16] %v474, 128
      %787 = vxpose.xlu0.b32.cont [2/16] 0.0, 128
      %788 = vxpose.xlu0.b32.cont [3/16] 0.0, 128
      %789 = vxpose.xlu0.b32.cont [4/16] 0.0, 128
      %790 = vxpose.xlu0.b32.cont [5/16] 0.0, 128
      %791 = vxpose.xlu0.b32.cont [6/16] 0.0, 128
      %792 = vxpose.xlu0.b32.cont [7/16] 0.0, 128
      %793 = vxpose.xlu0.b32.cont [8/16] 0.0, 128
      %794 = vxpose.xlu0.b32.cont [9/16] 0.0, 128
      %795 = vxpose.xlu0.b32.cont [10/16] 0.0, 128
      %796 = vxpose.xlu0.b32.cont [11/16] 0.0, 128
      %797 = vxpose.xlu0.b32.cont [12/16] 0.0, 128
      %798 = vxpose.xlu0.b32.cont [13/16] 0.0, 128
      %799 = vxpose.xlu0.b32.cont [14/16] 0.0, 128
      %800 = vxpose.xlu0.b32.cont [15/16] 0.0, 128
      %801 = vxpose.xlu0.b32.end [16/16] 0.0, 128
      %v802 = vpop.trf.xlu0
      %v803 = vpop.trf.xlu0
      %v804 = vpop.trf.xlu0
      %v805 = vpop.trf.xlu0
      %v806 = vpop.trf.xlu0
      %v807 = vpop.trf.xlu0
      %v808 = vpop.trf.xlu0
      %v809 = vpop.trf.xlu0
      %v810 = vpop.trf.xlu0
      %v811 = vpop.trf.xlu0
      %v812 = vpop.trf.xlu0
      %v813 = vpop.trf.xlu0
      %v814 = vpop.trf.xlu0
      %v815 = vpop.trf.xlu0
      %v816 = vpop.trf.xlu0
      %v817 = vpop.trf.xlu0
      %818 = vxpose.xlu0.b32.start [1/16] %v475, 128
      %819 = vxpose.xlu0.b32.cont [2/16] 0.0, 128
      %820 = vxpose.xlu0.b32.cont [3/16] 0.0, 128
      %821 = vxpose.xlu0.b32.cont [4/16] 0.0, 128
      %822 = vxpose.xlu0.b32.cont [5/16] 0.0, 128
      %823 = vxpose.xlu0.b32.cont [6/16] 0.0, 128
      %824 = vxpose.xlu0.b32.cont [7/16] 0.0, 128
      %825 = vxpose.xlu0.b32.cont [8/16] 0.0, 128
      %826 = vxpose.xlu0.b32.cont [9/16] 0.0, 128
      %827 = vxpose.xlu0.b32.cont [10/16] 0.0, 128
      %828 = vxpose.xlu0.b32.cont [11/16] 0.0, 128
      %829 = vxpose.xlu0.b32.cont [12/16] 0.0, 128
      %830 = vxpose.xlu0.b32.cont [13/16] 0.0, 128
      %831 = vxpose.xlu0.b32.cont [14/16] 0.0, 128
      %832 = vxpose.xlu0.b32.cont [15/16] 0.0, 128
      %833 = vxpose.xlu0.b32.end [16/16] 0.0, 128
      %v834 = vpop.trf.xlu0
      %v835 = vpop.trf.xlu0
      %v836 = vpop.trf.xlu0
      %v837 = vpop.trf.xlu0
      %v838 = vpop.trf.xlu0
      %v839 = vpop.trf.xlu0
      %v840 = vpop.trf.xlu0
      %v841 = vpop.trf.xlu0
      %v842 = vpop.trf.xlu0
      %v843 = vpop.trf.xlu0
      %v844 = vpop.trf.xlu0
      %v845 = vpop.trf.xlu0
      %v846 = vpop.trf.xlu0
      %v847 = vpop.trf.xlu0
      %v848 = vpop.trf.xlu0
      %v849 = vpop.trf.xlu0
      %850 = vxpose.xlu0.b32.start [1/16] %v476, 128
      %851 = vxpose.xlu0.b32.cont [2/16] 0.0, 128
      %852 = vxpose.xlu0.b32.cont [3/16] 0.0, 128
      %853 = vxpose.xlu0.b32.cont [4/16] 0.0, 128
      %854 = vxpose.xlu0.b32.cont [5/16] 0.0, 128
      %855 = vxpose.xlu0.b32.cont [6/16] 0.0, 128
      %856 = vxpose.xlu0.b32.cont [7/16] 0.0, 128
      %857 = vxpose.xlu0.b32.cont [8/16] 0.0, 128
      %858 = vxpose.xlu0.b32.cont [9/16] 0.0, 128
      %859 = vxpose.xlu0.b32.cont [10/16] 0.0, 128
      %860 = vxpose.xlu0.b32.cont [11/16] 0.0, 128
      %861 = vxpose.xlu0.b32.cont [12/16] 0.0, 128
      %862 = vxpose.xlu0.b32.cont [13/16] 0.0, 128
      %863 = vxpose.xlu0.b32.cont [14/16] 0.0, 128
      %864 = vxpose.xlu0.b32.cont [15/16] 0.0, 128
      %865 = vxpose.xlu0.b32.end [16/16] 0.0, 128
      %v866 = vpop.trf.xlu0
      %v867 = vpop.trf.xlu0
      %v868 = vpop.trf.xlu0
      %v869 = vpop.trf.xlu0
      %v870 = vpop.trf.xlu0
      %v871 = vpop.trf.xlu0
      %v872 = vpop.trf.xlu0
      %v873 = vpop.trf.xlu0
      %v874 = vpop.trf.xlu0
      %v875 = vpop.trf.xlu0
      %v876 = vpop.trf.xlu0
      %v877 = vpop.trf.xlu0
      %v878 = vpop.trf.xlu0
      %v879 = vpop.trf.xlu0
      %v880 = vpop.trf.xlu0
      %v881 = vpop.trf.xlu0
      %v882 = vpack.c.bf16 %v770, %v770
      %v883 = vpack.c.bf16 %v802, %v802
      %v884 = vpack.c.bf16 %v834, %v834
      %v885 = vpack.c.bf16 %v866, %v866
      %886 = vst.msk [vmem:[%s347] sm:$0xf] %vm613, %v882
      %887 = vst.msk [vmem:[%s347 + $0x4] sm:$0xf] %vm613, %v883
      %888 = vst.msk [vmem:[%s347 + $0x8] sm:$0xf] %vm613, %v884
      %889 = vst.msk [vmem:[%s347 + $0xc] sm:$0xf] %vm613, %v885
      %p890 = scmp.lt.s32.totalorder %s23, 1
      %s891 = scalar_select %p890, %s23, 1
      %p892 = scmp.lt.s32.totalorder %s24, 0
      %s893 = scalar_select %p892, %s24, 0
      %s894 = smul.addr %s891, 4
      %s895 = sadd.s32 %s893, %s894
      %s896 = smul.addr %s895, 4
      %s897 = scalar_lea.vmem %s5, %s896
      %p898 = scmp.lt.s32.totalorder %s23, 1
      %s899 = scalar_select %p898, %s23, 1
      %p900 = scmp.lt.s32.totalorder %s24, 0
      %s901 = scalar_select %p900, %s24, 0
      %s902 = smul.addr %s899, 4
      %s903 = sadd.s32 %s901, %s902
      %s904 = smul.addr %s903, 4
      %s905 = scalar_lea.vmem %s6, %s904
      %p906 = scmp.lt.s32.totalorder %s23, 1
      %s907 = scalar_select %p906, %s23, 1
      %p908 = scmp.lt.s32.totalorder %s24, 0
      %s909 = scalar_select %p908, %s24, 0
      %s910 = smul.addr %s907, 4
      %s911 = sadd.s32 %s909, %s910
      %s912 = smul.addr %s911, 4
      %s913 = scalar_lea.vmem %s7, %s912
      // Predicated region
      $region41: #{_lambda_.8} parent=39 // pred_check
        %p914 = pneg %p163
      $region42: #{_lambda_.8} parent=39 // pred_check_branch
        %916 = sbr.rel (%p914) target = $region44
      $region43: #{_lambda_.8} parent=39 // pred_region
        _
      $region44: #{_lambda_.8} parent=39 // pred_fallthru
        _
      // Predicated region
      $region45: #{_lambda_.8} parent=39 // pred_check
        %p917 = pneg %p191
      $region46: #{_lambda_.8} parent=39 // pred_check_branch
        %919 = sbr.rel (%p917) target = $region48
      $region47: #{_lambda_.8} parent=39 // pred_region
        _
      $region48: #{_lambda_.8} parent=39 // pred_fallthru
        _
      // Predicated region
      $region49: #{_lambda_.8} parent=39 // pred_check
        %p920 = pneg %p219
      $region50: #{_lambda_.8} parent=39 // pred_check_branch
        %922 = sbr.rel (%p920) target = $region52
      $region51: #{_lambda_.8} parent=39 // pred_region
        _
      $region52: #{_lambda_.8} parent=39 // pred_fallthru
        _
    $region40: #{_lambda_.8} parent=5 // pred_fallthru
      _
    %p923 = scmp.le.s32.totalorder 2, %s14
    // Predicated region
    $region53: #{_lambda_.8} parent=5 // pred_check
      %p924 = pneg %p923
    $region54: #{_lambda_.8} parent=5 // pred_check_branch
      %926 = sbr.rel (%p924) target = $region56
    $region55: #{_lambda_.8} parent=5 // pred_region
      %s927 = ssub.s32 %s14, 2
      // Predicated region
      $region57: #{_lambda_.8} parent=55 // pred_check
        %p928 = pneg %p169
      $region58: #{_lambda_.8} parent=55 // pred_check_branch
        %930 = sbr.rel (%p928) target = $region60
      $region59: #{_lambda_.8} parent=55 // pred_region
        %p931 = scmp.lt.s32.totalorder %s25, 1
        %s932 = scalar_select %p931, %s25, 1
        %p933 = scmp.lt.s32.totalorder %s26, 0
        %s934 = scalar_select %p933, %s26, 0
        %s935 = smul.addr %s932, 4
        %s936 = sadd.s32 %s934, %s935
        %s937 = smul.addr %s936, 4
        %s938 = scalar_lea.vmem %s5, %s937
      $region60: #{_lambda_.8} parent=55 // pred_fallthru
        _
      // Predicated region
      $region61: #{_lambda_.8} parent=55 // pred_check
        %p939 = pneg %p197
      $region62: #{_lambda_.8} parent=55 // pred_check_branch
        %941 = sbr.rel (%p939) target = $region64
      $region63: #{_lambda_.8} parent=55 // pred_region
        %p942 = scmp.lt.s32.totalorder %s25, 1
        %s943 = scalar_select %p942, %s25, 1
        %p944 = scmp.lt.s32.totalorder %s26, 0
        %s945 = scalar_select %p944, %s26, 0
        %s946 = smul.addr %s943, 4
        %s947 = sadd.s32 %s945, %s946
        %s948 = smul.addr %s947, 4
        %s949 = scalar_lea.vmem %s6, %s948
      $region64: #{_lambda_.8} parent=55 // pred_fallthru
        _
      // Predicated region
      $region65: #{_lambda_.8} parent=55 // pred_check
        %p950 = pneg %p225
      $region66: #{_lambda_.8} parent=55 // pred_check_branch
        %952 = sbr.rel (%p950) target = $region68
      $region67: #{_lambda_.8} parent=55 // pred_region
        %p953 = scmp.lt.s32.totalorder %s25, 1
        %s954 = scalar_select %p953, %s25, 1
        %p955 = scmp.lt.s32.totalorder %s26, 0
        %s956 = scalar_select %p955, %s26, 0
        %s957 = smul.addr %s954, 4
        %s958 = sadd.s32 %s956, %s957
        %s959 = smul.addr %s958, 4
        %s960 = scalar_lea.vmem %s7, %s959
      $region68: #{_lambda_.8} parent=55 // pred_fallthru
        _
    $region56: #{_lambda_.8} parent=5 // pred_fallthru
      _
  $region6: #{_lambda_.8} parent=0 // loop_footer
    %s18 = sadd.s32 1, %s14
  $region7: #{_lambda_.8} parent=0 // loop_footer_branch
    %13 = sbr.rel target = $region3
  $region8: #{_lambda_.8} parent=0 // loop_exit
    _

// kernel: _lambda_.9
$region0: #{_lambda_.9}
  #allocation0 [shape = 'u32[]', space=smem, size = 0x4, offset = 0x4, fixed_abs, tag = 'smem constant byte address 0x4 - core index']
  #allocation1 [shape = 'u32[144,128]{1,0:T(1,128)}', space=vmem, size = 0x12000, scoped, tag = 'internal scratch']
  #allocation2 [shape = 'f32[8,1]{1,0:T(8,128)}', space=vmem, size = 0x1000, scoped, tag = 'scratch operand']
  #allocation3 [shape = 'f32[8,1]{1,0:T(8,128)}', space=vmem, size = 0x1000, scoped, tag = 'scratch operand']
  #allocation4 [shape = 'f32[8,8]{1,0:T(8,128)}', space=vmem, size = 0x1000, scoped, tag = 'scratch operand']
  %s0 = inlined_call_operand.vmem [shape: bf16[2,4,8,8], index: 0, kind: input, shape index: {}]
  %s1 = inlined_call_operand.vmem [shape: bf16[2,4,8,8], index: 1, kind: input, shape index: {}]
  %s2 = inlined_call_operand.vmem [shape: bf16[2,4,8,8], index: 2, kind: input, shape index: {}]
  %s3 = inlined_call_operand.vmem [shape: bf16[2,4,8,8], index: 3, kind: output, shape index: {}]
  %s4 = sld [smem:[#allocation0]]
  $region57: #{_lambda_.9} parent=0
    _
  %s6 = ssub.s32 1, %s4
  %s7 = scalar_select 0, %s6, %s4
  loop: start=0, step=1, limit=10
  $region2: #{_lambda_.9} parent=0 // loop_pre_header
    _
  $region3: #{_lambda_.9} parent=0 // loop_header
    %s9 = sphi 0, %s13
    %p10 = scmp.ge.s32.totalorder %s9, 10
    %s16 = sphi 0, %s42
    %s17 = sphi 0, %s38
    %s18 = sphi 0, %s34
    %s19 = sphi 0, %s30
    %s20 = sphi 0, %s16
    %s21 = sphi 0, %s17
    %s22 = sphi 0, %s18
    %s23 = sphi 0, %s19
    %s24 = sphi 0, %s20
    %s25 = sphi 0, %s21
    %s26 = sphi 0, %s22
    %s27 = sphi 0, %s23
    %s49 = sphi 0, %s51
    %s52 = sphi 0, %s49
    %s53 = sphi 0, %s52
    %s69 = sphi 0, %s53
    %s79 = sphi 0, %s81
    %s82 = sphi 0, %s79
    %s83 = sphi 0, %s82
    %s99 = sphi 0, %s83
    %s109 = sphi 0, %s111
    %s112 = sphi 0, %s109
    %s113 = sphi 0, %s112
    %s129 = sphi 0, %s113
    %s139 = sphi 0, %s141
    %s142 = sphi 0, %s139
    %s143 = sphi 0, %s142
    %s159 = sphi 0, %s143
  $region4: #{_lambda_.9} parent=0 // loop_header_branch
    %12 = sbr.rel (%p10) target = $region8
  $region5: #{_lambda_.9} parent=0 // loop_body
    %s14 = ssub.s32 %s9, 1
    %s15 = ssub.s32 %s9, 2
    %s28 = sadd.s32 1, %s19
    %p29 = scmp.ge.s32.totalorder %s28, 1
    %s30 = scalar_select %p29, 0, %s28
    %s31 = sadd.s32 1, %s18
    %s32 = scalar_select %p29, %s31, %s18
    %p33 = scmp.ge.s32.totalorder %s32, 1
    %s34 = scalar_select %p33, 0, %s32
    %s35 = sadd.s32 1, %s17
    %s36 = scalar_select %p33, %s35, %s17
    %p37 = scmp.ge.s32.totalorder %s36, 4
    %s38 = scalar_select %p37, 0, %s36
    %s39 = sadd.s32 1, %s16
    %s40 = scalar_select %p37, %s39, %s16
    %p41 = scmp.ge.s32.totalorder %s40, 2
    %s42 = scalar_select %p41, 0, %s40
    %s43 = ssub.s32 %s16, %s42
    %s44 = ssub.s32 %s17, %s38
    %s45 = sor.u32 %s43, %s44
    %s46 = ssub.s32 %s18, %s34
    %s47 = sor.u32 %s45, %s46
    %p48 = scmp.eq.s32.totalorder %s47, 0
    %s50 = sadd.s32 %s49, 1
    %s51 = scalar_select %p48, %s49, %s50
    %p54 = pneg %p48
    %p55 = scmp.eq.s32.totalorder %s9, 7
    %p56 = por %p54, %p55
    %p57 = scmp.ne.s32.totalorder %s49, %s52
    %p58 = scmp.eq.s32.totalorder %s9, 0
    %p59 = por %p57, %p58
    %p60 = scmp.ne.s32.totalorder %s49, %s52
    %p61 = scmp.eq.s32.totalorder %s14, 7
    %p62 = por %p60, %p61
    %p63 = scmp.ne.s32.totalorder %s52, %s53
    %p64 = scmp.eq.s32.totalorder %s14, 0
    %p65 = por %p63, %p64
    %p66 = scmp.ne.s32.totalorder %s52, %s53
    %p67 = scmp.eq.s32.totalorder %s15, 7
    %p68 = por %p66, %p67
    %p70 = scmp.ne.s32.totalorder %s53, %s69
    %p71 = scmp.eq.s32.totalorder %s15, 0
    %p72 = por %p70, %p71
    %s73 = ssub.s32 %s16, %s42
    %s74 = ssub.s32 %s17, %s38
    %s75 = sor.u32 %s73, %s74
    %s76 = ssub.s32 %s19, %s30
    %s77 = sor.u32 %s75, %s76
    %p78 = scmp.eq.s32.totalorder %s77, 0
    %s80 = sadd.s32 %s79, 1
    %s81 = scalar_select %p78, %s79, %s80
    %p84 = pneg %p78
    %p85 = scmp.eq.s32.totalorder %s9, 7
    %p86 = por %p84, %p85
    %p87 = scmp.ne.s32.totalorder %s79, %s82
    %p88 = scmp.eq.s32.totalorder %s9, 0
    %p89 = por %p87, %p88
    %p90 = scmp.ne.s32.totalorder %s79, %s82
    %p91 = scmp.eq.s32.totalorder %s14, 7
    %p92 = por %p90, %p91
    %p93 = scmp.ne.s32.totalorder %s82, %s83
    %p94 = scmp.eq.s32.totalorder %s14, 0
    %p95 = por %p93, %p94
    %p96 = scmp.ne.s32.totalorder %s82, %s83
    %p97 = scmp.eq.s32.totalorder %s15, 7
    %p98 = por %p96, %p97
    %p100 = scmp.ne.s32.totalorder %s83, %s99
    %p101 = scmp.eq.s32.totalorder %s15, 0
    %p102 = por %p100, %p101
    %s103 = ssub.s32 %s16, %s42
    %s104 = ssub.s32 %s17, %s38
    %s105 = sor.u32 %s103, %s104
    %s106 = ssub.s32 %s19, %s30
    %s107 = sor.u32 %s105, %s106
    %p108 = scmp.eq.s32.totalorder %s107, 0
    %s110 = sadd.s32 %s109, 1
    %s111 = scalar_select %p108, %s109, %s110
    %p114 = pneg %p108
    %p115 = scmp.eq.s32.totalorder %s9, 7
    %p116 = por %p114, %p115
    %p117 = scmp.ne.s32.totalorder %s109, %s112
    %p118 = scmp.eq.s32.totalorder %s9, 0
    %p119 = por %p117, %p118
    %p120 = scmp.ne.s32.totalorder %s109, %s112
    %p121 = scmp.eq.s32.totalorder %s14, 7
    %p122 = por %p120, %p121
    %p123 = scmp.ne.s32.totalorder %s112, %s113
    %p124 = scmp.eq.s32.totalorder %s14, 0
    %p125 = por %p123, %p124
    %p126 = scmp.ne.s32.totalorder %s112, %s113
    %p127 = scmp.eq.s32.totalorder %s15, 7
    %p128 = por %p126, %p127
    %p130 = scmp.ne.s32.totalorder %s113, %s129
    %p131 = scmp.eq.s32.totalorder %s15, 0
    %p132 = por %p130, %p131
    %s133 = ssub.s32 %s16, %s42
    %s134 = ssub.s32 %s17, %s38
    %s135 = sor.u32 %s133, %s134
    %s136 = ssub.s32 %s18, %s34
    %s137 = sor.u32 %s135, %s136
    %p138 = scmp.eq.s32.totalorder %s137, 0
    %s140 = sadd.s32 %s139, 1
    %s141 = scalar_select %p138, %s139, %s140
    %p144 = pneg %p138
    %p145 = scmp.eq.s32.totalorder %s9, 7
    %p146 = por %p144, %p145
    %p147 = scmp.ne.s32.totalorder %s139, %s142
    %p148 = scmp.eq.s32.totalorder %s9, 0
    %p149 = por %p147, %p148
    %p150 = scmp.ne.s32.totalorder %s139, %s142
    %p151 = scmp.eq.s32.totalorder %s14, 7
    %p152 = por %p150, %p151
    %p153 = scmp.ne.s32.totalorder %s142, %s143
    %p154 = scmp.eq.s32.totalorder %s14, 0
    %p155 = por %p153, %p154
    %p156 = scmp.ne.s32.totalorder %s142, %s143
    %p157 = scmp.eq.s32.totalorder %s15, 7
    %p158 = por %p156, %p157
    %p160 = scmp.ne.s32.totalorder %s143, %s159
    %p161 = scmp.eq.s32.totalorder %s15, 0
    %p162 = por %p160, %p161
    %p163 = scmp.le.s32.totalorder 1, %s9
    %p164 = scmp.lt.s32.totalorder %s9, 9
    %p165 = pnand %p163, %p164
    %p166 = pneg %p165
    // Predicated region
    $region9: #{_lambda_.9} parent=5 // pred_check
      _
    $region10: #{_lambda_.9} parent=5 // pred_check_branch
      %168 = sbr.rel (%p165) target = $region12
    $region11: #{_lambda_.9} parent=5 // pred_region
      %s169 = ssub.s32 %s9, 1
    $region12: #{_lambda_.9} parent=5 // pred_fallthru
      _
    %p170 = scmp.lt.s32.totalorder %s9, 8
    // Predicated region
    $region13: #{_lambda_.9} parent=5 // pred_check
      %p171 = pneg %p170
    $region14: #{_lambda_.9} parent=5 // pred_check_branch
      %173 = sbr.rel (%p171) target = $region16
    $region15: #{_lambda_.9} parent=5 // pred_region
      // Predicated region
      $region17: #{_lambda_.9} parent=15 // pred_check
        %p174 = pneg %p59
      $region18: #{_lambda_.9} parent=15 // pred_check_branch
        %176 = sbr.rel (%p174) target = $region20
      $region19: #{_lambda_.9} parent=15 // pred_region
        %p177 = scmp.lt.s32.totalorder %s16, 1
        %s178 = scalar_select %p177, %s16, 1
        %p179 = scmp.lt.s32.totalorder %s17, 3
        %s180 = scalar_select %p179, %s17, 3
        %p181 = scmp.lt.s32.totalorder %s18, 0
        %s182 = scalar_select %p181, %s18, 0
        %s183 = sadd.s32 %s182, %s180
        %s184 = smul.addr %s178, 4
        %s185 = sadd.s32 %s183, %s184
        %s186 = smul.addr %s185, 4
        %s187 = scalar_lea.vmem %s0, %s186
      $region20: #{_lambda_.9} parent=15 // pred_fallthru
        _
      // Predicated region
      $region21: #{_lambda_.9} parent=15 // pred_check
        %p188 = pneg %p89
      $region22: #{_lambda_.9} parent=15 // pred_check_branch
        %190 = sbr.rel (%p188) target = $region24
      $region23: #{_lambda_.9} parent=15 // pred_region
        %p191 = scmp.lt.s32.totalorder %s16, 1
        %s192 = scalar_select %p191, %s16, 1
        %p193 = scmp.lt.s32.totalorder %s17, 3
        %s194 = scalar_select %p193, %s17, 3
        %p195 = scmp.lt.s32.totalorder %s19, 0
        %s196 = scalar_select %p195, %s19, 0
        %s197 = sadd.s32 %s196, %s194
        %s198 = smul.addr %s192, 4
        %s199 = sadd.s32 %s197, %s198
        %s200 = smul.addr %s199, 4
        %s201 = scalar_lea.vmem %s1, %s200
      $region24: #{_lambda_.9} parent=15 // pred_fallthru
        _
      // Predicated region
      $region25: #{_lambda_.9} parent=15 // pred_check
        %p202 = pneg %p119
      $region26: #{_lambda_.9} parent=15 // pred_check_branch
        %204 = sbr.rel (%p202) target = $region28
      $region27: #{_lambda_.9} parent=15 // pred_region
        %p205 = scmp.lt.s32.totalorder %s16, 1
        %s206 = scalar_select %p205, %s16, 1
        %p207 = scmp.lt.s32.totalorder %s17, 3
        %s208 = scalar_select %p207, %s17, 3
        %p209 = scmp.lt.s32.totalorder %s19, 0
        %s210 = scalar_select %p209, %s19, 0
        %s211 = sadd.s32 %s210, %s208
        %s212 = smul.addr %s206, 4
        %s213 = sadd.s32 %s211, %s212
        %s214 = smul.addr %s213, 4
        %s215 = scalar_lea.vmem %s2, %s214
      $region28: #{_lambda_.9} parent=15 // pred_fallthru
        _
    $region16: #{_lambda_.9} parent=5 // pred_fallthru
      _
    %p216 = scmp.le.s32.totalorder 1, %s9
    %p217 = scmp.lt.s32.totalorder %s9, 9
    %p218 = pnand %p216, %p217
    %p219 = pneg %p218
    // Predicated region
    $region29: #{_lambda_.9} parent=5 // pred_check
      _
    $region30: #{_lambda_.9} parent=5 // pred_check_branch
      %221 = sbr.rel (%p218) target = $region32
    $region31: #{_lambda_.9} parent=5 // pred_region
      %s222 = ssub.s32 %s9, 1
      %p223 = scmp.lt.s32.totalorder %s20, 1
      %s224 = scalar_select %p223, %s20, 1
      %p225 = scmp.lt.s32.totalorder %s21, 3
      %s226 = scalar_select %p225, %s21, 3
      %p227 = scmp.lt.s32.totalorder %s22, 0
      %s228 = scalar_select %p227, %s22, 0
      %s229 = sadd.s32 %s228, %s226
      %s230 = smul.addr %s224, 4
      %s231 = sadd.s32 %s229, %s230
      %s232 = smul.addr %s231, 4
      %s233 = scalar_lea.vmem %s0, %s232
      %p234 = pneg %p65
      %p235 = pneg %p62
      %p236 = scmp.lt.s32.totalorder %s20, 1
      %s237 = scalar_select %p236, %s20, 1
      %p238 = scmp.lt.s32.totalorder %s21, 3
      %s239 = scalar_select %p238, %s21, 3
      %p240 = scmp.lt.s32.totalorder %s23, 0
      %s241 = scalar_select %p240, %s23, 0
      %s242 = sadd.s32 %s241, %s239
      %s243 = smul.addr %s237, 4
      %s244 = sadd.s32 %s242, %s243
      %s245 = smul.addr %s244, 4
      %s246 = scalar_lea.vmem %s1, %s245
      %p247 = pneg %p95
      %p248 = pneg %p92
      %p249 = scmp.lt.s32.totalorder %s20, 1
      %s250 = scalar_select %p249, %s20, 1
      %p251 = scmp.lt.s32.totalorder %s21, 3
      %s252 = scalar_select %p251, %s21, 3
      %p253 = scmp.lt.s32.totalorder %s23, 0
      %s254 = scalar_select %p253, %s23, 0
      %s255 = sadd.s32 %s254, %s252
      %s256 = smul.addr %s250, 4
      %s257 = sadd.s32 %s255, %s256
      %s258 = smul.addr %s257, 4
      %s259 = scalar_lea.vmem %s2, %s258
      %p260 = pneg %p125
      %p261 = pneg %p122
      %p262 = pneg %p155
      %p263 = pneg %p152
      %p264 = scmp.lt.s32.totalorder %s20, 1
      %s265 = scalar_select %p264, %s20, 1
      %p266 = scmp.lt.s32.totalorder %s21, 3
      %s267 = scalar_select %p266, %s21, 3
      %p268 = scmp.lt.s32.totalorder %s22, 0
      %s269 = scalar_select %p268, %s22, 0
      %s270 = sadd.s32 %s269, %s267
      %s271 = smul.addr %s265, 4
      %s272 = sadd.s32 %s270, %s271
      %s273 = smul.addr %s272, 4
      %s274 = scalar_lea.vmem %s3, %s273
      %p275 = scmp.lt.s32.totalorder %s20, 1
      %s276 = scalar_select %p275, %s20, 1
      %p277 = scmp.lt.s32.totalorder %s21, 3
      %s278 = scalar_select %p277, %s21, 3
      %p279 = scmp.lt.s32.totalorder %s22, 0
      %s280 = scalar_select %p279, %s22, 0
      %s281 = sadd.s32 %s280, %s278
      %s282 = smul.addr %s276, 4
      %s283 = sadd.s32 %s281, %s282
      %s284 = smul.addr %s283, 4
      %s285 = scalar_lea.vmem %s0, %s284
      %p286 = scmp.lt.s32.totalorder %s20, 1
      %s287 = scalar_select %p286, %s20, 1
      %p288 = scmp.lt.s32.totalorder %s21, 3
      %s289 = scalar_select %p288, %s21, 3
      %p290 = scmp.lt.s32.totalorder %s23, 0
      %s291 = scalar_select %p290, %s23, 0
      %s292 = sadd.s32 %s291, %s289
      %s293 = smul.addr %s287, 4
      %s294 = sadd.s32 %s292, %s293
      %s295 = smul.addr %s294, 4
      %s296 = scalar_lea.vmem %s1, %s295
      %p297 = scmp.lt.s32.totalorder %s20, 1
      %s298 = scalar_select %p297, %s20, 1
      %p299 = scmp.lt.s32.totalorder %s21, 3
      %s300 = scalar_select %p299, %s21, 3
      %p301 = scmp.lt.s32.totalorder %s23, 0
      %s302 = scalar_select %p301, %s23, 0
      %s303 = sadd.s32 %s302, %s300
      %s304 = smul.addr %s298, 4
      %s305 = sadd.s32 %s303, %s304
      %s306 = smul.addr %s305, 4
      %s307 = scalar_lea.vmem %s2, %s306
      %p308 = scmp.lt.s32.totalorder %s20, 1
      %s309 = scalar_select %p308, %s20, 1
      %p310 = scmp.lt.s32.totalorder %s21, 3
      %s311 = scalar_select %p310, %s21, 3
      %p312 = scmp.lt.s32.totalorder %s22, 0
      %s313 = scalar_select %p312, %s22, 0
      %s314 = sadd.s32 %s313, %s311
      %s315 = smul.addr %s309, 4
      %s316 = sadd.s32 %s314, %s315
      %s317 = smul.addr %s316, 4
      %s318 = scalar_lea.vmem %s3, %s317
      %p320 = scmp.eq.s32.totalorder %s23, 0
      // Predicated region
      $region33: #{_lambda_.9} parent=31 // pred_check
        %p321 = pneg %p320
      $region34: #{_lambda_.9} parent=31 // pred_check_branch
        %323 = sbr.rel (%p321) target = $region36
      $region35: #{_lambda_.9} parent=31 // pred_region
        %vm324 = vcmask 7168
        %325 = vst.msk [vmem:[#allocation2] sm:$0xff] %vm324, -1e+30
        %326 = vst.msk [vmem:[#allocation3] sm:$0xff] %vm324, 0.0
        %vm327 = vcmask 64512
        %328 = vst.msk [vmem:[#allocation4] sm:$0xff] %vm327, 0.0
      $region36: #{_lambda_.9} parent=31 // pred_fallthru
        _
      %s329 = smul.u32 %s23, 8
      %s330 = smul.u32 %s22, 8
      %s331 = sadd.s32 %s330, 7
      %p332 = scmp.le.s32.totalorder %s329, %s331
      // Predicated region
      $region37: #{_lambda_.9} parent=31 // pred_check
        %p333 = pneg %p332
      $region38: #{_lambda_.9} parent=31 // pred_check_branch
        %335 = sbr.rel (%p333) target = $region40
      $region39: #{_lambda_.9} parent=31 // pred_region
        %v336 = vld [vmem:[%s285] sm:$0xf]
        %v337 = vld [vmem:[%s296] sm:$0xf]
        %vm338 = vcmask 64512
        %v340 = vsel %vm338, %v336, 0
        %v343 = vsel %vm338, %v337, 0
        %345 = vmatprep.subr.bf16.mxu0 0
        %346 = vmatpush1.bf16.xpose.msra.mxu0 %v343
        %347 = vmatprep.subr.bf16.mxu0 0
        %348 = vmatpush1.bf16.xpose.msra.mxu0 0
        %349 = vmatprep.subr.bf16.mxu0 0
        %350 = vmatpush1.bf16.xpose.msra.mxu0 0
        %351 = vmatprep.subr.bf16.mxu0 0
        %352 = vmatpush1.bf16.xpose.msra.mxu0 0
        %353 = vmatprep.subr.bf16.mxu0 0
        %354 = vmatpush1.bf16.xpose.msra.mxu0 0
        %355 = vmatprep.subr.bf16.mxu0 0
        %356 = vmatpush1.bf16.xpose.msra.mxu0 0
        %357 = vmatprep.subr.bf16.mxu0 0
        %358 = vmatpush1.bf16.xpose.msra.mxu0 0
        %359 = vmatprep.subr.bf16.mxu0 0
        %360 = vmatpush1.bf16.xpose.msra.mxu0 0
        %361 = vmatprep.subr.bf16.mxu0 0
        %362 = vmatpush1.bf16.xpose.msra.mxu0 0
        %363 = vmatprep.subr.bf16.mxu0 0
        %364 = vmatpush1.bf16.xpose.msra.mxu0 0
        %365 = vmatprep.subr.bf16.mxu0 0
        %366 = vmatpush1.bf16.xpose.msra.mxu0 0
        %367 = vmatprep.subr.bf16.mxu0 0
        %368 = vmatpush1.bf16.xpose.msra.mxu0 0
        %369 = vmatprep.subr.bf16.mxu0 0
        %370 = vmatpush1.bf16.xpose.msra.mxu0 0
        %371 = vmatprep.subr.bf16.mxu0 0
        %372 = vmatpush1.bf16.xpose.msra.mxu0 0
        %373 = vmatprep.subr.bf16.mxu0 0
        %374 = vmatpush1.bf16.xpose.msra.mxu0 0
        %375 = vmatprep.subr.bf16.mxu0 0
        %376 = vmatpush1.bf16.xpose.msra.mxu0 0
        %377 = vmatprep.mubr.bf16.mxu0 0
        %378 = vmatmul.mubr.bf16.gmra.mrb[0].mxu0 %v340
        %v379 = vpop.f32.mrb[0].mxu0
        %v380 = vadd.f32 0.0, %v379
        %v381 = vpop.f32.mrb[0].mxu0
        %v382 = vpop.f32.mrb[0].mxu0
        %v383 = vpop.f32.mrb[0].mxu0
        %384 = vdwg.mxu0
        %v385 = vmul.f32 %v380, 0.35355338
        %v386 = vlaneseq
        %v387 = vshrl.u32 %v386, 7
        %v388 = vstv %s330
        %v389 = vadd.s32 %v388, %v387
        %v390 = vlaneseq
        %v391 = vand.u32 %v390, 127
        %v392 = vstv %s329
        %v393 = vadd.s32 %v392, %v391
        %vm394 = vcmp.le.s32.totalorder %v393, %v389
        %v395 = vsel %vm394, %v385, -1e+30
        %v396 = vld [vmem:[#allocation2] sm:$0xff]
        %v397 = vsel %vm338, %v395, -inf
        %398 = vmax.xlane.f32.xlu0 %v397
        %v399 = vpop.xlane.xlu0 %398
        %v400 = vmax.f32 %v396, %v399
        %v401 = vsub.f32 %v396, %v400
        %v402 = vmul.f32 %v401, 1.442695
        %v403 = vpow.pop %v402
        %405 = vset.pattern.permute.xlu0 0
        %406 = vperm.xlu0 %405, %v400
        %v407 = vpop.permute.xlu0 %406
        %v409 = vsub.f32 %v395, %v407
        %v410 = vmul.f32 %v409, 1.442695
        %v411 = vpow.pop %v410
        %v412 = vld [vmem:[#allocation3] sm:$0xff]
        %v413 = vmul.f32 %v403, %v412
        %v414 = vsel %vm338, %v411, 0.0
        %415 = vadd.xlane.f32.xlu0 %v414
        %v416 = vpop.xlane.xlu0 %415
        %v417 = vadd.f32 %v413, %v416
        %vm418 = vcmask 7168
        %419 = vst.msk [vmem:[#allocation3] sm:$0xff] %vm418, %v417
        %v420 = vld [vmem:[#allocation4] sm:$0xff]
        %422 = vset.pattern.permute.xlu0 0
        %423 = vperm.xlu0 %422, %v403
        %v424 = vpop.permute.xlu0 %423
        %v426 = vmul.f32 %v424, %v420
        %v427 = vpack.c.bf16 %v411, %v411
        %v428 = vld [vmem:[%s307] sm:$0xf]
        %v430 = vsel %vm338, %v427, 0
        %vm432 = vcmask 1043456
        %v434 = vsel %vm432, %v428, 0
        %436 = vmatprep.subr.bf16.mxu0 0
        %437 = vmatpush1.bf16.msra.mxu0 %v434
        %438 = vmatprep.subr.bf16.mxu0 0
        %439 = vmatpush1.bf16.msra.mxu0 0
        %440 = vmatprep.subr.bf16.mxu0 0
        %441 = vmatpush1.bf16.msra.mxu0 0
        %442 = vmatprep.subr.bf16.mxu0 0
        %443 = vmatpush1.bf16.msra.mxu0 0
        %444 = vmatprep.subr.bf16.mxu0 0
        %445 = vmatpush1.bf16.msra.mxu0 0
        %446 = vmatprep.subr.bf16.mxu0 0
        %447 = vmatpush1.bf16.msra.mxu0 0
        %448 = vmatprep.subr.bf16.mxu0 0
        %449 = vmatpush1.bf16.msra.mxu0 0
        %450 = vmatprep.subr.bf16.mxu0 0
        %451 = vmatpush1.bf16.msra.mxu0 0
        %452 = vmatprep.subr.bf16.mxu0 0
        %453 = vmatpush1.bf16.msra.mxu0 0
        %454 = vmatprep.subr.bf16.mxu0 0
        %455 = vmatpush1.bf16.msra.mxu0 0
        %456 = vmatprep.subr.bf16.mxu0 0
        %457 = vmatpush1.bf16.msra.mxu0 0
        %458 = vmatprep.subr.bf16.mxu0 0
        %459 = vmatpush1.bf16.msra.mxu0 0
        %460 = vmatprep.subr.bf16.mxu0 0
        %461 = vmatpush1.bf16.msra.mxu0 0
        %462 = vmatprep.subr.bf16.mxu0 0
        %463 = vmatpush1.bf16.msra.mxu0 0
        %464 = vmatprep.subr.bf16.mxu0 0
        %465 = vmatpush1.bf16.msra.mxu0 0
        %466 = vmatprep.subr.bf16.mxu0 0
        %467 = vmatpush1.bf16.msra.mxu0 0
        %468 = vmatprep.mubr.bf16.mxu0 0
        %469 = vmatmul.mubr.bf16.gmra.mrb[0].mxu0 %v430
        %v470 = vpop.f32.mrb[0].mxu0
        %v471 = vadd.f32 0.0, %v470
        %v472 = vpop.f32.mrb[0].mxu0
        %v473 = vpop.f32.mrb[0].mxu0
        %v474 = vpop.f32.mrb[0].mxu0
        %475 = vdwg.mxu0
        %v476 = vadd.f32 %v426, %v471
        %477 = vst.msk [vmem:[#allocation4] sm:$0xff] %vm338, %v476
        %478 = vst.msk [vmem:[#allocation2] sm:$0xff] %vm418, %v400
      $region40: #{_lambda_.9} parent=31 // pred_fallthru
        _
      // Predicated region
      $region41: #{_lambda_.9} parent=31 // pred_check
        %p479 = pneg %p320
      $region42: #{_lambda_.9} parent=31 // pred_check_branch
        %481 = sbr.rel (%p479) target = $region44
      $region43: #{_lambda_.9} parent=31 // pred_region
        %v482 = vld [vmem:[#allocation4] sm:$0xff]
        %v483 = vld [vmem:[#allocation3] sm:$0xff]
        %v484 = vrcp.pop %v483
        %486 = vset.pattern.permute.xlu0 0
        %487 = vperm.xlu0 %486, %v484
        %v488 = vpop.permute.xlu0 %487
        %v490 = vmul.f32 %v482, %v488
        %v491 = vpack.c.bf16 %v490, %v490
        %vm492 = vcmask 60416
        %493 = vst.msk [vmem:[%s318] sm:$0xf] %vm492, %v491
      $region44: #{_lambda_.9} parent=31 // pred_fallthru
        _
      %p494 = scmp.lt.s32.totalorder %s20, 1
      %s495 = scalar_select %p494, %s20, 1
      %p496 = scmp.lt.s32.totalorder %s21, 3
      %s497 = scalar_select %p496, %s21, 3
      %p498 = scmp.lt.s32.totalorder %s22, 0
      %s499 = scalar_select %p498, %s22, 0
      %s500 = sadd.s32 %s499, %s497
      %s501 = smul.addr %s495, 4
      %s502 = sadd.s32 %s500, %s501
      %s503 = smul.addr %s502, 4
      %s504 = scalar_lea.vmem %s3, %s503
      // Predicated region
      $region45: #{_lambda_.9} parent=31 // pred_check
        %p505 = pneg %p152
      $region46: #{_lambda_.9} parent=31 // pred_check_branch
        %507 = sbr.rel (%p505) target = $region48
      $region47: #{_lambda_.9} parent=31 // pred_region
        _
      $region48: #{_lambda_.9} parent=31 // pred_fallthru
        _
    $region32: #{_lambda_.9} parent=5 // pred_fallthru
      _
    %p508 = scmp.le.s32.totalorder 2, %s9
    // Predicated region
    $region49: #{_lambda_.9} parent=5 // pred_check
      %p509 = pneg %p508
    $region50: #{_lambda_.9} parent=5 // pred_check_branch
      %511 = sbr.rel (%p509) target = $region52
    $region51: #{_lambda_.9} parent=5 // pred_region
      %s512 = ssub.s32 %s9, 2
      // Predicated region
      $region53: #{_lambda_.9} parent=51 // pred_check
        %p513 = pneg %p158
      $region54: #{_lambda_.9} parent=51 // pred_check_branch
        %515 = sbr.rel (%p513) target = $region56
      $region55: #{_lambda_.9} parent=51 // pred_region
        %p516 = scmp.lt.s32.totalorder %s24, 1
        %s517 = scalar_select %p516, %s24, 1
        %p518 = scmp.lt.s32.totalorder %s25, 3
        %s519 = scalar_select %p518, %s25, 3
        %p520 = scmp.lt.s32.totalorder %s26, 0
        %s521 = scalar_select %p520, %s26, 0
        %s522 = sadd.s32 %s521, %s519
        %s523 = smul.addr %s517, 4
        %s524 = sadd.s32 %s522, %s523
        %s525 = smul.addr %s524, 4
        %s526 = scalar_lea.vmem %s3, %s525
      $region56: #{_lambda_.9} parent=51 // pred_fallthru
        _
    $region52: #{_lambda_.9} parent=5 // pred_fallthru
      _
  $region6: #{_lambda_.9} parent=0 // loop_footer
    %s13 = sadd.s32 1, %s9
  $region7: #{_lambda_.9} parent=0 // loop_footer_branch
    %8 = sbr.rel target = $region3
  $region8: #{_lambda_.9} parent=0 // loop_exit
    _

// kernel: _lambda_.10
$region0: #{_lambda_.10}
  #allocation0 [shape = 'u32[]', space=smem, size = 0x4, offset = 0x4, fixed_abs, tag = 'smem constant byte address 0x4 - core index']
  #allocation1 [shape = 'u32[144,128]{1,0:T(1,128)}', space=vmem, size = 0x12000, scoped, tag = 'internal scratch']
  %s0 = inlined_call_operand.vmem [shape: bf16[2,8,32], index: 0, kind: input, shape index: {}]
  %s1 = inlined_call_operand.vmem [shape: bf16[2,4,8,8], index: 1, kind: input, shape index: {}]
  %s2 = inlined_call_operand.vmem [shape: bf16[32,32], index: 2, kind: input, shape index: {}]
  %s3 = inlined_call_operand.vmem [shape: f32[1,32], index: 3, kind: input, shape index: {}]
  %s4 = inlined_call_operand.vmem [shape: f32[1,32], index: 4, kind: input, shape index: {}]
  %s5 = inlined_call_operand.vmem [shape: f32[1,32], index: 5, kind: input, shape index: {}]
  %s6 = inlined_call_operand.vmem [shape: bf16[32,128], index: 6, kind: input, shape index: {}]
  %s7 = inlined_call_operand.vmem [shape: f32[1,128], index: 7, kind: input, shape index: {}]
  %s8 = inlined_call_operand.vmem [shape: bf16[128,32], index: 8, kind: input, shape index: {}]
  %s9 = inlined_call_operand.vmem [shape: f32[1,32], index: 9, kind: input, shape index: {}]
  %s10 = inlined_call_operand.vmem [shape: bf16[2,8,32], index: 10, kind: output, shape index: {}]
  %s11 = sld [smem:[#allocation0]]
  $region73: #{_lambda_.10} parent=0
    _
  %s13 = ssub.s32 1, %s11
  %s14 = scalar_select 0, %s13, %s11
  loop: start=0, step=1, limit=4
  $region2: #{_lambda_.10} parent=0 // loop_pre_header
    _
  $region3: #{_lambda_.10} parent=0 // loop_header
    %s16 = sphi 0, %s20
    %p17 = scmp.ge.s32.totalorder %s16, 4
    %s23 = sphi 0, %s35
    %s24 = sphi 0, %s31
    %s25 = sphi 0, %s23
    %s26 = sphi 0, %s24
    %s27 = sphi 0, %s25
    %s28 = sphi 0, %s26
    %s40 = sphi 0, %s42
    %s43 = sphi 0, %s40
    %s44 = sphi 0, %s43
    %s60 = sphi 0, %s44
    %s68 = sphi 0, %s70
    %s71 = sphi 0, %s68
    %s72 = sphi 0, %s71
    %s88 = sphi 0, %s72
    %s92 = sphi 0, %s92
    %s94 = sphi 0, %s92
    %s95 = sphi 0, %s94
    %s109 = sphi 0, %s95
    %s113 = sphi 0, %s113
    %s115 = sphi 0, %s113
    %s116 = sphi 0, %s115
    %s130 = sphi 0, %s116
    %s134 = sphi 0, %s134
    %s136 = sphi 0, %s134
    %s137 = sphi 0, %s136
    %s151 = sphi 0, %s137
    %s155 = sphi 0, %s155
    %s157 = sphi 0, %s155
    %s158 = sphi 0, %s157
    %s172 = sphi 0, %s158
    %s176 = sphi 0, %s176
    %s178 = sphi 0, %s176
    %s179 = sphi 0, %s178
    %s193 = sphi 0, %s179
    %s197 = sphi 0, %s197
    %s199 = sphi 0, %s197
    %s200 = sphi 0, %s199
    %s214 = sphi 0, %s200
    %s218 = sphi 0, %s218
    %s220 = sphi 0, %s218
    %s221 = sphi 0, %s220
    %s235 = sphi 0, %s221
    %s239 = sphi 0, %s239
    %s241 = sphi 0, %s239
    %s242 = sphi 0, %s241
    %s256 = sphi 0, %s242
    %s264 = sphi 0, %s266
    %s267 = sphi 0, %s264
    %s268 = sphi 0, %s267
    %s284 = sphi 0, %s268
  $region4: #{_lambda_.10} parent=0 // loop_header_branch
    %19 = sbr.rel (%p17) target = $region8
  $region5: #{_lambda_.10} parent=0 // loop_body
    %s21 = ssub.s32 %s16, 1
    %s22 = ssub.s32 %s16, 2
    %s29 = sadd.s32 1, %s24
    %p30 = scmp.ge.s32.totalorder %s29, 1
    %s31 = scalar_select %p30, 0, %s29
    %s32 = sadd.s32 1, %s23
    %s33 = scalar_select %p30, %s32, %s23
    %p34 = scmp.ge.s32.totalorder %s33, 2
    %s35 = scalar_select %p34, 0, %s33
    %s36 = ssub.s32 %s23, %s35
    %s37 = ssub.s32 %s24, %s31
    %s38 = sor.u32 %s36, %s37
    %p39 = scmp.eq.s32.totalorder %s38, 0
    %s41 = sadd.s32 %s40, 1
    %s42 = scalar_select %p39, %s40, %s41
    %p45 = pneg %p39
    %p46 = scmp.eq.s32.totalorder %s16, 1
    %p47 = por %p45, %p46
    %p48 = scmp.ne.s32.totalorder %s40, %s43
    %p49 = scmp.eq.s32.totalorder %s16, 0
    %p50 = por %p48, %p49
    %p51 = scmp.ne.s32.totalorder %s40, %s43
    %p52 = scmp.eq.s32.totalorder %s21, 1
    %p53 = por %p51, %p52
    %p54 = scmp.ne.s32.totalorder %s43, %s44
    %p55 = scmp.eq.s32.totalorder %s21, 0
    %p56 = por %p54, %p55
    %p57 = scmp.ne.s32.totalorder %s43, %s44
    %p58 = scmp.eq.s32.totalorder %s22, 1
    %p59 = por %p57, %p58
    %p61 = scmp.ne.s32.totalorder %s44, %s60
    %p62 = scmp.eq.s32.totalorder %s22, 0
    %p63 = por %p61, %p62
    %s64 = ssub.s32 %s23, %s35
    %s65 = ssub.s32 %s24, %s31
    %s66 = sor.u32 %s64, %s65
    %p67 = scmp.eq.s32.totalorder %s66, 0
    %s69 = sadd.s32 %s68, 1
    %s70 = scalar_select %p67, %s68, %s69
    %p73 = pneg %p67
    %p74 = scmp.eq.s32.totalorder %s16, 1
    %p75 = por %p73, %p74
    %p76 = scmp.ne.s32.totalorder %s68, %s71
    %p77 = scmp.eq.s32.totalorder %s16, 0
    %p78 = por %p76, %p77
    %p79 = scmp.ne.s32.totalorder %s68, %s71
    %p80 = scmp.eq.s32.totalorder %s21, 1
    %p81 = por %p79, %p80
    %p82 = scmp.ne.s32.totalorder %s71, %s72
    %p83 = scmp.eq.s32.totalorder %s21, 0
    %p84 = por %p82, %p83
    %p85 = scmp.ne.s32.totalorder %s71, %s72
    %p86 = scmp.eq.s32.totalorder %s22, 1
    %p87 = por %p85, %p86
    %p89 = scmp.ne.s32.totalorder %s72, %s88
    %p90 = scmp.eq.s32.totalorder %s22, 0
    %p91 = por %p89, %p90
    %s93 = sadd.s32 %s92, 1
    %p96 = scmp.eq.s32.totalorder %s16, 1
    %p97 = scmp.ne.s32.totalorder %s92, %s94
    %p98 = scmp.eq.s32.totalorder %s16, 0
    %p99 = por %p97, %p98
    %p100 = scmp.ne.s32.totalorder %s92, %s94
    %p101 = scmp.eq.s32.totalorder %s21, 1
    %p102 = por %p100, %p101
    %p103 = scmp.ne.s32.totalorder %s94, %s95
    %p104 = scmp.eq.s32.totalorder %s21, 0
    %p105 = por %p103, %p104
    %p106 = scmp.ne.s32.totalorder %s94, %s95
    %p107 = scmp.eq.s32.totalorder %s22, 1
    %p108 = por %p106, %p107
    %p110 = scmp.ne.s32.totalorder %s95, %s109
    %p111 = scmp.eq.s32.totalorder %s22, 0
    %p112 = por %p110, %p111
    %s114 = sadd.s32 %s113, 1
    %p117 = scmp.eq.s32.totalorder %s16, 1
    %p118 = scmp.ne.s32.totalorder %s113, %s115
    %p119 = scmp.eq.s32.totalorder %s16, 0
    %p120 = por %p118, %p119
    %p121 = scmp.ne.s32.totalorder %s113, %s115
    %p122 = scmp.eq.s32.totalorder %s21, 1
    %p123 = por %p121, %p122
    %p124 = scmp.ne.s32.totalorder %s115, %s116
    %p125 = scmp.eq.s32.totalorder %s21, 0
    %p126 = por %p124, %p125
    %p127 = scmp.ne.s32.totalorder %s115, %s116
    %p128 = scmp.eq.s32.totalorder %s22, 1
    %p129 = por %p127, %p128
    %p131 = scmp.ne.s32.totalorder %s116, %s130
    %p132 = scmp.eq.s32.totalorder %s22, 0
    %p133 = por %p131, %p132
    %s135 = sadd.s32 %s134, 1
    %p138 = scmp.eq.s32.totalorder %s16, 1
    %p139 = scmp.ne.s32.totalorder %s134, %s136
    %p140 = scmp.eq.s32.totalorder %s16, 0
    %p141 = por %p139, %p140
    %p142 = scmp.ne.s32.totalorder %s134, %s136
    %p143 = scmp.eq.s32.totalorder %s21, 1
    %p144 = por %p142, %p143
    %p145 = scmp.ne.s32.totalorder %s136, %s137
    %p146 = scmp.eq.s32.totalorder %s21, 0
    %p147 = por %p145, %p146
    %p148 = scmp.ne.s32.totalorder %s136, %s137
    %p149 = scmp.eq.s32.totalorder %s22, 1
    %p150 = por %p148, %p149
    %p152 = scmp.ne.s32.totalorder %s137, %s151
    %p153 = scmp.eq.s32.totalorder %s22, 0
    %p154 = por %p152, %p153
    %s156 = sadd.s32 %s155, 1
    %p159 = scmp.eq.s32.totalorder %s16, 1
    %p160 = scmp.ne.s32.totalorder %s155, %s157
    %p161 = scmp.eq.s32.totalorder %s16, 0
    %p162 = por %p160, %p161
    %p163 = scmp.ne.s32.totalorder %s155, %s157
    %p164 = scmp.eq.s32.totalorder %s21, 1
    %p165 = por %p163, %p164
    %p166 = scmp.ne.s32.totalorder %s157, %s158
    %p167 = scmp.eq.s32.totalorder %s21, 0
    %p168 = por %p166, %p167
    %p169 = scmp.ne.s32.totalorder %s157, %s158
    %p170 = scmp.eq.s32.totalorder %s22, 1
    %p171 = por %p169, %p170
    %p173 = scmp.ne.s32.totalorder %s158, %s172
    %p174 = scmp.eq.s32.totalorder %s22, 0
    %p175 = por %p173, %p174
    %s177 = sadd.s32 %s176, 1
    %p180 = scmp.eq.s32.totalorder %s16, 1
    %p181 = scmp.ne.s32.totalorder %s176, %s178
    %p182 = scmp.eq.s32.totalorder %s16, 0
    %p183 = por %p181, %p182
    %p184 = scmp.ne.s32.totalorder %s176, %s178
    %p185 = scmp.eq.s32.totalorder %s21, 1
    %p186 = por %p184, %p185
    %p187 = scmp.ne.s32.totalorder %s178, %s179
    %p188 = scmp.eq.s32.totalorder %s21, 0
    %p189 = por %p187, %p188
    %p190 = scmp.ne.s32.totalorder %s178, %s179
    %p191 = scmp.eq.s32.totalorder %s22, 1
    %p192 = por %p190, %p191
    %p194 = scmp.ne.s32.totalorder %s179, %s193
    %p195 = scmp.eq.s32.totalorder %s22, 0
    %p196 = por %p194, %p195
    %s198 = sadd.s32 %s197, 1
    %p201 = scmp.eq.s32.totalorder %s16, 1
    %p202 = scmp.ne.s32.totalorder %s197, %s199
    %p203 = scmp.eq.s32.totalorder %s16, 0
    %p204 = por %p202, %p203
    %p205 = scmp.ne.s32.totalorder %s197, %s199
    %p206 = scmp.eq.s32.totalorder %s21, 1
    %p207 = por %p205, %p206
    %p208 = scmp.ne.s32.totalorder %s199, %s200
    %p209 = scmp.eq.s32.totalorder %s21, 0
    %p210 = por %p208, %p209
    %p211 = scmp.ne.s32.totalorder %s199, %s200
    %p212 = scmp.eq.s32.totalorder %s22, 1
    %p213 = por %p211, %p212
    %p215 = scmp.ne.s32.totalorder %s200, %s214
    %p216 = scmp.eq.s32.totalorder %s22, 0
    %p217 = por %p215, %p216
    %s219 = sadd.s32 %s218, 1
    %p222 = scmp.eq.s32.totalorder %s16, 1
    %p223 = scmp.ne.s32.totalorder %s218, %s220
    %p224 = scmp.eq.s32.totalorder %s16, 0
    %p225 = por %p223, %p224
    %p226 = scmp.ne.s32.totalorder %s218, %s220
    %p227 = scmp.eq.s32.totalorder %s21, 1
    %p228 = por %p226, %p227
    %p229 = scmp.ne.s32.totalorder %s220, %s221
    %p230 = scmp.eq.s32.totalorder %s21, 0
    %p231 = por %p229, %p230
    %p232 = scmp.ne.s32.totalorder %s220, %s221
    %p233 = scmp.eq.s32.totalorder %s22, 1
    %p234 = por %p232, %p233
    %p236 = scmp.ne.s32.totalorder %s221, %s235
    %p237 = scmp.eq.s32.totalorder %s22, 0
    %p238 = por %p236, %p237
    %s240 = sadd.s32 %s239, 1
    %p243 = scmp.eq.s32.totalorder %s16, 1
    %p244 = scmp.ne.s32.totalorder %s239, %s241
    %p245 = scmp.eq.s32.totalorder %s16, 0
    %p246 = por %p244, %p245
    %p247 = scmp.ne.s32.totalorder %s239, %s241
    %p248 = scmp.eq.s32.totalorder %s21, 1
    %p249 = por %p247, %p248
    %p250 = scmp.ne.s32.totalorder %s241, %s242
    %p251 = scmp.eq.s32.totalorder %s21, 0
    %p252 = por %p250, %p251
    %p253 = scmp.ne.s32.totalorder %s241, %s242
    %p254 = scmp.eq.s32.totalorder %s22, 1
    %p255 = por %p253, %p254
    %p257 = scmp.ne.s32.totalorder %s242, %s256
    %p258 = scmp.eq.s32.totalorder %s22, 0
    %p259 = por %p257, %p258
    %s260 = ssub.s32 %s23, %s35
    %s261 = ssub.s32 %s24, %s31
    %s262 = sor.u32 %s260, %s261
    %p263 = scmp.eq.s32.totalorder %s262, 0
    %s265 = sadd.s32 %s264, 1
    %s266 = scalar_select %p263, %s264, %s265
    %p269 = pneg %p263
    %p270 = scmp.eq.s32.totalorder %s16, 1
    %p271 = por %p269, %p270
    %p272 = scmp.ne.s32.totalorder %s264, %s267
    %p273 = scmp.eq.s32.totalorder %s16, 0
    %p274 = por %p272, %p273
    %p275 = scmp.ne.s32.totalorder %s264, %s267
    %p276 = scmp.eq.s32.totalorder %s21, 1
    %p277 = por %p275, %p276
    %p278 = scmp.ne.s32.totalorder %s267, %s268
    %p279 = scmp.eq.s32.totalorder %s21, 0
    %p280 = por %p278, %p279
    %p281 = scmp.ne.s32.totalorder %s267, %s268
    %p282 = scmp.eq.s32.totalorder %s22, 1
    %p283 = por %p281, %p282
    %p285 = scmp.ne.s32.totalorder %s268, %s284
    %p286 = scmp.eq.s32.totalorder %s22, 0
    %p287 = por %p285, %p286
    %p288 = scmp.le.s32.totalorder 1, %s16
    %p289 = scmp.lt.s32.totalorder %s16, 3
    %p290 = pnand %p288, %p289
    %p291 = pneg %p290
    // Predicated region
    $region9: #{_lambda_.10} parent=5 // pred_check
      _
    $region10: #{_lambda_.10} parent=5 // pred_check_branch
      %293 = sbr.rel (%p290) target = $region12
    $region11: #{_lambda_.10} parent=5 // pred_region
      %s294 = ssub.s32 %s16, 1
      // Predicated region
      $region13: #{_lambda_.10} parent=11 // pred_check
        %p295 = pneg %p105
      $region14: #{_lambda_.10} parent=11 // pred_check_branch
        %297 = sbr.rel (%p295) target = $region16
      $region15: #{_lambda_.10} parent=11 // pred_region
        _
      $region16: #{_lambda_.10} parent=11 // pred_fallthru
        _
      // Predicated region
      $region17: #{_lambda_.10} parent=11 // pred_check
        %p298 = pneg %p126
      $region18: #{_lambda_.10} parent=11 // pred_check_branch
        %300 = sbr.rel (%p298) target = $region20
      $region19: #{_lambda_.10} parent=11 // pred_region
        _
      $region20: #{_lambda_.10} parent=11 // pred_fallthru
        _
      // Predicated region
      $region21: #{_lambda_.10} parent=11 // pred_check
        %p301 = pneg %p147
      $region22: #{_lambda_.10} parent=11 // pred_check_branch
        %303 = sbr.rel (%p301) target = $region24
      $region23: #{_lambda_.10} parent=11 // pred_region
        _
      $region24: #{_lambda_.10} parent=11 // pred_fallthru
        _
      // Predicated region
      $region25: #{_lambda_.10} parent=11 // pred_check
        %p304 = pneg %p168
      $region26: #{_lambda_.10} parent=11 // pred_check_branch
        %306 = sbr.rel (%p304) target = $region28
      $region27: #{_lambda_.10} parent=11 // pred_region
        _
      $region28: #{_lambda_.10} parent=11 // pred_fallthru
        _
      // Predicated region
      $region29: #{_lambda_.10} parent=11 // pred_check
        %p307 = pneg %p189
      $region30: #{_lambda_.10} parent=11 // pred_check_branch
        %309 = sbr.rel (%p307) target = $region32
      $region31: #{_lambda_.10} parent=11 // pred_region
        _
      $region32: #{_lambda_.10} parent=11 // pred_fallthru
        _
      // Predicated region
      $region33: #{_lambda_.10} parent=11 // pred_check
        %p310 = pneg %p210
      $region34: #{_lambda_.10} parent=11 // pred_check_branch
        %312 = sbr.rel (%p310) target = $region36
      $region35: #{_lambda_.10} parent=11 // pred_region
        _
      $region36: #{_lambda_.10} parent=11 // pred_fallthru
        _
      // Predicated region
      $region37: #{_lambda_.10} parent=11 // pred_check
        %p313 = pneg %p231
      $region38: #{_lambda_.10} parent=11 // pred_check_branch
        %315 = sbr.rel (%p313) target = $region40
      $region39: #{_lambda_.10} parent=11 // pred_region
        _
      $region40: #{_lambda_.10} parent=11 // pred_fallthru
        _
      // Predicated region
      $region41: #{_lambda_.10} parent=11 // pred_check
        %p316 = pneg %p252
      $region42: #{_lambda_.10} parent=11 // pred_check_branch
        %318 = sbr.rel (%p316) target = $region44
      $region43: #{_lambda_.10} parent=11 // pred_region
        _
      $region44: #{_lambda_.10} parent=11 // pred_fallthru
        _
    $region12: #{_lambda_.10} parent=5 // pred_fallthru
      _
    %p319 = scmp.lt.s32.totalorder %s16, 2
    // Predicated region
    $region45: #{_lambda_.10} parent=5 // pred_check
      %p320 = pneg %p319
    $region46: #{_lambda_.10} parent=5 // pred_check_branch
      %322 = sbr.rel (%p320) target = $region48
    $region47: #{_lambda_.10} parent=5 // pred_region
      // Predicated region
      $region49: #{_lambda_.10} parent=47 // pred_check
        %p323 = pneg %p50
      $region50: #{_lambda_.10} parent=47 // pred_check_branch
        %325 = sbr.rel (%p323) target = $region52
      $region51: #{_lambda_.10} parent=47 // pred_region
        %p326 = scmp.lt.s32.totalorder %s23, 1
        %s327 = scalar_select %p326, %s23, 1
        %p328 = scmp.lt.s32.totalorder %s24, 0
        %s329 = scalar_select %p328, %s24, 0
        %s330 = sadd.s32 %s329, %s327
        %s331 = smul.addr %s330, 4
        %s332 = scalar_lea.vmem %s0, %s331
      $region52: #{_lambda_.10} parent=47 // pred_fallthru
        _
      // Predicated region
      $region53: #{_lambda_.10} parent=47 // pred_check
        %p333 = pneg %p78
      $region54: #{_lambda_.10} parent=47 // pred_check_branch
        %335 = sbr.rel (%p333) target = $region56
      $region55: #{_lambda_.10} parent=47 // pred_region
        %p336 = scmp.lt.s32.totalorder %s23, 1
        %s337 = scalar_select %p336, %s23, 1
        %p338 = scmp.lt.s32.totalorder %s24, 0
        %s339 = scalar_select %p338, %s24, 0
        %s340 = smul.addr %s337, 4
        %s341 = sadd.s32 %s339, %s340
        %s342 = smul.addr %s341, 4
        %s343 = scalar_lea.vmem %s1, %s342
      $region56: #{_lambda_.10} parent=47 // pred_fallthru
        _
    $region48: #{_lambda_.10} parent=5 // pred_fallthru
      _
    %p344 = scmp.le.s32.totalorder 1, %s16
    %p345 = scmp.lt.s32.totalorder %s16, 3
    %p346 = pnand %p344, %p345
    %p347 = pneg %p346
    // Predicated region
    $region57: #{_lambda_.10} parent=5 // pred_check
      _
    $region58: #{_lambda_.10} parent=5 // pred_check_branch
      %349 = sbr.rel (%p346) target = $region60
    $region59: #{_lambda_.10} parent=5 // pred_region
      %s350 = ssub.s32 %s16, 1
      %p351 = scmp.lt.s32.totalorder %s25, 1
      %s352 = scalar_select %p351, %s25, 1
      %p353 = scmp.lt.s32.totalorder %s26, 0
      %s354 = scalar_select %p353, %s26, 0
      %s355 = sadd.s32 %s354, %s352
      %s356 = smul.addr %s355, 4
      %s357 = scalar_lea.vmem %s0, %s356
      %p358 = pneg %p56
      %p359 = pneg %p53
      %p360 = scmp.lt.s32.totalorder %s25, 1
      %s361 = scalar_select %p360, %s25, 1
      %p362 = scmp.lt.s32.totalorder %s26, 0
      %s363 = scalar_select %p362, %s26, 0
      %s364 = smul.addr %s361, 4
      %s365 = sadd.s32 %s363, %s364
      %s366 = smul.addr %s365, 4
      %s367 = scalar_lea.vmem %s1, %s366
      %p368 = pneg %p84
      %p369 = pneg %p81
      %p370 = pneg %p105
      %p371 = pneg %p102
      %p372 = pneg %p126
      %p373 = pneg %p123
      %p374 = pneg %p147
      %p375 = pneg %p144
      %p376 = pneg %p168
      %p377 = pneg %p165
      %p378 = pneg %p189
      %p379 = pneg %p186
      %p380 = pneg %p210
      %p381 = pneg %p207
      %p382 = pneg %p231
      %p383 = pneg %p228
      %p384 = pneg %p252
      %p385 = pneg %p249
      %p386 = pneg %p280
      %p387 = pneg %p277
      %p388 = scmp.lt.s32.totalorder %s25, 1
      %s389 = scalar_select %p388, %s25, 1
      %p390 = scmp.lt.s32.totalorder %s26, 0
      %s391 = scalar_select %p390, %s26, 0
      %s392 = sadd.s32 %s391, %s389
      %s393 = smul.addr %s392, 4
      %s394 = scalar_lea.vmem %s10, %s393
      %p395 = scmp.lt.s32.totalorder %s25, 1
      %s396 = scalar_select %p395, %s25, 1
      %p397 = scmp.lt.s32.totalorder %s26, 0
      %s398 = scalar_select %p397, %s26, 0
      %s399 = sadd.s32 %s398, %s396
      %s400 = smul.addr %s399, 4
      %s401 = scalar_lea.vmem %s0, %s400
      %p402 = scmp.lt.s32.totalorder %s25, 1
      %s403 = scalar_select %p402, %s25, 1
      %p404 = scmp.lt.s32.totalorder %s26, 0
      %s405 = scalar_select %p404, %s26, 0
      %s406 = smul.addr %s403, 4
      %s407 = sadd.s32 %s405, %s406
      %s408 = smul.addr %s407, 4
      %s409 = scalar_lea.vmem %s1, %s408
      %p410 = scmp.lt.s32.totalorder %s25, 1
      %s411 = scalar_select %p410, %s25, 1
      %p412 = scmp.lt.s32.totalorder %s26, 0
      %s413 = scalar_select %p412, %s26, 0
      %s414 = sadd.s32 %s413, %s411
      %s415 = smul.addr %s414, 4
      %s416 = scalar_lea.vmem %s10, %s415
      %v418 = vld [vmem:[%s401] sm:$0xf]
      %v419 = vunpack.c.l.bf16 %v418
      %v420 = vld [vmem:[%s409] sm:$0xf]
      %v421 = vld [vmem:[%s409 + $0x4] sm:$0xf]
      %v422 = vld [vmem:[%s409 + $0x8] sm:$0xf]
      %v423 = vld [vmem:[%s409 + $0xc] sm:$0xf]
      %424 = vxpose.xlu0.c.b16.start [1/8] %v420, 128
      %425 = vxpose.xlu0.c.b16.cont [2/8] 0, 128
      %426 = vxpose.xlu0.c.b16.cont [3/8] 0, 128
      %427 = vxpose.xlu0.c.b16.cont [4/8] 0, 128
      %428 = vxpose.xlu0.c.b16.cont [5/8] 0, 128
      %429 = vxpose.xlu0.c.b16.cont [6/8] 0, 128
      %430 = vxpose.xlu0.c.b16.cont [7/8] 0, 128
      %431 = vxpose.xlu0.c.b16.end [8/8] 0, 128
      %v432 = vpop.trf.xlu0
      %v433 = vpop.trf.xlu0
      %v434 = vpop.trf.xlu0
      %v435 = vpop.trf.xlu0
      %v436 = vpop.trf.xlu0
      %v437 = vpop.trf.xlu0
      %v438 = vpop.trf.xlu0
      %v439 = vpop.trf.xlu0
      %440 = vxpose.xlu0.c.b16.start [1/8] %v421, 128
      %441 = vxpose.xlu0.c.b16.cont [2/8] 0, 128
      %442 = vxpose.xlu0.c.b16.cont [3/8] 0, 128
      %443 = vxpose.xlu0.c.b16.cont [4/8] 0, 128
      %444 = vxpose.xlu0.c.b16.cont [5/8] 0, 128
      %445 = vxpose.xlu0.c.b16.cont [6/8] 0, 128
      %446 = vxpose.xlu0.c.b16.cont [7/8] 0, 128
      %447 = vxpose.xlu0.c.b16.end [8/8] 0, 128
      %v448 = vpop.trf.xlu0
      %v449 = vpop.trf.xlu0
      %v450 = vpop.trf.xlu0
      %v451 = vpop.trf.xlu0
      %v452 = vpop.trf.xlu0
      %v453 = vpop.trf.xlu0
      %v454 = vpop.trf.xlu0
      %v455 = vpop.trf.xlu0
      %456 = vxpose.xlu0.c.b16.start [1/8] %v422, 128
      %457 = vxpose.xlu0.c.b16.cont [2/8] 0, 128
      %458 = vxpose.xlu0.c.b16.cont [3/8] 0, 128
      %459 = vxpose.xlu0.c.b16.cont [4/8] 0, 128
      %460 = vxpose.xlu0.c.b16.cont [5/8] 0, 128
      %461 = vxpose.xlu0.c.b16.cont [6/8] 0, 128
      %462 = vxpose.xlu0.c.b16.cont [7/8] 0, 128
      %463 = vxpose.xlu0.c.b16.end [8/8] 0, 128
      %v464 = vpop.trf.xlu0
      %v465 = vpop.trf.xlu0
      %v466 = vpop.trf.xlu0
      %v467 = vpop.trf.xlu0
      %v468 = vpop.trf.xlu0
      %v469 = vpop.trf.xlu0
      %v470 = vpop.trf.xlu0
      %v471 = vpop.trf.xlu0
      %472 = vxpose.xlu0.c.b16.start [1/8] %v423, 128
      %473 = vxpose.xlu0.c.b16.cont [2/8] 0, 128
      %474 = vxpose.xlu0.c.b16.cont [3/8] 0, 128
      %475 = vxpose.xlu0.c.b16.cont [4/8] 0, 128
      %476 = vxpose.xlu0.c.b16.cont [5/8] 0, 128
      %477 = vxpose.xlu0.c.b16.cont [6/8] 0, 128
      %478 = vxpose.xlu0.c.b16.cont [7/8] 0, 128
      %479 = vxpose.xlu0.c.b16.end [8/8] 0, 128
      %v480 = vpop.trf.xlu0
      %v481 = vpop.trf.xlu0
      %v482 = vpop.trf.xlu0
      %v483 = vpop.trf.xlu0
      %v484 = vpop.trf.xlu0
      %v485 = vpop.trf.xlu0
      %v486 = vpop.trf.xlu0
      %v487 = vpop.trf.xlu0
      %v492 = vunpack.c.l.b16 %v432
      %v493 = vunpack.c.l.b16 %v448
      %v494 = vunpack.c.l.b16 %v464
      %v495 = vunpack.c.l.b16 %v480
      %v496 = vpack.c.b16 %v493, %v492
      %v497 = vpack.c.b16 %v495, %v494
      %500 = vxpose.xlu0.c.b16.start [1/8] %v496, 128
      %501 = vxpose.xlu0.c.b16.cont [2/8] %v497, 128
      %502 = vxpose.xlu0.c.b16.cont [3/8] 0, 128
      %503 = vxpose.xlu0.c.b16.cont [4/8] 0, 128
      %504 = vxpose.xlu0.c.b16.cont [5/8] 0, 128
      %505 = vxpose.xlu0.c.b16.cont [6/8] 0, 128
      %506 = vxpose.xlu0.c.b16.cont [7/8] 0, 128
      %507 = vxpose.xlu0.c.b16.end [8/8] 0, 128
      %v508 = vpop.trf.xlu0
      %v509 = vpop.trf.xlu0
      %v510 = vpop.trf.xlu0
      %v511 = vpop.trf.xlu0
      %v512 = vpop.trf.xlu0
      %v513 = vpop.trf.xlu0
      %v514 = vpop.trf.xlu0
      %v515 = vpop.trf.xlu0
      %v516 = vld [vmem:[%s2] sm:$0xf]
      %v517 = vld [vmem:[%s2 + $0x4] sm:$0xf]
      %v518 = vld [vmem:[%s2 + $0x8] sm:$0xf]
      %v519 = vld [vmem:[%s2 + $0xc] sm:$0xf]
      %v520 = vld [vmem:[%s3] sm:$0x1]
      %v522 = vlaneseq
      %v523 = vshrl.u32 %v522, 7
      %v524 = vsub.s32 0, %v523
      %v525 = vrot.slane %v520, %v524
      %v531 = vunpack.c.l.b16 %v516
      %v532 = vunpack.c.l.b16 %v517
      %v533 = vunpack.c.l.b16 %v518
      %v534 = vunpack.c.l.b16 %v519
      %v535 = vpack.c.b16 %v532, %v531
      %v536 = vpack.c.b16 %v534, %v533
      %vm539 = vcmask 261120
      %v541 = vsel %vm539, %v508, 0
      %543 = vmatprep.subr.bf16.mxu0 0
      %544 = vmatpush1.bf16.msra.mxu0 %v535
      %545 = vmatprep.subr.bf16.mxu0 0
      %546 = vmatpush1.bf16.msra.mxu0 %v536
      %547 = vmatprep.subr.bf16.mxu0 0
      %548 = vmatpush1.bf16.msra.mxu0 0
      %549 = vmatprep.subr.bf16.mxu0 0
      %550 = vmatpush1.bf16.msra.mxu0 0
      %551 = vmatprep.subr.bf16.mxu0 0
      %552 = vmatpush1.bf16.msra.mxu0 0
      %553 = vmatprep.subr.bf16.mxu0 0
      %554 = vmatpush1.bf16.msra.mxu0 0
      %555 = vmatprep.subr.bf16.mxu0 0
      %556 = vmatpush1.bf16.msra.mxu0 0
      %557 = vmatprep.subr.bf16.mxu0 0
      %558 = vmatpush1.bf16.msra.mxu0 0
      %559 = vmatprep.subr.bf16.mxu0 0
      %560 = vmatpush1.bf16.msra.mxu0 0
      %561 = vmatprep.subr.bf16.mxu0 0
      %562 = vmatpush1.bf16.msra.mxu0 0
      %563 = vmatprep.subr.bf16.mxu0 0
      %564 = vmatpush1.bf16.msra.mxu0 0
      %565 = vmatprep.subr.bf16.mxu0 0
      %566 = vmatpush1.bf16.msra.mxu0 0
      %567 = vmatprep.subr.bf16.mxu0 0
      %568 = vmatpush1.bf16.msra.mxu0 0
      %569 = vmatprep.subr.bf16.mxu0 0
      %570 = vmatpush1.bf16.msra.mxu0 0
      %571 = vmatprep.subr.bf16.mxu0 0
      %572 = vmatpush1.bf16.msra.mxu0 0
      %573 = vmatprep.subr.bf16.mxu0 0
      %574 = vmatpush1.bf16.msra.mxu0 0
      %575 = vmatprep.mubr.bf16.mxu0 0
      %576 = vmatmul.mubr.bf16.gmra.mrb[0].mxu0 %v541
      %v577 = vpop.f32.mrb[0].mxu0
      %v578 = vadd.f32 %v525, %v577
      %v579 = vpop.f32.mrb[0].mxu0
      %v580 = vpop.f32.mrb[0].mxu0
      %v581 = vpop.f32.mrb[0].mxu0
      %582 = vdwg.mxu0
      %v583 = vadd.f32 %v419, %v578
      %v584 = vld [vmem:[%s4] sm:$0x1]
      %v585 = vld [vmem:[%s5] sm:$0x1]
      %v586 = vsel %vm539, %v583, 0.0
      %587 = vadd.xlane.f32.xlu0 %v586
      %v588 = vpop.xlane.xlu0 %587
      %v589 = vrcp.pop 32.0
      %v590 = vmul.f32 %v588, %v589
      %v591 = vsub.f32 %v583, %v590
      %v592 = vmul.f32 %v591, %v591
      %v593 = vsel %vm539, %v592, 0.0
      %594 = vadd.xlane.f32.xlu0 %v593
      %v595 = vpop.xlane.xlu0 %594
      %v596 = vmul.f32 %v595, %v589
      %v597 = vadd.f32 %v596, 1e-05
      %v598 = vrsqrt.pop %v597
      %v599 = vmul.f32 %v591, %v598
      %v601 = vlaneseq
      %v602 = vshrl.u32 %v601, 7
      %v603 = vsub.s32 0, %v602
      %v604 = vrot.slane %v584, %v603
      %v606 = vmul.f32 %v599, %v604
      %v608 = vlaneseq
      %v609 = vshrl.u32 %v608, 7
      %v610 = vsub.s32 0, %v609
      %v611 = vrot.slane %v585, %v610
      %v613 = vadd.f32 %v606, %v611
      %v614 = vpack.c.bf16 %v613, %v613
      %v615 = vld [vmem:[%s6] sm:$0xf]
      %v616 = vld [vmem:[%s6 + $0x4] sm:$0xf]
      %v617 = vld [vmem:[%s6 + $0x8] sm:$0xf]
      %v618 = vld [vmem:[%s6 + $0xc] sm:$0xf]
      %v619 = vld [vmem:[%s7] sm:$0x1]
      %v621 = vlaneseq
      %v622 = vshrl.u32 %v621, 7
      %v623 = vsub.s32 0, %v622
      %v624 = vrot.slane %v619, %v623
      %v630 = vunpack.c.l.b16 %v615
      %v631 = vunpack.c.l.b16 %v616
      %v632 = vunpack.c.l.b16 %v617
      %v633 = vunpack.c.l.b16 %v618
      %v634 = vpack.c.b16 %v631, %v630
      %v635 = vpack.c.b16 %v633, %v632
      %v639 = vsel %vm539, %v614, 0
      %641 = vmatprep.subr.bf16.mxu0 0
      %642 = vmatpush1.bf16.msra.mxu0 %v634
      %643 = vmatprep.subr.bf16.mxu0 0
      %644 = vmatpush1.bf16.msra.mxu0 %v635
      %645 = vmatprep.subr.bf16.mxu0 0
      %646 = vmatpush1.bf16.msra.mxu0 0
      %647 = vmatprep.subr.bf16.mxu0 0
      %648 = vmatpush1.bf16.msra.mxu0 0
      %649 = vmatprep.subr.bf16.mxu0 0
      %650 = vmatpush1.bf16.msra.mxu0 0
      %651 = vmatprep.subr.bf16.mxu0 0
      %652 = vmatpush1.bf16.msra.mxu0 0
      %653 = vmatprep.subr.bf16.mxu0 0
      %654 = vmatpush1.bf16.msra.mxu0 0
      %655 = vmatprep.subr.bf16.mxu0 0
      %656 = vmatpush1.bf16.msra.mxu0 0
      %657 = vmatprep.subr.bf16.mxu0 0
      %658 = vmatpush1.bf16.msra.mxu0 0
      %659 = vmatprep.subr.bf16.mxu0 0
      %660 = vmatpush1.bf16.msra.mxu0 0
      %661 = vmatprep.subr.bf16.mxu0 0
      %662 = vmatpush1.bf16.msra.mxu0 0
      %663 = vmatprep.subr.bf16.mxu0 0
      %664 = vmatpush1.bf16.msra.mxu0 0
      %665 = vmatprep.subr.bf16.mxu0 0
      %666 = vmatpush1.bf16.msra.mxu0 0
      %667 = vmatprep.subr.bf16.mxu0 0
      %668 = vmatpush1.bf16.msra.mxu0 0
      %669 = vmatprep.subr.bf16.mxu0 0
      %670 = vmatpush1.bf16.msra.mxu0 0
      %671 = vmatprep.subr.bf16.mxu0 0
      %672 = vmatpush1.bf16.msra.mxu0 0
      %673 = vmatprep.mubr.bf16.mxu0 0
      %674 = vmatmul.mubr.bf16.gmra.mrb[0].mxu0 %v639
      %v675 = vpop.f32.mrb[0].mxu0
      %v676 = vadd.f32 %v624, %v675
      %v677 = vpop.f32.mrb[0].mxu0
      %v678 = vpop.f32.mrb[0].mxu0
      %v679 = vpop.f32.mrb[0].mxu0
      %680 = vdwg.mxu0
      %v681 = vmul.f32 %v676, 0.5
      %v682 = vmul.f32 %v676, 0.70710677
      %v683 = verf.f32.pop %v682
      %v684 = vadd.f32 %v683, 1.0
      %v685 = vmul.f32 %v681, %v684
      %v686 = vpack.c.bf16 %v685, %v685
      %v687 = vld [vmem:[%s8] sm:$0xf]
      %v688 = vld [vmem:[%s8 + $0x4] sm:$0xf]
      %v689 = vld [vmem:[%s8 + $0x8] sm:$0xf]
      %v690 = vld [vmem:[%s8 + $0xc] sm:$0xf]
      %v691 = vld [vmem:[%s8 + $0x10] sm:$0xf]
      %v692 = vld [vmem:[%s8 + $0x14] sm:$0xf]
      %v693 = vld [vmem:[%s8 + $0x18] sm:$0xf]
      %v694 = vld [vmem:[%s8 + $0x1c] sm:$0xf]
      %v695 = vld [vmem:[%s8 + $0x20] sm:$0xf]
      %v696 = vld [vmem:[%s8 + $0x24] sm:$0xf]
      %v697 = vld [vmem:[%s8 + $0x28] sm:$0xf]
      %v698 = vld [vmem:[%s8 + $0x2c] sm:$0xf]
      %v699 = vld [vmem:[%s8 + $0x30] sm:$0xf]
      %v700 = vld [vmem:[%s8 + $0x34] sm:$0xf]
      %v701 = vld [vmem:[%s8 + $0x38] sm:$0xf]
      %v702 = vld [vmem:[%s8 + $0x3c] sm:$0xf]
      %v703 = vld [vmem:[%s9] sm:$0x1]
      %v705 = vlaneseq
      %v706 = vshrl.u32 %v705, 7
      %v707 = vsub.s32 0, %v706
      %v708 = vrot.slane %v703, %v707
      %v726 = vunpack.c.l.b16 %v687
      %v727 = vunpack.c.l.b16 %v688
      %v728 = vunpack.c.l.b16 %v689
      %v729 = vunpack.c.l.b16 %v690
      %v730 = vunpack.c.l.b16 %v691
      %v731 = vunpack.c.l.b16 %v692
      %v732 = vunpack.c.l.b16 %v693
      %v733 = vunpack.c.l.b16 %v694
      %v734 = vunpack.c.l.b16 %v695
      %v735 = vunpack.c.l.b16 %v696
      %v736 = vunpack.c.l.b16 %v697
      %v737 = vunpack.c.l.b16 %v698
      %v738 = vunpack.c.l.b16 %v699
      %v739 = vunpack.c.l.b16 %v700
      %v740 = vunpack.c.l.b16 %v701
      %v741 = vunpack.c.l.b16 %v702
      %v742 = vpack.c.b16 %v727, %v726
      %v743 = vpack.c.b16 %v729, %v728
      %v744 = vpack.c.b16 %v731, %v730
      %v745 = vpack.c.b16 %v733, %v732
      %v746 = vpack.c.b16 %v735, %v734
      %v747 = vpack.c.b16 %v737, %v736
      %v748 = vpack.c.b16 %v739, %v738
      %v749 = vpack.c.b16 %v741, %v740
      %758 = vmatprep.subr.bf16.mxu0 0
      %759 = vmatpush1.bf16.msra.mxu0 %v742
      %760 = vmatprep.subr.bf16.mxu0 0
      %761 = vmatpush1.bf16.msra.mxu0 %v743
      %762 = vmatprep.subr.bf16.mxu0 0
      %763 = vmatpush1.bf16.msra.mxu0 %v744
      %764 = vmatprep.subr.bf16.mxu0 0
      %765 = vmatpush1.bf16.msra.mxu0 %v745
      %766 = vmatprep.subr.bf16.mxu0 0
      %767 = vmatpush1.bf16.msra.mxu0 %v746
      %768 = vmatprep.subr.bf16.mxu0 0
      %769 = vmatpush1.bf16.msra.mxu0 %v747
      %770 = vmatprep.subr.bf16.mxu0 0
      %771 = vmatpush1.bf16.msra.mxu0 %v748
      %772 = vmatprep.subr.bf16.mxu0 0
      %773 = vmatpush1.bf16.msra.mxu0 %v749
      %774 = vmatprep.subr.bf16.mxu0 0
      %775 = vmatpush1.bf16.msra.mxu0 0
      %776 = vmatprep.subr.bf16.mxu0 0
      %777 = vmatpush1.bf16.msra.mxu0 0
      %778 = vmatprep.subr.bf16.mxu0 0
      %779 = vmatpush1.bf16.msra.mxu0 0
      %780 = vmatprep.subr.bf16.mxu0 0
      %781 = vmatpush1.bf16.msra.mxu0 0
      %782 = vmatprep.subr.bf16.mxu0 0
      %783 = vmatpush1.bf16.msra.mxu0 0
      %784 = vmatprep.subr.bf16.mxu0 0
      %785 = vmatpush1.bf16.msra.mxu0 0
      %786 = vmatprep.subr.bf16.mxu0 0
      %787 = vmatpush1.bf16.msra.mxu0 0
      %788 = vmatprep.subr.bf16.mxu0 0
      %789 = vmatpush1.bf16.msra.mxu0 0
      %790 = vmatprep.mubr.bf16.mxu0 0
      %791 = vmatmul.mubr.bf16.gmra.mrb[0].mxu0 %v686
      %v792 = vpop.f32.mrb[0].mxu0
      %v793 = vadd.f32 %v708, %v792
      %v794 = vpop.f32.mrb[0].mxu0
      %v795 = vpop.f32.mrb[0].mxu0
      %v796 = vpop.f32.mrb[0].mxu0
      %797 = vdwg.mxu0
      %v798 = vadd.f32 %v583, %v793
      %v799 = vpack.c.bf16 %v798, %v798
      %vm800 = vcmask 257024
      %801 = vst.msk [vmem:[%s416] sm:$0xf] %vm800, %v799
      %p802 = scmp.lt.s32.totalorder %s25, 1
      %s803 = scalar_select %p802, %s25, 1
      %p804 = scmp.lt.s32.totalorder %s26, 0
      %s805 = scalar_select %p804, %s26, 0
      %s806 = sadd.s32 %s805, %s803
      %s807 = smul.addr %s806, 4
      %s808 = scalar_lea.vmem %s10, %s807
      // Predicated region
      $region61: #{_lambda_.10} parent=59 // pred_check
        %p809 = pneg %p277
      $region62: #{_lambda_.10} parent=59 // pred_check_branch
        %811 = sbr.rel (%p809) target = $region64
      $region63: #{_lambda_.10} parent=59 // pred_region
        _
      $region64: #{_lambda_.10} parent=59 // pred_fallthru
        _
    $region60: #{_lambda_.10} parent=5 // pred_fallthru
      _
    %p812 = scmp.le.s32.totalorder 2, %s16
    // Predicated region
    $region65: #{_lambda_.10} parent=5 // pred_check
      %p813 = pneg %p812
    $region66: #{_lambda_.10} parent=5 // pred_check_branch
      %815 = sbr.rel (%p813) target = $region68
    $region67: #{_lambda_.10} parent=5 // pred_region
      %s816 = ssub.s32 %s16, 2
      // Predicated region
      $region69: #{_lambda_.10} parent=67 // pred_check
        %p817 = pneg %p283
      $region70: #{_lambda_.10} parent=67 // pred_check_branch
        %819 = sbr.rel (%p817) target = $region72
      $region71: #{_lambda_.10} parent=67 // pred_region
        %p820 = scmp.lt.s32.totalorder %s27, 1
        %s821 = scalar_select %p820, %s27, 1
        %p822 = scmp.lt.s32.totalorder %s28, 0
        %s823 = scalar_select %p822, %s28, 0
        %s824 = sadd.s32 %s823, %s821
        %s825 = smul.addr %s824, 4
        %s826 = scalar_lea.vmem %s10, %s825
      $region72: #{_lambda_.10} parent=67 // pred_fallthru
        _
    $region68: #{_lambda_.10} parent=5 // pred_fallthru
      _
  $region6: #{_lambda_.10} parent=0 // loop_footer
    %s20 = sadd.s32 1, %s16
  $region7: #{_lambda_.10} parent=0 // loop_footer_branch
    %15 = sbr.rel target = $region3
  $region8: #{_lambda_.10} parent=0 // loop_exit
    _

// kernel: _lambda_.15
$region0: #{_lambda_.15}
  #allocation0 [shape = 'u32[]', space=smem, size = 0x4, offset = 0x4, fixed_abs, tag = 'smem constant byte address 0x4 - core index']
  #allocation1 [shape = 'u32[144,128]{1,0:T(1,128)}', space=vmem, size = 0x12000, scoped, tag = 'internal scratch']
  %s0 = inlined_call_operand.vmem [shape: bf16[16,32], index: 0, kind: input, shape index: {}]
  %s1 = inlined_call_operand.vmem [shape: bf16[32,64], index: 1, kind: input, shape index: {}]
  %s2 = inlined_call_operand.hbm [shape: f32[16,64], index: 2, kind: output, shape index: {}]
  %s3 = sld [smem:[#allocation0]]
  $region18: #{_lambda_.15} parent=0
    _
  %s5 = ssub.s32 1, %s3
  %s6 = scalar_select 0, %s5, %s3
  $region1: #{_lambda_.15} parent=0
    #allocation2 [shape = 'u8[8192]{0}', space=vmem, size = 0x2000, scoped, tag = 'output window, operand 0, single buffered']
    #allocation3 [shape = 's32[1]{0}', space=sflag, size = 0x4, scoped, tag = 'scoped memory for _lambda_.15']
    %7 = vsyncpa [#allocation3], 0
    // Predicated region
    $region2: #{_lambda_.15} parent=1 // pred_check
      _
    $region3: #{_lambda_.15} parent=1 // pred_check_branch
      %9 = sbr.rel (0) target = $region5
    $region4: #{_lambda_.15} parent=1 // pred_region
      _
    $region5: #{_lambda_.15} parent=1 // pred_fallthru
      _
    // Predicated region
    $region6: #{_lambda_.15} parent=1 // pred_check
      _
    $region7: #{_lambda_.15} parent=1 // pred_check_branch
      %11 = sbr.rel (0) target = $region9
    $region8: #{_lambda_.15} parent=1 // pred_region
      _
    $region9: #{_lambda_.15} parent=1 // pred_fallthru
      _
    %v13 = vld [vmem:[%s0] sm:$0xf]
    %v14 = vld [vmem:[%s0 + $0x4] sm:$0xf]
    %v15 = vld [vmem:[%s1] sm:$0xf]
    %v16 = vld [vmem:[%s1 + $0x4] sm:$0xf]
    %v17 = vld [vmem:[%s1 + $0x8] sm:$0xf]
    %v18 = vld [vmem:[%s1 + $0xc] sm:$0xf]
    %v21 = vunpack.c.l.b16 %v13
    %v22 = vunpack.c.l.b16 %v14
    %v23 = vpack.c.b16 %v22, %v21
    %v28 = vunpack.c.l.b16 %v15
    %v29 = vunpack.c.l.b16 %v16
    %v30 = vunpack.c.l.b16 %v17
    %v31 = vunpack.c.l.b16 %v18
    %v32 = vpack.c.b16 %v29, %v28
    %v33 = vpack.c.b16 %v31, %v30
    %vm36 = vcmask 261120
    %v38 = vsel %vm36, %v23, 0
    %40 = vmatprep.subr.bf16.mxu0 0
    %41 = vmatpush1.bf16.msra.mxu0 %v32
    %42 = vmatprep.subr.bf16.mxu0 0
    %43 = vmatpush1.bf16.msra.mxu0 %v33
    %44 = vmatprep.subr.bf16.mxu0 0
    %45 = vmatpush1.bf16.msra.mxu0 0
    %46 = vmatprep.subr.bf16.mxu0 0
    %47 = vmatpush1.bf16.msra.mxu0 0
    %48 = vmatprep.subr.bf16.mxu0 0
    %49 = vmatpush1.bf16.msra.mxu0 0
    %50 = vmatprep.subr.bf16.mxu0 0
    %51 = vmatpush1.bf16.msra.mxu0 0
    %52 = vmatprep.subr.bf16.mxu0 0
    %53 = vmatpush1.bf16.msra.mxu0 0
    %54 = vmatprep.subr.bf16.mxu0 0
    %55 = vmatpush1.bf16.msra.mxu0 0
    %56 = vmatprep.subr.bf16.mxu0 0
    %57 = vmatpush1.bf16.msra.mxu0 0
    %58 = vmatprep.subr.bf16.mxu0 0
    %59 = vmatpush1.bf16.msra.mxu0 0
    %60 = vmatprep.subr.bf16.mxu0 0
    %61 = vmatpush1.bf16.msra.mxu0 0
    %62 = vmatprep.subr.bf16.mxu0 0
    %63 = vmatpush1.bf16.msra.mxu0 0
    %64 = vmatprep.subr.bf16.mxu0 0
    %65 = vmatpush1.bf16.msra.mxu0 0
    %66 = vmatprep.subr.bf16.mxu0 0
    %67 = vmatpush1.bf16.msra.mxu0 0
    %68 = vmatprep.subr.bf16.mxu0 0
    %69 = vmatpush1.bf16.msra.mxu0 0
    %70 = vmatprep.subr.bf16.mxu0 0
    %71 = vmatpush1.bf16.msra.mxu0 0
    %72 = vmatprep.mubr.bf16.mxu0 0
    %73 = vmatmul.mubr.bf16.gmra.mrb[0].mxu0 %v38
    %v74 = vpop.f32.mrb[0].mxu0
    %v75 = vadd.f32 0.0, %v74
    %v76 = vpop.f32.mrb[0].mxu0
    %v77 = vpop.f32.mrb[0].mxu0
    %v78 = vadd.f32 0.0, %v77
    %v79 = vpop.f32.mrb[0].mxu0
    %80 = vdwg.mxu0
    %vm81 = vcmask 523264
    %82 = vst.msk [vmem:[#allocation2] sm:$0xff] %vm81, %v75
    %83 = vst.msk [vmem:[#allocation2 + $0x8] sm:$0xff] %vm81, %v78
    // Predicated region
    $region10: #{_lambda_.15} parent=1 // pred_check
      _
    $region11: #{_lambda_.15} parent=1 // pred_check_branch
      %85 = sbr.rel (0) target = $region13
    $region12: #{_lambda_.15} parent=1 // pred_region
      %s87 = ssub.s32 256, 256
      %88 = vsyncadd [#allocation3], %s87
      %s89 = sshll.u32 [#allocation2], 4
      %s90 = int_to_ptr.vmem [resolvable:$true] %s89
      %95 = dma.vmem_to_hbm [thread:$0]  %s90, 256, %s2, [#allocation3], 128, 128, 8
    $region13: #{_lambda_.15} parent=1 // pred_fallthru
      _
    // Predicated region
    $region14: #{_lambda_.15} parent=1 // pred_check
      _
    $region15: #{_lambda_.15} parent=1 // pred_check_branch
      %97 = sbr.rel (0) target = $region17
    $region16: #{_lambda_.15} parent=1 // pred_region
      %98 = dma.done [#allocation3], 256
    $region17: #{_lambda_.15} parent=1 // pred_fallthru
      _
    %99 = vsyncpa [#allocation3], 1

</llo_original>
